<compile_context>
chip_gen: v6e
topology: v6e:2x2x1
jax: 0.10.0
libtpu: 0.0.40
codegen_flags: <defaults>
</compile_context>

<pallas_src>
import functools

import numpy as np
import jax
import jax.numpy as jnp
from jax.experimental import pallas as pl
from jax.experimental.pallas import tpu as pltpu


TB_MAX = 64                 # max batch-tile per grid step (multiple of 16)
_LAYERS = (                 # (H_in, W_in, Cin, Cout) of the three ConvTranspose2d layers
    (4, 4, 64, 32),
    (8, 8, 32, 32),
    (16, 16, 32, 1),
)


# ----------------------------------------------------------------------------
# In-kernel building blocks
# ----------------------------------------------------------------------------
def _deconv_layer(g_ref, t_ref, bias_ref, *, H_in, tb, relu, emit):
    """One ConvTranspose2d(k=4, s=2, p=1) layer on the (h*b, w*c) row layout.

    g_ref:    ((H_in+2)*tb, W_in*Cin) bf16   h-padded input, rows ordered (h_pad, b)
    t_ref:    (4, W_in*Cin, 2*W_in*Cout)     block-Toeplitz weights, one per kh tap
    bias_ref: (1, 2*W_in*Cout)               f32
    emit(r, y): consume the full phase-r result y (f32, (H_in*tb, 2*W_in*Cout));
                output spatial row oh = 2*p + r lives at y[p*tb:(p+1)*tb, :].
    """
    HT = H_in * tb
    bias = bias_ref[...]
    # Output row oh = 2p + r:
    #   r=0 <- (kh=1, ih=p)   + (kh=3, ih=p-1)  -> h-shifts (1, 0)
    #   r=1 <- (kh=0, ih=p+1) + (kh=2, ih=p)    -> h-shifts (2, 1)
    taps = (((1, 1), (0, 3)), ((2, 0), (1, 2)))
    for r in range(2):
        (sa, ka), (sb, kb) = taps[r]
        y = (jnp.dot(g_ref[sa * tb:sa * tb + HT, :], t_ref[ka],
                     preferred_element_type=jnp.float32)
             + jnp.dot(g_ref[sb * tb:sb * tb + HT, :], t_ref[kb],
                       preferred_element_type=jnp.float32)
             + bias)
        if relu:
            y = jnp.maximum(y, 0.0)
        emit(r, y)


def _scatter_emit(dst_ref, H_in, tb):
    """Scatter a phase result into the next layer's h-padded bf16 scratch."""
    def emit(r, y):
        yb = y.astype(jnp.bfloat16)                 # single f32->bf16 cast per phase
        for p in range(H_in):
            oh = 2 * p + r
            dst_ref[(oh + 1) * tb:(oh + 2) * tb, :] = yb[p * tb:(p + 1) * tb, :]
    return emit


def decoder_kernel(z_ref, w1_ref, b1_ref, w2_ref, b2_ref,
                   t1_ref, c1_ref, t2_ref, c2_ref, t3_ref, c3_ref,
                   out_ref, g1_ref, g2_ref, g3_ref, *, tb):
    f32 = jnp.float32
    bf16 = jnp.bfloat16

    # ---- fc1 + fc2 (+ReLU); fc2 columns pre-permuted to (h, w, c) order ------
    zb = z_ref[...].astype(bf16)
    h1 = jnp.dot(zb, w1_ref[...], preferred_element_type=f32) + b1_ref[...]
    h1 = jnp.maximum(h1, 0.0).astype(bf16)
    h2 = jnp.dot(h1, w2_ref[...], preferred_element_type=f32) + b2_ref[...]
    h2 = jnp.maximum(h2, 0.0).astype(bf16)          # (tb, 1024), cols = (h, w, c)

    # ---- zero padding rows of all h-padded scratch buffers -------------------
    zpad1 = jnp.zeros((tb, g1_ref.shape[1]), bf16)
    g1_ref[0:tb, :] = zpad1
    g1_ref[5 * tb:6 * tb, :] = zpad1
    zpad2 = jnp.zeros((tb, g2_ref.shape[1]), bf16)
    g2_ref[0:tb, :] = zpad2
    g2_ref[9 * tb:10 * tb, :] = zpad2
    zpad3 = jnp.zeros((tb, g3_ref.shape[1]), bf16)
    g3_ref[0:tb, :] = zpad3
    g3_ref[17 * tb:18 * tb, :] = zpad3

    # ---- scatter fc2 output into the h-padded (h*b, w*c) layout of layer 1 ---
    for h in range(4):
        g1_ref[(h + 1) * tb:(h + 2) * tb, :] = h2[:, h * 256:(h + 1) * 256]

    # ---- deconv 1: 4x4x64 -> 8x8x32, ReLU ------------------------------------
    _deconv_layer(g1_ref, t1_ref, c1_ref, H_in=4, tb=tb, relu=True,
                  emit=_scatter_emit(g2_ref, 4, tb))

    # ---- deconv 2: 8x8x32 -> 16x16x32, ReLU ----------------------------------
    _deconv_layer(g2_ref, t2_ref, c2_ref, H_in=8, tb=tb, relu=True,
                  emit=_scatter_emit(g3_ref, 8, tb))

    # ---- deconv 3: 16x16x32 -> 32x32x1, no ReLU, two block stores ------------
    def emit3(r, y):
        out_ref[r] = y.reshape(16, tb, 32)          # out_ref: (2, 16, tb, 32)

    _deconv_layer(g3_ref, t3_ref, c3_ref, H_in=16, tb=tb, relu=False, emit=emit3)


# ----------------------------------------------------------------------------
# Parameter packing (prep-time, outside jit)
# ----------------------------------------------------------------------------
def _toeplitz_pack(w, W_in):
    """Pack ConvTranspose2d weight (Cin, Cout, 4, 4) into per-kh block-Toeplitz
    matrices T[kh] of shape (W_in*Cin, 2*W_in*Cout): the whole width dimension
    plus both kw taps of a phase become a single MXU contraction."""
    w = np.asarray(w, dtype=np.float32)
    Cin, Cout, KH, KW = w.shape
    W_out = 2 * W_in
    t = np.zeros((KH, W_in * Cin, W_out * Cout), dtype=np.float32)
    for kh in range(KH):
        for iw in range(W_in):
            for kw in range(KW):
                ow = 2 * iw - 1 + kw                # stride 2, output crop (padding) 1
                if 0 <= ow < W_out:
                    t[kh, iw * Cin:(iw + 1) * Cin,
                      ow * Cout:(ow + 1) * Cout] = w[:, :, kh, kw]
    return t


def pack_params(params):
    """Pre-pack all weights into the MXU-ready layouts the kernel expects."""
    # fc2 columns re-ordered from PyTorch's view(B, 64, 4, 4) order (c, h, w)
    # to the kernel's (h, w, c) order.
    hh, ww, cc = np.meshgrid(np.arange(4), np.arange(4), np.arange(64), indexing="ij")
    perm = (cc * 16 + hh * 4 + ww).reshape(-1)

    def bf16(x):
        return jnp.asarray(np.asarray(x, np.float32), dtype=jnp.bfloat16)

    packed = {
        "w1": bf16(params["fc1_w"]),
        "b1": jnp.asarray(params["fc1_b"], jnp.float32).reshape(1, 256),
        "w2": bf16(np.asarray(params["fc2_w"], np.float32)[:, perm]),
        "b2": jnp.asarray(np.asarray(params["fc2_b"], np.float32).reshape(-1)[perm],
                          jnp.float32).reshape(1, 1024),
    }
    names = zip(("ct1_w", "ct2_w", "ct3_w"), ("ct1_b", "ct2_b", "ct3_b"), _LAYERS)
    for idx, (name_w, name_b, (H, W, Cin, Cout)) in enumerate(names, 1):
        packed[f"t{idx}"] = bf16(_toeplitz_pack(params[name_w], W))
        b = np.asarray(params[name_b], np.float32)
        packed[f"c{idx}"] = jnp.asarray(np.tile(b, 2 * W).reshape(1, -1), jnp.float32)
    return packed


# ----------------------------------------------------------------------------
# Forward pass
# ----------------------------------------------------------------------------
def _choose_tb(B, tb_max=TB_MAX):
    """Batch tile: multiple of 16 (bf16 sublane tile), capped at tb_max, and
    split so the grid has >=2 steps when the batch allows (v7x: 2 TensorCores)."""
    r16 = lambda n: ((n + 15) // 16) * 16
    tb = min(tb_max, r16(B))
    if B > 16 and -(-B // tb) < 2:
        tb = max(16, r16(-(-B // 2)))
    return tb


def decoder_a_forward(zPrivate, zShared, packed, tb_max=TB_MAX):
    z = jnp.concatenate([zPrivate, zShared], axis=1).astype(jnp.float32)   # (B, 8)
    B = z.shape[0]
    tb = _choose_tb(B, tb_max)
    n_tiles = -(-B // tb)
    B_pad = n_tiles * tb
    if B_pad != B:
        z = jnp.pad(z, ((0, B_pad - B), (0, 0)))

    macs = 8 * 256 + 256 * 1024
    for (H, W, Cin, Cout) in _LAYERS:
        macs += 4 * H * (W * Cin) * (2 * W * Cout)
    weight_bytes = sum(int(np.prod(packed[k].shape)) * packed[k].dtype.itemsize
                       for k in packed)
    cost = pl.CostEstimate(
        flops=2 * macs * B_pad,
        transcendentals=0,
        bytes_accessed=weight_bytes + B_pad * 8 * 4 + B_pad * 2 * 16 * 32 * 4)

    grid_spec = pltpu.PrefetchScalarGridSpec(
        num_scalar_prefetch=0,
        grid=(n_tiles,),
        in_specs=[
            pl.BlockSpec((tb, 8), lambda i: (i, 0)),            # z (batch-tiled)
            pl.BlockSpec((8, 256), lambda i: (0, 0)),           # w1 (resident)
            pl.BlockSpec((1, 256), lambda i: (0, 0)),           # b1
            pl.BlockSpec((256, 1024), lambda i: (0, 0)),        # w2 (permuted)
            pl.BlockSpec((1, 1024), lambda i: (0, 0)),          # b2
            pl.BlockSpec((4, 256, 256), lambda i: (0, 0, 0)),   # t1 Toeplitz
            pl.BlockSpec((1, 256), lambda i: (0, 0)),           # c1
            pl.BlockSpec((4, 256, 512), lambda i: (0, 0, 0)),   # t2
            pl.BlockSpec((1, 512), lambda i: (0, 0)),           # c2
            pl.BlockSpec((4, 512, 32), lambda i: (0, 0, 0)),    # t3
            pl.BlockSpec((1, 32), lambda i: (0, 0)),            # c3
        ],
        out_specs=pl.BlockSpec((2, 16, tb, 32), lambda i: (0, 0, i, 0)),
        scratch_shapes=[
            pltpu.VMEM((6 * tb, 4 * 64), jnp.bfloat16),    # layer-1 input, h-padded
            pltpu.VMEM((10 * tb, 8 * 32), jnp.bfloat16),   # layer-2 input, h-padded
            pltpu.VMEM((18 * tb, 16 * 32), jnp.bfloat16),  # layer-3 input, h-padded
        ],
    )

    out = pl.pallas_call(
        functools.partial(decoder_kernel, tb=tb),
        out_shape=jax.ShapeDtypeStruct((2, 16, B_pad, 32), jnp.float32),
        grid_spec=grid_spec,
        compiler_params=pltpu.CompilerParams(
            dimension_semantics=("parallel",)),
        cost_estimate=cost,
    )(z, packed["w1"], packed["b1"], packed["w2"], packed["b2"],
      packed["t1"], packed["c1"], packed["t2"], packed["c2"],
      packed["t3"], packed["c3"])

    # out[r, p, b, ow] with oh = 2*p + r  ->  NCHW (B, 1, 32, 32)
    x = jnp.transpose(out, (2, 1, 0, 3)).reshape(B_pad, 32, 32)[:B]
    return x[:, None, :, :]


# ----------------------------------------------------------------------------
# Synthetic parameters (module shapes) + plain-JAX reference (same quantization)
# ----------------------------------------------------------------------------
def make_params(key, zPrivate_dim=3, zShared_dim=5, channel=1):
    ks = jax.random.split(key, 8)
    zdim = zPrivate_dim + zShared_dim
    return {
        "fc1_w": 0.1 * jax.random.normal(ks[0], (zdim, 256), jnp.float32),
        "fc1_b": jnp.zeros((1, 256), jnp.float32),
        "fc2_w": 0.05 * jax.random.normal(ks[1], (256, 64 * 4 * 4), jnp.float32),
        "fc2_b": jnp.zeros((1, 64 * 4 * 4), jnp.float32),
        "ct1_w": 0.1 * jax.random.normal(ks[2], (64, 32, 4, 4), jnp.float32),
        "ct1_b": 0.02 * jax.random.normal(ks[3], (32,), jnp.float32),
        "ct2_w": 0.1 * jax.random.normal(ks[4], (32, 32, 4, 4), jnp.float32),
        "ct2_b": 0.02 * jax.random.normal(ks[5], (32,), jnp.float32),
        "ct3_w": 0.1 * jax.random.normal(ks[6], (32, channel, 4, 4), jnp.float32),
        "ct3_b": 0.02 * jax.random.normal(ks[7], (channel,), jnp.float32),
    }


def _bf(x):
    return jnp.asarray(x, jnp.float32).astype(jnp.bfloat16).astype(jnp.float32)


def _conv_transpose_ref(x, w, b):
    """Reference ConvTranspose2d(k=4, s=2, p=1). x: (B, Cin, H, W), w: (Cin, Cout, 4, 4)."""
    B, Cin, H, W = x.shape
    Cout = w.shape[1]
    full = jnp.zeros((B, Cout, 2 * H + 2, 2 * W + 2), jnp.float32)
    for kh in range(4):
        for kw in range(4):
            contrib = jnp.einsum("bchw,cd->bdhw", x, w[:, :, kh, kw],
                                 precision=jax.lax.Precision.HIGHEST)
            full = full.at[:, :, kh:kh + 2 * H:2, kw:kw + 2 * W:2].add(contrib)
    return full[:, :, 1:2 * H + 1, 1:2 * W + 1] + b[None, :, None, None]


def reference_forward(zPrivate, zShared, params):
    """Matches the kernel's quantization: bf16-rounded weights AND activations
    at the same points, f32 accumulation / bias / ReLU."""
    hp = jax.lax.Precision.HIGHEST
    z = _bf(jnp.concatenate([zPrivate, zShared], axis=1))
    h = jax.nn.relu(jnp.dot(z, _bf(params["fc1_w"]), precision=hp) + params["fc1_b"])
    h = jax.nn.relu(jnp.dot(_bf(h), _bf(params["fc2_w"]), precision=hp) + params["fc2_b"])
    x = _bf(h).reshape(-1, 64, 4, 4)
    x = _bf(jax.nn.relu(_conv_transpose_ref(x, _bf(params["ct1_w"]), params["ct1_b"])))
    x = _bf(jax.nn.relu(_conv_transpose_ref(x, _bf(params["ct2_w"]), params["ct2_b"])))
    return _conv_transpose_ref(x, _bf(params["ct3_w"]), params["ct3_b"])


if __name__ == "__main__":
    key = jax.random.PRNGKey(0)
    k_priv, k_shared, k_params = jax.random.split(key, 3)

    B = 2
    zPrivate = jax.random.normal(k_priv, (B, 3), jnp.float32)
    zShared = jax.random.normal(k_shared, (B, 5), jnp.float32)

    params = make_params(k_params)
    packed = pack_params(params)

    fwd = jax.jit(decoder_a_forward)
    x_recon = jax.block_until_ready(fwd(zPrivate, zShared, packed))
    assert x_recon.shape == (B, 1, 32, 32), x_recon.shape

    # Numerical check against a plain-JAX reference with identical quantization.
    x_ref = reference_forward(zPrivate, zShared, params)
    err = float(jnp.max(jnp.abs(x_recon - x_ref)))
    scale = float(jnp.max(jnp.abs(x_ref))) + 1e-6
    assert err <= 1e-2 * scale + 2e-3, f"mismatch: max|err|={err}, scale={scale}"

    print("KERNEL_OK")
</pallas_src>

<mosaic_0001>
module attributes {stable_mosaic.version = 11 : i64} {
  func.func @decoder_kernel(%arg0: i32, %arg1: memref<16x8xf32, #tpu.memory_space<vmem>>, %arg2: memref<8x256xbf16, #tpu.memory_space<vmem>>, %arg3: memref<1x256xf32, #tpu.memory_space<vmem>>, %arg4: memref<256x1024xbf16, #tpu.memory_space<vmem>>, %arg5: memref<1x1024xf32, #tpu.memory_space<vmem>>, %arg6: memref<4x256x256xbf16, #tpu.memory_space<vmem>>, %arg7: memref<1x256xf32, #tpu.memory_space<vmem>>, %arg8: memref<4x256x512xbf16, #tpu.memory_space<vmem>>, %arg9: memref<1x512xf32, #tpu.memory_space<vmem>>, %arg10: memref<4x512x32xbf16, #tpu.memory_space<vmem>>, %arg11: memref<1x32xf32, #tpu.memory_space<vmem>>, %arg12: memref<2x16x16x32xf32, #tpu.memory_space<vmem>>, %arg13: memref<96x256xbf16, #tpu.memory_space<vmem>>, %arg14: memref<160x256xbf16, #tpu.memory_space<vmem>>, %arg15: memref<288x512xbf16, #tpu.memory_space<vmem>>) attributes {dimension_semantics = [#tpu.dimension_semantics<parallel>], iteration_bounds = array<i64: 1>, scalar_prefetch = 0 : i64, scratch_operands = 3 : i64, tpu.core_type = #tpu.core_type<tc>, window_params = [{transform_indices = @transform_0, window_bounds = array<i64: 16, 8>}, {pipeline_mode = #tpu.pipeline_mode<synchronous>, transform_indices = @transform_1, window_bounds = array<i64: 8, 256>}, {pipeline_mode = #tpu.pipeline_mode<synchronous>, transform_indices = @transform_2, window_bounds = array<i64: 1, 256>}, {pipeline_mode = #tpu.pipeline_mode<synchronous>, transform_indices = @transform_3, window_bounds = array<i64: 256, 1024>}, {pipeline_mode = #tpu.pipeline_mode<synchronous>, transform_indices = @transform_4, window_bounds = array<i64: 1, 1024>}, {pipeline_mode = #tpu.pipeline_mode<synchronous>, transform_indices = @transform_5, window_bounds = array<i64: 4, 256, 256>}, {pipeline_mode = #tpu.pipeline_mode<synchronous>, transform_indices = @transform_6, window_bounds = array<i64: 1, 256>}, {pipeline_mode = #tpu.pipeline_mode<synchronous>, transform_indices = @transform_7, window_bounds = array<i64: 4, 256, 512>}, {pipeline_mode = #tpu.pipeline_mode<synchronous>, transform_indices = @transform_8, window_bounds = array<i64: 1, 512>}, {pipeline_mode = #tpu.pipeline_mode<synchronous>, transform_indices = @transform_9, window_bounds = array<i64: 4, 512, 32>}, {pipeline_mode = #tpu.pipeline_mode<synchronous>, transform_indices = @transform_10, window_bounds = array<i64: 1, 32>}, {transform_indices = @transform_11, window_bounds = array<i64: 2, 16, 16, 32>}]} {
    %c0 = arith.constant 0 : index
    %c0_0 = arith.constant 0 : index
    %0 = vector.load %arg1[%c0, %c0_0] : memref<16x8xf32, #tpu.memory_space<vmem>>, vector<16x8xf32>
    %1 = arith.truncf %0 : vector<16x8xf32> to vector<16x8xbf16>
    %c0_1 = arith.constant 0 : index
    %c0_2 = arith.constant 0 : index
    %2 = vector.load %arg2[%c0_1, %c0_2] : memref<8x256xbf16, #tpu.memory_space<vmem>>, vector<8x256xbf16>
    %cst = arith.constant dense<0.000000e+00> : vector<16x256xf32>
    %3 = tpu.matmul %1, %2, %cst {dimension_numbers = #tpu.dot_dimension_numbers<[1], [0], [0], [1], [0, 0, 1, 1], [], []>} : vector<16x8xbf16>, vector<8x256xbf16>, vector<16x256xf32> -> vector<16x256xf32>
    %c0_3 = arith.constant 0 : index
    %c0_4 = arith.constant 0 : index
    %4 = vector.load %arg3[%c0_3, %c0_4] : memref<1x256xf32, #tpu.memory_space<vmem>>, vector<1x256xf32>
    %5 = vector.broadcast %4 : vector<1x256xf32> to vector<16x256xf32>
    %6 = arith.addf %3, %5 : vector<16x256xf32>
    %cst_5 = arith.constant 0.000000e+00 : f32
    %7 = vector.broadcast %cst_5 : f32 to vector<16x256xf32>
    %8 = arith.maximumf %6, %7 : vector<16x256xf32>
    %9 = arith.truncf %8 : vector<16x256xf32> to vector<16x256xbf16>
    %c0_6 = arith.constant 0 : index
    %c0_7 = arith.constant 0 : index
    %10 = vector.load %arg4[%c0_6, %c0_7] : memref<256x1024xbf16, #tpu.memory_space<vmem>>, vector<256x1024xbf16>
    %cst_8 = arith.constant dense<0.000000e+00> : vector<16x1024xf32>
    %11 = tpu.matmul %9, %10, %cst_8 {dimension_numbers = #tpu.dot_dimension_numbers<[1], [0], [0], [1], [0, 0, 1, 1], [], []>} : vector<16x256xbf16>, vector<256x1024xbf16>, vector<16x1024xf32> -> vector<16x1024xf32>
    %c0_9 = arith.constant 0 : index
    %c0_10 = arith.constant 0 : index
    %12 = vector.load %arg5[%c0_9, %c0_10] : memref<1x1024xf32, #tpu.memory_space<vmem>>, vector<1x1024xf32>
    %13 = vector.broadcast %12 : vector<1x1024xf32> to vector<16x1024xf32>
    %14 = arith.addf %11, %13 : vector<16x1024xf32>
    %cst_11 = arith.constant 0.000000e+00 : f32
    %15 = vector.broadcast %cst_11 : f32 to vector<16x1024xf32>
    %16 = arith.maximumf %14, %15 : vector<16x1024xf32>
    %17 = arith.truncf %16 : vector<16x1024xf32> to vector<16x1024xbf16>
    %cst_12 = arith.constant 0.000000e+00 : bf16
    %18 = vector.broadcast %cst_12 : bf16 to vector<16x256xbf16>
    %c0_13 = arith.constant 0 : index
    %c0_14 = arith.constant 0 : index
    %19 = vector.load %arg13[%c0_13, %c0_14] : memref<96x256xbf16, #tpu.memory_space<vmem>>, vector<16x256xbf16>
    tpu.vector_store %arg13[%c0_13, %c0_14], %18 {strides = array<i32>} : memref<96x256xbf16, #tpu.memory_space<vmem>>, vector<16x256xbf16>,
    %c80 = arith.constant 80 : index
    %c0_15 = arith.constant 0 : index
    %20 = vector.load %arg13[%c80, %c0_15] : memref<96x256xbf16, #tpu.memory_space<vmem>>, vector<16x256xbf16>
    tpu.vector_store %arg13[%c80, %c0_15], %18 {strides = array<i32>} : memref<96x256xbf16, #tpu.memory_space<vmem>>, vector<16x256xbf16>,
    %cst_16 = arith.constant 0.000000e+00 : bf16
    %21 = vector.broadcast %cst_16 : bf16 to vector<16x256xbf16>
    %c0_17 = arith.constant 0 : index
    %c0_18 = arith.constant 0 : index
    %22 = vector.load %arg14[%c0_17, %c0_18] : memref<160x256xbf16, #tpu.memory_space<vmem>>, vector<16x256xbf16>
    tpu.vector_store %arg14[%c0_17, %c0_18], %21 {strides = array<i32>} : memref<160x256xbf16, #tpu.memory_space<vmem>>, vector<16x256xbf16>,
    %c144 = arith.constant 144 : index
    %c0_19 = arith.constant 0 : index
    %23 = vector.load %arg14[%c144, %c0_19] : memref<160x256xbf16, #tpu.memory_space<vmem>>, vector<16x256xbf16>
    tpu.vector_store %arg14[%c144, %c0_19], %21 {strides = array<i32>} : memref<160x256xbf16, #tpu.memory_space<vmem>>, vector<16x256xbf16>,
    %cst_20 = arith.constant 0.000000e+00 : bf16
    %24 = vector.broadcast %cst_20 : bf16 to vector<16x512xbf16>
    %c0_21 = arith.constant 0 : index
    %c0_22 = arith.constant 0 : index
    %25 = vector.load %arg15[%c0_21, %c0_22] : memref<288x512xbf16, #tpu.memory_space<vmem>>, vector<16x512xbf16>
    tpu.vector_store %arg15[%c0_21, %c0_22], %24 {strides = array<i32>} : memref<288x512xbf16, #tpu.memory_space<vmem>>, vector<16x512xbf16>,
    %c272 = arith.constant 272 : index
    %c0_23 = arith.constant 0 : index
    %26 = vector.load %arg15[%c272, %c0_23] : memref<288x512xbf16, #tpu.memory_space<vmem>>, vector<16x512xbf16>
    tpu.vector_store %arg15[%c272, %c0_23], %24 {strides = array<i32>} : memref<288x512xbf16, #tpu.memory_space<vmem>>, vector<16x512xbf16>,
    %27 = vector.extract_strided_slice %17 {offsets = [0, 0], sizes = [16, 256], strides = [1, 1]} : vector<16x1024xbf16> to vector<16x256xbf16>
    %c16 = arith.constant 16 : index
    %c0_24 = arith.constant 0 : index
    %28 = vector.load %arg13[%c16, %c0_24] : memref<96x256xbf16, #tpu.memory_space<vmem>>, vector<16x256xbf16>
    tpu.vector_store %arg13[%c16, %c0_24], %27 {strides = array<i32>} : memref<96x256xbf16, #tpu.memory_space<vmem>>, vector<16x256xbf16>,
    %29 = vector.extract_strided_slice %17 {offsets = [0, 256], sizes = [16, 256], strides = [1, 1]} : vector<16x1024xbf16> to vector<16x256xbf16>
    %c32 = arith.constant 32 : index
    %c0_25 = arith.constant 0 : index
    %30 = vector.load %arg13[%c32, %c0_25] : memref<96x256xbf16, #tpu.memory_space<vmem>>, vector<16x256xbf16>
    tpu.vector_store %arg13[%c32, %c0_25], %29 {strides = array<i32>} : memref<96x256xbf16, #tpu.memory_space<vmem>>, vector<16x256xbf16>,
    %31 = vector.extract_strided_slice %17 {offsets = [0, 512], sizes = [16, 256], strides = [1, 1]} : vector<16x1024xbf16> to vector<16x256xbf16>
    %c48 = arith.constant 48 : index
    %c0_26 = arith.constant 0 : index
    %32 = vector.load %arg13[%c48, %c0_26] : memref<96x256xbf16, #tpu.memory_space<vmem>>, vector<16x256xbf16>
    tpu.vector_store %arg13[%c48, %c0_26], %31 {strides = array<i32>} : memref<96x256xbf16, #tpu.memory_space<vmem>>, vector<16x256xbf16>,
    %33 = vector.extract_strided_slice %17 {offsets = [0, 768], sizes = [16, 256], strides = [1, 1]} : vector<16x1024xbf16> to vector<16x256xbf16>
    %c64 = arith.constant 64 : index
    %c0_27 = arith.constant 0 : index
    %34 = vector.load %arg13[%c64, %c0_27] : memref<96x256xbf16, #tpu.memory_space<vmem>>, vector<16x256xbf16>
    tpu.vector_store %arg13[%c64, %c0_27], %33 {strides = array<i32>} : memref<96x256xbf16, #tpu.memory_space<vmem>>, vector<16x256xbf16>,
    %c0_28 = arith.constant 0 : index
    %c0_29 = arith.constant 0 : index
    %35 = vector.load %arg7[%c0_28, %c0_29] : memref<1x256xf32, #tpu.memory_space<vmem>>, vector<1x256xf32>
    %c16_30 = arith.constant 16 : index
    %c0_31 = arith.constant 0 : index
    %36 = vector.load %arg13[%c16_30, %c0_31] : memref<96x256xbf16, #tpu.memory_space<vmem>>, vector<64x256xbf16>
    %c1 = arith.constant 1 : index
    %c0_32 = arith.constant 0 : index
    %c0_33 = arith.constant 0 : index
    %37 = vector.load %arg6[%c1, %c0_32, %c0_33] : memref<4x256x256xbf16, #tpu.memory_space<vmem>>, vector<1x256x256xbf16>
    %38 = vector.shape_cast %37 : vector<1x256x256xbf16> to vector<256x256xbf16>
    %cst_34 = arith.constant dense<0.000000e+00> : vector<64x256xf32>
    %39 = tpu.matmul %36, %38, %cst_34 {dimension_numbers = #tpu.dot_dimension_numbers<[1], [0], [0], [1], [0, 0, 1, 1], [], []>} : vector<64x256xbf16>, vector<256x256xbf16>, vector<64x256xf32> -> vector<64x256xf32>
    %c0_35 = arith.constant 0 : index
    %c0_36 = arith.constant 0 : index
    %40 = vector.load %arg13[%c0_35, %c0_36] : memref<96x256xbf16, #tpu.memory_space<vmem>>, vector<64x256xbf16>
    %c3 = arith.constant 3 : index
    %c0_37 = arith.constant 0 : index
    %c0_38 = arith.constant 0 : index
    %41 = vector.load %arg6[%c3, %c0_37, %c0_38] : memref<4x256x256xbf16, #tpu.memory_space<vmem>>, vector<1x256x256xbf16>
    %42 = vector.shape_cast %41 : vector<1x256x256xbf16> to vector<256x256xbf16>
    %cst_39 = arith.constant dense<0.000000e+00> : vector<64x256xf32>
    %43 = tpu.matmul %40, %42, %cst_39 {dimension_numbers = #tpu.dot_dimension_numbers<[1], [0], [0], [1], [0, 0, 1, 1], [], []>} : vector<64x256xbf16>, vector<256x256xbf16>, vector<64x256xf32> -> vector<64x256xf32>
    %44 = arith.addf %39, %43 : vector<64x256xf32>
    %45 = vector.broadcast %35 : vector<1x256xf32> to vector<64x256xf32>
    %46 = arith.addf %44, %45 : vector<64x256xf32>
    %cst_40 = arith.constant 0.000000e+00 : f32
    %47 = vector.broadcast %cst_40 : f32 to vector<64x256xf32>
    %48 = arith.maximumf %46, %47 : vector<64x256xf32>
    %49 = arith.truncf %48 : vector<64x256xf32> to vector<64x256xbf16>
    %50 = vector.extract_strided_slice %49 {offsets = [0, 0], sizes = [16, 256], strides = [1, 1]} : vector<64x256xbf16> to vector<16x256xbf16>
    %c16_41 = arith.constant 16 : index
    %c0_42 = arith.constant 0 : index
    %51 = vector.load %arg14[%c16_41, %c0_42] : memref<160x256xbf16, #tpu.memory_space<vmem>>, vector<16x256xbf16>
    tpu.vector_store %arg14[%c16_41, %c0_42], %50 {strides = array<i32>} : memref<160x256xbf16, #tpu.memory_space<vmem>>, vector<16x256xbf16>,
    %52 = vector.extract_strided_slice %49 {offsets = [16, 0], sizes = [16, 256], strides = [1, 1]} : vector<64x256xbf16> to vector<16x256xbf16>
    %c48_43 = arith.constant 48 : index
    %c0_44 = arith.constant 0 : index
    %53 = vector.load %arg14[%c48_43, %c0_44] : memref<160x256xbf16, #tpu.memory_space<vmem>>, vector<16x256xbf16>
    tpu.vector_store %arg14[%c48_43, %c0_44], %52 {strides = array<i32>} : memref<160x256xbf16, #tpu.memory_space<vmem>>, vector<16x256xbf16>,
    %54 = vector.extract_strided_slice %49 {offsets = [32, 0], sizes = [16, 256], strides = [1, 1]} : vector<64x256xbf16> to vector<16x256xbf16>
    %c80_45 = arith.constant 80 : index
    %c0_46 = arith.constant 0 : index
    %55 = vector.load %arg14[%c80_45, %c0_46] : memref<160x256xbf16, #tpu.memory_space<vmem>>, vector<16x256xbf16>
    tpu.vector_store %arg14[%c80_45, %c0_46], %54 {strides = array<i32>} : memref<160x256xbf16, #tpu.memory_space<vmem>>, vector<16x256xbf16>,
    %56 = vector.extract_strided_slice %49 {offsets = [48, 0], sizes = [16, 256], strides = [1, 1]} : vector<64x256xbf16> to vector<16x256xbf16>
    %c112 = arith.constant 112 : index
    %c0_47 = arith.constant 0 : index
    %57 = vector.load %arg14[%c112, %c0_47] : memref<160x256xbf16, #tpu.memory_space<vmem>>, vector<16x256xbf16>
    tpu.vector_store %arg14[%c112, %c0_47], %56 {strides = array<i32>} : memref<160x256xbf16, #tpu.memory_space<vmem>>, vector<16x256xbf16>,
    %c32_48 = arith.constant 32 : index
    %c0_49 = arith.constant 0 : index
    %58 = vector.load %arg13[%c32_48, %c0_49] : memref<96x256xbf16, #tpu.memory_space<vmem>>, vector<64x256xbf16>
    %c0_50 = arith.constant 0 : index
    %c0_51 = arith.constant 0 : index
    %c0_52 = arith.constant 0 : index
    %59 = vector.load %arg6[%c0_50, %c0_51, %c0_52] : memref<4x256x256xbf16, #tpu.memory_space<vmem>>, vector<1x256x256xbf16>
    %60 = vector.shape_cast %59 : vector<1x256x256xbf16> to vector<256x256xbf16>
    %cst_53 = arith.constant dense<0.000000e+00> : vector<64x256xf32>
    %61 = tpu.matmul %58, %60, %cst_53 {dimension_numbers = #tpu.dot_dimension_numbers<[1], [0], [0], [1], [0, 0, 1, 1], [], []>} : vector<64x256xbf16>, vector<256x256xbf16>, vector<64x256xf32> -> vector<64x256xf32>
    %c16_54 = arith.constant 16 : index
    %c0_55 = arith.constant 0 : index
    %62 = vector.load %arg13[%c16_54, %c0_55] : memref<96x256xbf16, #tpu.memory_space<vmem>>, vector<64x256xbf16>
    %c2 = arith.constant 2 : index
    %c0_56 = arith.constant 0 : index
    %c0_57 = arith.constant 0 : index
    %63 = vector.load %arg6[%c2, %c0_56, %c0_57] : memref<4x256x256xbf16, #tpu.memory_space<vmem>>, vector<1x256x256xbf16>
    %64 = vector.shape_cast %63 : vector<1x256x256xbf16> to vector<256x256xbf16>
    %cst_58 = arith.constant dense<0.000000e+00> : vector<64x256xf32>
    %65 = tpu.matmul %62, %64, %cst_58 {dimension_numbers = #tpu.dot_dimension_numbers<[1], [0], [0], [1], [0, 0, 1, 1], [], []>} : vector<64x256xbf16>, vector<256x256xbf16>, vector<64x256xf32> -> vector<64x256xf32>
    %66 = arith.addf %61, %65 : vector<64x256xf32>
    %67 = vector.broadcast %35 : vector<1x256xf32> to vector<64x256xf32>
    %68 = arith.addf %66, %67 : vector<64x256xf32>
    %cst_59 = arith.constant 0.000000e+00 : f32
    %69 = vector.broadcast %cst_59 : f32 to vector<64x256xf32>
    %70 = arith.maximumf %68, %69 : vector<64x256xf32>
    %71 = arith.truncf %70 : vector<64x256xf32> to vector<64x256xbf16>
    %72 = vector.extract_strided_slice %71 {offsets = [0, 0], sizes = [16, 256], strides = [1, 1]} : vector<64x256xbf16> to vector<16x256xbf16>
    %c32_60 = arith.constant 32 : index
    %c0_61 = arith.constant 0 : index
    %73 = vector.load %arg14[%c32_60, %c0_61] : memref<160x256xbf16, #tpu.memory_space<vmem>>, vector<16x256xbf16>
    tpu.vector_store %arg14[%c32_60, %c0_61], %72 {strides = array<i32>} : memref<160x256xbf16, #tpu.memory_space<vmem>>, vector<16x256xbf16>,
    %74 = vector.extract_strided_slice %71 {offsets = [16, 0], sizes = [16, 256], strides = [1, 1]} : vector<64x256xbf16> to vector<16x256xbf16>
    %c64_62 = arith.constant 64 : index
    %c0_63 = arith.constant 0 : index
    %75 = vector.load %arg14[%c64_62, %c0_63] : memref<160x256xbf16, #tpu.memory_space<vmem>>, vector<16x256xbf16>
    tpu.vector_store %arg14[%c64_62, %c0_63], %74 {strides = array<i32>} : memref<160x256xbf16, #tpu.memory_space<vmem>>, vector<16x256xbf16>,
    %76 = vector.extract_strided_slice %71 {offsets = [32, 0], sizes = [16, 256], strides = [1, 1]} : vector<64x256xbf16> to vector<16x256xbf16>
    %c96 = arith.constant 96 : index
    %c0_64 = arith.constant 0 : index
    %77 = vector.load %arg14[%c96, %c0_64] : memref<160x256xbf16, #tpu.memory_space<vmem>>, vector<16x256xbf16>
    tpu.vector_store %arg14[%c96, %c0_64], %76 {strides = array<i32>} : memref<160x256xbf16, #tpu.memory_space<vmem>>, vector<16x256xbf16>,
    %78 = vector.extract_strided_slice %71 {offsets = [48, 0], sizes = [16, 256], strides = [1, 1]} : vector<64x256xbf16> to vector<16x256xbf16>
    %c128 = arith.constant 128 : index
    %c0_65 = arith.constant 0 : index
    %79 = vector.load %arg14[%c128, %c0_65] : memref<160x256xbf16, #tpu.memory_space<vmem>>, vector<16x256xbf16>
    tpu.vector_store %arg14[%c128, %c0_65], %78 {strides = array<i32>} : memref<160x256xbf16, #tpu.memory_space<vmem>>, vector<16x256xbf16>,
    %c0_66 = arith.constant 0 : index
    %c0_67 = arith.constant 0 : index
    %80 = vector.load %arg9[%c0_66, %c0_67] : memref<1x512xf32, #tpu.memory_space<vmem>>, vector<1x512xf32>
    %c16_68 = arith.constant 16 : index
    %c0_69 = arith.constant 0 : index
    %81 = vector.load %arg14[%c16_68, %c0_69] : memref<160x256xbf16, #tpu.memory_space<vmem>>, vector<128x256xbf16>
    %c1_70 = arith.constant 1 : index
    %c0_71 = arith.constant 0 : index
    %c0_72 = arith.constant 0 : index
    %82 = vector.load %arg8[%c1_70, %c0_71, %c0_72] : memref<4x256x512xbf16, #tpu.memory_space<vmem>>, vector<1x256x512xbf16>
    %83 = vector.shape_cast %82 : vector<1x256x512xbf16> to vector<256x512xbf16>
    %cst_73 = arith.constant dense<0.000000e+00> : vector<128x512xf32>
    %84 = tpu.matmul %81, %83, %cst_73 {dimension_numbers = #tpu.dot_dimension_numbers<[1], [0], [0], [1], [0, 0, 1, 1], [], []>} : vector<128x256xbf16>, vector<256x512xbf16>, vector<128x512xf32> -> vector<128x512xf32>
    %c0_74 = arith.constant 0 : index
    %c0_75 = arith.constant 0 : index
    %85 = vector.load %arg14[%c0_74, %c0_75] : memref<160x256xbf16, #tpu.memory_space<vmem>>, vector<128x256xbf16>
    %c3_76 = arith.constant 3 : index
    %c0_77 = arith.constant 0 : index
    %c0_78 = arith.constant 0 : index
    %86 = vector.load %arg8[%c3_76, %c0_77, %c0_78] : memref<4x256x512xbf16, #tpu.memory_space<vmem>>, vector<1x256x512xbf16>
    %87 = vector.shape_cast %86 : vector<1x256x512xbf16> to vector<256x512xbf16>
    %cst_79 = arith.constant dense<0.000000e+00> : vector<128x512xf32>
    %88 = tpu.matmul %85, %87, %cst_79 {dimension_numbers = #tpu.dot_dimension_numbers<[1], [0], [0], [1], [0, 0, 1, 1], [], []>} : vector<128x256xbf16>, vector<256x512xbf16>, vector<128x512xf32> -> vector<128x512xf32>
    %89 = arith.addf %84, %88 : vector<128x512xf32>
    %90 = vector.broadcast %80 : vector<1x512xf32> to vector<128x512xf32>
    %91 = arith.addf %89, %90 : vector<128x512xf32>
    %cst_80 = arith.constant 0.000000e+00 : f32
    %92 = vector.broadcast %cst_80 : f32 to vector<128x512xf32>
    %93 = arith.maximumf %91, %92 : vector<128x512xf32>
    %94 = arith.truncf %93 : vector<128x512xf32> to vector<128x512xbf16>
    %95 = vector.extract_strided_slice %94 {offsets = [0, 0], sizes = [16, 512], strides = [1, 1]} : vector<128x512xbf16> to vector<16x512xbf16>
    %c16_81 = arith.constant 16 : index
    %c0_82 = arith.constant 0 : index
    %96 = vector.load %arg15[%c16_81, %c0_82] : memref<288x512xbf16, #tpu.memory_space<vmem>>, vector<16x512xbf16>
    tpu.vector_store %arg15[%c16_81, %c0_82], %95 {strides = array<i32>} : memref<288x512xbf16, #tpu.memory_space<vmem>>, vector<16x512xbf16>,
    %97 = vector.extract_strided_slice %94 {offsets = [16, 0], sizes = [16, 512], strides = [1, 1]} : vector<128x512xbf16> to vector<16x512xbf16>
    %c48_83 = arith.constant 48 : index
    %c0_84 = arith.constant 0 : index
    %98 = vector.load %arg15[%c48_83, %c0_84] : memref<288x512xbf16, #tpu.memory_space<vmem>>, vector<16x512xbf16>
    tpu.vector_store %arg15[%c48_83, %c0_84], %97 {strides = array<i32>} : memref<288x512xbf16, #tpu.memory_space<vmem>>, vector<16x512xbf16>,
    %99 = vector.extract_strided_slice %94 {offsets = [32, 0], sizes = [16, 512], strides = [1, 1]} : vector<128x512xbf16> to vector<16x512xbf16>
    %c80_85 = arith.constant 80 : index
    %c0_86 = arith.constant 0 : index
    %100 = vector.load %arg15[%c80_85, %c0_86] : memref<288x512xbf16, #tpu.memory_space<vmem>>, vector<16x512xbf16>
    tpu.vector_store %arg15[%c80_85, %c0_86], %99 {strides = array<i32>} : memref<288x512xbf16, #tpu.memory_space<vmem>>, vector<16x512xbf16>,
    %101 = vector.extract_strided_slice %94 {offsets = [48, 0], sizes = [16, 512], strides = [1, 1]} : vector<128x512xbf16> to vector<16x512xbf16>
    %c112_87 = arith.constant 112 : index
    %c0_88 = arith.constant 0 : index
    %102 = vector.load %arg15[%c112_87, %c0_88] : memref<288x512xbf16, #tpu.memory_space<vmem>>, vector<16x512xbf16>
    tpu.vector_store %arg15[%c112_87, %c0_88], %101 {strides = array<i32>} : memref<288x512xbf16, #tpu.memory_space<vmem>>, vector<16x512xbf16>,
    %103 = vector.extract_strided_slice %94 {offsets = [64, 0], sizes = [16, 512], strides = [1, 1]} : vector<128x512xbf16> to vector<16x512xbf16>
    %c144_89 = arith.constant 144 : index
    %c0_90 = arith.constant 0 : index
    %104 = vector.load %arg15[%c144_89, %c0_90] : memref<288x512xbf16, #tpu.memory_space<vmem>>, vector<16x512xbf16>
    tpu.vector_store %arg15[%c144_89, %c0_90], %103 {strides = array<i32>} : memref<288x512xbf16, #tpu.memory_space<vmem>>, vector<16x512xbf16>,
    %105 = vector.extract_strided_slice %94 {offsets = [80, 0], sizes = [16, 512], strides = [1, 1]} : vector<128x512xbf16> to vector<16x512xbf16>
    %c176 = arith.constant 176 : index
    %c0_91 = arith.constant 0 : index
    %106 = vector.load %arg15[%c176, %c0_91] : memref<288x512xbf16, #tpu.memory_space<vmem>>, vector<16x512xbf16>
    tpu.vector_store %arg15[%c176, %c0_91], %105 {strides = array<i32>} : memref<288x512xbf16, #tpu.memory_space<vmem>>, vector<16x512xbf16>,
    %107 = vector.extract_strided_slice %94 {offsets = [96, 0], sizes = [16, 512], strides = [1, 1]} : vector<128x512xbf16> to vector<16x512xbf16>
    %c208 = arith.constant 208 : index
    %c0_92 = arith.constant 0 : index
    %108 = vector.load %arg15[%c208, %c0_92] : memref<288x512xbf16, #tpu.memory_space<vmem>>, vector<16x512xbf16>
    tpu.vector_store %arg15[%c208, %c0_92], %107 {strides = array<i32>} : memref<288x512xbf16, #tpu.memory_space<vmem>>, vector<16x512xbf16>,
    %109 = vector.extract_strided_slice %94 {offsets = [112, 0], sizes = [16, 512], strides = [1, 1]} : vector<128x512xbf16> to vector<16x512xbf16>
    %c240 = arith.constant 240 : index
    %c0_93 = arith.constant 0 : index
    %110 = vector.load %arg15[%c240, %c0_93] : memref<288x512xbf16, #tpu.memory_space<vmem>>, vector<16x512xbf16>
    tpu.vector_store %arg15[%c240, %c0_93], %109 {strides = array<i32>} : memref<288x512xbf16, #tpu.memory_space<vmem>>, vector<16x512xbf16>,
    %c32_94 = arith.constant 32 : index
    %c0_95 = arith.constant 0 : index
    %111 = vector.load %arg14[%c32_94, %c0_95] : memref<160x256xbf16, #tpu.memory_space<vmem>>, vector<128x256xbf16>
    %c0_96 = arith.constant 0 : index
    %c0_97 = arith.constant 0 : index
    %c0_98 = arith.constant 0 : index
    %112 = vector.load %arg8[%c0_96, %c0_97, %c0_98] : memref<4x256x512xbf16, #tpu.memory_space<vmem>>, vector<1x256x512xbf16>
    %113 = vector.shape_cast %112 : vector<1x256x512xbf16> to vector<256x512xbf16>
    %cst_99 = arith.constant dense<0.000000e+00> : vector<128x512xf32>
    %114 = tpu.matmul %111, %113, %cst_99 {dimension_numbers = #tpu.dot_dimension_numbers<[1], [0], [0], [1], [0, 0, 1, 1], [], []>} : vector<128x256xbf16>, vector<256x512xbf16>, vector<128x512xf32> -> vector<128x512xf32>
    %c16_100 = arith.constant 16 : index
    %c0_101 = arith.constant 0 : index
    %115 = vector.load %arg14[%c16_100, %c0_101] : memref<160x256xbf16, #tpu.memory_space<vmem>>, vector<128x256xbf16>
    %c2_102 = arith.constant 2 : index
    %c0_103 = arith.constant 0 : index
    %c0_104 = arith.constant 0 : index
    %116 = vector.load %arg8[%c2_102, %c0_103, %c0_104] : memref<4x256x512xbf16, #tpu.memory_space<vmem>>, vector<1x256x512xbf16>
    %117 = vector.shape_cast %116 : vector<1x256x512xbf16> to vector<256x512xbf16>
    %cst_105 = arith.constant dense<0.000000e+00> : vector<128x512xf32>
    %118 = tpu.matmul %115, %117, %cst_105 {dimension_numbers = #tpu.dot_dimension_numbers<[1], [0], [0], [1], [0, 0, 1, 1], [], []>} : vector<128x256xbf16>, vector<256x512xbf16>, vector<128x512xf32> -> vector<128x512xf32>
    %119 = arith.addf %114, %118 : vector<128x512xf32>
    %120 = vector.broadcast %80 : vector<1x512xf32> to vector<128x512xf32>
    %121 = arith.addf %119, %120 : vector<128x512xf32>
    %cst_106 = arith.constant 0.000000e+00 : f32
    %122 = vector.broadcast %cst_106 : f32 to vector<128x512xf32>
    %123 = arith.maximumf %121, %122 : vector<128x512xf32>
    %124 = arith.truncf %123 : vector<128x512xf32> to vector<128x512xbf16>
    %125 = vector.extract_strided_slice %124 {offsets = [0, 0], sizes = [16, 512], strides = [1, 1]} : vector<128x512xbf16> to vector<16x512xbf16>
    %c32_107 = arith.constant 32 : index
    %c0_108 = arith.constant 0 : index
    %126 = vector.load %arg15[%c32_107, %c0_108] : memref<288x512xbf16, #tpu.memory_space<vmem>>, vector<16x512xbf16>
    tpu.vector_store %arg15[%c32_107, %c0_108], %125 {strides = array<i32>} : memref<288x512xbf16, #tpu.memory_space<vmem>>, vector<16x512xbf16>,
    %127 = vector.extract_strided_slice %124 {offsets = [16, 0], sizes = [16, 512], strides = [1, 1]} : vector<128x512xbf16> to vector<16x512xbf16>
    %c64_109 = arith.constant 64 : index
    %c0_110 = arith.constant 0 : index
    %128 = vector.load %arg15[%c64_109, %c0_110] : memref<288x512xbf16, #tpu.memory_space<vmem>>, vector<16x512xbf16>
    tpu.vector_store %arg15[%c64_109, %c0_110], %127 {strides = array<i32>} : memref<288x512xbf16, #tpu.memory_space<vmem>>, vector<16x512xbf16>,
    %129 = vector.extract_strided_slice %124 {offsets = [32, 0], sizes = [16, 512], strides = [1, 1]} : vector<128x512xbf16> to vector<16x512xbf16>
    %c96_111 = arith.constant 96 : index
    %c0_112 = arith.constant 0 : index
    %130 = vector.load %arg15[%c96_111, %c0_112] : memref<288x512xbf16, #tpu.memory_space<vmem>>, vector<16x512xbf16>
    tpu.vector_store %arg15[%c96_111, %c0_112], %129 {strides = array<i32>} : memref<288x512xbf16, #tpu.memory_space<vmem>>, vector<16x512xbf16>,
    %131 = vector.extract_strided_slice %124 {offsets = [48, 0], sizes = [16, 512], strides = [1, 1]} : vector<128x512xbf16> to vector<16x512xbf16>
    %c128_113 = arith.constant 128 : index
    %c0_114 = arith.constant 0 : index
    %132 = vector.load %arg15[%c128_113, %c0_114] : memref<288x512xbf16, #tpu.memory_space<vmem>>, vector<16x512xbf16>
    tpu.vector_store %arg15[%c128_113, %c0_114], %131 {strides = array<i32>} : memref<288x512xbf16, #tpu.memory_space<vmem>>, vector<16x512xbf16>,
    %133 = vector.extract_strided_slice %124 {offsets = [64, 0], sizes = [16, 512], strides = [1, 1]} : vector<128x512xbf16> to vector<16x512xbf16>
    %c160 = arith.constant 160 : index
    %c0_115 = arith.constant 0 : index
    %134 = vector.load %arg15[%c160, %c0_115] : memref<288x512xbf16, #tpu.memory_space<vmem>>, vector<16x512xbf16>
    tpu.vector_store %arg15[%c160, %c0_115], %133 {strides = array<i32>} : memref<288x512xbf16, #tpu.memory_space<vmem>>, vector<16x512xbf16>,
    %135 = vector.extract_strided_slice %124 {offsets = [80, 0], sizes = [16, 512], strides = [1, 1]} : vector<128x512xbf16> to vector<16x512xbf16>
    %c192 = arith.constant 192 : index
    %c0_116 = arith.constant 0 : index
    %136 = vector.load %arg15[%c192, %c0_116] : memref<288x512xbf16, #tpu.memory_space<vmem>>, vector<16x512xbf16>
    tpu.vector_store %arg15[%c192, %c0_116], %135 {strides = array<i32>} : memref<288x512xbf16, #tpu.memory_space<vmem>>, vector<16x512xbf16>,
    %137 = vector.extract_strided_slice %124 {offsets = [96, 0], sizes = [16, 512], strides = [1, 1]} : vector<128x512xbf16> to vector<16x512xbf16>
    %c224 = arith.constant 224 : index
    %c0_117 = arith.constant 0 : index
    %138 = vector.load %arg15[%c224, %c0_117] : memref<288x512xbf16, #tpu.memory_space<vmem>>, vector<16x512xbf16>
    tpu.vector_store %arg15[%c224, %c0_117], %137 {strides = array<i32>} : memref<288x512xbf16, #tpu.memory_space<vmem>>, vector<16x512xbf16>,
    %139 = vector.extract_strided_slice %124 {offsets = [112, 0], sizes = [16, 512], strides = [1, 1]} : vector<128x512xbf16> to vector<16x512xbf16>
    %c256 = arith.constant 256 : index
    %c0_118 = arith.constant 0 : index
    %140 = vector.load %arg15[%c256, %c0_118] : memref<288x512xbf16, #tpu.memory_space<vmem>>, vector<16x512xbf16>
    tpu.vector_store %arg15[%c256, %c0_118], %139 {strides = array<i32>} : memref<288x512xbf16, #tpu.memory_space<vmem>>, vector<16x512xbf16>,
    %c0_119 = arith.constant 0 : index
    %c0_120 = arith.constant 0 : index
    %141 = vector.load %arg11[%c0_119, %c0_120] : memref<1x32xf32, #tpu.memory_space<vmem>>, vector<1x32xf32>
    %c16_121 = arith.constant 16 : index
    %c0_122 = arith.constant 0 : index
    %142 = vector.load %arg15[%c16_121, %c0_122] : memref<288x512xbf16, #tpu.memory_space<vmem>>, vector<256x512xbf16>
    %c1_123 = arith.constant 1 : index
    %c0_124 = arith.constant 0 : index
    %c0_125 = arith.constant 0 : index
    %143 = vector.load %arg10[%c1_123, %c0_124, %c0_125] : memref<4x512x32xbf16, #tpu.memory_space<vmem>>, vector<1x512x32xbf16>
    %144 = vector.shape_cast %143 : vector<1x512x32xbf16> to vector<512x32xbf16>
    %cst_126 = arith.constant dense<0.000000e+00> : vector<256x32xf32>
    %145 = tpu.matmul %142, %144, %cst_126 {dimension_numbers = #tpu.dot_dimension_numbers<[1], [0], [0], [1], [0, 0, 1, 1], [], []>} : vector<256x512xbf16>, vector<512x32xbf16>, vector<256x32xf32> -> vector<256x32xf32>
    %c0_127 = arith.constant 0 : index
    %c0_128 = arith.constant 0 : index
    %146 = vector.load %arg15[%c0_127, %c0_128] : memref<288x512xbf16, #tpu.memory_space<vmem>>, vector<256x512xbf16>
    %c3_129 = arith.constant 3 : index
    %c0_130 = arith.constant 0 : index
    %c0_131 = arith.constant 0 : index
    %147 = vector.load %arg10[%c3_129, %c0_130, %c0_131] : memref<4x512x32xbf16, #tpu.memory_space<vmem>>, vector<1x512x32xbf16>
    %148 = vector.shape_cast %147 : vector<1x512x32xbf16> to vector<512x32xbf16>
    %cst_132 = arith.constant dense<0.000000e+00> : vector<256x32xf32>
    %149 = tpu.matmul %146, %148, %cst_132 {dimension_numbers = #tpu.dot_dimension_numbers<[1], [0], [0], [1], [0, 0, 1, 1], [], []>} : vector<256x512xbf16>, vector<512x32xbf16>, vector<256x32xf32> -> vector<256x32xf32>
    %150 = arith.addf %145, %149 : vector<256x32xf32>
    %151 = vector.broadcast %141 : vector<1x32xf32> to vector<256x32xf32>
    %152 = arith.addf %150, %151 : vector<256x32xf32>
    %153 = vector.shape_cast %152 : vector<256x32xf32> to vector<16x16x32xf32>
    %c0_133 = arith.constant 0 : index
    %c0_134 = arith.constant 0 : index
    %c0_135 = arith.constant 0 : index
    %c0_136 = arith.constant 0 : index
    %154 = vector.load %arg12[%c0_133, %c0_134, %c0_135, %c0_136] : memref<2x16x16x32xf32, #tpu.memory_space<vmem>>, vector<1x16x16x32xf32>
    %155 = vector.shape_cast %154 : vector<1x16x16x32xf32> to vector<16x16x32xf32>
    %156 = vector.shape_cast %153 : vector<16x16x32xf32> to vector<1x16x16x32xf32>
    tpu.vector_store %arg12[%c0_133, %c0_134, %c0_135, %c0_136], %156 {strides = array<i32>} : memref<2x16x16x32xf32, #tpu.memory_space<vmem>>, vector<1x16x16x32xf32>,
    %c32_137 = arith.constant 32 : index
    %c0_138 = arith.constant 0 : index
    %157 = vector.load %arg15[%c32_137, %c0_138] : memref<288x512xbf16, #tpu.memory_space<vmem>>, vector<256x512xbf16>
    %c0_139 = arith.constant 0 : index
    %c0_140 = arith.constant 0 : index
    %c0_141 = arith.constant 0 : index
    %158 = vector.load %arg10[%c0_139, %c0_140, %c0_141] : memref<4x512x32xbf16, #tpu.memory_space<vmem>>, vector<1x512x32xbf16>
    %159 = vector.shape_cast %158 : vector<1x512x32xbf16> to vector<512x32xbf16>
    %cst_142 = arith.constant dense<0.000000e+00> : vector<256x32xf32>
    %160 = tpu.matmul %157, %159, %cst_142 {dimension_numbers = #tpu.dot_dimension_numbers<[1], [0], [0], [1], [0, 0, 1, 1], [], []>} : vector<256x512xbf16>, vector<512x32xbf16>, vector<256x32xf32> -> vector<256x32xf32>
    %c16_143 = arith.constant 16 : index
    %c0_144 = arith.constant 0 : index
    %161 = vector.load %arg15[%c16_143, %c0_144] : memref<288x512xbf16, #tpu.memory_space<vmem>>, vector<256x512xbf16>
    %c2_145 = arith.constant 2 : index
    %c0_146 = arith.constant 0 : index
    %c0_147 = arith.constant 0 : index
    %162 = vector.load %arg10[%c2_145, %c0_146, %c0_147] : memref<4x512x32xbf16, #tpu.memory_space<vmem>>, vector<1x512x32xbf16>
    %163 = vector.shape_cast %162 : vector<1x512x32xbf16> to vector<512x32xbf16>
    %cst_148 = arith.constant dense<0.000000e+00> : vector<256x32xf32>
    %164 = tpu.matmul %161, %163, %cst_148 {dimension_numbers = #tpu.dot_dimension_numbers<[1], [0], [0], [1], [0, 0, 1, 1], [], []>} : vector<256x512xbf16>, vector<512x32xbf16>, vector<256x32xf32> -> vector<256x32xf32>
    %165 = arith.addf %160, %164 : vector<256x32xf32>
    %166 = vector.broadcast %141 : vector<1x32xf32> to vector<256x32xf32>
    %167 = arith.addf %165, %166 : vector<256x32xf32>
    %168 = vector.shape_cast %167 : vector<256x32xf32> to vector<16x16x32xf32>
    %c1_149 = arith.constant 1 : index
    %c0_150 = arith.constant 0 : index
    %c0_151 = arith.constant 0 : index
    %c0_152 = arith.constant 0 : index
    %169 = vector.load %arg12[%c1_149, %c0_150, %c0_151, %c0_152] : memref<2x16x16x32xf32, #tpu.memory_space<vmem>>, vector<1x16x16x32xf32>
    %170 = vector.shape_cast %169 : vector<1x16x16x32xf32> to vector<16x16x32xf32>
    %171 = vector.shape_cast %168 : vector<16x16x32xf32> to vector<1x16x16x32xf32>
    tpu.vector_store %arg12[%c1_149, %c0_150, %c0_151, %c0_152], %171 {strides = array<i32>} : memref<2x16x16x32xf32, #tpu.memory_space<vmem>>, vector<1x16x16x32xf32>,
    return
  }
  func.func @transform_0(%arg0: i32) -> (i32, i32) {
    %c0_i32 = arith.constant 0 : i32
    %c0_i32_0 = arith.constant 0 : i32
    return %arg0, %c0_i32 : i32, i32
  }
  func.func @transform_1(%arg0: i32) -> (i32, i32) {
    %c0_i32 = arith.constant 0 : i32
    %c0_i32_0 = arith.constant 0 : i32
    %c0_i32_1 = arith.constant 0 : i32
    return %c0_i32, %c0_i32_0 : i32, i32
  }
  func.func @transform_2(%arg0: i32) -> (i32, i32) {
    %c0_i32 = arith.constant 0 : i32
    %c0_i32_0 = arith.constant 0 : i32
    %c0_i32_1 = arith.constant 0 : i32
    return %c0_i32, %c0_i32_0 : i32, i32
  }
  func.func @transform_3(%arg0: i32) -> (i32, i32) {
    %c0_i32 = arith.constant 0 : i32
    %c0_i32_0 = arith.constant 0 : i32
    %c0_i32_1 = arith.constant 0 : i32
    return %c0_i32, %c0_i32_0 : i32, i32
  }
  func.func @transform_4(%arg0: i32) -> (i32, i32) {
    %c0_i32 = arith.constant 0 : i32
    %c0_i32_0 = arith.constant 0 : i32
    %c0_i32_1 = arith.constant 0 : i32
    return %c0_i32, %c0_i32_0 : i32, i32
  }
  func.func @transform_5(%arg0: i32) -> (i32, i32, i32) {
    %c0_i32 = arith.constant 0 : i32
    %c0_i32_0 = arith.constant 0 : i32
    %c0_i32_1 = arith.constant 0 : i32
    %c0_i32_2 = arith.constant 0 : i32
    return %c0_i32, %c0_i32_0, %c0_i32_1 : i32, i32, i32
  }
  func.func @transform_6(%arg0: i32) -> (i32, i32) {
    %c0_i32 = arith.constant 0 : i32
    %c0_i32_0 = arith.constant 0 : i32
    %c0_i32_1 = arith.constant 0 : i32
    return %c0_i32, %c0_i32_0 : i32, i32
  }
  func.func @transform_7(%arg0: i32) -> (i32, i32, i32) {
    %c0_i32 = arith.constant 0 : i32
    %c0_i32_0 = arith.constant 0 : i32
    %c0_i32_1 = arith.constant 0 : i32
    %c0_i32_2 = arith.constant 0 : i32
    return %c0_i32, %c0_i32_0, %c0_i32_1 : i32, i32, i32
  }
  func.func @transform_8(%arg0: i32) -> (i32, i32) {
    %c0_i32 = arith.constant 0 : i32
    %c0_i32_0 = arith.constant 0 : i32
    %c0_i32_1 = arith.constant 0 : i32
    return %c0_i32, %c0_i32_0 : i32, i32
  }
  func.func @transform_9(%arg0: i32) -> (i32, i32, i32) {
    %c0_i32 = arith.constant 0 : i32
    %c0_i32_0 = arith.constant 0 : i32
    %c0_i32_1 = arith.constant 0 : i32
    %c0_i32_2 = arith.constant 0 : i32
    return %c0_i32, %c0_i32_0, %c0_i32_1 : i32, i32, i32
  }
  func.func @transform_10(%arg0: i32) -> (i32, i32) {
    %c0_i32 = arith.constant 0 : i32
    %c0_i32_0 = arith.constant 0 : i32
    %c0_i32_1 = arith.constant 0 : i32
    return %c0_i32, %c0_i32_0 : i32, i32
  }
  func.func @transform_11(%arg0: i32) -> (i32, i32, i32, i32) {
    %c0_i32 = arith.constant 0 : i32
    %c0_i32_0 = arith.constant 0 : i32
    %c0_i32_1 = arith.constant 0 : i32
    %c0_i32_2 = arith.constant 0 : i32
    return %c0_i32, %c0_i32_0, %arg0, %c0_i32_1 : i32, i32, i32, i32
  }
}

</mosaic_0001>

<llo_original>
// kernel: decoder_a_forward.1
$region0: #{decoder_a_forward.1}
  #allocation0 [shape = 'u32[]', space=smem, size = 0x4, offset = 0x4, fixed_abs, tag = 'smem constant byte address 0x4 - core index']
  #allocation1 [shape = 'u32[144,128]{1,0:T(1,128)}', space=vmem, size = 0x12000, scoped, tag = 'internal scratch']
  #allocation2 [shape = 'bf16[96,256]{1,0:T(8,128)(2,1)}', space=vmem, size = 0xc000, scoped, tag = 'scratch operand']
  #allocation3 [shape = 'bf16[160,256]{1,0:T(8,128)(2,1)}', space=vmem, size = 0x14000, scoped, tag = 'scratch operand']
  #allocation4 [shape = 'bf16[288,512]{1,0:T(8,128)(2,1)}', space=vmem, size = 0x48000, scoped, tag = 'scratch operand']
  %s0 = inlined_call_operand.vmem [shape: f32[16,8], index: 0, kind: input, shape index: {}]
  %s1 = inlined_call_operand.vmem [shape: bf16[8,256], index: 1, kind: input, shape index: {}]
  %s2 = inlined_call_operand.vmem [shape: f32[1,256], index: 2, kind: input, shape index: {}]
  %s3 = inlined_call_operand.vmem [shape: bf16[256,1024], index: 3, kind: input, shape index: {}]
  %s4 = inlined_call_operand.vmem [shape: f32[1,1024], index: 4, kind: input, shape index: {}]
  %s5 = inlined_call_operand.hbm [shape: bf16[4,256,256], index: 5, kind: input, shape index: {}]
  %s6 = inlined_call_operand.vmem [shape: f32[1,256], index: 6, kind: input, shape index: {}]
  %s7 = inlined_call_operand.hbm [shape: bf16[4,256,512], index: 7, kind: input, shape index: {}]
  %s8 = inlined_call_operand.vmem [shape: f32[1,512], index: 8, kind: input, shape index: {}]
  %s9 = inlined_call_operand.vmem [shape: bf16[4,512,32], index: 9, kind: input, shape index: {}]
  %s10 = inlined_call_operand.vmem [shape: f32[1,32], index: 10, kind: input, shape index: {}]
  %s11 = inlined_call_operand.vmem [shape: f32[2,16,16,32], index: 11, kind: output, shape index: {}]
  %s12 = sld [smem:[#allocation0]]
  $region62: #{decoder_a_forward.1} parent=0
    _
  %s14 = ssub.s32 1, %s12
  %s15 = scalar_select 0, %s14, %s12
  $region1: #{decoder_a_forward.1} parent=0
    #allocation5 [shape = 'u8[524288]{0}', space=vmem, size = 0x80000, scoped, tag = 'input window, operand 5, single buffered']
    #allocation6 [shape = 's32[1]{0}', space=sflag, size = 0x4, scoped, tag = 'scoped memory for decoder_a_forward.1']
    #allocation7 [shape = 'u8[1048576]{0}', space=vmem, size = 0x100000, scoped, tag = 'input window, operand 7, single buffered']
    #allocation8 [shape = 's32[1]{0}', space=sflag, size = 0x4, scoped, tag = 'scoped memory for decoder_a_forward.1']
    %16 = vsyncpa [#allocation6], 0
    %17 = vsyncpa [#allocation8], 0
    // Predicated region
    $region2: #{decoder_a_forward.1} parent=1 // pred_check
      _
    $region3: #{decoder_a_forward.1} parent=1 // pred_check_branch
      %19 = sbr.rel (0) target = $region5
    $region4: #{decoder_a_forward.1} parent=1 // pred_region
      _
    $region5: #{decoder_a_forward.1} parent=1 // pred_fallthru
      _
    // Predicated region
    $region6: #{decoder_a_forward.1} parent=1 // pred_check
      _
    $region7: #{decoder_a_forward.1} parent=1 // pred_check_branch
      %21 = sbr.rel (0) target = $region9
    $region8: #{decoder_a_forward.1} parent=1 // pred_region
      _
    $region9: #{decoder_a_forward.1} parent=1 // pred_fallthru
      _
    // Predicated region
    $region10: #{decoder_a_forward.1} parent=1 // pred_check
      _
    $region11: #{decoder_a_forward.1} parent=1 // pred_check_branch
      %23 = sbr.rel (0) target = $region13
    $region12: #{decoder_a_forward.1} parent=1 // pred_region
      _
    $region13: #{decoder_a_forward.1} parent=1 // pred_fallthru
      _
    // Predicated region
    $region14: #{decoder_a_forward.1} parent=1 // pred_check
      _
    $region15: #{decoder_a_forward.1} parent=1 // pred_check_branch
      %25 = sbr.rel (0) target = $region17
    $region16: #{decoder_a_forward.1} parent=1 // pred_region
      _
    $region17: #{decoder_a_forward.1} parent=1 // pred_fallthru
      _
    // Predicated region
    $region18: #{decoder_a_forward.1} parent=1 // pred_check
      _
    $region19: #{decoder_a_forward.1} parent=1 // pred_check_branch
      %27 = sbr.rel (0) target = $region21
    $region20: #{decoder_a_forward.1} parent=1 // pred_region
      _
    $region21: #{decoder_a_forward.1} parent=1 // pred_fallthru
      _
    // Predicated region
    $region22: #{decoder_a_forward.1} parent=1 // pred_check
      _
    $region23: #{decoder_a_forward.1} parent=1 // pred_check_branch
      %29 = sbr.rel (0) target = $region25
    $region24: #{decoder_a_forward.1} parent=1 // pred_region
      %s31 = ssub.s32 16384, 16384
      %32 = vsyncadd [#allocation6], %s31
      %s33 = sshll.u32 [#allocation5], 4
      %s34 = int_to_ptr.vmem [resolvable:$true] %s33
      %39 = dma.hbm_to_vmem [thread:$0]  %s5, 16384, %s34, [#allocation6], 128, 128, 8
    $region25: #{decoder_a_forward.1} parent=1 // pred_fallthru
      _
    // Predicated region
    $region26: #{decoder_a_forward.1} parent=1 // pred_check
      _
    $region27: #{decoder_a_forward.1} parent=1 // pred_check_branch
      %41 = sbr.rel (0) target = $region29
    $region28: #{decoder_a_forward.1} parent=1 // pred_region
      _
    $region29: #{decoder_a_forward.1} parent=1 // pred_fallthru
      _
    // Predicated region
    $region30: #{decoder_a_forward.1} parent=1 // pred_check
      _
    $region31: #{decoder_a_forward.1} parent=1 // pred_check_branch
      %43 = sbr.rel (0) target = $region33
    $region32: #{decoder_a_forward.1} parent=1 // pred_region
      %s45 = ssub.s32 32768, 32768
      %46 = vsyncadd [#allocation8], %s45
      %s47 = sshll.u32 [#allocation7], 4
      %s48 = int_to_ptr.vmem [resolvable:$true] %s47
      %53 = dma.hbm_to_vmem [thread:$0]  %s7, 32768, %s48, [#allocation8], 256, 256, 16
    $region33: #{decoder_a_forward.1} parent=1 // pred_fallthru
      _
    // Predicated region
    $region34: #{decoder_a_forward.1} parent=1 // pred_check
      _
    $region35: #{decoder_a_forward.1} parent=1 // pred_check_branch
      %55 = sbr.rel (0) target = $region37
    $region36: #{decoder_a_forward.1} parent=1 // pred_region
      _
    $region37: #{decoder_a_forward.1} parent=1 // pred_fallthru
      _
    // Predicated region
    $region38: #{decoder_a_forward.1} parent=1 // pred_check
      _
    $region39: #{decoder_a_forward.1} parent=1 // pred_check_branch
      %57 = sbr.rel (0) target = $region41
    $region40: #{decoder_a_forward.1} parent=1 // pred_region
      _
    $region41: #{decoder_a_forward.1} parent=1 // pred_fallthru
      _
    // Predicated region
    $region42: #{decoder_a_forward.1} parent=1 // pred_check
      _
    $region43: #{decoder_a_forward.1} parent=1 // pred_check_branch
      %59 = sbr.rel (0) target = $region45
    $region44: #{decoder_a_forward.1} parent=1 // pred_region
      _
    $region45: #{decoder_a_forward.1} parent=1 // pred_fallthru
      _
    // Predicated region
    $region46: #{decoder_a_forward.1} parent=1 // pred_check
      _
    $region47: #{decoder_a_forward.1} parent=1 // pred_check_branch
      %61 = sbr.rel (0) target = $region49
    $region48: #{decoder_a_forward.1} parent=1 // pred_region
      %62 = dma.done [#allocation6], 16384
    $region49: #{decoder_a_forward.1} parent=1 // pred_fallthru
      _
    // Predicated region
    $region50: #{decoder_a_forward.1} parent=1 // pred_check
      _
    $region51: #{decoder_a_forward.1} parent=1 // pred_check_branch
      %64 = sbr.rel (0) target = $region53
    $region52: #{decoder_a_forward.1} parent=1 // pred_region
      %65 = dma.done [#allocation8], 32768
    $region53: #{decoder_a_forward.1} parent=1 // pred_fallthru
      _
    %v67 = vld [vmem:[%s0] sm:$0xff]
    %v68 = vld [vmem:[%s0 + $0x8] sm:$0xff]
    %v69 = vpack.c.bf16 %v68, %v67
    %v70 = vld [vmem:[%s1] sm:$0xff]
    %v71 = vld [vmem:[%s2] sm:$0x3]
    %v73 = vlaneseq
    %v74 = vshrl.u32 %v73, 7
    %v75 = vsub.s32 0, %v74
    %v76 = vrot.slane %v71, %v75
    %v77 = vlaneseq
    %v78 = vshrl.u32 %v77, 7
    %v79 = vsub.s32 1, %v78
    %v80 = vrot.slane %v71, %v79
    %v84 = vunpack.c.l.b16 %v70
    %v85 = vunpack.c.h.b16 %v70
    %v86 = vpack.c.b16 %v84, %v84
    %v87 = vpack.c.b16 %v85, %v85
    %vm88 = vcmask 64512
    %v90 = vsel %vm88, %v69, 0
    %vm92 = vcmask 1043456
    %v94 = vsel %vm92, %v86, 0
    %v97 = vsel %vm92, %v87, 0
    %99 = vmatprep.subr.bf16.mxu0 0
    %100 = vmatpush1.bf16.msra.mxu0 0
    %101 = vmatprep.subr.bf16.mxu0 0
    %102 = vmatpush1.bf16.msra.mxu0 0
    %103 = vmatprep.subr.bf16.mxu0 0
    %104 = vmatpush1.bf16.msra.mxu0 0
    %105 = vmatprep.subr.bf16.mxu0 0
    %106 = vmatpush1.bf16.msra.mxu0 0
    %107 = vmatprep.subr.bf16.mxu0 0
    %108 = vmatpush1.bf16.msra.mxu0 0
    %109 = vmatprep.subr.bf16.mxu0 0
    %110 = vmatpush1.bf16.msra.mxu0 0
    %111 = vmatprep.subr.bf16.mxu0 0
    %112 = vmatpush1.bf16.msra.mxu0 0
    %113 = vmatprep.subr.bf16.mxu0 %v97
    %114 = vmatpush1.bf16.msra.mxu0 %v94
    %115 = vmatprep.subr.bf16.mxu0 0
    %116 = vmatpush2.bf16.msra.mxu0 0
    %117 = vmatprep.subr.bf16.mxu0 0
    %118 = vmatpush2.bf16.msra.mxu0 0
    %119 = vmatprep.subr.bf16.mxu0 0
    %120 = vmatpush2.bf16.msra.mxu0 0
    %121 = vmatprep.subr.bf16.mxu0 0
    %122 = vmatpush2.bf16.msra.mxu0 0
    %123 = vmatprep.subr.bf16.mxu0 0
    %124 = vmatpush2.bf16.msra.mxu0 0
    %125 = vmatprep.subr.bf16.mxu0 0
    %126 = vmatpush2.bf16.msra.mxu0 0
    %127 = vmatprep.subr.bf16.mxu0 0
    %128 = vmatpush2.bf16.msra.mxu0 0
    %129 = vmatprep.subr.bf16.mxu0 0
    %130 = vmatpush2.bf16.msra.mxu0 0
    %131 = vmatprep.mubr.bf16.mxu0 0
    %132 = vmatmul.mubr.bf16.gmra.mxu0 %v90
    %v133 = vpop.f32.mrf.mxu0
    %v134 = vadd.f32 %v76, %v133
    %v135 = vpop.f32.mrf.mxu0
    %v136 = vadd.f32 %v80, %v135
    %v137 = vpop.f32.mrf.mxu0
    %v138 = vadd.f32 %v76, %v137
    %v139 = vpop.f32.mrf.mxu0
    %v140 = vadd.f32 %v80, %v139
    %141 = vdwg.mxu0
    %v142 = vmax.f32 %v134, 0.0
    %v143 = vmax.f32 %v136, 0.0
    %v144 = vmax.f32 %v138, 0.0
    %v145 = vmax.f32 %v140, 0.0
    %v146 = vpack.c.bf16 %v144, %v142
    %v147 = vpack.c.bf16 %v145, %v143
    %v148 = vld [vmem:[%s3] sm:$0xff]
    %v149 = vld [vmem:[%s3 + $0x8] sm:$0xff]
    %v150 = vld [vmem:[%s3 + $0x10] sm:$0xff]
    %v151 = vld [vmem:[%s3 + $0x18] sm:$0xff]
    %v152 = vld [vmem:[%s3 + $0x20] sm:$0xff]
    %v153 = vld [vmem:[%s3 + $0x28] sm:$0xff]
    %v154 = vld [vmem:[%s3 + $0x30] sm:$0xff]
    %v155 = vld [vmem:[%s3 + $0x38] sm:$0xff]
    %v156 = vld [vmem:[%s3 + $0x40] sm:$0xff]
    %v157 = vld [vmem:[%s3 + $0x48] sm:$0xff]
    %v158 = vld [vmem:[%s3 + $0x50] sm:$0xff]
    %v159 = vld [vmem:[%s3 + $0x58] sm:$0xff]
    %v160 = vld [vmem:[%s3 + $0x60] sm:$0xff]
    %v161 = vld [vmem:[%s3 + $0x68] sm:$0xff]
    %v162 = vld [vmem:[%s3 + $0x70] sm:$0xff]
    %v163 = vld [vmem:[%s3 + $0x78] sm:$0xff]
    %v164 = vld [vmem:[%s3 + $0x80] sm:$0xff]
    %v165 = vld [vmem:[%s3 + $0x88] sm:$0xff]
    %v166 = vld [vmem:[%s3 + $0x90] sm:$0xff]
    %v167 = vld [vmem:[%s3 + $0x98] sm:$0xff]
    %v168 = vld [vmem:[%s3 + $0xa0] sm:$0xff]
    %v169 = vld [vmem:[%s3 + $0xa8] sm:$0xff]
    %v170 = vld [vmem:[%s3 + $0xb0] sm:$0xff]
    %v171 = vld [vmem:[%s3 + $0xb8] sm:$0xff]
    %v172 = vld [vmem:[%s3 + $0xc0] sm:$0xff]
    %v173 = vld [vmem:[%s3 + $0xc8] sm:$0xff]
    %v174 = vld [vmem:[%s3 + $0xd0] sm:$0xff]
    %v175 = vld [vmem:[%s3 + $0xd8] sm:$0xff]
    %v176 = vld [vmem:[%s3 + $0xe0] sm:$0xff]
    %v177 = vld [vmem:[%s3 + $0xe8] sm:$0xff]
    %v178 = vld [vmem:[%s3 + $0xf0] sm:$0xff]
    %v179 = vld [vmem:[%s3 + $0xf8] sm:$0xff]
    %v180 = vld [vmem:[%s3 + $0x100] sm:$0xff]
    %v181 = vld [vmem:[%s3 + $0x108] sm:$0xff]
    %v182 = vld [vmem:[%s3 + $0x110] sm:$0xff]
    %v183 = vld [vmem:[%s3 + $0x118] sm:$0xff]
    %v184 = vld [vmem:[%s3 + $0x120] sm:$0xff]
    %v185 = vld [vmem:[%s3 + $0x128] sm:$0xff]
    %v186 = vld [vmem:[%s3 + $0x130] sm:$0xff]
    %v187 = vld [vmem:[%s3 + $0x138] sm:$0xff]
    %v188 = vld [vmem:[%s3 + $0x140] sm:$0xff]
    %v189 = vld [vmem:[%s3 + $0x148] sm:$0xff]
    %v190 = vld [vmem:[%s3 + $0x150] sm:$0xff]
    %v191 = vld [vmem:[%s3 + $0x158] sm:$0xff]
    %v192 = vld [vmem:[%s3 + $0x160] sm:$0xff]
    %v193 = vld [vmem:[%s3 + $0x168] sm:$0xff]
    %v194 = vld [vmem:[%s3 + $0x170] sm:$0xff]
    %v195 = vld [vmem:[%s3 + $0x178] sm:$0xff]
    %v196 = vld [vmem:[%s3 + $0x180] sm:$0xff]
    %v197 = vld [vmem:[%s3 + $0x188] sm:$0xff]
    %v198 = vld [vmem:[%s3 + $0x190] sm:$0xff]
    %v199 = vld [vmem:[%s3 + $0x198] sm:$0xff]
    %v200 = vld [vmem:[%s3 + $0x1a0] sm:$0xff]
    %v201 = vld [vmem:[%s3 + $0x1a8] sm:$0xff]
    %v202 = vld [vmem:[%s3 + $0x1b0] sm:$0xff]
    %v203 = vld [vmem:[%s3 + $0x1b8] sm:$0xff]
    %v204 = vld [vmem:[%s3 + $0x1c0] sm:$0xff]
    %v205 = vld [vmem:[%s3 + $0x1c8] sm:$0xff]
    %v206 = vld [vmem:[%s3 + $0x1d0] sm:$0xff]
    %v207 = vld [vmem:[%s3 + $0x1d8] sm:$0xff]
    %v208 = vld [vmem:[%s3 + $0x1e0] sm:$0xff]
    %v209 = vld [vmem:[%s3 + $0x1e8] sm:$0xff]
    %v210 = vld [vmem:[%s3 + $0x1f0] sm:$0xff]
    %v211 = vld [vmem:[%s3 + $0x1f8] sm:$0xff]
    %v212 = vld [vmem:[%s3 + $0x200] sm:$0xff]
    %v213 = vld [vmem:[%s3 + $0x208] sm:$0xff]
    %v214 = vld [vmem:[%s3 + $0x210] sm:$0xff]
    %v215 = vld [vmem:[%s3 + $0x218] sm:$0xff]
    %v216 = vld [vmem:[%s3 + $0x220] sm:$0xff]
    %v217 = vld [vmem:[%s3 + $0x228] sm:$0xff]
    %v218 = vld [vmem:[%s3 + $0x230] sm:$0xff]
    %v219 = vld [vmem:[%s3 + $0x238] sm:$0xff]
    %v220 = vld [vmem:[%s3 + $0x240] sm:$0xff]
    %v221 = vld [vmem:[%s3 + $0x248] sm:$0xff]
    %v222 = vld [vmem:[%s3 + $0x250] sm:$0xff]
    %v223 = vld [vmem:[%s3 + $0x258] sm:$0xff]
    %v224 = vld [vmem:[%s3 + $0x260] sm:$0xff]
    %v225 = vld [vmem:[%s3 + $0x268] sm:$0xff]
    %v226 = vld [vmem:[%s3 + $0x270] sm:$0xff]
    %v227 = vld [vmem:[%s3 + $0x278] sm:$0xff]
    %v228 = vld [vmem:[%s3 + $0x280] sm:$0xff]
    %v229 = vld [vmem:[%s3 + $0x288] sm:$0xff]
    %v230 = vld [vmem:[%s3 + $0x290] sm:$0xff]
    %v231 = vld [vmem:[%s3 + $0x298] sm:$0xff]
    %v232 = vld [vmem:[%s3 + $0x2a0] sm:$0xff]
    %v233 = vld [vmem:[%s3 + $0x2a8] sm:$0xff]
    %v234 = vld [vmem:[%s3 + $0x2b0] sm:$0xff]
    %v235 = vld [vmem:[%s3 + $0x2b8] sm:$0xff]
    %v236 = vld [vmem:[%s3 + $0x2c0] sm:$0xff]
    %v237 = vld [vmem:[%s3 + $0x2c8] sm:$0xff]
    %v238 = vld [vmem:[%s3 + $0x2d0] sm:$0xff]
    %v239 = vld [vmem:[%s3 + $0x2d8] sm:$0xff]
    %v240 = vld [vmem:[%s3 + $0x2e0] sm:$0xff]
    %v241 = vld [vmem:[%s3 + $0x2e8] sm:$0xff]
    %v242 = vld [vmem:[%s3 + $0x2f0] sm:$0xff]
    %v243 = vld [vmem:[%s3 + $0x2f8] sm:$0xff]
    %v244 = vld [vmem:[%s3 + $0x300] sm:$0xff]
    %v245 = vld [vmem:[%s3 + $0x308] sm:$0xff]
    %v246 = vld [vmem:[%s3 + $0x310] sm:$0xff]
    %v247 = vld [vmem:[%s3 + $0x318] sm:$0xff]
    %v248 = vld [vmem:[%s3 + $0x320] sm:$0xff]
    %v249 = vld [vmem:[%s3 + $0x328] sm:$0xff]
    %v250 = vld [vmem:[%s3 + $0x330] sm:$0xff]
    %v251 = vld [vmem:[%s3 + $0x338] sm:$0xff]
    %v252 = vld [vmem:[%s3 + $0x340] sm:$0xff]
    %v253 = vld [vmem:[%s3 + $0x348] sm:$0xff]
    %v254 = vld [vmem:[%s3 + $0x350] sm:$0xff]
    %v255 = vld [vmem:[%s3 + $0x358] sm:$0xff]
    %v256 = vld [vmem:[%s3 + $0x360] sm:$0xff]
    %v257 = vld [vmem:[%s3 + $0x368] sm:$0xff]
    %v258 = vld [vmem:[%s3 + $0x370] sm:$0xff]
    %v259 = vld [vmem:[%s3 + $0x378] sm:$0xff]
    %v260 = vld [vmem:[%s3 + $0x380] sm:$0xff]
    %v261 = vld [vmem:[%s3 + $0x388] sm:$0xff]
    %v262 = vld [vmem:[%s3 + $0x390] sm:$0xff]
    %v263 = vld [vmem:[%s3 + $0x398] sm:$0xff]
    %v264 = vld [vmem:[%s3 + $0x3a0] sm:$0xff]
    %v265 = vld [vmem:[%s3 + $0x3a8] sm:$0xff]
    %v266 = vld [vmem:[%s3 + $0x3b0] sm:$0xff]
    %v267 = vld [vmem:[%s3 + $0x3b8] sm:$0xff]
    %v268 = vld [vmem:[%s3 + $0x3c0] sm:$0xff]
    %v269 = vld [vmem:[%s3 + $0x3c8] sm:$0xff]
    %v270 = vld [vmem:[%s3 + $0x3d0] sm:$0xff]
    %v271 = vld [vmem:[%s3 + $0x3d8] sm:$0xff]
    %v272 = vld [vmem:[%s3 + $0x3e0] sm:$0xff]
    %v273 = vld [vmem:[%s3 + $0x3e8] sm:$0xff]
    %v274 = vld [vmem:[%s3 + $0x3f0] sm:$0xff]
    %v275 = vld [vmem:[%s3 + $0x3f8] sm:$0xff]
    %v276 = vld [vmem:[%s4] sm:$0xff]
    %v278 = vlaneseq
    %v279 = vshrl.u32 %v278, 7
    %v280 = vsub.s32 0, %v279
    %v281 = vrot.slane %v276, %v280
    %v282 = vlaneseq
    %v283 = vshrl.u32 %v282, 7
    %v284 = vsub.s32 1, %v283
    %v285 = vrot.slane %v276, %v284
    %v286 = vlaneseq
    %v287 = vshrl.u32 %v286, 7
    %v288 = vsub.s32 2, %v287
    %v289 = vrot.slane %v276, %v288
    %v290 = vlaneseq
    %v291 = vshrl.u32 %v290, 7
    %v292 = vsub.s32 3, %v291
    %v293 = vrot.slane %v276, %v292
    %v294 = vlaneseq
    %v295 = vshrl.u32 %v294, 7
    %v296 = vsub.s32 4, %v295
    %v297 = vrot.slane %v276, %v296
    %v298 = vlaneseq
    %v299 = vshrl.u32 %v298, 7
    %v300 = vsub.s32 5, %v299
    %v301 = vrot.slane %v276, %v300
    %v302 = vlaneseq
    %v303 = vshrl.u32 %v302, 7
    %v304 = vsub.s32 6, %v303
    %v305 = vrot.slane %v276, %v304
    %v306 = vlaneseq
    %v307 = vshrl.u32 %v306, 7
    %v308 = vsub.s32 7, %v307
    %v309 = vrot.slane %v276, %v308
    %v446 = vunpack.c.l.b16 %v148
    %v447 = vunpack.c.h.b16 %v148
    %v448 = vunpack.c.l.b16 %v149
    %v449 = vunpack.c.h.b16 %v149
    %v450 = vunpack.c.l.b16 %v150
    %v451 = vunpack.c.h.b16 %v150
    %v452 = vunpack.c.l.b16 %v151
    %v453 = vunpack.c.h.b16 %v151
    %v454 = vunpack.c.l.b16 %v152
    %v455 = vunpack.c.h.b16 %v152
    %v456 = vunpack.c.l.b16 %v153
    %v457 = vunpack.c.h.b16 %v153
    %v458 = vunpack.c.l.b16 %v154
    %v459 = vunpack.c.h.b16 %v154
    %v460 = vunpack.c.l.b16 %v155
    %v461 = vunpack.c.h.b16 %v155
    %v462 = vunpack.c.l.b16 %v156
    %v463 = vunpack.c.h.b16 %v156
    %v464 = vunpack.c.l.b16 %v157
    %v465 = vunpack.c.h.b16 %v157
    %v466 = vunpack.c.l.b16 %v158
    %v467 = vunpack.c.h.b16 %v158
    %v468 = vunpack.c.l.b16 %v159
    %v469 = vunpack.c.h.b16 %v159
    %v470 = vunpack.c.l.b16 %v160
    %v471 = vunpack.c.h.b16 %v160
    %v472 = vunpack.c.l.b16 %v161
    %v473 = vunpack.c.h.b16 %v161
    %v474 = vunpack.c.l.b16 %v162
    %v475 = vunpack.c.h.b16 %v162
    %v476 = vunpack.c.l.b16 %v163
    %v477 = vunpack.c.h.b16 %v163
    %v478 = vunpack.c.l.b16 %v164
    %v479 = vunpack.c.h.b16 %v164
    %v480 = vunpack.c.l.b16 %v165
    %v481 = vunpack.c.h.b16 %v165
    %v482 = vunpack.c.l.b16 %v166
    %v483 = vunpack.c.h.b16 %v166
    %v484 = vunpack.c.l.b16 %v167
    %v485 = vunpack.c.h.b16 %v167
    %v486 = vunpack.c.l.b16 %v168
    %v487 = vunpack.c.h.b16 %v168
    %v488 = vunpack.c.l.b16 %v169
    %v489 = vunpack.c.h.b16 %v169
    %v490 = vunpack.c.l.b16 %v170
    %v491 = vunpack.c.h.b16 %v170
    %v492 = vunpack.c.l.b16 %v171
    %v493 = vunpack.c.h.b16 %v171
    %v494 = vunpack.c.l.b16 %v172
    %v495 = vunpack.c.h.b16 %v172
    %v496 = vunpack.c.l.b16 %v173
    %v497 = vunpack.c.h.b16 %v173
    %v498 = vunpack.c.l.b16 %v174
    %v499 = vunpack.c.h.b16 %v174
    %v500 = vunpack.c.l.b16 %v175
    %v501 = vunpack.c.h.b16 %v175
    %v502 = vunpack.c.l.b16 %v176
    %v503 = vunpack.c.h.b16 %v176
    %v504 = vunpack.c.l.b16 %v177
    %v505 = vunpack.c.h.b16 %v177
    %v506 = vunpack.c.l.b16 %v178
    %v507 = vunpack.c.h.b16 %v178
    %v508 = vunpack.c.l.b16 %v179
    %v509 = vunpack.c.h.b16 %v179
    %v510 = vunpack.c.l.b16 %v180
    %v511 = vunpack.c.h.b16 %v180
    %v512 = vunpack.c.l.b16 %v181
    %v513 = vunpack.c.h.b16 %v181
    %v514 = vunpack.c.l.b16 %v182
    %v515 = vunpack.c.h.b16 %v182
    %v516 = vunpack.c.l.b16 %v183
    %v517 = vunpack.c.h.b16 %v183
    %v518 = vunpack.c.l.b16 %v184
    %v519 = vunpack.c.h.b16 %v184
    %v520 = vunpack.c.l.b16 %v185
    %v521 = vunpack.c.h.b16 %v185
    %v522 = vunpack.c.l.b16 %v186
    %v523 = vunpack.c.h.b16 %v186
    %v524 = vunpack.c.l.b16 %v187
    %v525 = vunpack.c.h.b16 %v187
    %v526 = vunpack.c.l.b16 %v188
    %v527 = vunpack.c.h.b16 %v188
    %v528 = vunpack.c.l.b16 %v189
    %v529 = vunpack.c.h.b16 %v189
    %v530 = vunpack.c.l.b16 %v190
    %v531 = vunpack.c.h.b16 %v190
    %v532 = vunpack.c.l.b16 %v191
    %v533 = vunpack.c.h.b16 %v191
    %v534 = vunpack.c.l.b16 %v192
    %v535 = vunpack.c.h.b16 %v192
    %v536 = vunpack.c.l.b16 %v193
    %v537 = vunpack.c.h.b16 %v193
    %v538 = vunpack.c.l.b16 %v194
    %v539 = vunpack.c.h.b16 %v194
    %v540 = vunpack.c.l.b16 %v195
    %v541 = vunpack.c.h.b16 %v195
    %v542 = vunpack.c.l.b16 %v196
    %v543 = vunpack.c.h.b16 %v196
    %v544 = vunpack.c.l.b16 %v197
    %v545 = vunpack.c.h.b16 %v197
    %v546 = vunpack.c.l.b16 %v198
    %v547 = vunpack.c.h.b16 %v198
    %v548 = vunpack.c.l.b16 %v199
    %v549 = vunpack.c.h.b16 %v199
    %v550 = vunpack.c.l.b16 %v200
    %v551 = vunpack.c.h.b16 %v200
    %v552 = vunpack.c.l.b16 %v201
    %v553 = vunpack.c.h.b16 %v201
    %v554 = vunpack.c.l.b16 %v202
    %v555 = vunpack.c.h.b16 %v202
    %v556 = vunpack.c.l.b16 %v203
    %v557 = vunpack.c.h.b16 %v203
    %v558 = vunpack.c.l.b16 %v204
    %v559 = vunpack.c.h.b16 %v204
    %v560 = vunpack.c.l.b16 %v205
    %v561 = vunpack.c.h.b16 %v205
    %v562 = vunpack.c.l.b16 %v206
    %v563 = vunpack.c.h.b16 %v206
    %v564 = vunpack.c.l.b16 %v207
    %v565 = vunpack.c.h.b16 %v207
    %v566 = vunpack.c.l.b16 %v208
    %v567 = vunpack.c.h.b16 %v208
    %v568 = vunpack.c.l.b16 %v209
    %v569 = vunpack.c.h.b16 %v209
    %v570 = vunpack.c.l.b16 %v210
    %v571 = vunpack.c.h.b16 %v210
    %v572 = vunpack.c.l.b16 %v211
    %v573 = vunpack.c.h.b16 %v211
    %v574 = vunpack.c.l.b16 %v212
    %v575 = vunpack.c.h.b16 %v212
    %v576 = vunpack.c.l.b16 %v213
    %v577 = vunpack.c.h.b16 %v213
    %v578 = vunpack.c.l.b16 %v214
    %v579 = vunpack.c.h.b16 %v214
    %v580 = vunpack.c.l.b16 %v215
    %v581 = vunpack.c.h.b16 %v215
    %v582 = vunpack.c.l.b16 %v216
    %v583 = vunpack.c.h.b16 %v216
    %v584 = vunpack.c.l.b16 %v217
    %v585 = vunpack.c.h.b16 %v217
    %v586 = vunpack.c.l.b16 %v218
    %v587 = vunpack.c.h.b16 %v218
    %v588 = vunpack.c.l.b16 %v219
    %v589 = vunpack.c.h.b16 %v219
    %v590 = vunpack.c.l.b16 %v220
    %v591 = vunpack.c.h.b16 %v220
    %v592 = vunpack.c.l.b16 %v221
    %v593 = vunpack.c.h.b16 %v221
    %v594 = vunpack.c.l.b16 %v222
    %v595 = vunpack.c.h.b16 %v222
    %v596 = vunpack.c.l.b16 %v223
    %v597 = vunpack.c.h.b16 %v223
    %v598 = vunpack.c.l.b16 %v224
    %v599 = vunpack.c.h.b16 %v224
    %v600 = vunpack.c.l.b16 %v225
    %v601 = vunpack.c.h.b16 %v225
    %v602 = vunpack.c.l.b16 %v226
    %v603 = vunpack.c.h.b16 %v226
    %v604 = vunpack.c.l.b16 %v227
    %v605 = vunpack.c.h.b16 %v227
    %v606 = vunpack.c.l.b16 %v228
    %v607 = vunpack.c.h.b16 %v228
    %v608 = vunpack.c.l.b16 %v229
    %v609 = vunpack.c.h.b16 %v229
    %v610 = vunpack.c.l.b16 %v230
    %v611 = vunpack.c.h.b16 %v230
    %v612 = vunpack.c.l.b16 %v231
    %v613 = vunpack.c.h.b16 %v231
    %v614 = vunpack.c.l.b16 %v232
    %v615 = vunpack.c.h.b16 %v232
    %v616 = vunpack.c.l.b16 %v233
    %v617 = vunpack.c.h.b16 %v233
    %v618 = vunpack.c.l.b16 %v234
    %v619 = vunpack.c.h.b16 %v234
    %v620 = vunpack.c.l.b16 %v235
    %v621 = vunpack.c.h.b16 %v235
    %v622 = vunpack.c.l.b16 %v236
    %v623 = vunpack.c.h.b16 %v236
    %v624 = vunpack.c.l.b16 %v237
    %v625 = vunpack.c.h.b16 %v237
    %v626 = vunpack.c.l.b16 %v238
    %v627 = vunpack.c.h.b16 %v238
    %v628 = vunpack.c.l.b16 %v239
    %v629 = vunpack.c.h.b16 %v239
    %v630 = vunpack.c.l.b16 %v240
    %v631 = vunpack.c.h.b16 %v240
    %v632 = vunpack.c.l.b16 %v241
    %v633 = vunpack.c.h.b16 %v241
    %v634 = vunpack.c.l.b16 %v242
    %v635 = vunpack.c.h.b16 %v242
    %v636 = vunpack.c.l.b16 %v243
    %v637 = vunpack.c.h.b16 %v243
    %v638 = vunpack.c.l.b16 %v244
    %v639 = vunpack.c.h.b16 %v244
    %v640 = vunpack.c.l.b16 %v245
    %v641 = vunpack.c.h.b16 %v245
    %v642 = vunpack.c.l.b16 %v246
    %v643 = vunpack.c.h.b16 %v246
    %v644 = vunpack.c.l.b16 %v247
    %v645 = vunpack.c.h.b16 %v247
    %v646 = vunpack.c.l.b16 %v248
    %v647 = vunpack.c.h.b16 %v248
    %v648 = vunpack.c.l.b16 %v249
    %v649 = vunpack.c.h.b16 %v249
    %v650 = vunpack.c.l.b16 %v250
    %v651 = vunpack.c.h.b16 %v250
    %v652 = vunpack.c.l.b16 %v251
    %v653 = vunpack.c.h.b16 %v251
    %v654 = vunpack.c.l.b16 %v252
    %v655 = vunpack.c.h.b16 %v252
    %v656 = vunpack.c.l.b16 %v253
    %v657 = vunpack.c.h.b16 %v253
    %v658 = vunpack.c.l.b16 %v254
    %v659 = vunpack.c.h.b16 %v254
    %v660 = vunpack.c.l.b16 %v255
    %v661 = vunpack.c.h.b16 %v255
    %v662 = vunpack.c.l.b16 %v256
    %v663 = vunpack.c.h.b16 %v256
    %v664 = vunpack.c.l.b16 %v257
    %v665 = vunpack.c.h.b16 %v257
    %v666 = vunpack.c.l.b16 %v258
    %v667 = vunpack.c.h.b16 %v258
    %v668 = vunpack.c.l.b16 %v259
    %v669 = vunpack.c.h.b16 %v259
    %v670 = vunpack.c.l.b16 %v260
    %v671 = vunpack.c.h.b16 %v260
    %v672 = vunpack.c.l.b16 %v261
    %v673 = vunpack.c.h.b16 %v261
    %v674 = vunpack.c.l.b16 %v262
    %v675 = vunpack.c.h.b16 %v262
    %v676 = vunpack.c.l.b16 %v263
    %v677 = vunpack.c.h.b16 %v263
    %v678 = vunpack.c.l.b16 %v264
    %v679 = vunpack.c.h.b16 %v264
    %v680 = vunpack.c.l.b16 %v265
    %v681 = vunpack.c.h.b16 %v265
    %v682 = vunpack.c.l.b16 %v266
    %v683 = vunpack.c.h.b16 %v266
    %v684 = vunpack.c.l.b16 %v267
    %v685 = vunpack.c.h.b16 %v267
    %v686 = vunpack.c.l.b16 %v268
    %v687 = vunpack.c.h.b16 %v268
    %v688 = vunpack.c.l.b16 %v269
    %v689 = vunpack.c.h.b16 %v269
    %v690 = vunpack.c.l.b16 %v270
    %v691 = vunpack.c.h.b16 %v270
    %v692 = vunpack.c.l.b16 %v271
    %v693 = vunpack.c.h.b16 %v271
    %v694 = vunpack.c.l.b16 %v272
    %v695 = vunpack.c.h.b16 %v272
    %v696 = vunpack.c.l.b16 %v273
    %v697 = vunpack.c.h.b16 %v273
    %v698 = vunpack.c.l.b16 %v274
    %v699 = vunpack.c.h.b16 %v274
    %v700 = vunpack.c.l.b16 %v275
    %v701 = vunpack.c.h.b16 %v275
    %v702 = vpack.c.b16 %v454, %v446
    %v703 = vpack.c.b16 %v455, %v447
    %v704 = vpack.c.b16 %v456, %v448
    %v705 = vpack.c.b16 %v457, %v449
    %v706 = vpack.c.b16 %v458, %v450
    %v707 = vpack.c.b16 %v459, %v451
    %v708 = vpack.c.b16 %v460, %v452
    %v709 = vpack.c.b16 %v461, %v453
    %v710 = vpack.c.b16 %v470, %v462
    %v711 = vpack.c.b16 %v471, %v463
    %v712 = vpack.c.b16 %v472, %v464
    %v713 = vpack.c.b16 %v473, %v465
    %v714 = vpack.c.b16 %v474, %v466
    %v715 = vpack.c.b16 %v475, %v467
    %v716 = vpack.c.b16 %v476, %v468
    %v717 = vpack.c.b16 %v477, %v469
    %v718 = vpack.c.b16 %v486, %v478
    %v719 = vpack.c.b16 %v487, %v479
    %v720 = vpack.c.b16 %v488, %v480
    %v721 = vpack.c.b16 %v489, %v481
    %v722 = vpack.c.b16 %v490, %v482
    %v723 = vpack.c.b16 %v491, %v483
    %v724 = vpack.c.b16 %v492, %v484
    %v725 = vpack.c.b16 %v493, %v485
    %v726 = vpack.c.b16 %v502, %v494
    %v727 = vpack.c.b16 %v503, %v495
    %v728 = vpack.c.b16 %v504, %v496
    %v729 = vpack.c.b16 %v505, %v497
    %v730 = vpack.c.b16 %v506, %v498
    %v731 = vpack.c.b16 %v507, %v499
    %v732 = vpack.c.b16 %v508, %v500
    %v733 = vpack.c.b16 %v509, %v501
    %v734 = vpack.c.b16 %v518, %v510
    %v735 = vpack.c.b16 %v519, %v511
    %v736 = vpack.c.b16 %v520, %v512
    %v737 = vpack.c.b16 %v521, %v513
    %v738 = vpack.c.b16 %v522, %v514
    %v739 = vpack.c.b16 %v523, %v515
    %v740 = vpack.c.b16 %v524, %v516
    %v741 = vpack.c.b16 %v525, %v517
    %v742 = vpack.c.b16 %v534, %v526
    %v743 = vpack.c.b16 %v535, %v527
    %v744 = vpack.c.b16 %v536, %v528
    %v745 = vpack.c.b16 %v537, %v529
    %v746 = vpack.c.b16 %v538, %v530
    %v747 = vpack.c.b16 %v539, %v531
    %v748 = vpack.c.b16 %v540, %v532
    %v749 = vpack.c.b16 %v541, %v533
    %v750 = vpack.c.b16 %v550, %v542
    %v751 = vpack.c.b16 %v551, %v543
    %v752 = vpack.c.b16 %v552, %v544
    %v753 = vpack.c.b16 %v553, %v545
    %v754 = vpack.c.b16 %v554, %v546
    %v755 = vpack.c.b16 %v555, %v547
    %v756 = vpack.c.b16 %v556, %v548
    %v757 = vpack.c.b16 %v557, %v549
    %v758 = vpack.c.b16 %v566, %v558
    %v759 = vpack.c.b16 %v567, %v559
    %v760 = vpack.c.b16 %v568, %v560
    %v761 = vpack.c.b16 %v569, %v561
    %v762 = vpack.c.b16 %v570, %v562
    %v763 = vpack.c.b16 %v571, %v563
    %v764 = vpack.c.b16 %v572, %v564
    %v765 = vpack.c.b16 %v573, %v565
    %v766 = vpack.c.b16 %v582, %v574
    %v767 = vpack.c.b16 %v583, %v575
    %v768 = vpack.c.b16 %v584, %v576
    %v769 = vpack.c.b16 %v585, %v577
    %v770 = vpack.c.b16 %v586, %v578
    %v771 = vpack.c.b16 %v587, %v579
    %v772 = vpack.c.b16 %v588, %v580
    %v773 = vpack.c.b16 %v589, %v581
    %v774 = vpack.c.b16 %v598, %v590
    %v775 = vpack.c.b16 %v599, %v591
    %v776 = vpack.c.b16 %v600, %v592
    %v777 = vpack.c.b16 %v601, %v593
    %v778 = vpack.c.b16 %v602, %v594
    %v779 = vpack.c.b16 %v603, %v595
    %v780 = vpack.c.b16 %v604, %v596
    %v781 = vpack.c.b16 %v605, %v597
    %v782 = vpack.c.b16 %v614, %v606
    %v783 = vpack.c.b16 %v615, %v607
    %v784 = vpack.c.b16 %v616, %v608
    %v785 = vpack.c.b16 %v617, %v609
    %v786 = vpack.c.b16 %v618, %v610
    %v787 = vpack.c.b16 %v619, %v611
    %v788 = vpack.c.b16 %v620, %v612
    %v789 = vpack.c.b16 %v621, %v613
    %v790 = vpack.c.b16 %v630, %v622
    %v791 = vpack.c.b16 %v631, %v623
    %v792 = vpack.c.b16 %v632, %v624
    %v793 = vpack.c.b16 %v633, %v625
    %v794 = vpack.c.b16 %v634, %v626
    %v795 = vpack.c.b16 %v635, %v627
    %v796 = vpack.c.b16 %v636, %v628
    %v797 = vpack.c.b16 %v637, %v629
    %v798 = vpack.c.b16 %v646, %v638
    %v799 = vpack.c.b16 %v647, %v639
    %v800 = vpack.c.b16 %v648, %v640
    %v801 = vpack.c.b16 %v649, %v641
    %v802 = vpack.c.b16 %v650, %v642
    %v803 = vpack.c.b16 %v651, %v643
    %v804 = vpack.c.b16 %v652, %v644
    %v805 = vpack.c.b16 %v653, %v645
    %v806 = vpack.c.b16 %v662, %v654
    %v807 = vpack.c.b16 %v663, %v655
    %v808 = vpack.c.b16 %v664, %v656
    %v809 = vpack.c.b16 %v665, %v657
    %v810 = vpack.c.b16 %v666, %v658
    %v811 = vpack.c.b16 %v667, %v659
    %v812 = vpack.c.b16 %v668, %v660
    %v813 = vpack.c.b16 %v669, %v661
    %v814 = vpack.c.b16 %v678, %v670
    %v815 = vpack.c.b16 %v679, %v671
    %v816 = vpack.c.b16 %v680, %v672
    %v817 = vpack.c.b16 %v681, %v673
    %v818 = vpack.c.b16 %v682, %v674
    %v819 = vpack.c.b16 %v683, %v675
    %v820 = vpack.c.b16 %v684, %v676
    %v821 = vpack.c.b16 %v685, %v677
    %v822 = vpack.c.b16 %v694, %v686
    %v823 = vpack.c.b16 %v695, %v687
    %v824 = vpack.c.b16 %v696, %v688
    %v825 = vpack.c.b16 %v697, %v689
    %v826 = vpack.c.b16 %v698, %v690
    %v827 = vpack.c.b16 %v699, %v691
    %v828 = vpack.c.b16 %v700, %v692
    %v829 = vpack.c.b16 %v701, %v693
    %958 = vmatprep.subr.bf16.mxu0 %v759
    %959 = vmatpush1.bf16.msra.mxu0 %v758
    %960 = vmatprep.subr.bf16.mxu0 %v751
    %961 = vmatpush1.bf16.msra.mxu0 %v750
    %962 = vmatprep.subr.bf16.mxu0 %v743
    %963 = vmatpush1.bf16.msra.mxu0 %v742
    %964 = vmatprep.subr.bf16.mxu0 %v735
    %965 = vmatpush1.bf16.msra.mxu0 %v734
    %966 = vmatprep.subr.bf16.mxu0 %v727
    %967 = vmatpush1.bf16.msra.mxu0 %v726
    %968 = vmatprep.subr.bf16.mxu0 %v719
    %969 = vmatpush1.bf16.msra.mxu0 %v718
    %970 = vmatprep.subr.bf16.mxu0 %v711
    %971 = vmatpush1.bf16.msra.mxu0 %v710
    %972 = vmatprep.subr.bf16.mxu0 %v703
    %973 = vmatpush1.bf16.msra.mxu0 %v702
    %974 = vmatprep.subr.bf16.mxu0 %v823
    %975 = vmatpush2.bf16.msra.mxu0 %v822
    %976 = vmatprep.subr.bf16.mxu0 %v815
    %977 = vmatpush2.bf16.msra.mxu0 %v814
    %978 = vmatprep.subr.bf16.mxu0 %v807
    %979 = vmatpush2.bf16.msra.mxu0 %v806
    %980 = vmatprep.subr.bf16.mxu0 %v799
    %981 = vmatpush2.bf16.msra.mxu0 %v798
    %982 = vmatprep.subr.bf16.mxu0 %v791
    %983 = vmatpush2.bf16.msra.mxu0 %v790
    %984 = vmatprep.subr.bf16.mxu0 %v783
    %985 = vmatpush2.bf16.msra.mxu0 %v782
    %986 = vmatprep.subr.bf16.mxu0 %v775
    %987 = vmatpush2.bf16.msra.mxu0 %v774
    %988 = vmatprep.subr.bf16.mxu0 %v767
    %989 = vmatpush2.bf16.msra.mxu0 %v766
    %990 = vmatprep.mubr.bf16.mxu0 %v147
    %991 = vmatmul.mubr.bf16.gmra.mxu0 %v146
    %v992 = vpop.f32.mrf.mxu0
    %v993 = vadd.f32 %v281, %v992
    %v994 = vpop.f32.mrf.mxu0
    %v995 = vadd.f32 %v285, %v994
    %v996 = vpop.f32.mrf.mxu0
    %v997 = vadd.f32 %v281, %v996
    %v998 = vpop.f32.mrf.mxu0
    %v999 = vadd.f32 %v285, %v998
    %1000 = vdwg.mxu0
    %1001 = vmatprep.subr.bf16.mxu0 %v761
    %1002 = vmatpush1.bf16.msra.mxu0 %v760
    %1003 = vmatprep.subr.bf16.mxu0 %v753
    %1004 = vmatpush1.bf16.msra.mxu0 %v752
    %1005 = vmatprep.subr.bf16.mxu0 %v745
    %1006 = vmatpush1.bf16.msra.mxu0 %v744
    %1007 = vmatprep.subr.bf16.mxu0 %v737
    %1008 = vmatpush1.bf16.msra.mxu0 %v736
    %1009 = vmatprep.subr.bf16.mxu0 %v729
    %1010 = vmatpush1.bf16.msra.mxu0 %v728
    %1011 = vmatprep.subr.bf16.mxu0 %v721
    %1012 = vmatpush1.bf16.msra.mxu0 %v720
    %1013 = vmatprep.subr.bf16.mxu0 %v713
    %1014 = vmatpush1.bf16.msra.mxu0 %v712
    %1015 = vmatprep.subr.bf16.mxu0 %v705
    %1016 = vmatpush1.bf16.msra.mxu0 %v704
    %1017 = vmatprep.subr.bf16.mxu0 %v825
    %1018 = vmatpush2.bf16.msra.mxu0 %v824
    %1019 = vmatprep.subr.bf16.mxu0 %v817
    %1020 = vmatpush2.bf16.msra.mxu0 %v816
    %1021 = vmatprep.subr.bf16.mxu0 %v809
    %1022 = vmatpush2.bf16.msra.mxu0 %v808
    %1023 = vmatprep.subr.bf16.mxu0 %v801
    %1024 = vmatpush2.bf16.msra.mxu0 %v800
    %1025 = vmatprep.subr.bf16.mxu0 %v793
    %1026 = vmatpush2.bf16.msra.mxu0 %v792
    %1027 = vmatprep.subr.bf16.mxu0 %v785
    %1028 = vmatpush2.bf16.msra.mxu0 %v784
    %1029 = vmatprep.subr.bf16.mxu0 %v777
    %1030 = vmatpush2.bf16.msra.mxu0 %v776
    %1031 = vmatprep.subr.bf16.mxu0 %v769
    %1032 = vmatpush2.bf16.msra.mxu0 %v768
    %1033 = vmatprep.mubr.bf16.mxu0 %v147
    %1034 = vmatmul.mubr.bf16.gmra.mxu0 %v146
    %v1035 = vpop.f32.mrf.mxu0
    %v1036 = vadd.f32 %v289, %v1035
    %v1037 = vpop.f32.mrf.mxu0
    %v1038 = vadd.f32 %v293, %v1037
    %v1039 = vpop.f32.mrf.mxu0
    %v1040 = vadd.f32 %v289, %v1039
    %v1041 = vpop.f32.mrf.mxu0
    %v1042 = vadd.f32 %v293, %v1041
    %1043 = vdwg.mxu0
    %1044 = vmatprep.subr.bf16.mxu0 %v763
    %1045 = vmatpush1.bf16.msra.mxu0 %v762
    %1046 = vmatprep.subr.bf16.mxu0 %v755
    %1047 = vmatpush1.bf16.msra.mxu0 %v754
    %1048 = vmatprep.subr.bf16.mxu0 %v747
    %1049 = vmatpush1.bf16.msra.mxu0 %v746
    %1050 = vmatprep.subr.bf16.mxu0 %v739
    %1051 = vmatpush1.bf16.msra.mxu0 %v738
    %1052 = vmatprep.subr.bf16.mxu0 %v731
    %1053 = vmatpush1.bf16.msra.mxu0 %v730
    %1054 = vmatprep.subr.bf16.mxu0 %v723
    %1055 = vmatpush1.bf16.msra.mxu0 %v722
    %1056 = vmatprep.subr.bf16.mxu0 %v715
    %1057 = vmatpush1.bf16.msra.mxu0 %v714
    %1058 = vmatprep.subr.bf16.mxu0 %v707
    %1059 = vmatpush1.bf16.msra.mxu0 %v706
    %1060 = vmatprep.subr.bf16.mxu0 %v827
    %1061 = vmatpush2.bf16.msra.mxu0 %v826
    %1062 = vmatprep.subr.bf16.mxu0 %v819
    %1063 = vmatpush2.bf16.msra.mxu0 %v818
    %1064 = vmatprep.subr.bf16.mxu0 %v811
    %1065 = vmatpush2.bf16.msra.mxu0 %v810
    %1066 = vmatprep.subr.bf16.mxu0 %v803
    %1067 = vmatpush2.bf16.msra.mxu0 %v802
    %1068 = vmatprep.subr.bf16.mxu0 %v795
    %1069 = vmatpush2.bf16.msra.mxu0 %v794
    %1070 = vmatprep.subr.bf16.mxu0 %v787
    %1071 = vmatpush2.bf16.msra.mxu0 %v786
    %1072 = vmatprep.subr.bf16.mxu0 %v779
    %1073 = vmatpush2.bf16.msra.mxu0 %v778
    %1074 = vmatprep.subr.bf16.mxu0 %v771
    %1075 = vmatpush2.bf16.msra.mxu0 %v770
    %1076 = vmatprep.mubr.bf16.mxu0 %v147
    %1077 = vmatmul.mubr.bf16.gmra.mxu0 %v146
    %v1078 = vpop.f32.mrf.mxu0
    %v1079 = vadd.f32 %v297, %v1078
    %v1080 = vpop.f32.mrf.mxu0
    %v1081 = vadd.f32 %v301, %v1080
    %v1082 = vpop.f32.mrf.mxu0
    %v1083 = vadd.f32 %v297, %v1082
    %v1084 = vpop.f32.mrf.mxu0
    %v1085 = vadd.f32 %v301, %v1084
    %1086 = vdwg.mxu0
    %1087 = vmatprep.subr.bf16.mxu0 %v765
    %1088 = vmatpush1.bf16.msra.mxu0 %v764
    %1089 = vmatprep.subr.bf16.mxu0 %v757
    %1090 = vmatpush1.bf16.msra.mxu0 %v756
    %1091 = vmatprep.subr.bf16.mxu0 %v749
    %1092 = vmatpush1.bf16.msra.mxu0 %v748
    %1093 = vmatprep.subr.bf16.mxu0 %v741
    %1094 = vmatpush1.bf16.msra.mxu0 %v740
    %1095 = vmatprep.subr.bf16.mxu0 %v733
    %1096 = vmatpush1.bf16.msra.mxu0 %v732
    %1097 = vmatprep.subr.bf16.mxu0 %v725
    %1098 = vmatpush1.bf16.msra.mxu0 %v724
    %1099 = vmatprep.subr.bf16.mxu0 %v717
    %1100 = vmatpush1.bf16.msra.mxu0 %v716
    %1101 = vmatprep.subr.bf16.mxu0 %v709
    %1102 = vmatpush1.bf16.msra.mxu0 %v708
    %1103 = vmatprep.subr.bf16.mxu0 %v829
    %1104 = vmatpush2.bf16.msra.mxu0 %v828
    %1105 = vmatprep.subr.bf16.mxu0 %v821
    %1106 = vmatpush2.bf16.msra.mxu0 %v820
    %1107 = vmatprep.subr.bf16.mxu0 %v813
    %1108 = vmatpush2.bf16.msra.mxu0 %v812
    %1109 = vmatprep.subr.bf16.mxu0 %v805
    %1110 = vmatpush2.bf16.msra.mxu0 %v804
    %1111 = vmatprep.subr.bf16.mxu0 %v797
    %1112 = vmatpush2.bf16.msra.mxu0 %v796
    %1113 = vmatprep.subr.bf16.mxu0 %v789
    %1114 = vmatpush2.bf16.msra.mxu0 %v788
    %1115 = vmatprep.subr.bf16.mxu0 %v781
    %1116 = vmatpush2.bf16.msra.mxu0 %v780
    %1117 = vmatprep.subr.bf16.mxu0 %v773
    %1118 = vmatpush2.bf16.msra.mxu0 %v772
    %1119 = vmatprep.mubr.bf16.mxu0 %v147
    %1120 = vmatmul.mubr.bf16.gmra.mxu0 %v146
    %v1121 = vpop.f32.mrf.mxu0
    %v1122 = vadd.f32 %v305, %v1121
    %v1123 = vpop.f32.mrf.mxu0
    %v1124 = vadd.f32 %v309, %v1123
    %v1125 = vpop.f32.mrf.mxu0
    %v1126 = vadd.f32 %v305, %v1125
    %v1127 = vpop.f32.mrf.mxu0
    %v1128 = vadd.f32 %v309, %v1127
    %1129 = vdwg.mxu0
    %v1130 = vmax.f32 %v993, 0.0
    %v1131 = vmax.f32 %v995, 0.0
    %v1132 = vmax.f32 %v1036, 0.0
    %v1133 = vmax.f32 %v1038, 0.0
    %v1134 = vmax.f32 %v1079, 0.0
    %v1135 = vmax.f32 %v1081, 0.0
    %v1136 = vmax.f32 %v1122, 0.0
    %v1137 = vmax.f32 %v1124, 0.0
    %v1138 = vmax.f32 %v997, 0.0
    %v1139 = vmax.f32 %v999, 0.0
    %v1140 = vmax.f32 %v1040, 0.0
    %v1141 = vmax.f32 %v1042, 0.0
    %v1142 = vmax.f32 %v1083, 0.0
    %v1143 = vmax.f32 %v1085, 0.0
    %v1144 = vmax.f32 %v1126, 0.0
    %v1145 = vmax.f32 %v1128, 0.0
    %v1146 = vpack.c.bf16 %v1138, %v1130
    %v1147 = vpack.c.bf16 %v1139, %v1131
    %v1148 = vpack.c.bf16 %v1140, %v1132
    %v1149 = vpack.c.bf16 %v1141, %v1133
    %v1150 = vpack.c.bf16 %v1142, %v1134
    %v1151 = vpack.c.bf16 %v1143, %v1135
    %v1152 = vpack.c.bf16 %v1144, %v1136
    %v1153 = vpack.c.bf16 %v1145, %v1137
    %1154 = vst [vmem:[#allocation2] sm:$0xff] 0
    %1155 = vst [vmem:[#allocation2 + $0x8] sm:$0xff] 0
    %1156 = vst [vmem:[#allocation2 + $0x50] sm:$0xff] 0
    %1157 = vst [vmem:[#allocation2 + $0x58] sm:$0xff] 0
    %1158 = vst [vmem:[#allocation3] sm:$0xff] 0
    %1159 = vst [vmem:[#allocation3 + $0x8] sm:$0xff] 0
    %1160 = vst [vmem:[#allocation3 + $0x90] sm:$0xff] 0
    %1161 = vst [vmem:[#allocation3 + $0x98] sm:$0xff] 0
    %1162 = vst [vmem:[#allocation4] sm:$0xff] 0
    %1163 = vst [vmem:[#allocation4 + $0x8] sm:$0xff] 0
    %1164 = vst [vmem:[#allocation4 + $0x10] sm:$0xff] 0
    %1165 = vst [vmem:[#allocation4 + $0x18] sm:$0xff] 0
    %1166 = vst [vmem:[#allocation4 + $0x220] sm:$0xff] 0
    %1167 = vst [vmem:[#allocation4 + $0x228] sm:$0xff] 0
    %1168 = vst [vmem:[#allocation4 + $0x230] sm:$0xff] 0
    %1169 = vst [vmem:[#allocation4 + $0x238] sm:$0xff] 0
    %v1172 = vunpack.c.l.b16 %v1146
    %v1173 = vunpack.c.l.b16 %v1147
    %v1174 = vunpack.c.h.b16 %v1146
    %v1175 = vunpack.c.h.b16 %v1147
    %v1176 = vpack.c.b16 %v1173, %v1172
    %v1177 = vpack.c.b16 %v1175, %v1174
    %1180 = vst [vmem:[#allocation2 + $0x10] sm:$0xff] %v1176
    %1181 = vst [vmem:[#allocation2 + $0x18] sm:$0xff] %v1177
    %v1184 = vunpack.c.l.b16 %v1148
    %v1185 = vunpack.c.l.b16 %v1149
    %v1186 = vunpack.c.h.b16 %v1148
    %v1187 = vunpack.c.h.b16 %v1149
    %v1188 = vpack.c.b16 %v1185, %v1184
    %v1189 = vpack.c.b16 %v1187, %v1186
    %1192 = vst [vmem:[#allocation2 + $0x20] sm:$0xff] %v1188
    %1193 = vst [vmem:[#allocation2 + $0x28] sm:$0xff] %v1189
    %v1196 = vunpack.c.l.b16 %v1150
    %v1197 = vunpack.c.l.b16 %v1151
    %v1198 = vunpack.c.h.b16 %v1150
    %v1199 = vunpack.c.h.b16 %v1151
    %v1200 = vpack.c.b16 %v1197, %v1196
    %v1201 = vpack.c.b16 %v1199, %v1198
    %1204 = vst [vmem:[#allocation2 + $0x30] sm:$0xff] %v1200
    %1205 = vst [vmem:[#allocation2 + $0x38] sm:$0xff] %v1201
    %v1208 = vunpack.c.l.b16 %v1152
    %v1209 = vunpack.c.l.b16 %v1153
    %v1210 = vunpack.c.h.b16 %v1152
    %v1211 = vunpack.c.h.b16 %v1153
    %v1212 = vpack.c.b16 %v1209, %v1208
    %v1213 = vpack.c.b16 %v1211, %v1210
    %1216 = vst [vmem:[#allocation2 + $0x40] sm:$0xff] %v1212
    %1217 = vst [vmem:[#allocation2 + $0x48] sm:$0xff] %v1213
    %v1218 = vld [vmem:[%s6] sm:$0x3]
    %v1219 = vld [vmem:[#allocation2 + $0x10] sm:$0xff]
    %v1220 = vld [vmem:[#allocation2 + $0x18] sm:$0xff]
    %v1221 = vld [vmem:[#allocation2 + $0x20] sm:$0xff]
    %v1222 = vld [vmem:[#allocation2 + $0x28] sm:$0xff]
    %v1223 = vld [vmem:[#allocation2 + $0x30] sm:$0xff]
    %v1224 = vld [vmem:[#allocation2 + $0x38] sm:$0xff]
    %v1225 = vld [vmem:[#allocation2 + $0x40] sm:$0xff]
    %v1226 = vld [vmem:[#allocation2 + $0x48] sm:$0xff]
    %s1227 = scalar_lea.vmem [#allocation5], 256
    %v1228 = vld [vmem:[%s1227] sm:$0xff]
    %v1229 = vld [vmem:[%s1227 + $0x8] sm:$0xff]
    %v1230 = vld [vmem:[%s1227 + $0x10] sm:$0xff]
    %v1231 = vld [vmem:[%s1227 + $0x18] sm:$0xff]
    %v1232 = vld [vmem:[%s1227 + $0x20] sm:$0xff]
    %v1233 = vld [vmem:[%s1227 + $0x28] sm:$0xff]
    %v1234 = vld [vmem:[%s1227 + $0x30] sm:$0xff]
    %v1235 = vld [vmem:[%s1227 + $0x38] sm:$0xff]
    %v1236 = vld [vmem:[%s1227 + $0x40] sm:$0xff]
    %v1237 = vld [vmem:[%s1227 + $0x48] sm:$0xff]
    %v1238 = vld [vmem:[%s1227 + $0x50] sm:$0xff]
    %v1239 = vld [vmem:[%s1227 + $0x58] sm:$0xff]
    %v1240 = vld [vmem:[%s1227 + $0x60] sm:$0xff]
    %v1241 = vld [vmem:[%s1227 + $0x68] sm:$0xff]
    %v1242 = vld [vmem:[%s1227 + $0x70] sm:$0xff]
    %v1243 = vld [vmem:[%s1227 + $0x78] sm:$0xff]
    %v1244 = vld [vmem:[%s1227 + $0x80] sm:$0xff]
    %v1245 = vld [vmem:[%s1227 + $0x88] sm:$0xff]
    %v1246 = vld [vmem:[%s1227 + $0x90] sm:$0xff]
    %v1247 = vld [vmem:[%s1227 + $0x98] sm:$0xff]
    %v1248 = vld [vmem:[%s1227 + $0xa0] sm:$0xff]
    %v1249 = vld [vmem:[%s1227 + $0xa8] sm:$0xff]
    %v1250 = vld [vmem:[%s1227 + $0xb0] sm:$0xff]
    %v1251 = vld [vmem:[%s1227 + $0xb8] sm:$0xff]
    %v1252 = vld [vmem:[%s1227 + $0xc0] sm:$0xff]
    %v1253 = vld [vmem:[%s1227 + $0xc8] sm:$0xff]
    %v1254 = vld [vmem:[%s1227 + $0xd0] sm:$0xff]
    %v1255 = vld [vmem:[%s1227 + $0xd8] sm:$0xff]
    %v1256 = vld [vmem:[%s1227 + $0xe0] sm:$0xff]
    %v1257 = vld [vmem:[%s1227 + $0xe8] sm:$0xff]
    %v1258 = vld [vmem:[%s1227 + $0xf0] sm:$0xff]
    %v1259 = vld [vmem:[%s1227 + $0xf8] sm:$0xff]
    %v1260 = vld [vmem:[#allocation2] sm:$0xff]
    %v1261 = vld [vmem:[#allocation2 + $0x8] sm:$0xff]
    %s1262 = scalar_lea.vmem [#allocation5], 768
    %v1263 = vld [vmem:[%s1262] sm:$0xff]
    %v1264 = vld [vmem:[%s1262 + $0x8] sm:$0xff]
    %v1265 = vld [vmem:[%s1262 + $0x10] sm:$0xff]
    %v1266 = vld [vmem:[%s1262 + $0x18] sm:$0xff]
    %v1267 = vld [vmem:[%s1262 + $0x20] sm:$0xff]
    %v1268 = vld [vmem:[%s1262 + $0x28] sm:$0xff]
    %v1269 = vld [vmem:[%s1262 + $0x30] sm:$0xff]
    %v1270 = vld [vmem:[%s1262 + $0x38] sm:$0xff]
    %v1271 = vld [vmem:[%s1262 + $0x40] sm:$0xff]
    %v1272 = vld [vmem:[%s1262 + $0x48] sm:$0xff]
    %v1273 = vld [vmem:[%s1262 + $0x50] sm:$0xff]
    %v1274 = vld [vmem:[%s1262 + $0x58] sm:$0xff]
    %v1275 = vld [vmem:[%s1262 + $0x60] sm:$0xff]
    %v1276 = vld [vmem:[%s1262 + $0x68] sm:$0xff]
    %v1277 = vld [vmem:[%s1262 + $0x70] sm:$0xff]
    %v1278 = vld [vmem:[%s1262 + $0x78] sm:$0xff]
    %v1279 = vld [vmem:[%s1262 + $0x80] sm:$0xff]
    %v1280 = vld [vmem:[%s1262 + $0x88] sm:$0xff]
    %v1281 = vld [vmem:[%s1262 + $0x90] sm:$0xff]
    %v1282 = vld [vmem:[%s1262 + $0x98] sm:$0xff]
    %v1283 = vld [vmem:[%s1262 + $0xa0] sm:$0xff]
    %v1284 = vld [vmem:[%s1262 + $0xa8] sm:$0xff]
    %v1285 = vld [vmem:[%s1262 + $0xb0] sm:$0xff]
    %v1286 = vld [vmem:[%s1262 + $0xb8] sm:$0xff]
    %v1287 = vld [vmem:[%s1262 + $0xc0] sm:$0xff]
    %v1288 = vld [vmem:[%s1262 + $0xc8] sm:$0xff]
    %v1289 = vld [vmem:[%s1262 + $0xd0] sm:$0xff]
    %v1290 = vld [vmem:[%s1262 + $0xd8] sm:$0xff]
    %v1291 = vld [vmem:[%s1262 + $0xe0] sm:$0xff]
    %v1292 = vld [vmem:[%s1262 + $0xe8] sm:$0xff]
    %v1293 = vld [vmem:[%s1262 + $0xf0] sm:$0xff]
    %v1294 = vld [vmem:[%s1262 + $0xf8] sm:$0xff]
    %v1303 = vunpack.c.l.b16 %v1260
    %v1304 = vunpack.c.h.b16 %v1260
    %v1305 = vunpack.c.l.b16 %v1261
    %v1306 = vunpack.c.h.b16 %v1261
    %v1307 = vunpack.c.l.b16 %v1219
    %v1308 = vunpack.c.h.b16 %v1219
    %v1309 = vunpack.c.l.b16 %v1220
    %v1310 = vunpack.c.h.b16 %v1220
    %v1311 = vunpack.c.l.b16 %v1221
    %v1312 = vunpack.c.h.b16 %v1221
    %v1313 = vunpack.c.l.b16 %v1222
    %v1314 = vunpack.c.h.b16 %v1222
    %v1315 = vunpack.c.l.b16 %v1223
    %v1316 = vunpack.c.h.b16 %v1223
    %v1317 = vunpack.c.l.b16 %v1224
    %v1318 = vunpack.c.h.b16 %v1224
    %v1319 = vpack.c.b16 %v1305, %v1303
    %v1320 = vpack.c.b16 %v1306, %v1304
    %v1321 = vpack.c.b16 %v1309, %v1307
    %v1322 = vpack.c.b16 %v1310, %v1308
    %v1323 = vpack.c.b16 %v1313, %v1311
    %v1324 = vpack.c.b16 %v1314, %v1312
    %v1325 = vpack.c.b16 %v1317, %v1315
    %v1326 = vpack.c.b16 %v1318, %v1316
    %v1367 = vunpack.c.l.b16 %v1263
    %v1368 = vunpack.c.h.b16 %v1263
    %v1369 = vunpack.c.l.b16 %v1264
    %v1370 = vunpack.c.h.b16 %v1264
    %v1371 = vunpack.c.l.b16 %v1265
    %v1372 = vunpack.c.h.b16 %v1265
    %v1373 = vunpack.c.l.b16 %v1266
    %v1374 = vunpack.c.h.b16 %v1266
    %v1375 = vunpack.c.l.b16 %v1267
    %v1376 = vunpack.c.h.b16 %v1267
    %v1377 = vunpack.c.l.b16 %v1268
    %v1378 = vunpack.c.h.b16 %v1268
    %v1379 = vunpack.c.l.b16 %v1269
    %v1380 = vunpack.c.h.b16 %v1269
    %v1381 = vunpack.c.l.b16 %v1270
    %v1382 = vunpack.c.h.b16 %v1270
    %v1383 = vunpack.c.l.b16 %v1271
    %v1384 = vunpack.c.h.b16 %v1271
    %v1385 = vunpack.c.l.b16 %v1272
    %v1386 = vunpack.c.h.b16 %v1272
    %v1387 = vunpack.c.l.b16 %v1273
    %v1388 = vunpack.c.h.b16 %v1273
    %v1389 = vunpack.c.l.b16 %v1274
    %v1390 = vunpack.c.h.b16 %v1274
    %v1391 = vunpack.c.l.b16 %v1275
    %v1392 = vunpack.c.h.b16 %v1275
    %v1393 = vunpack.c.l.b16 %v1276
    %v1394 = vunpack.c.h.b16 %v1276
    %v1395 = vunpack.c.l.b16 %v1277
    %v1396 = vunpack.c.h.b16 %v1277
    %v1397 = vunpack.c.l.b16 %v1278
    %v1398 = vunpack.c.h.b16 %v1278
    %v1399 = vunpack.c.l.b16 %v1279
    %v1400 = vunpack.c.h.b16 %v1279
    %v1401 = vunpack.c.l.b16 %v1280
    %v1402 = vunpack.c.h.b16 %v1280
    %v1403 = vunpack.c.l.b16 %v1281
    %v1404 = vunpack.c.h.b16 %v1281
    %v1405 = vunpack.c.l.b16 %v1282
    %v1406 = vunpack.c.h.b16 %v1282
    %v1407 = vunpack.c.l.b16 %v1283
    %v1408 = vunpack.c.h.b16 %v1283
    %v1409 = vunpack.c.l.b16 %v1284
    %v1410 = vunpack.c.h.b16 %v1284
    %v1411 = vunpack.c.l.b16 %v1285
    %v1412 = vunpack.c.h.b16 %v1285
    %v1413 = vunpack.c.l.b16 %v1286
    %v1414 = vunpack.c.h.b16 %v1286
    %v1415 = vunpack.c.l.b16 %v1287
    %v1416 = vunpack.c.h.b16 %v1287
    %v1417 = vunpack.c.l.b16 %v1288
    %v1418 = vunpack.c.h.b16 %v1288
    %v1419 = vunpack.c.l.b16 %v1289
    %v1420 = vunpack.c.h.b16 %v1289
    %v1421 = vunpack.c.l.b16 %v1290
    %v1422 = vunpack.c.h.b16 %v1290
    %v1423 = vunpack.c.l.b16 %v1291
    %v1424 = vunpack.c.h.b16 %v1291
    %v1425 = vunpack.c.l.b16 %v1292
    %v1426 = vunpack.c.h.b16 %v1292
    %v1427 = vunpack.c.l.b16 %v1293
    %v1428 = vunpack.c.h.b16 %v1293
    %v1429 = vunpack.c.l.b16 %v1294
    %v1430 = vunpack.c.h.b16 %v1294
    %v1431 = vpack.c.b16 %v1369, %v1367
    %v1432 = vpack.c.b16 %v1370, %v1368
    %v1433 = vpack.c.b16 %v1373, %v1371
    %v1434 = vpack.c.b16 %v1374, %v1372
    %v1435 = vpack.c.b16 %v1377, %v1375
    %v1436 = vpack.c.b16 %v1378, %v1376
    %v1437 = vpack.c.b16 %v1381, %v1379
    %v1438 = vpack.c.b16 %v1382, %v1380
    %v1439 = vpack.c.b16 %v1385, %v1383
    %v1440 = vpack.c.b16 %v1386, %v1384
    %v1441 = vpack.c.b16 %v1389, %v1387
    %v1442 = vpack.c.b16 %v1390, %v1388
    %v1443 = vpack.c.b16 %v1393, %v1391
    %v1444 = vpack.c.b16 %v1394, %v1392
    %v1445 = vpack.c.b16 %v1397, %v1395
    %v1446 = vpack.c.b16 %v1398, %v1396
    %v1447 = vpack.c.b16 %v1401, %v1399
    %v1448 = vpack.c.b16 %v1402, %v1400
    %v1449 = vpack.c.b16 %v1405, %v1403
    %v1450 = vpack.c.b16 %v1406, %v1404
    %v1451 = vpack.c.b16 %v1409, %v1407
    %v1452 = vpack.c.b16 %v1410, %v1408
    %v1453 = vpack.c.b16 %v1413, %v1411
    %v1454 = vpack.c.b16 %v1414, %v1412
    %v1455 = vpack.c.b16 %v1417, %v1415
    %v1456 = vpack.c.b16 %v1418, %v1416
    %v1457 = vpack.c.b16 %v1421, %v1419
    %v1458 = vpack.c.b16 %v1422, %v1420
    %v1459 = vpack.c.b16 %v1425, %v1423
    %v1460 = vpack.c.b16 %v1426, %v1424
    %v1461 = vpack.c.b16 %v1429, %v1427
    %v1462 = vpack.c.b16 %v1430, %v1428
    %1495 = vmatprep.subr.bf16.mxu0 %v1446
    %1496 = vmatpush1.bf16.msra.mxu0 %v1445
    %1497 = vmatprep.subr.bf16.mxu0 %v1444
    %1498 = vmatpush1.bf16.msra.mxu0 %v1443
    %1499 = vmatprep.subr.bf16.mxu0 %v1442
    %1500 = vmatpush1.bf16.msra.mxu0 %v1441
    %1501 = vmatprep.subr.bf16.mxu0 %v1440
    %1502 = vmatpush1.bf16.msra.mxu0 %v1439
    %1503 = vmatprep.subr.bf16.mxu0 %v1438
    %1504 = vmatpush1.bf16.msra.mxu0 %v1437
    %1505 = vmatprep.subr.bf16.mxu0 %v1436
    %1506 = vmatpush1.bf16.msra.mxu0 %v1435
    %1507 = vmatprep.subr.bf16.mxu0 %v1434
    %1508 = vmatpush1.bf16.msra.mxu0 %v1433
    %1509 = vmatprep.subr.bf16.mxu0 %v1432
    %1510 = vmatpush1.bf16.msra.mxu0 %v1431
    %1511 = vmatprep.subr.bf16.mxu0 %v1462
    %1512 = vmatpush2.bf16.msra.mxu0 %v1461
    %1513 = vmatprep.subr.bf16.mxu0 %v1460
    %1514 = vmatpush2.bf16.msra.mxu0 %v1459
    %1515 = vmatprep.subr.bf16.mxu0 %v1458
    %1516 = vmatpush2.bf16.msra.mxu0 %v1457
    %1517 = vmatprep.subr.bf16.mxu0 %v1456
    %1518 = vmatpush2.bf16.msra.mxu0 %v1455
    %1519 = vmatprep.subr.bf16.mxu0 %v1454
    %1520 = vmatpush2.bf16.msra.mxu0 %v1453
    %1521 = vmatprep.subr.bf16.mxu0 %v1452
    %1522 = vmatpush2.bf16.msra.mxu0 %v1451
    %1523 = vmatprep.subr.bf16.mxu0 %v1450
    %1524 = vmatpush2.bf16.msra.mxu0 %v1449
    %1525 = vmatprep.subr.bf16.mxu0 %v1448
    %1526 = vmatpush2.bf16.msra.mxu0 %v1447
    %1527 = vmatprep.mubr.bf16.mxu0 %v1320
    %1528 = vmatmul.mubr.bf16.gmra.mxu0 %v1319
    %v1529 = vpop.f32.mrf.mxu0
    %v1530 = vadd.f32 0.0, %v1529
    %v1531 = vpop.f32.mrf.mxu0
    %v1532 = vadd.f32 0.0, %v1531
    %v1533 = vpop.f32.mrf.mxu0
    %v1534 = vadd.f32 0.0, %v1533
    %v1535 = vpop.f32.mrf.mxu0
    %v1536 = vadd.f32 0.0, %v1535
    %1537 = vmatprep.mubr.bf16.mxu0 %v1322
    %1538 = vmatmul.mubr.bf16.gmra.mxu0 %v1321
    %v1539 = vpop.f32.mrf.mxu0
    %v1540 = vadd.f32 0.0, %v1539
    %v1541 = vpop.f32.mrf.mxu0
    %v1542 = vadd.f32 0.0, %v1541
    %v1543 = vpop.f32.mrf.mxu0
    %v1544 = vadd.f32 0.0, %v1543
    %v1545 = vpop.f32.mrf.mxu0
    %v1546 = vadd.f32 0.0, %v1545
    %1547 = vmatprep.mubr.bf16.mxu0 %v1324
    %1548 = vmatmul.mubr.bf16.gmra.mxu0 %v1323
    %v1549 = vpop.f32.mrf.mxu0
    %v1550 = vadd.f32 0.0, %v1549
    %v1551 = vpop.f32.mrf.mxu0
    %v1552 = vadd.f32 0.0, %v1551
    %v1553 = vpop.f32.mrf.mxu0
    %v1554 = vadd.f32 0.0, %v1553
    %v1555 = vpop.f32.mrf.mxu0
    %v1556 = vadd.f32 0.0, %v1555
    %1557 = vmatprep.mubr.bf16.mxu0 %v1326
    %1558 = vmatmul.mubr.bf16.gmra.mxu0 %v1325
    %v1559 = vpop.f32.mrf.mxu0
    %v1560 = vadd.f32 0.0, %v1559
    %v1561 = vpop.f32.mrf.mxu0
    %v1562 = vadd.f32 0.0, %v1561
    %v1563 = vpop.f32.mrf.mxu0
    %v1564 = vadd.f32 0.0, %v1563
    %v1565 = vpop.f32.mrf.mxu0
    %v1566 = vadd.f32 0.0, %v1565
    %1567 = vdwg.mxu0
    %v1570 = vunpack.c.l.b16 %v1225
    %v1571 = vunpack.c.h.b16 %v1225
    %v1572 = vunpack.c.l.b16 %v1226
    %v1573 = vunpack.c.h.b16 %v1226
    %v1574 = vpack.c.b16 %v1572, %v1570
    %v1575 = vpack.c.b16 %v1573, %v1571
    %v1610 = vunpack.c.l.b16 %v1228
    %v1611 = vunpack.c.h.b16 %v1228
    %v1612 = vunpack.c.l.b16 %v1229
    %v1613 = vunpack.c.h.b16 %v1229
    %v1614 = vunpack.c.l.b16 %v1230
    %v1615 = vunpack.c.h.b16 %v1230
    %v1616 = vunpack.c.l.b16 %v1231
    %v1617 = vunpack.c.h.b16 %v1231
    %v1618 = vunpack.c.l.b16 %v1232
    %v1619 = vunpack.c.h.b16 %v1232
    %v1620 = vunpack.c.l.b16 %v1233
    %v1621 = vunpack.c.h.b16 %v1233
    %v1622 = vunpack.c.l.b16 %v1234
    %v1623 = vunpack.c.h.b16 %v1234
    %v1624 = vunpack.c.l.b16 %v1235
    %v1625 = vunpack.c.h.b16 %v1235
    %v1626 = vunpack.c.l.b16 %v1236
    %v1627 = vunpack.c.h.b16 %v1236
    %v1628 = vunpack.c.l.b16 %v1237
    %v1629 = vunpack.c.h.b16 %v1237
    %v1630 = vunpack.c.l.b16 %v1238
    %v1631 = vunpack.c.h.b16 %v1238
    %v1632 = vunpack.c.l.b16 %v1239
    %v1633 = vunpack.c.h.b16 %v1239
    %v1634 = vunpack.c.l.b16 %v1240
    %v1635 = vunpack.c.h.b16 %v1240
    %v1636 = vunpack.c.l.b16 %v1241
    %v1637 = vunpack.c.h.b16 %v1241
    %v1638 = vunpack.c.l.b16 %v1242
    %v1639 = vunpack.c.h.b16 %v1242
    %v1640 = vunpack.c.l.b16 %v1243
    %v1641 = vunpack.c.h.b16 %v1243
    %v1642 = vunpack.c.l.b16 %v1244
    %v1643 = vunpack.c.h.b16 %v1244
    %v1644 = vunpack.c.l.b16 %v1245
    %v1645 = vunpack.c.h.b16 %v1245
    %v1646 = vunpack.c.l.b16 %v1246
    %v1647 = vunpack.c.h.b16 %v1246
    %v1648 = vunpack.c.l.b16 %v1247
    %v1649 = vunpack.c.h.b16 %v1247
    %v1650 = vunpack.c.l.b16 %v1248
    %v1651 = vunpack.c.h.b16 %v1248
    %v1652 = vunpack.c.l.b16 %v1249
    %v1653 = vunpack.c.h.b16 %v1249
    %v1654 = vunpack.c.l.b16 %v1250
    %v1655 = vunpack.c.h.b16 %v1250
    %v1656 = vunpack.c.l.b16 %v1251
    %v1657 = vunpack.c.h.b16 %v1251
    %v1658 = vunpack.c.l.b16 %v1252
    %v1659 = vunpack.c.h.b16 %v1252
    %v1660 = vunpack.c.l.b16 %v1253
    %v1661 = vunpack.c.h.b16 %v1253
    %v1662 = vunpack.c.l.b16 %v1254
    %v1663 = vunpack.c.h.b16 %v1254
    %v1664 = vunpack.c.l.b16 %v1255
    %v1665 = vunpack.c.h.b16 %v1255
    %v1666 = vunpack.c.l.b16 %v1256
    %v1667 = vunpack.c.h.b16 %v1256
    %v1668 = vunpack.c.l.b16 %v1257
    %v1669 = vunpack.c.h.b16 %v1257
    %v1670 = vunpack.c.l.b16 %v1258
    %v1671 = vunpack.c.h.b16 %v1258
    %v1672 = vunpack.c.l.b16 %v1259
    %v1673 = vunpack.c.h.b16 %v1259
    %v1674 = vpack.c.b16 %v1612, %v1610
    %v1675 = vpack.c.b16 %v1613, %v1611
    %v1676 = vpack.c.b16 %v1616, %v1614
    %v1677 = vpack.c.b16 %v1617, %v1615
    %v1678 = vpack.c.b16 %v1620, %v1618
    %v1679 = vpack.c.b16 %v1621, %v1619
    %v1680 = vpack.c.b16 %v1624, %v1622
    %v1681 = vpack.c.b16 %v1625, %v1623
    %v1682 = vpack.c.b16 %v1628, %v1626
    %v1683 = vpack.c.b16 %v1629, %v1627
    %v1684 = vpack.c.b16 %v1632, %v1630
    %v1685 = vpack.c.b16 %v1633, %v1631
    %v1686 = vpack.c.b16 %v1636, %v1634
    %v1687 = vpack.c.b16 %v1637, %v1635
    %v1688 = vpack.c.b16 %v1640, %v1638
    %v1689 = vpack.c.b16 %v1641, %v1639
    %v1690 = vpack.c.b16 %v1644, %v1642
    %v1691 = vpack.c.b16 %v1645, %v1643
    %v1692 = vpack.c.b16 %v1648, %v1646
    %v1693 = vpack.c.b16 %v1649, %v1647
    %v1694 = vpack.c.b16 %v1652, %v1650
    %v1695 = vpack.c.b16 %v1653, %v1651
    %v1696 = vpack.c.b16 %v1656, %v1654
    %v1697 = vpack.c.b16 %v1657, %v1655
    %v1698 = vpack.c.b16 %v1660, %v1658
    %v1699 = vpack.c.b16 %v1661, %v1659
    %v1700 = vpack.c.b16 %v1664, %v1662
    %v1701 = vpack.c.b16 %v1665, %v1663
    %v1702 = vpack.c.b16 %v1668, %v1666
    %v1703 = vpack.c.b16 %v1669, %v1667
    %v1704 = vpack.c.b16 %v1672, %v1670
    %v1705 = vpack.c.b16 %v1673, %v1671
    %1738 = vmatprep.subr.bf16.mxu0 %v1689
    %1739 = vmatpush1.bf16.msra.mxu0 %v1688
    %1740 = vmatprep.subr.bf16.mxu0 %v1687
    %1741 = vmatpush1.bf16.msra.mxu0 %v1686
    %1742 = vmatprep.subr.bf16.mxu0 %v1685
    %1743 = vmatpush1.bf16.msra.mxu0 %v1684
    %1744 = vmatprep.subr.bf16.mxu0 %v1683
    %1745 = vmatpush1.bf16.msra.mxu0 %v1682
    %1746 = vmatprep.subr.bf16.mxu0 %v1681
    %1747 = vmatpush1.bf16.msra.mxu0 %v1680
    %1748 = vmatprep.subr.bf16.mxu0 %v1679
    %1749 = vmatpush1.bf16.msra.mxu0 %v1678
    %1750 = vmatprep.subr.bf16.mxu0 %v1677
    %1751 = vmatpush1.bf16.msra.mxu0 %v1676
    %1752 = vmatprep.subr.bf16.mxu0 %v1675
    %1753 = vmatpush1.bf16.msra.mxu0 %v1674
    %1754 = vmatprep.subr.bf16.mxu0 %v1705
    %1755 = vmatpush2.bf16.msra.mxu0 %v1704
    %1756 = vmatprep.subr.bf16.mxu0 %v1703
    %1757 = vmatpush2.bf16.msra.mxu0 %v1702
    %1758 = vmatprep.subr.bf16.mxu0 %v1701
    %1759 = vmatpush2.bf16.msra.mxu0 %v1700
    %1760 = vmatprep.subr.bf16.mxu0 %v1699
    %1761 = vmatpush2.bf16.msra.mxu0 %v1698
    %1762 = vmatprep.subr.bf16.mxu0 %v1697
    %1763 = vmatpush2.bf16.msra.mxu0 %v1696
    %1764 = vmatprep.subr.bf16.mxu0 %v1695
    %1765 = vmatpush2.bf16.msra.mxu0 %v1694
    %1766 = vmatprep.subr.bf16.mxu0 %v1693
    %1767 = vmatpush2.bf16.msra.mxu0 %v1692
    %1768 = vmatprep.subr.bf16.mxu0 %v1691
    %1769 = vmatpush2.bf16.msra.mxu0 %v1690
    %1770 = vmatprep.mubr.bf16.mxu0 %v1322
    %1771 = vmatmul.mubr.bf16.gmra.mxu0 %v1321
    %v1772 = vpop.f32.mrf.mxu0
    %v1773 = vadd.f32 %v1530, %v1772
    %v1774 = vpop.f32.mrf.mxu0
    %v1775 = vadd.f32 %v1532, %v1774
    %v1776 = vpop.f32.mrf.mxu0
    %v1777 = vadd.f32 %v1534, %v1776
    %v1778 = vpop.f32.mrf.mxu0
    %v1779 = vadd.f32 %v1536, %v1778
    %1780 = vmatprep.mubr.bf16.mxu0 %v1324
    %1781 = vmatmul.mubr.bf16.gmra.mxu0 %v1323
    %v1782 = vpop.f32.mrf.mxu0
    %v1783 = vadd.f32 %v1540, %v1782
    %v1784 = vpop.f32.mrf.mxu0
    %v1785 = vadd.f32 %v1542, %v1784
    %v1786 = vpop.f32.mrf.mxu0
    %v1787 = vadd.f32 %v1544, %v1786
    %v1788 = vpop.f32.mrf.mxu0
    %v1789 = vadd.f32 %v1546, %v1788
    %1790 = vmatprep.mubr.bf16.mxu0 %v1326
    %1791 = vmatmul.mubr.bf16.gmra.mxu0 %v1325
    %v1792 = vpop.f32.mrf.mxu0
    %v1793 = vadd.f32 %v1550, %v1792
    %v1794 = vpop.f32.mrf.mxu0
    %v1795 = vadd.f32 %v1552, %v1794
    %v1796 = vpop.f32.mrf.mxu0
    %v1797 = vadd.f32 %v1554, %v1796
    %v1798 = vpop.f32.mrf.mxu0
    %v1799 = vadd.f32 %v1556, %v1798
    %1800 = vmatprep.mubr.bf16.mxu0 %v1575
    %1801 = vmatmul.mubr.bf16.gmra.mxu0 %v1574
    %v1802 = vpop.f32.mrf.mxu0
    %v1803 = vadd.f32 %v1560, %v1802
    %v1804 = vpop.f32.mrf.mxu0
    %v1805 = vadd.f32 %v1562, %v1804
    %v1806 = vpop.f32.mrf.mxu0
    %v1807 = vadd.f32 %v1564, %v1806
    %v1808 = vpop.f32.mrf.mxu0
    %v1809 = vadd.f32 %v1566, %v1808
    %1810 = vdwg.mxu0
    %v1812 = vlaneseq
    %v1813 = vshrl.u32 %v1812, 7
    %v1814 = vsub.s32 0, %v1813
    %v1815 = vrot.slane %v1218, %v1814
    %v1816 = vlaneseq
    %v1817 = vshrl.u32 %v1816, 7
    %v1818 = vsub.s32 1, %v1817
    %v1819 = vrot.slane %v1218, %v1818
    %v1822 = vadd.f32 %v1773, %v1815
    %v1823 = vadd.f32 %v1775, %v1819
    %v1824 = vadd.f32 %v1777, %v1815
    %v1825 = vadd.f32 %v1779, %v1819
    %v1826 = vadd.f32 %v1783, %v1815
    %v1827 = vadd.f32 %v1785, %v1819
    %v1828 = vadd.f32 %v1787, %v1815
    %v1829 = vadd.f32 %v1789, %v1819
    %v1830 = vadd.f32 %v1793, %v1815
    %v1831 = vadd.f32 %v1795, %v1819
    %v1832 = vadd.f32 %v1797, %v1815
    %v1833 = vadd.f32 %v1799, %v1819
    %v1834 = vadd.f32 %v1803, %v1815
    %v1835 = vadd.f32 %v1805, %v1819
    %v1836 = vadd.f32 %v1807, %v1815
    %v1837 = vadd.f32 %v1809, %v1819
    %v1838 = vmax.f32 %v1822, 0.0
    %v1839 = vmax.f32 %v1823, 0.0
    %v1840 = vmax.f32 %v1824, 0.0
    %v1841 = vmax.f32 %v1825, 0.0
    %v1842 = vmax.f32 %v1826, 0.0
    %v1843 = vmax.f32 %v1827, 0.0
    %v1844 = vmax.f32 %v1828, 0.0
    %v1845 = vmax.f32 %v1829, 0.0
    %v1846 = vmax.f32 %v1830, 0.0
    %v1847 = vmax.f32 %v1831, 0.0
    %v1848 = vmax.f32 %v1832, 0.0
    %v1849 = vmax.f32 %v1833, 0.0
    %v1850 = vmax.f32 %v1834, 0.0
    %v1851 = vmax.f32 %v1835, 0.0
    %v1852 = vmax.f32 %v1836, 0.0
    %v1853 = vmax.f32 %v1837, 0.0
    %v1854 = vpack.c.bf16 %v1840, %v1838
    %v1855 = vpack.c.bf16 %v1841, %v1839
    %v1856 = vpack.c.bf16 %v1844, %v1842
    %v1857 = vpack.c.bf16 %v1845, %v1843
    %v1858 = vpack.c.bf16 %v1848, %v1846
    %v1859 = vpack.c.bf16 %v1849, %v1847
    %v1860 = vpack.c.bf16 %v1852, %v1850
    %v1861 = vpack.c.bf16 %v1853, %v1851
    %v1864 = vunpack.c.l.b16 %v1854
    %v1865 = vunpack.c.l.b16 %v1855
    %v1866 = vunpack.c.h.b16 %v1854
    %v1867 = vunpack.c.h.b16 %v1855
    %v1868 = vpack.c.b16 %v1865, %v1864
    %v1869 = vpack.c.b16 %v1867, %v1866
    %1872 = vst [vmem:[#allocation3 + $0x10] sm:$0xff] %v1868
    %1873 = vst [vmem:[#allocation3 + $0x18] sm:$0xff] %v1869
    %v1876 = vunpack.c.l.b16 %v1856
    %v1877 = vunpack.c.l.b16 %v1857
    %v1878 = vunpack.c.h.b16 %v1856
    %v1879 = vunpack.c.h.b16 %v1857
    %v1880 = vpack.c.b16 %v1877, %v1876
    %v1881 = vpack.c.b16 %v1879, %v1878
    %1884 = vst [vmem:[#allocation3 + $0x30] sm:$0xff] %v1880
    %1885 = vst [vmem:[#allocation3 + $0x38] sm:$0xff] %v1881
    %v1888 = vunpack.c.l.b16 %v1858
    %v1889 = vunpack.c.l.b16 %v1859
    %v1890 = vunpack.c.h.b16 %v1858
    %v1891 = vunpack.c.h.b16 %v1859
    %v1892 = vpack.c.b16 %v1889, %v1888
    %v1893 = vpack.c.b16 %v1891, %v1890
    %1896 = vst [vmem:[#allocation3 + $0x50] sm:$0xff] %v1892
    %1897 = vst [vmem:[#allocation3 + $0x58] sm:$0xff] %v1893
    %v1900 = vunpack.c.l.b16 %v1860
    %v1901 = vunpack.c.l.b16 %v1861
    %v1902 = vunpack.c.h.b16 %v1860
    %v1903 = vunpack.c.h.b16 %v1861
    %v1904 = vpack.c.b16 %v1901, %v1900
    %v1905 = vpack.c.b16 %v1903, %v1902
    %1908 = vst [vmem:[#allocation3 + $0x70] sm:$0xff] %v1904
    %1909 = vst [vmem:[#allocation3 + $0x78] sm:$0xff] %v1905
    %v1910 = vld [vmem:[#allocation2 + $0x20] sm:$0xff]
    %v1911 = vld [vmem:[#allocation2 + $0x28] sm:$0xff]
    %v1912 = vld [vmem:[#allocation2 + $0x30] sm:$0xff]
    %v1913 = vld [vmem:[#allocation2 + $0x38] sm:$0xff]
    %v1914 = vld [vmem:[#allocation2 + $0x40] sm:$0xff]
    %v1915 = vld [vmem:[#allocation2 + $0x48] sm:$0xff]
    %v1916 = vld [vmem:[#allocation2 + $0x50] sm:$0xff]
    %v1917 = vld [vmem:[#allocation2 + $0x58] sm:$0xff]
    %v1918 = vld [vmem:[#allocation5] sm:$0xff]
    %v1919 = vld [vmem:[#allocation5 + $0x8] sm:$0xff]
    %v1920 = vld [vmem:[#allocation5 + $0x10] sm:$0xff]
    %v1921 = vld [vmem:[#allocation5 + $0x18] sm:$0xff]
    %v1922 = vld [vmem:[#allocation5 + $0x20] sm:$0xff]
    %v1923 = vld [vmem:[#allocation5 + $0x28] sm:$0xff]
    %v1924 = vld [vmem:[#allocation5 + $0x30] sm:$0xff]
    %v1925 = vld [vmem:[#allocation5 + $0x38] sm:$0xff]
    %v1926 = vld [vmem:[#allocation5 + $0x40] sm:$0xff]
    %v1927 = vld [vmem:[#allocation5 + $0x48] sm:$0xff]
    %v1928 = vld [vmem:[#allocation5 + $0x50] sm:$0xff]
    %v1929 = vld [vmem:[#allocation5 + $0x58] sm:$0xff]
    %v1930 = vld [vmem:[#allocation5 + $0x60] sm:$0xff]
    %v1931 = vld [vmem:[#allocation5 + $0x68] sm:$0xff]
    %v1932 = vld [vmem:[#allocation5 + $0x70] sm:$0xff]
    %v1933 = vld [vmem:[#allocation5 + $0x78] sm:$0xff]
    %v1934 = vld [vmem:[#allocation5 + $0x80] sm:$0xff]
    %v1935 = vld [vmem:[#allocation5 + $0x88] sm:$0xff]
    %v1936 = vld [vmem:[#allocation5 + $0x90] sm:$0xff]
    %v1937 = vld [vmem:[#allocation5 + $0x98] sm:$0xff]
    %v1938 = vld [vmem:[#allocation5 + $0xa0] sm:$0xff]
    %v1939 = vld [vmem:[#allocation5 + $0xa8] sm:$0xff]
    %v1940 = vld [vmem:[#allocation5 + $0xb0] sm:$0xff]
    %v1941 = vld [vmem:[#allocation5 + $0xb8] sm:$0xff]
    %v1942 = vld [vmem:[#allocation5 + $0xc0] sm:$0xff]
    %v1943 = vld [vmem:[#allocation5 + $0xc8] sm:$0xff]
    %v1944 = vld [vmem:[#allocation5 + $0xd0] sm:$0xff]
    %v1945 = vld [vmem:[#allocation5 + $0xd8] sm:$0xff]
    %v1946 = vld [vmem:[#allocation5 + $0xe0] sm:$0xff]
    %v1947 = vld [vmem:[#allocation5 + $0xe8] sm:$0xff]
    %v1948 = vld [vmem:[#allocation5 + $0xf0] sm:$0xff]
    %v1949 = vld [vmem:[#allocation5 + $0xf8] sm:$0xff]
    %v1950 = vld [vmem:[#allocation2 + $0x10] sm:$0xff]
    %v1951 = vld [vmem:[#allocation2 + $0x18] sm:$0xff]
    %v1952 = vld [vmem:[#allocation2 + $0x20] sm:$0xff]
    %v1953 = vld [vmem:[#allocation2 + $0x28] sm:$0xff]
    %v1954 = vld [vmem:[#allocation2 + $0x30] sm:$0xff]
    %v1955 = vld [vmem:[#allocation2 + $0x38] sm:$0xff]
    %v1956 = vld [vmem:[#allocation2 + $0x40] sm:$0xff]
    %v1957 = vld [vmem:[#allocation2 + $0x48] sm:$0xff]
    %s1958 = scalar_lea.vmem [#allocation5], 512
    %v1959 = vld [vmem:[%s1958] sm:$0xff]
    %v1960 = vld [vmem:[%s1958 + $0x8] sm:$0xff]
    %v1961 = vld [vmem:[%s1958 + $0x10] sm:$0xff]
    %v1962 = vld [vmem:[%s1958 + $0x18] sm:$0xff]
    %v1963 = vld [vmem:[%s1958 + $0x20] sm:$0xff]
    %v1964 = vld [vmem:[%s1958 + $0x28] sm:$0xff]
    %v1965 = vld [vmem:[%s1958 + $0x30] sm:$0xff]
    %v1966 = vld [vmem:[%s1958 + $0x38] sm:$0xff]
    %v1967 = vld [vmem:[%s1958 + $0x40] sm:$0xff]
    %v1968 = vld [vmem:[%s1958 + $0x48] sm:$0xff]
    %v1969 = vld [vmem:[%s1958 + $0x50] sm:$0xff]
    %v1970 = vld [vmem:[%s1958 + $0x58] sm:$0xff]
    %v1971 = vld [vmem:[%s1958 + $0x60] sm:$0xff]
    %v1972 = vld [vmem:[%s1958 + $0x68] sm:$0xff]
    %v1973 = vld [vmem:[%s1958 + $0x70] sm:$0xff]
    %v1974 = vld [vmem:[%s1958 + $0x78] sm:$0xff]
    %v1975 = vld [vmem:[%s1958 + $0x80] sm:$0xff]
    %v1976 = vld [vmem:[%s1958 + $0x88] sm:$0xff]
    %v1977 = vld [vmem:[%s1958 + $0x90] sm:$0xff]
    %v1978 = vld [vmem:[%s1958 + $0x98] sm:$0xff]
    %v1979 = vld [vmem:[%s1958 + $0xa0] sm:$0xff]
    %v1980 = vld [vmem:[%s1958 + $0xa8] sm:$0xff]
    %v1981 = vld [vmem:[%s1958 + $0xb0] sm:$0xff]
    %v1982 = vld [vmem:[%s1958 + $0xb8] sm:$0xff]
    %v1983 = vld [vmem:[%s1958 + $0xc0] sm:$0xff]
    %v1984 = vld [vmem:[%s1958 + $0xc8] sm:$0xff]
    %v1985 = vld [vmem:[%s1958 + $0xd0] sm:$0xff]
    %v1986 = vld [vmem:[%s1958 + $0xd8] sm:$0xff]
    %v1987 = vld [vmem:[%s1958 + $0xe0] sm:$0xff]
    %v1988 = vld [vmem:[%s1958 + $0xe8] sm:$0xff]
    %v1989 = vld [vmem:[%s1958 + $0xf0] sm:$0xff]
    %v1990 = vld [vmem:[%s1958 + $0xf8] sm:$0xff]
    %v1999 = vunpack.c.l.b16 %v1950
    %v2000 = vunpack.c.h.b16 %v1950
    %v2001 = vunpack.c.l.b16 %v1951
    %v2002 = vunpack.c.h.b16 %v1951
    %v2003 = vunpack.c.l.b16 %v1952
    %v2004 = vunpack.c.h.b16 %v1952
    %v2005 = vunpack.c.l.b16 %v1953
    %v2006 = vunpack.c.h.b16 %v1953
    %v2007 = vunpack.c.l.b16 %v1954
    %v2008 = vunpack.c.h.b16 %v1954
    %v2009 = vunpack.c.l.b16 %v1955
    %v2010 = vunpack.c.h.b16 %v1955
    %v2011 = vunpack.c.l.b16 %v1956
    %v2012 = vunpack.c.h.b16 %v1956
    %v2013 = vunpack.c.l.b16 %v1957
    %v2014 = vunpack.c.h.b16 %v1957
    %v2015 = vpack.c.b16 %v2001, %v1999
    %v2016 = vpack.c.b16 %v2002, %v2000
    %v2017 = vpack.c.b16 %v2005, %v2003
    %v2018 = vpack.c.b16 %v2006, %v2004
    %v2019 = vpack.c.b16 %v2009, %v2007
    %v2020 = vpack.c.b16 %v2010, %v2008
    %v2021 = vpack.c.b16 %v2013, %v2011
    %v2022 = vpack.c.b16 %v2014, %v2012
    %v2063 = vunpack.c.l.b16 %v1959
    %v2064 = vunpack.c.h.b16 %v1959
    %v2065 = vunpack.c.l.b16 %v1960
    %v2066 = vunpack.c.h.b16 %v1960
    %v2067 = vunpack.c.l.b16 %v1961
    %v2068 = vunpack.c.h.b16 %v1961
    %v2069 = vunpack.c.l.b16 %v1962
    %v2070 = vunpack.c.h.b16 %v1962
    %v2071 = vunpack.c.l.b16 %v1963
    %v2072 = vunpack.c.h.b16 %v1963
    %v2073 = vunpack.c.l.b16 %v1964
    %v2074 = vunpack.c.h.b16 %v1964
    %v2075 = vunpack.c.l.b16 %v1965
    %v2076 = vunpack.c.h.b16 %v1965
    %v2077 = vunpack.c.l.b16 %v1966
    %v2078 = vunpack.c.h.b16 %v1966
    %v2079 = vunpack.c.l.b16 %v1967
    %v2080 = vunpack.c.h.b16 %v1967
    %v2081 = vunpack.c.l.b16 %v1968
    %v2082 = vunpack.c.h.b16 %v1968
    %v2083 = vunpack.c.l.b16 %v1969
    %v2084 = vunpack.c.h.b16 %v1969
    %v2085 = vunpack.c.l.b16 %v1970
    %v2086 = vunpack.c.h.b16 %v1970
    %v2087 = vunpack.c.l.b16 %v1971
    %v2088 = vunpack.c.h.b16 %v1971
    %v2089 = vunpack.c.l.b16 %v1972
    %v2090 = vunpack.c.h.b16 %v1972
    %v2091 = vunpack.c.l.b16 %v1973
    %v2092 = vunpack.c.h.b16 %v1973
    %v2093 = vunpack.c.l.b16 %v1974
    %v2094 = vunpack.c.h.b16 %v1974
    %v2095 = vunpack.c.l.b16 %v1975
    %v2096 = vunpack.c.h.b16 %v1975
    %v2097 = vunpack.c.l.b16 %v1976
    %v2098 = vunpack.c.h.b16 %v1976
    %v2099 = vunpack.c.l.b16 %v1977
    %v2100 = vunpack.c.h.b16 %v1977
    %v2101 = vunpack.c.l.b16 %v1978
    %v2102 = vunpack.c.h.b16 %v1978
    %v2103 = vunpack.c.l.b16 %v1979
    %v2104 = vunpack.c.h.b16 %v1979
    %v2105 = vunpack.c.l.b16 %v1980
    %v2106 = vunpack.c.h.b16 %v1980
    %v2107 = vunpack.c.l.b16 %v1981
    %v2108 = vunpack.c.h.b16 %v1981
    %v2109 = vunpack.c.l.b16 %v1982
    %v2110 = vunpack.c.h.b16 %v1982
    %v2111 = vunpack.c.l.b16 %v1983
    %v2112 = vunpack.c.h.b16 %v1983
    %v2113 = vunpack.c.l.b16 %v1984
    %v2114 = vunpack.c.h.b16 %v1984
    %v2115 = vunpack.c.l.b16 %v1985
    %v2116 = vunpack.c.h.b16 %v1985
    %v2117 = vunpack.c.l.b16 %v1986
    %v2118 = vunpack.c.h.b16 %v1986
    %v2119 = vunpack.c.l.b16 %v1987
    %v2120 = vunpack.c.h.b16 %v1987
    %v2121 = vunpack.c.l.b16 %v1988
    %v2122 = vunpack.c.h.b16 %v1988
    %v2123 = vunpack.c.l.b16 %v1989
    %v2124 = vunpack.c.h.b16 %v1989
    %v2125 = vunpack.c.l.b16 %v1990
    %v2126 = vunpack.c.h.b16 %v1990
    %v2127 = vpack.c.b16 %v2065, %v2063
    %v2128 = vpack.c.b16 %v2066, %v2064
    %v2129 = vpack.c.b16 %v2069, %v2067
    %v2130 = vpack.c.b16 %v2070, %v2068
    %v2131 = vpack.c.b16 %v2073, %v2071
    %v2132 = vpack.c.b16 %v2074, %v2072
    %v2133 = vpack.c.b16 %v2077, %v2075
    %v2134 = vpack.c.b16 %v2078, %v2076
    %v2135 = vpack.c.b16 %v2081, %v2079
    %v2136 = vpack.c.b16 %v2082, %v2080
    %v2137 = vpack.c.b16 %v2085, %v2083
    %v2138 = vpack.c.b16 %v2086, %v2084
    %v2139 = vpack.c.b16 %v2089, %v2087
    %v2140 = vpack.c.b16 %v2090, %v2088
    %v2141 = vpack.c.b16 %v2093, %v2091
    %v2142 = vpack.c.b16 %v2094, %v2092
    %v2143 = vpack.c.b16 %v2097, %v2095
    %v2144 = vpack.c.b16 %v2098, %v2096
    %v2145 = vpack.c.b16 %v2101, %v2099
    %v2146 = vpack.c.b16 %v2102, %v2100
    %v2147 = vpack.c.b16 %v2105, %v2103
    %v2148 = vpack.c.b16 %v2106, %v2104
    %v2149 = vpack.c.b16 %v2109, %v2107
    %v2150 = vpack.c.b16 %v2110, %v2108
    %v2151 = vpack.c.b16 %v2113, %v2111
    %v2152 = vpack.c.b16 %v2114, %v2112
    %v2153 = vpack.c.b16 %v2117, %v2115
    %v2154 = vpack.c.b16 %v2118, %v2116
    %v2155 = vpack.c.b16 %v2121, %v2119
    %v2156 = vpack.c.b16 %v2122, %v2120
    %v2157 = vpack.c.b16 %v2125, %v2123
    %v2158 = vpack.c.b16 %v2126, %v2124
    %2191 = vmatprep.subr.bf16.mxu0 %v2142
    %2192 = vmatpush1.bf16.msra.mxu0 %v2141
    %2193 = vmatprep.subr.bf16.mxu0 %v2140
    %2194 = vmatpush1.bf16.msra.mxu0 %v2139
    %2195 = vmatprep.subr.bf16.mxu0 %v2138
    %2196 = vmatpush1.bf16.msra.mxu0 %v2137
    %2197 = vmatprep.subr.bf16.mxu0 %v2136
    %2198 = vmatpush1.bf16.msra.mxu0 %v2135
    %2199 = vmatprep.subr.bf16.mxu0 %v2134
    %2200 = vmatpush1.bf16.msra.mxu0 %v2133
    %2201 = vmatprep.subr.bf16.mxu0 %v2132
    %2202 = vmatpush1.bf16.msra.mxu0 %v2131
    %2203 = vmatprep.subr.bf16.mxu0 %v2130
    %2204 = vmatpush1.bf16.msra.mxu0 %v2129
    %2205 = vmatprep.subr.bf16.mxu0 %v2128
    %2206 = vmatpush1.bf16.msra.mxu0 %v2127
    %2207 = vmatprep.subr.bf16.mxu0 %v2158
    %2208 = vmatpush2.bf16.msra.mxu0 %v2157
    %2209 = vmatprep.subr.bf16.mxu0 %v2156
    %2210 = vmatpush2.bf16.msra.mxu0 %v2155
    %2211 = vmatprep.subr.bf16.mxu0 %v2154
    %2212 = vmatpush2.bf16.msra.mxu0 %v2153
    %2213 = vmatprep.subr.bf16.mxu0 %v2152
    %2214 = vmatpush2.bf16.msra.mxu0 %v2151
    %2215 = vmatprep.subr.bf16.mxu0 %v2150
    %2216 = vmatpush2.bf16.msra.mxu0 %v2149
    %2217 = vmatprep.subr.bf16.mxu0 %v2148
    %2218 = vmatpush2.bf16.msra.mxu0 %v2147
    %2219 = vmatprep.subr.bf16.mxu0 %v2146
    %2220 = vmatpush2.bf16.msra.mxu0 %v2145
    %2221 = vmatprep.subr.bf16.mxu0 %v2144
    %2222 = vmatpush2.bf16.msra.mxu0 %v2143
    %2223 = vmatprep.mubr.bf16.mxu0 %v2016
    %2224 = vmatmul.mubr.bf16.gmra.mxu0 %v2015
    %v2225 = vpop.f32.mrf.mxu0
    %v2226 = vadd.f32 0.0, %v2225
    %v2227 = vpop.f32.mrf.mxu0
    %v2228 = vadd.f32 0.0, %v2227
    %v2229 = vpop.f32.mrf.mxu0
    %v2230 = vadd.f32 0.0, %v2229
    %v2231 = vpop.f32.mrf.mxu0
    %v2232 = vadd.f32 0.0, %v2231
    %2233 = vmatprep.mubr.bf16.mxu0 %v2018
    %2234 = vmatmul.mubr.bf16.gmra.mxu0 %v2017
    %v2235 = vpop.f32.mrf.mxu0
    %v2236 = vadd.f32 0.0, %v2235
    %v2237 = vpop.f32.mrf.mxu0
    %v2238 = vadd.f32 0.0, %v2237
    %v2239 = vpop.f32.mrf.mxu0
    %v2240 = vadd.f32 0.0, %v2239
    %v2241 = vpop.f32.mrf.mxu0
    %v2242 = vadd.f32 0.0, %v2241
    %2243 = vmatprep.mubr.bf16.mxu0 %v2020
    %2244 = vmatmul.mubr.bf16.gmra.mxu0 %v2019
    %v2245 = vpop.f32.mrf.mxu0
    %v2246 = vadd.f32 0.0, %v2245
    %v2247 = vpop.f32.mrf.mxu0
    %v2248 = vadd.f32 0.0, %v2247
    %v2249 = vpop.f32.mrf.mxu0
    %v2250 = vadd.f32 0.0, %v2249
    %v2251 = vpop.f32.mrf.mxu0
    %v2252 = vadd.f32 0.0, %v2251
    %2253 = vmatprep.mubr.bf16.mxu0 %v2022
    %2254 = vmatmul.mubr.bf16.gmra.mxu0 %v2021
    %v2255 = vpop.f32.mrf.mxu0
    %v2256 = vadd.f32 0.0, %v2255
    %v2257 = vpop.f32.mrf.mxu0
    %v2258 = vadd.f32 0.0, %v2257
    %v2259 = vpop.f32.mrf.mxu0
    %v2260 = vadd.f32 0.0, %v2259
    %v2261 = vpop.f32.mrf.mxu0
    %v2262 = vadd.f32 0.0, %v2261
    %2263 = vdwg.mxu0
    %v2272 = vunpack.c.l.b16 %v1910
    %v2273 = vunpack.c.h.b16 %v1910
    %v2274 = vunpack.c.l.b16 %v1911
    %v2275 = vunpack.c.h.b16 %v1911
    %v2276 = vunpack.c.l.b16 %v1912
    %v2277 = vunpack.c.h.b16 %v1912
    %v2278 = vunpack.c.l.b16 %v1913
    %v2279 = vunpack.c.h.b16 %v1913
    %v2280 = vunpack.c.l.b16 %v1914
    %v2281 = vunpack.c.h.b16 %v1914
    %v2282 = vunpack.c.l.b16 %v1915
    %v2283 = vunpack.c.h.b16 %v1915
    %v2284 = vunpack.c.l.b16 %v1916
    %v2285 = vunpack.c.h.b16 %v1916
    %v2286 = vunpack.c.l.b16 %v1917
    %v2287 = vunpack.c.h.b16 %v1917
    %v2288 = vpack.c.b16 %v2274, %v2272
    %v2289 = vpack.c.b16 %v2275, %v2273
    %v2290 = vpack.c.b16 %v2278, %v2276
    %v2291 = vpack.c.b16 %v2279, %v2277
    %v2292 = vpack.c.b16 %v2282, %v2280
    %v2293 = vpack.c.b16 %v2283, %v2281
    %v2294 = vpack.c.b16 %v2286, %v2284
    %v2295 = vpack.c.b16 %v2287, %v2285
    %v2336 = vunpack.c.l.b16 %v1918
    %v2337 = vunpack.c.h.b16 %v1918
    %v2338 = vunpack.c.l.b16 %v1919
    %v2339 = vunpack.c.h.b16 %v1919
    %v2340 = vunpack.c.l.b16 %v1920
    %v2341 = vunpack.c.h.b16 %v1920
    %v2342 = vunpack.c.l.b16 %v1921
    %v2343 = vunpack.c.h.b16 %v1921
    %v2344 = vunpack.c.l.b16 %v1922
    %v2345 = vunpack.c.h.b16 %v1922
    %v2346 = vunpack.c.l.b16 %v1923
    %v2347 = vunpack.c.h.b16 %v1923
    %v2348 = vunpack.c.l.b16 %v1924
    %v2349 = vunpack.c.h.b16 %v1924
    %v2350 = vunpack.c.l.b16 %v1925
    %v2351 = vunpack.c.h.b16 %v1925
    %v2352 = vunpack.c.l.b16 %v1926
    %v2353 = vunpack.c.h.b16 %v1926
    %v2354 = vunpack.c.l.b16 %v1927
    %v2355 = vunpack.c.h.b16 %v1927
    %v2356 = vunpack.c.l.b16 %v1928
    %v2357 = vunpack.c.h.b16 %v1928
    %v2358 = vunpack.c.l.b16 %v1929
    %v2359 = vunpack.c.h.b16 %v1929
    %v2360 = vunpack.c.l.b16 %v1930
    %v2361 = vunpack.c.h.b16 %v1930
    %v2362 = vunpack.c.l.b16 %v1931
    %v2363 = vunpack.c.h.b16 %v1931
    %v2364 = vunpack.c.l.b16 %v1932
    %v2365 = vunpack.c.h.b16 %v1932
    %v2366 = vunpack.c.l.b16 %v1933
    %v2367 = vunpack.c.h.b16 %v1933
    %v2368 = vunpack.c.l.b16 %v1934
    %v2369 = vunpack.c.h.b16 %v1934
    %v2370 = vunpack.c.l.b16 %v1935
    %v2371 = vunpack.c.h.b16 %v1935
    %v2372 = vunpack.c.l.b16 %v1936
    %v2373 = vunpack.c.h.b16 %v1936
    %v2374 = vunpack.c.l.b16 %v1937
    %v2375 = vunpack.c.h.b16 %v1937
    %v2376 = vunpack.c.l.b16 %v1938
    %v2377 = vunpack.c.h.b16 %v1938
    %v2378 = vunpack.c.l.b16 %v1939
    %v2379 = vunpack.c.h.b16 %v1939
    %v2380 = vunpack.c.l.b16 %v1940
    %v2381 = vunpack.c.h.b16 %v1940
    %v2382 = vunpack.c.l.b16 %v1941
    %v2383 = vunpack.c.h.b16 %v1941
    %v2384 = vunpack.c.l.b16 %v1942
    %v2385 = vunpack.c.h.b16 %v1942
    %v2386 = vunpack.c.l.b16 %v1943
    %v2387 = vunpack.c.h.b16 %v1943
    %v2388 = vunpack.c.l.b16 %v1944
    %v2389 = vunpack.c.h.b16 %v1944
    %v2390 = vunpack.c.l.b16 %v1945
    %v2391 = vunpack.c.h.b16 %v1945
    %v2392 = vunpack.c.l.b16 %v1946
    %v2393 = vunpack.c.h.b16 %v1946
    %v2394 = vunpack.c.l.b16 %v1947
    %v2395 = vunpack.c.h.b16 %v1947
    %v2396 = vunpack.c.l.b16 %v1948
    %v2397 = vunpack.c.h.b16 %v1948
    %v2398 = vunpack.c.l.b16 %v1949
    %v2399 = vunpack.c.h.b16 %v1949
    %v2400 = vpack.c.b16 %v2338, %v2336
    %v2401 = vpack.c.b16 %v2339, %v2337
    %v2402 = vpack.c.b16 %v2342, %v2340
    %v2403 = vpack.c.b16 %v2343, %v2341
    %v2404 = vpack.c.b16 %v2346, %v2344
    %v2405 = vpack.c.b16 %v2347, %v2345
    %v2406 = vpack.c.b16 %v2350, %v2348
    %v2407 = vpack.c.b16 %v2351, %v2349
    %v2408 = vpack.c.b16 %v2354, %v2352
    %v2409 = vpack.c.b16 %v2355, %v2353
    %v2410 = vpack.c.b16 %v2358, %v2356
    %v2411 = vpack.c.b16 %v2359, %v2357
    %v2412 = vpack.c.b16 %v2362, %v2360
    %v2413 = vpack.c.b16 %v2363, %v2361
    %v2414 = vpack.c.b16 %v2366, %v2364
    %v2415 = vpack.c.b16 %v2367, %v2365
    %v2416 = vpack.c.b16 %v2370, %v2368
    %v2417 = vpack.c.b16 %v2371, %v2369
    %v2418 = vpack.c.b16 %v2374, %v2372
    %v2419 = vpack.c.b16 %v2375, %v2373
    %v2420 = vpack.c.b16 %v2378, %v2376
    %v2421 = vpack.c.b16 %v2379, %v2377
    %v2422 = vpack.c.b16 %v2382, %v2380
    %v2423 = vpack.c.b16 %v2383, %v2381
    %v2424 = vpack.c.b16 %v2386, %v2384
    %v2425 = vpack.c.b16 %v2387, %v2385
    %v2426 = vpack.c.b16 %v2390, %v2388
    %v2427 = vpack.c.b16 %v2391, %v2389
    %v2428 = vpack.c.b16 %v2394, %v2392
    %v2429 = vpack.c.b16 %v2395, %v2393
    %v2430 = vpack.c.b16 %v2398, %v2396
    %v2431 = vpack.c.b16 %v2399, %v2397
    %2464 = vmatprep.subr.bf16.mxu0 %v2415
    %2465 = vmatpush1.bf16.msra.mxu0 %v2414
    %2466 = vmatprep.subr.bf16.mxu0 %v2413
    %2467 = vmatpush1.bf16.msra.mxu0 %v2412
    %2468 = vmatprep.subr.bf16.mxu0 %v2411
    %2469 = vmatpush1.bf16.msra.mxu0 %v2410
    %2470 = vmatprep.subr.bf16.mxu0 %v2409
    %2471 = vmatpush1.bf16.msra.mxu0 %v2408
    %2472 = vmatprep.subr.bf16.mxu0 %v2407
    %2473 = vmatpush1.bf16.msra.mxu0 %v2406
    %2474 = vmatprep.subr.bf16.mxu0 %v2405
    %2475 = vmatpush1.bf16.msra.mxu0 %v2404
    %2476 = vmatprep.subr.bf16.mxu0 %v2403
    %2477 = vmatpush1.bf16.msra.mxu0 %v2402
    %2478 = vmatprep.subr.bf16.mxu0 %v2401
    %2479 = vmatpush1.bf16.msra.mxu0 %v2400
    %2480 = vmatprep.subr.bf16.mxu0 %v2431
    %2481 = vmatpush2.bf16.msra.mxu0 %v2430
    %2482 = vmatprep.subr.bf16.mxu0 %v2429
    %2483 = vmatpush2.bf16.msra.mxu0 %v2428
    %2484 = vmatprep.subr.bf16.mxu0 %v2427
    %2485 = vmatpush2.bf16.msra.mxu0 %v2426
    %2486 = vmatprep.subr.bf16.mxu0 %v2425
    %2487 = vmatpush2.bf16.msra.mxu0 %v2424
    %2488 = vmatprep.subr.bf16.mxu0 %v2423
    %2489 = vmatpush2.bf16.msra.mxu0 %v2422
    %2490 = vmatprep.subr.bf16.mxu0 %v2421
    %2491 = vmatpush2.bf16.msra.mxu0 %v2420
    %2492 = vmatprep.subr.bf16.mxu0 %v2419
    %2493 = vmatpush2.bf16.msra.mxu0 %v2418
    %2494 = vmatprep.subr.bf16.mxu0 %v2417
    %2495 = vmatpush2.bf16.msra.mxu0 %v2416
    %2496 = vmatprep.mubr.bf16.mxu0 %v2289
    %2497 = vmatmul.mubr.bf16.gmra.mxu0 %v2288
    %v2498 = vpop.f32.mrf.mxu0
    %v2499 = vadd.f32 %v2226, %v2498
    %v2500 = vpop.f32.mrf.mxu0
    %v2501 = vadd.f32 %v2228, %v2500
    %v2502 = vpop.f32.mrf.mxu0
    %v2503 = vadd.f32 %v2230, %v2502
    %v2504 = vpop.f32.mrf.mxu0
    %v2505 = vadd.f32 %v2232, %v2504
    %2506 = vmatprep.mubr.bf16.mxu0 %v2291
    %2507 = vmatmul.mubr.bf16.gmra.mxu0 %v2290
    %v2508 = vpop.f32.mrf.mxu0
    %v2509 = vadd.f32 %v2236, %v2508
    %v2510 = vpop.f32.mrf.mxu0
    %v2511 = vadd.f32 %v2238, %v2510
    %v2512 = vpop.f32.mrf.mxu0
    %v2513 = vadd.f32 %v2240, %v2512
    %v2514 = vpop.f32.mrf.mxu0
    %v2515 = vadd.f32 %v2242, %v2514
    %2516 = vmatprep.mubr.bf16.mxu0 %v2293
    %2517 = vmatmul.mubr.bf16.gmra.mxu0 %v2292
    %v2518 = vpop.f32.mrf.mxu0
    %v2519 = vadd.f32 %v2246, %v2518
    %v2520 = vpop.f32.mrf.mxu0
    %v2521 = vadd.f32 %v2248, %v2520
    %v2522 = vpop.f32.mrf.mxu0
    %v2523 = vadd.f32 %v2250, %v2522
    %v2524 = vpop.f32.mrf.mxu0
    %v2525 = vadd.f32 %v2252, %v2524
    %2526 = vmatprep.mubr.bf16.mxu0 %v2295
    %2527 = vmatmul.mubr.bf16.gmra.mxu0 %v2294
    %v2528 = vpop.f32.mrf.mxu0
    %v2529 = vadd.f32 %v2256, %v2528
    %v2530 = vpop.f32.mrf.mxu0
    %v2531 = vadd.f32 %v2258, %v2530
    %v2532 = vpop.f32.mrf.mxu0
    %v2533 = vadd.f32 %v2260, %v2532
    %v2534 = vpop.f32.mrf.mxu0
    %v2535 = vadd.f32 %v2262, %v2534
    %2536 = vdwg.mxu0
    %v2537 = vadd.f32 %v2499, %v1815
    %v2538 = vadd.f32 %v2501, %v1819
    %v2539 = vadd.f32 %v2503, %v1815
    %v2540 = vadd.f32 %v2505, %v1819
    %v2541 = vadd.f32 %v2509, %v1815
    %v2542 = vadd.f32 %v2511, %v1819
    %v2543 = vadd.f32 %v2513, %v1815
    %v2544 = vadd.f32 %v2515, %v1819
    %v2545 = vadd.f32 %v2519, %v1815
    %v2546 = vadd.f32 %v2521, %v1819
    %v2547 = vadd.f32 %v2523, %v1815
    %v2548 = vadd.f32 %v2525, %v1819
    %v2549 = vadd.f32 %v2529, %v1815
    %v2550 = vadd.f32 %v2531, %v1819
    %v2551 = vadd.f32 %v2533, %v1815
    %v2552 = vadd.f32 %v2535, %v1819
    %v2553 = vmax.f32 %v2537, 0.0
    %v2554 = vmax.f32 %v2538, 0.0
    %v2555 = vmax.f32 %v2539, 0.0
    %v2556 = vmax.f32 %v2540, 0.0
    %v2557 = vmax.f32 %v2541, 0.0
    %v2558 = vmax.f32 %v2542, 0.0
    %v2559 = vmax.f32 %v2543, 0.0
    %v2560 = vmax.f32 %v2544, 0.0
    %v2561 = vmax.f32 %v2545, 0.0
    %v2562 = vmax.f32 %v2546, 0.0
    %v2563 = vmax.f32 %v2547, 0.0
    %v2564 = vmax.f32 %v2548, 0.0
    %v2565 = vmax.f32 %v2549, 0.0
    %v2566 = vmax.f32 %v2550, 0.0
    %v2567 = vmax.f32 %v2551, 0.0
    %v2568 = vmax.f32 %v2552, 0.0
    %v2569 = vpack.c.bf16 %v2555, %v2553
    %v2570 = vpack.c.bf16 %v2556, %v2554
    %v2571 = vpack.c.bf16 %v2559, %v2557
    %v2572 = vpack.c.bf16 %v2560, %v2558
    %v2573 = vpack.c.bf16 %v2563, %v2561
    %v2574 = vpack.c.bf16 %v2564, %v2562
    %v2575 = vpack.c.bf16 %v2567, %v2565
    %v2576 = vpack.c.bf16 %v2568, %v2566
    %v2579 = vunpack.c.l.b16 %v2569
    %v2580 = vunpack.c.l.b16 %v2570
    %v2581 = vunpack.c.h.b16 %v2569
    %v2582 = vunpack.c.h.b16 %v2570
    %v2583 = vpack.c.b16 %v2580, %v2579
    %v2584 = vpack.c.b16 %v2582, %v2581
    %2587 = vst [vmem:[#allocation3 + $0x20] sm:$0xff] %v2583
    %2588 = vst [vmem:[#allocation3 + $0x28] sm:$0xff] %v2584
    %v2591 = vunpack.c.l.b16 %v2571
    %v2592 = vunpack.c.l.b16 %v2572
    %v2593 = vunpack.c.h.b16 %v2571
    %v2594 = vunpack.c.h.b16 %v2572
    %v2595 = vpack.c.b16 %v2592, %v2591
    %v2596 = vpack.c.b16 %v2594, %v2593
    %2599 = vst [vmem:[#allocation3 + $0x40] sm:$0xff] %v2595
    %2600 = vst [vmem:[#allocation3 + $0x48] sm:$0xff] %v2596
    %v2603 = vunpack.c.l.b16 %v2573
    %v2604 = vunpack.c.l.b16 %v2574
    %v2605 = vunpack.c.h.b16 %v2573
    %v2606 = vunpack.c.h.b16 %v2574
    %v2607 = vpack.c.b16 %v2604, %v2603
    %v2608 = vpack.c.b16 %v2606, %v2605
    %2611 = vst [vmem:[#allocation3 + $0x60] sm:$0xff] %v2607
    %2612 = vst [vmem:[#allocation3 + $0x68] sm:$0xff] %v2608
    %v2615 = vunpack.c.l.b16 %v2575
    %v2616 = vunpack.c.l.b16 %v2576
    %v2617 = vunpack.c.h.b16 %v2575
    %v2618 = vunpack.c.h.b16 %v2576
    %v2619 = vpack.c.b16 %v2616, %v2615
    %v2620 = vpack.c.b16 %v2618, %v2617
    %2623 = vst [vmem:[#allocation3 + $0x80] sm:$0xff] %v2619
    %2624 = vst [vmem:[#allocation3 + $0x88] sm:$0xff] %v2620
    %v2625 = vld [vmem:[%s8] sm:$0xf]
    %v2626 = vld [vmem:[#allocation3 + $0x10] sm:$0xff]
    %v2627 = vld [vmem:[#allocation3 + $0x18] sm:$0xff]
    %v2628 = vld [vmem:[#allocation3 + $0x20] sm:$0xff]
    %v2629 = vld [vmem:[#allocation3 + $0x28] sm:$0xff]
    %v2630 = vld [vmem:[#allocation3 + $0x30] sm:$0xff]
    %v2631 = vld [vmem:[#allocation3 + $0x38] sm:$0xff]
    %v2632 = vld [vmem:[#allocation3 + $0x40] sm:$0xff]
    %v2633 = vld [vmem:[#allocation3 + $0x48] sm:$0xff]
    %v2634 = vld [vmem:[#allocation3 + $0x50] sm:$0xff]
    %v2635 = vld [vmem:[#allocation3 + $0x58] sm:$0xff]
    %v2636 = vld [vmem:[#allocation3 + $0x60] sm:$0xff]
    %v2637 = vld [vmem:[#allocation3 + $0x68] sm:$0xff]
    %v2638 = vld [vmem:[#allocation3 + $0x70] sm:$0xff]
    %v2639 = vld [vmem:[#allocation3 + $0x78] sm:$0xff]
    %v2640 = vld [vmem:[#allocation3 + $0x80] sm:$0xff]
    %v2641 = vld [vmem:[#allocation3 + $0x88] sm:$0xff]
    %s2642 = scalar_lea.vmem [#allocation7], 512
    %v2643 = vld [vmem:[%s2642] sm:$0xff]
    %v2644 = vld [vmem:[%s2642 + $0x8] sm:$0xff]
    %v2645 = vld [vmem:[%s2642 + $0x10] sm:$0xff]
    %v2646 = vld [vmem:[%s2642 + $0x18] sm:$0xff]
    %v2647 = vld [vmem:[%s2642 + $0x20] sm:$0xff]
    %v2648 = vld [vmem:[%s2642 + $0x28] sm:$0xff]
    %v2649 = vld [vmem:[%s2642 + $0x30] sm:$0xff]
    %v2650 = vld [vmem:[%s2642 + $0x38] sm:$0xff]
    %v2651 = vld [vmem:[%s2642 + $0x40] sm:$0xff]
    %v2652 = vld [vmem:[%s2642 + $0x48] sm:$0xff]
    %v2653 = vld [vmem:[%s2642 + $0x50] sm:$0xff]
    %v2654 = vld [vmem:[%s2642 + $0x58] sm:$0xff]
    %v2655 = vld [vmem:[%s2642 + $0x60] sm:$0xff]
    %v2656 = vld [vmem:[%s2642 + $0x68] sm:$0xff]
    %v2657 = vld [vmem:[%s2642 + $0x70] sm:$0xff]
    %v2658 = vld [vmem:[%s2642 + $0x78] sm:$0xff]
    %v2659 = vld [vmem:[%s2642 + $0x80] sm:$0xff]
    %v2660 = vld [vmem:[%s2642 + $0x88] sm:$0xff]
    %v2661 = vld [vmem:[%s2642 + $0x90] sm:$0xff]
    %v2662 = vld [vmem:[%s2642 + $0x98] sm:$0xff]
    %v2663 = vld [vmem:[%s2642 + $0xa0] sm:$0xff]
    %v2664 = vld [vmem:[%s2642 + $0xa8] sm:$0xff]
    %v2665 = vld [vmem:[%s2642 + $0xb0] sm:$0xff]
    %v2666 = vld [vmem:[%s2642 + $0xb8] sm:$0xff]
    %v2667 = vld [vmem:[%s2642 + $0xc0] sm:$0xff]
    %v2668 = vld [vmem:[%s2642 + $0xc8] sm:$0xff]
    %v2669 = vld [vmem:[%s2642 + $0xd0] sm:$0xff]
    %v2670 = vld [vmem:[%s2642 + $0xd8] sm:$0xff]
    %v2671 = vld [vmem:[%s2642 + $0xe0] sm:$0xff]
    %v2672 = vld [vmem:[%s2642 + $0xe8] sm:$0xff]
    %v2673 = vld [vmem:[%s2642 + $0xf0] sm:$0xff]
    %v2674 = vld [vmem:[%s2642 + $0xf8] sm:$0xff]
    %v2675 = vld [vmem:[%s2642 + $0x100] sm:$0xff]
    %v2676 = vld [vmem:[%s2642 + $0x108] sm:$0xff]
    %v2677 = vld [vmem:[%s2642 + $0x110] sm:$0xff]
    %v2678 = vld [vmem:[%s2642 + $0x118] sm:$0xff]
    %v2679 = vld [vmem:[%s2642 + $0x120] sm:$0xff]
    %v2680 = vld [vmem:[%s2642 + $0x128] sm:$0xff]
    %v2681 = vld [vmem:[%s2642 + $0x130] sm:$0xff]
    %v2682 = vld [vmem:[%s2642 + $0x138] sm:$0xff]
    %v2683 = vld [vmem:[%s2642 + $0x140] sm:$0xff]
    %v2684 = vld [vmem:[%s2642 + $0x148] sm:$0xff]
    %v2685 = vld [vmem:[%s2642 + $0x150] sm:$0xff]
    %v2686 = vld [vmem:[%s2642 + $0x158] sm:$0xff]
    %v2687 = vld [vmem:[%s2642 + $0x160] sm:$0xff]
    %v2688 = vld [vmem:[%s2642 + $0x168] sm:$0xff]
    %v2689 = vld [vmem:[%s2642 + $0x170] sm:$0xff]
    %v2690 = vld [vmem:[%s2642 + $0x178] sm:$0xff]
    %v2691 = vld [vmem:[%s2642 + $0x180] sm:$0xff]
    %v2692 = vld [vmem:[%s2642 + $0x188] sm:$0xff]
    %v2693 = vld [vmem:[%s2642 + $0x190] sm:$0xff]
    %v2694 = vld [vmem:[%s2642 + $0x198] sm:$0xff]
    %v2695 = vld [vmem:[%s2642 + $0x1a0] sm:$0xff]
    %v2696 = vld [vmem:[%s2642 + $0x1a8] sm:$0xff]
    %v2697 = vld [vmem:[%s2642 + $0x1b0] sm:$0xff]
    %v2698 = vld [vmem:[%s2642 + $0x1b8] sm:$0xff]
    %v2699 = vld [vmem:[%s2642 + $0x1c0] sm:$0xff]
    %v2700 = vld [vmem:[%s2642 + $0x1c8] sm:$0xff]
    %v2701 = vld [vmem:[%s2642 + $0x1d0] sm:$0xff]
    %v2702 = vld [vmem:[%s2642 + $0x1d8] sm:$0xff]
    %v2703 = vld [vmem:[%s2642 + $0x1e0] sm:$0xff]
    %v2704 = vld [vmem:[%s2642 + $0x1e8] sm:$0xff]
    %v2705 = vld [vmem:[%s2642 + $0x1f0] sm:$0xff]
    %v2706 = vld [vmem:[%s2642 + $0x1f8] sm:$0xff]
    %v2707 = vld [vmem:[#allocation3] sm:$0xff]
    %v2708 = vld [vmem:[#allocation3 + $0x8] sm:$0xff]
    %s2709 = scalar_lea.vmem [#allocation7], 1536
    %v2710 = vld [vmem:[%s2709] sm:$0xff]
    %v2711 = vld [vmem:[%s2709 + $0x8] sm:$0xff]
    %v2712 = vld [vmem:[%s2709 + $0x10] sm:$0xff]
    %v2713 = vld [vmem:[%s2709 + $0x18] sm:$0xff]
    %v2714 = vld [vmem:[%s2709 + $0x20] sm:$0xff]
    %v2715 = vld [vmem:[%s2709 + $0x28] sm:$0xff]
    %v2716 = vld [vmem:[%s2709 + $0x30] sm:$0xff]
    %v2717 = vld [vmem:[%s2709 + $0x38] sm:$0xff]
    %v2718 = vld [vmem:[%s2709 + $0x40] sm:$0xff]
    %v2719 = vld [vmem:[%s2709 + $0x48] sm:$0xff]
    %v2720 = vld [vmem:[%s2709 + $0x50] sm:$0xff]
    %v2721 = vld [vmem:[%s2709 + $0x58] sm:$0xff]
    %v2722 = vld [vmem:[%s2709 + $0x60] sm:$0xff]
    %v2723 = vld [vmem:[%s2709 + $0x68] sm:$0xff]
    %v2724 = vld [vmem:[%s2709 + $0x70] sm:$0xff]
    %v2725 = vld [vmem:[%s2709 + $0x78] sm:$0xff]
    %v2726 = vld [vmem:[%s2709 + $0x80] sm:$0xff]
    %v2727 = vld [vmem:[%s2709 + $0x88] sm:$0xff]
    %v2728 = vld [vmem:[%s2709 + $0x90] sm:$0xff]
    %v2729 = vld [vmem:[%s2709 + $0x98] sm:$0xff]
    %v2730 = vld [vmem:[%s2709 + $0xa0] sm:$0xff]
    %v2731 = vld [vmem:[%s2709 + $0xa8] sm:$0xff]
    %v2732 = vld [vmem:[%s2709 + $0xb0] sm:$0xff]
    %v2733 = vld [vmem:[%s2709 + $0xb8] sm:$0xff]
    %v2734 = vld [vmem:[%s2709 + $0xc0] sm:$0xff]
    %v2735 = vld [vmem:[%s2709 + $0xc8] sm:$0xff]
    %v2736 = vld [vmem:[%s2709 + $0xd0] sm:$0xff]
    %v2737 = vld [vmem:[%s2709 + $0xd8] sm:$0xff]
    %v2738 = vld [vmem:[%s2709 + $0xe0] sm:$0xff]
    %v2739 = vld [vmem:[%s2709 + $0xe8] sm:$0xff]
    %v2740 = vld [vmem:[%s2709 + $0xf0] sm:$0xff]
    %v2741 = vld [vmem:[%s2709 + $0xf8] sm:$0xff]
    %v2742 = vld [vmem:[%s2709 + $0x100] sm:$0xff]
    %v2743 = vld [vmem:[%s2709 + $0x108] sm:$0xff]
    %v2744 = vld [vmem:[%s2709 + $0x110] sm:$0xff]
    %v2745 = vld [vmem:[%s2709 + $0x118] sm:$0xff]
    %v2746 = vld [vmem:[%s2709 + $0x120] sm:$0xff]
    %v2747 = vld [vmem:[%s2709 + $0x128] sm:$0xff]
    %v2748 = vld [vmem:[%s2709 + $0x130] sm:$0xff]
    %v2749 = vld [vmem:[%s2709 + $0x138] sm:$0xff]
    %v2750 = vld [vmem:[%s2709 + $0x140] sm:$0xff]
    %v2751 = vld [vmem:[%s2709 + $0x148] sm:$0xff]
    %v2752 = vld [vmem:[%s2709 + $0x150] sm:$0xff]
    %v2753 = vld [vmem:[%s2709 + $0x158] sm:$0xff]
    %v2754 = vld [vmem:[%s2709 + $0x160] sm:$0xff]
    %v2755 = vld [vmem:[%s2709 + $0x168] sm:$0xff]
    %v2756 = vld [vmem:[%s2709 + $0x170] sm:$0xff]
    %v2757 = vld [vmem:[%s2709 + $0x178] sm:$0xff]
    %v2758 = vld [vmem:[%s2709 + $0x180] sm:$0xff]
    %v2759 = vld [vmem:[%s2709 + $0x188] sm:$0xff]
    %v2760 = vld [vmem:[%s2709 + $0x190] sm:$0xff]
    %v2761 = vld [vmem:[%s2709 + $0x198] sm:$0xff]
    %v2762 = vld [vmem:[%s2709 + $0x1a0] sm:$0xff]
    %v2763 = vld [vmem:[%s2709 + $0x1a8] sm:$0xff]
    %v2764 = vld [vmem:[%s2709 + $0x1b0] sm:$0xff]
    %v2765 = vld [vmem:[%s2709 + $0x1b8] sm:$0xff]
    %v2766 = vld [vmem:[%s2709 + $0x1c0] sm:$0xff]
    %v2767 = vld [vmem:[%s2709 + $0x1c8] sm:$0xff]
    %v2768 = vld [vmem:[%s2709 + $0x1d0] sm:$0xff]
    %v2769 = vld [vmem:[%s2709 + $0x1d8] sm:$0xff]
    %v2770 = vld [vmem:[%s2709 + $0x1e0] sm:$0xff]
    %v2771 = vld [vmem:[%s2709 + $0x1e8] sm:$0xff]
    %v2772 = vld [vmem:[%s2709 + $0x1f0] sm:$0xff]
    %v2773 = vld [vmem:[%s2709 + $0x1f8] sm:$0xff]
    %v2790 = vunpack.c.l.b16 %v2707
    %v2791 = vunpack.c.h.b16 %v2707
    %v2792 = vunpack.c.l.b16 %v2708
    %v2793 = vunpack.c.h.b16 %v2708
    %v2794 = vunpack.c.l.b16 %v2626
    %v2795 = vunpack.c.h.b16 %v2626
    %v2796 = vunpack.c.l.b16 %v2627
    %v2797 = vunpack.c.h.b16 %v2627
    %v2798 = vunpack.c.l.b16 %v2628
    %v2799 = vunpack.c.h.b16 %v2628
    %v2800 = vunpack.c.l.b16 %v2629
    %v2801 = vunpack.c.h.b16 %v2629
    %v2802 = vunpack.c.l.b16 %v2630
    %v2803 = vunpack.c.h.b16 %v2630
    %v2804 = vunpack.c.l.b16 %v2631
    %v2805 = vunpack.c.h.b16 %v2631
    %v2806 = vunpack.c.l.b16 %v2632
    %v2807 = vunpack.c.h.b16 %v2632
    %v2808 = vunpack.c.l.b16 %v2633
    %v2809 = vunpack.c.h.b16 %v2633
    %v2810 = vunpack.c.l.b16 %v2634
    %v2811 = vunpack.c.h.b16 %v2634
    %v2812 = vunpack.c.l.b16 %v2635
    %v2813 = vunpack.c.h.b16 %v2635
    %v2814 = vunpack.c.l.b16 %v2636
    %v2815 = vunpack.c.h.b16 %v2636
    %v2816 = vunpack.c.l.b16 %v2637
    %v2817 = vunpack.c.h.b16 %v2637
    %v2818 = vunpack.c.l.b16 %v2638
    %v2819 = vunpack.c.h.b16 %v2638
    %v2820 = vunpack.c.l.b16 %v2639
    %v2821 = vunpack.c.h.b16 %v2639
    %v2822 = vpack.c.b16 %v2792, %v2790
    %v2823 = vpack.c.b16 %v2793, %v2791
    %v2824 = vpack.c.b16 %v2796, %v2794
    %v2825 = vpack.c.b16 %v2797, %v2795
    %v2826 = vpack.c.b16 %v2800, %v2798
    %v2827 = vpack.c.b16 %v2801, %v2799
    %v2828 = vpack.c.b16 %v2804, %v2802
    %v2829 = vpack.c.b16 %v2805, %v2803
    %v2830 = vpack.c.b16 %v2808, %v2806
    %v2831 = vpack.c.b16 %v2809, %v2807
    %v2832 = vpack.c.b16 %v2812, %v2810
    %v2833 = vpack.c.b16 %v2813, %v2811
    %v2834 = vpack.c.b16 %v2816, %v2814
    %v2835 = vpack.c.b16 %v2817, %v2815
    %v2836 = vpack.c.b16 %v2820, %v2818
    %v2837 = vpack.c.b16 %v2821, %v2819
    %v2918 = vunpack.c.l.b16 %v2710
    %v2919 = vunpack.c.h.b16 %v2710
    %v2920 = vunpack.c.l.b16 %v2711
    %v2921 = vunpack.c.h.b16 %v2711
    %v2922 = vunpack.c.l.b16 %v2712
    %v2923 = vunpack.c.h.b16 %v2712
    %v2924 = vunpack.c.l.b16 %v2713
    %v2925 = vunpack.c.h.b16 %v2713
    %v2926 = vunpack.c.l.b16 %v2714
    %v2927 = vunpack.c.h.b16 %v2714
    %v2928 = vunpack.c.l.b16 %v2715
    %v2929 = vunpack.c.h.b16 %v2715
    %v2930 = vunpack.c.l.b16 %v2716
    %v2931 = vunpack.c.h.b16 %v2716
    %v2932 = vunpack.c.l.b16 %v2717
    %v2933 = vunpack.c.h.b16 %v2717
    %v2934 = vunpack.c.l.b16 %v2718
    %v2935 = vunpack.c.h.b16 %v2718
    %v2936 = vunpack.c.l.b16 %v2719
    %v2937 = vunpack.c.h.b16 %v2719
    %v2938 = vunpack.c.l.b16 %v2720
    %v2939 = vunpack.c.h.b16 %v2720
    %v2940 = vunpack.c.l.b16 %v2721
    %v2941 = vunpack.c.h.b16 %v2721
    %v2942 = vunpack.c.l.b16 %v2722
    %v2943 = vunpack.c.h.b16 %v2722
    %v2944 = vunpack.c.l.b16 %v2723
    %v2945 = vunpack.c.h.b16 %v2723
    %v2946 = vunpack.c.l.b16 %v2724
    %v2947 = vunpack.c.h.b16 %v2724
    %v2948 = vunpack.c.l.b16 %v2725
    %v2949 = vunpack.c.h.b16 %v2725
    %v2950 = vunpack.c.l.b16 %v2726
    %v2951 = vunpack.c.h.b16 %v2726
    %v2952 = vunpack.c.l.b16 %v2727
    %v2953 = vunpack.c.h.b16 %v2727
    %v2954 = vunpack.c.l.b16 %v2728
    %v2955 = vunpack.c.h.b16 %v2728
    %v2956 = vunpack.c.l.b16 %v2729
    %v2957 = vunpack.c.h.b16 %v2729
    %v2958 = vunpack.c.l.b16 %v2730
    %v2959 = vunpack.c.h.b16 %v2730
    %v2960 = vunpack.c.l.b16 %v2731
    %v2961 = vunpack.c.h.b16 %v2731
    %v2962 = vunpack.c.l.b16 %v2732
    %v2963 = vunpack.c.h.b16 %v2732
    %v2964 = vunpack.c.l.b16 %v2733
    %v2965 = vunpack.c.h.b16 %v2733
    %v2966 = vunpack.c.l.b16 %v2734
    %v2967 = vunpack.c.h.b16 %v2734
    %v2968 = vunpack.c.l.b16 %v2735
    %v2969 = vunpack.c.h.b16 %v2735
    %v2970 = vunpack.c.l.b16 %v2736
    %v2971 = vunpack.c.h.b16 %v2736
    %v2972 = vunpack.c.l.b16 %v2737
    %v2973 = vunpack.c.h.b16 %v2737
    %v2974 = vunpack.c.l.b16 %v2738
    %v2975 = vunpack.c.h.b16 %v2738
    %v2976 = vunpack.c.l.b16 %v2739
    %v2977 = vunpack.c.h.b16 %v2739
    %v2978 = vunpack.c.l.b16 %v2740
    %v2979 = vunpack.c.h.b16 %v2740
    %v2980 = vunpack.c.l.b16 %v2741
    %v2981 = vunpack.c.h.b16 %v2741
    %v2982 = vunpack.c.l.b16 %v2742
    %v2983 = vunpack.c.h.b16 %v2742
    %v2984 = vunpack.c.l.b16 %v2743
    %v2985 = vunpack.c.h.b16 %v2743
    %v2986 = vunpack.c.l.b16 %v2744
    %v2987 = vunpack.c.h.b16 %v2744
    %v2988 = vunpack.c.l.b16 %v2745
    %v2989 = vunpack.c.h.b16 %v2745
    %v2990 = vunpack.c.l.b16 %v2746
    %v2991 = vunpack.c.h.b16 %v2746
    %v2992 = vunpack.c.l.b16 %v2747
    %v2993 = vunpack.c.h.b16 %v2747
    %v2994 = vunpack.c.l.b16 %v2748
    %v2995 = vunpack.c.h.b16 %v2748
    %v2996 = vunpack.c.l.b16 %v2749
    %v2997 = vunpack.c.h.b16 %v2749
    %v2998 = vunpack.c.l.b16 %v2750
    %v2999 = vunpack.c.h.b16 %v2750
    %v3000 = vunpack.c.l.b16 %v2751
    %v3001 = vunpack.c.h.b16 %v2751
    %v3002 = vunpack.c.l.b16 %v2752
    %v3003 = vunpack.c.h.b16 %v2752
    %v3004 = vunpack.c.l.b16 %v2753
    %v3005 = vunpack.c.h.b16 %v2753
    %v3006 = vunpack.c.l.b16 %v2754
    %v3007 = vunpack.c.h.b16 %v2754
    %v3008 = vunpack.c.l.b16 %v2755
    %v3009 = vunpack.c.h.b16 %v2755
    %v3010 = vunpack.c.l.b16 %v2756
    %v3011 = vunpack.c.h.b16 %v2756
    %v3012 = vunpack.c.l.b16 %v2757
    %v3013 = vunpack.c.h.b16 %v2757
    %v3014 = vunpack.c.l.b16 %v2758
    %v3015 = vunpack.c.h.b16 %v2758
    %v3016 = vunpack.c.l.b16 %v2759
    %v3017 = vunpack.c.h.b16 %v2759
    %v3018 = vunpack.c.l.b16 %v2760
    %v3019 = vunpack.c.h.b16 %v2760
    %v3020 = vunpack.c.l.b16 %v2761
    %v3021 = vunpack.c.h.b16 %v2761
    %v3022 = vunpack.c.l.b16 %v2762
    %v3023 = vunpack.c.h.b16 %v2762
    %v3024 = vunpack.c.l.b16 %v2763
    %v3025 = vunpack.c.h.b16 %v2763
    %v3026 = vunpack.c.l.b16 %v2764
    %v3027 = vunpack.c.h.b16 %v2764
    %v3028 = vunpack.c.l.b16 %v2765
    %v3029 = vunpack.c.h.b16 %v2765
    %v3030 = vunpack.c.l.b16 %v2766
    %v3031 = vunpack.c.h.b16 %v2766
    %v3032 = vunpack.c.l.b16 %v2767
    %v3033 = vunpack.c.h.b16 %v2767
    %v3034 = vunpack.c.l.b16 %v2768
    %v3035 = vunpack.c.h.b16 %v2768
    %v3036 = vunpack.c.l.b16 %v2769
    %v3037 = vunpack.c.h.b16 %v2769
    %v3038 = vunpack.c.l.b16 %v2770
    %v3039 = vunpack.c.h.b16 %v2770
    %v3040 = vunpack.c.l.b16 %v2771
    %v3041 = vunpack.c.h.b16 %v2771
    %v3042 = vunpack.c.l.b16 %v2772
    %v3043 = vunpack.c.h.b16 %v2772
    %v3044 = vunpack.c.l.b16 %v2773
    %v3045 = vunpack.c.h.b16 %v2773
    %v3046 = vpack.c.b16 %v2922, %v2918
    %v3047 = vpack.c.b16 %v2923, %v2919
    %v3048 = vpack.c.b16 %v2924, %v2920
    %v3049 = vpack.c.b16 %v2925, %v2921
    %v3050 = vpack.c.b16 %v2930, %v2926
    %v3051 = vpack.c.b16 %v2931, %v2927
    %v3052 = vpack.c.b16 %v2932, %v2928
    %v3053 = vpack.c.b16 %v2933, %v2929
    %v3054 = vpack.c.b16 %v2938, %v2934
    %v3055 = vpack.c.b16 %v2939, %v2935
    %v3056 = vpack.c.b16 %v2940, %v2936
    %v3057 = vpack.c.b16 %v2941, %v2937
    %v3058 = vpack.c.b16 %v2946, %v2942
    %v3059 = vpack.c.b16 %v2947, %v2943
    %v3060 = vpack.c.b16 %v2948, %v2944
    %v3061 = vpack.c.b16 %v2949, %v2945
    %v3062 = vpack.c.b16 %v2954, %v2950
    %v3063 = vpack.c.b16 %v2955, %v2951
    %v3064 = vpack.c.b16 %v2956, %v2952
    %v3065 = vpack.c.b16 %v2957, %v2953
    %v3066 = vpack.c.b16 %v2962, %v2958
    %v3067 = vpack.c.b16 %v2963, %v2959
    %v3068 = vpack.c.b16 %v2964, %v2960
    %v3069 = vpack.c.b16 %v2965, %v2961
    %v3070 = vpack.c.b16 %v2970, %v2966
    %v3071 = vpack.c.b16 %v2971, %v2967
    %v3072 = vpack.c.b16 %v2972, %v2968
    %v3073 = vpack.c.b16 %v2973, %v2969
    %v3074 = vpack.c.b16 %v2978, %v2974
    %v3075 = vpack.c.b16 %v2979, %v2975
    %v3076 = vpack.c.b16 %v2980, %v2976
    %v3077 = vpack.c.b16 %v2981, %v2977
    %v3078 = vpack.c.b16 %v2986, %v2982
    %v3079 = vpack.c.b16 %v2987, %v2983
    %v3080 = vpack.c.b16 %v2988, %v2984
    %v3081 = vpack.c.b16 %v2989, %v2985
    %v3082 = vpack.c.b16 %v2994, %v2990
    %v3083 = vpack.c.b16 %v2995, %v2991
    %v3084 = vpack.c.b16 %v2996, %v2992
    %v3085 = vpack.c.b16 %v2997, %v2993
    %v3086 = vpack.c.b16 %v3002, %v2998
    %v3087 = vpack.c.b16 %v3003, %v2999
    %v3088 = vpack.c.b16 %v3004, %v3000
    %v3089 = vpack.c.b16 %v3005, %v3001
    %v3090 = vpack.c.b16 %v3010, %v3006
    %v3091 = vpack.c.b16 %v3011, %v3007
    %v3092 = vpack.c.b16 %v3012, %v3008
    %v3093 = vpack.c.b16 %v3013, %v3009
    %v3094 = vpack.c.b16 %v3018, %v3014
    %v3095 = vpack.c.b16 %v3019, %v3015
    %v3096 = vpack.c.b16 %v3020, %v3016
    %v3097 = vpack.c.b16 %v3021, %v3017
    %v3098 = vpack.c.b16 %v3026, %v3022
    %v3099 = vpack.c.b16 %v3027, %v3023
    %v3100 = vpack.c.b16 %v3028, %v3024
    %v3101 = vpack.c.b16 %v3029, %v3025
    %v3102 = vpack.c.b16 %v3034, %v3030
    %v3103 = vpack.c.b16 %v3035, %v3031
    %v3104 = vpack.c.b16 %v3036, %v3032
    %v3105 = vpack.c.b16 %v3037, %v3033
    %v3106 = vpack.c.b16 %v3042, %v3038
    %v3107 = vpack.c.b16 %v3043, %v3039
    %v3108 = vpack.c.b16 %v3044, %v3040
    %v3109 = vpack.c.b16 %v3045, %v3041
    %3174 = vmatprep.subr.bf16.mxu0 %v3075
    %3175 = vmatpush1.bf16.msra.mxu0 %v3074
    %3176 = vmatprep.subr.bf16.mxu0 %v3071
    %3177 = vmatpush1.bf16.msra.mxu0 %v3070
    %3178 = vmatprep.subr.bf16.mxu0 %v3067
    %3179 = vmatpush1.bf16.msra.mxu0 %v3066
    %3180 = vmatprep.subr.bf16.mxu0 %v3063
    %3181 = vmatpush1.bf16.msra.mxu0 %v3062
    %3182 = vmatprep.subr.bf16.mxu0 %v3059
    %3183 = vmatpush1.bf16.msra.mxu0 %v3058
    %3184 = vmatprep.subr.bf16.mxu0 %v3055
    %3185 = vmatpush1.bf16.msra.mxu0 %v3054
    %3186 = vmatprep.subr.bf16.mxu0 %v3051
    %3187 = vmatpush1.bf16.msra.mxu0 %v3050
    %3188 = vmatprep.subr.bf16.mxu0 %v3047
    %3189 = vmatpush1.bf16.msra.mxu0 %v3046
    %3190 = vmatprep.subr.bf16.mxu0 %v3107
    %3191 = vmatpush2.bf16.msra.mxu0 %v3106
    %3192 = vmatprep.subr.bf16.mxu0 %v3103
    %3193 = vmatpush2.bf16.msra.mxu0 %v3102
    %3194 = vmatprep.subr.bf16.mxu0 %v3099
    %3195 = vmatpush2.bf16.msra.mxu0 %v3098
    %3196 = vmatprep.subr.bf16.mxu0 %v3095
    %3197 = vmatpush2.bf16.msra.mxu0 %v3094
    %3198 = vmatprep.subr.bf16.mxu0 %v3091
    %3199 = vmatpush2.bf16.msra.mxu0 %v3090
    %3200 = vmatprep.subr.bf16.mxu0 %v3087
    %3201 = vmatpush2.bf16.msra.mxu0 %v3086
    %3202 = vmatprep.subr.bf16.mxu0 %v3083
    %3203 = vmatpush2.bf16.msra.mxu0 %v3082
    %3204 = vmatprep.subr.bf16.mxu0 %v3079
    %3205 = vmatpush2.bf16.msra.mxu0 %v3078
    %3206 = vmatprep.mubr.bf16.mxu0 %v2823
    %3207 = vmatmul.mubr.bf16.gmra.mxu0 %v2822
    %v3208 = vpop.f32.mrf.mxu0
    %v3209 = vadd.f32 0.0, %v3208
    %v3210 = vpop.f32.mrf.mxu0
    %v3211 = vadd.f32 0.0, %v3210
    %v3212 = vpop.f32.mrf.mxu0
    %v3213 = vadd.f32 0.0, %v3212
    %v3214 = vpop.f32.mrf.mxu0
    %v3215 = vadd.f32 0.0, %v3214
    %3216 = vmatprep.mubr.bf16.mxu0 %v2825
    %3217 = vmatmul.mubr.bf16.gmra.mxu0 %v2824
    %v3218 = vpop.f32.mrf.mxu0
    %v3219 = vadd.f32 0.0, %v3218
    %v3220 = vpop.f32.mrf.mxu0
    %v3221 = vadd.f32 0.0, %v3220
    %v3222 = vpop.f32.mrf.mxu0
    %v3223 = vadd.f32 0.0, %v3222
    %v3224 = vpop.f32.mrf.mxu0
    %v3225 = vadd.f32 0.0, %v3224
    %3226 = vmatprep.mubr.bf16.mxu0 %v2827
    %3227 = vmatmul.mubr.bf16.gmra.mxu0 %v2826
    %v3228 = vpop.f32.mrf.mxu0
    %v3229 = vadd.f32 0.0, %v3228
    %v3230 = vpop.f32.mrf.mxu0
    %v3231 = vadd.f32 0.0, %v3230
    %v3232 = vpop.f32.mrf.mxu0
    %v3233 = vadd.f32 0.0, %v3232
    %v3234 = vpop.f32.mrf.mxu0
    %v3235 = vadd.f32 0.0, %v3234
    %3236 = vmatprep.mubr.bf16.mxu0 %v2829
    %3237 = vmatmul.mubr.bf16.gmra.mxu0 %v2828
    %v3238 = vpop.f32.mrf.mxu0
    %v3239 = vadd.f32 0.0, %v3238
    %v3240 = vpop.f32.mrf.mxu0
    %v3241 = vadd.f32 0.0, %v3240
    %v3242 = vpop.f32.mrf.mxu0
    %v3243 = vadd.f32 0.0, %v3242
    %v3244 = vpop.f32.mrf.mxu0
    %v3245 = vadd.f32 0.0, %v3244
    %3246 = vmatprep.mubr.bf16.mxu0 %v2831
    %3247 = vmatmul.mubr.bf16.gmra.mxu0 %v2830
    %v3248 = vpop.f32.mrf.mxu0
    %v3249 = vadd.f32 0.0, %v3248
    %v3250 = vpop.f32.mrf.mxu0
    %v3251 = vadd.f32 0.0, %v3250
    %v3252 = vpop.f32.mrf.mxu0
    %v3253 = vadd.f32 0.0, %v3252
    %v3254 = vpop.f32.mrf.mxu0
    %v3255 = vadd.f32 0.0, %v3254
    %3256 = vmatprep.mubr.bf16.mxu0 %v2833
    %3257 = vmatmul.mubr.bf16.gmra.mxu0 %v2832
    %v3258 = vpop.f32.mrf.mxu0
    %v3259 = vadd.f32 0.0, %v3258
    %v3260 = vpop.f32.mrf.mxu0
    %v3261 = vadd.f32 0.0, %v3260
    %v3262 = vpop.f32.mrf.mxu0
    %v3263 = vadd.f32 0.0, %v3262
    %v3264 = vpop.f32.mrf.mxu0
    %v3265 = vadd.f32 0.0, %v3264
    %3266 = vmatprep.mubr.bf16.mxu0 %v2835
    %3267 = vmatmul.mubr.bf16.gmra.mxu0 %v2834
    %v3268 = vpop.f32.mrf.mxu0
    %v3269 = vadd.f32 0.0, %v3268
    %v3270 = vpop.f32.mrf.mxu0
    %v3271 = vadd.f32 0.0, %v3270
    %v3272 = vpop.f32.mrf.mxu0
    %v3273 = vadd.f32 0.0, %v3272
    %v3274 = vpop.f32.mrf.mxu0
    %v3275 = vadd.f32 0.0, %v3274
    %3276 = vmatprep.mubr.bf16.mxu0 %v2837
    %3277 = vmatmul.mubr.bf16.gmra.mxu0 %v2836
    %v3278 = vpop.f32.mrf.mxu0
    %v3279 = vadd.f32 0.0, %v3278
    %v3280 = vpop.f32.mrf.mxu0
    %v3281 = vadd.f32 0.0, %v3280
    %v3282 = vpop.f32.mrf.mxu0
    %v3283 = vadd.f32 0.0, %v3282
    %v3284 = vpop.f32.mrf.mxu0
    %v3285 = vadd.f32 0.0, %v3284
    %3286 = vdwg.mxu0
    %3287 = vmatprep.subr.bf16.mxu0 %v3077
    %3288 = vmatpush1.bf16.msra.mxu0 %v3076
    %3289 = vmatprep.subr.bf16.mxu0 %v3073
    %3290 = vmatpush1.bf16.msra.mxu0 %v3072
    %3291 = vmatprep.subr.bf16.mxu0 %v3069
    %3292 = vmatpush1.bf16.msra.mxu0 %v3068
    %3293 = vmatprep.subr.bf16.mxu0 %v3065
    %3294 = vmatpush1.bf16.msra.mxu0 %v3064
    %3295 = vmatprep.subr.bf16.mxu0 %v3061
    %3296 = vmatpush1.bf16.msra.mxu0 %v3060
    %3297 = vmatprep.subr.bf16.mxu0 %v3057
    %3298 = vmatpush1.bf16.msra.mxu0 %v3056
    %3299 = vmatprep.subr.bf16.mxu0 %v3053
    %3300 = vmatpush1.bf16.msra.mxu0 %v3052
    %3301 = vmatprep.subr.bf16.mxu0 %v3049
    %3302 = vmatpush1.bf16.msra.mxu0 %v3048
    %3303 = vmatprep.subr.bf16.mxu0 %v3109
    %3304 = vmatpush2.bf16.msra.mxu0 %v3108
    %3305 = vmatprep.subr.bf16.mxu0 %v3105
    %3306 = vmatpush2.bf16.msra.mxu0 %v3104
    %3307 = vmatprep.subr.bf16.mxu0 %v3101
    %3308 = vmatpush2.bf16.msra.mxu0 %v3100
    %3309 = vmatprep.subr.bf16.mxu0 %v3097
    %3310 = vmatpush2.bf16.msra.mxu0 %v3096
    %3311 = vmatprep.subr.bf16.mxu0 %v3093
    %3312 = vmatpush2.bf16.msra.mxu0 %v3092
    %3313 = vmatprep.subr.bf16.mxu0 %v3089
    %3314 = vmatpush2.bf16.msra.mxu0 %v3088
    %3315 = vmatprep.subr.bf16.mxu0 %v3085
    %3316 = vmatpush2.bf16.msra.mxu0 %v3084
    %3317 = vmatprep.subr.bf16.mxu0 %v3081
    %3318 = vmatpush2.bf16.msra.mxu0 %v3080
    %3319 = vmatprep.mubr.bf16.mxu0 %v2823
    %3320 = vmatmul.mubr.bf16.gmra.mxu0 %v2822
    %v3321 = vpop.f32.mrf.mxu0
    %v3322 = vadd.f32 0.0, %v3321
    %v3323 = vpop.f32.mrf.mxu0
    %v3324 = vadd.f32 0.0, %v3323
    %v3325 = vpop.f32.mrf.mxu0
    %v3326 = vadd.f32 0.0, %v3325
    %v3327 = vpop.f32.mrf.mxu0
    %v3328 = vadd.f32 0.0, %v3327
    %3329 = vmatprep.mubr.bf16.mxu0 %v2825
    %3330 = vmatmul.mubr.bf16.gmra.mxu0 %v2824
    %v3331 = vpop.f32.mrf.mxu0
    %v3332 = vadd.f32 0.0, %v3331
    %v3333 = vpop.f32.mrf.mxu0
    %v3334 = vadd.f32 0.0, %v3333
    %v3335 = vpop.f32.mrf.mxu0
    %v3336 = vadd.f32 0.0, %v3335
    %v3337 = vpop.f32.mrf.mxu0
    %v3338 = vadd.f32 0.0, %v3337
    %3339 = vmatprep.mubr.bf16.mxu0 %v2827
    %3340 = vmatmul.mubr.bf16.gmra.mxu0 %v2826
    %v3341 = vpop.f32.mrf.mxu0
    %v3342 = vadd.f32 0.0, %v3341
    %v3343 = vpop.f32.mrf.mxu0
    %v3344 = vadd.f32 0.0, %v3343
    %v3345 = vpop.f32.mrf.mxu0
    %v3346 = vadd.f32 0.0, %v3345
    %v3347 = vpop.f32.mrf.mxu0
    %v3348 = vadd.f32 0.0, %v3347
    %3349 = vmatprep.mubr.bf16.mxu0 %v2829
    %3350 = vmatmul.mubr.bf16.gmra.mxu0 %v2828
    %v3351 = vpop.f32.mrf.mxu0
    %v3352 = vadd.f32 0.0, %v3351
    %v3353 = vpop.f32.mrf.mxu0
    %v3354 = vadd.f32 0.0, %v3353
    %v3355 = vpop.f32.mrf.mxu0
    %v3356 = vadd.f32 0.0, %v3355
    %v3357 = vpop.f32.mrf.mxu0
    %v3358 = vadd.f32 0.0, %v3357
    %3359 = vmatprep.mubr.bf16.mxu0 %v2831
    %3360 = vmatmul.mubr.bf16.gmra.mxu0 %v2830
    %v3361 = vpop.f32.mrf.mxu0
    %v3362 = vadd.f32 0.0, %v3361
    %v3363 = vpop.f32.mrf.mxu0
    %v3364 = vadd.f32 0.0, %v3363
    %v3365 = vpop.f32.mrf.mxu0
    %v3366 = vadd.f32 0.0, %v3365
    %v3367 = vpop.f32.mrf.mxu0
    %v3368 = vadd.f32 0.0, %v3367
    %3369 = vmatprep.mubr.bf16.mxu0 %v2833
    %3370 = vmatmul.mubr.bf16.gmra.mxu0 %v2832
    %v3371 = vpop.f32.mrf.mxu0
    %v3372 = vadd.f32 0.0, %v3371
    %v3373 = vpop.f32.mrf.mxu0
    %v3374 = vadd.f32 0.0, %v3373
    %v3375 = vpop.f32.mrf.mxu0
    %v3376 = vadd.f32 0.0, %v3375
    %v3377 = vpop.f32.mrf.mxu0
    %v3378 = vadd.f32 0.0, %v3377
    %3379 = vmatprep.mubr.bf16.mxu0 %v2835
    %3380 = vmatmul.mubr.bf16.gmra.mxu0 %v2834
    %v3381 = vpop.f32.mrf.mxu0
    %v3382 = vadd.f32 0.0, %v3381
    %v3383 = vpop.f32.mrf.mxu0
    %v3384 = vadd.f32 0.0, %v3383
    %v3385 = vpop.f32.mrf.mxu0
    %v3386 = vadd.f32 0.0, %v3385
    %v3387 = vpop.f32.mrf.mxu0
    %v3388 = vadd.f32 0.0, %v3387
    %3389 = vmatprep.mubr.bf16.mxu0 %v2837
    %3390 = vmatmul.mubr.bf16.gmra.mxu0 %v2836
    %v3391 = vpop.f32.mrf.mxu0
    %v3392 = vadd.f32 0.0, %v3391
    %v3393 = vpop.f32.mrf.mxu0
    %v3394 = vadd.f32 0.0, %v3393
    %v3395 = vpop.f32.mrf.mxu0
    %v3396 = vadd.f32 0.0, %v3395
    %v3397 = vpop.f32.mrf.mxu0
    %v3398 = vadd.f32 0.0, %v3397
    %3399 = vdwg.mxu0
    %v3402 = vunpack.c.l.b16 %v2640
    %v3403 = vunpack.c.h.b16 %v2640
    %v3404 = vunpack.c.l.b16 %v2641
    %v3405 = vunpack.c.h.b16 %v2641
    %v3406 = vpack.c.b16 %v3404, %v3402
    %v3407 = vpack.c.b16 %v3405, %v3403
    %v3474 = vunpack.c.l.b16 %v2643
    %v3475 = vunpack.c.h.b16 %v2643
    %v3476 = vunpack.c.l.b16 %v2644
    %v3477 = vunpack.c.h.b16 %v2644
    %v3478 = vunpack.c.l.b16 %v2645
    %v3479 = vunpack.c.h.b16 %v2645
    %v3480 = vunpack.c.l.b16 %v2646
    %v3481 = vunpack.c.h.b16 %v2646
    %v3482 = vunpack.c.l.b16 %v2647
    %v3483 = vunpack.c.h.b16 %v2647
    %v3484 = vunpack.c.l.b16 %v2648
    %v3485 = vunpack.c.h.b16 %v2648
    %v3486 = vunpack.c.l.b16 %v2649
    %v3487 = vunpack.c.h.b16 %v2649
    %v3488 = vunpack.c.l.b16 %v2650
    %v3489 = vunpack.c.h.b16 %v2650
    %v3490 = vunpack.c.l.b16 %v2651
    %v3491 = vunpack.c.h.b16 %v2651
    %v3492 = vunpack.c.l.b16 %v2652
    %v3493 = vunpack.c.h.b16 %v2652
    %v3494 = vunpack.c.l.b16 %v2653
    %v3495 = vunpack.c.h.b16 %v2653
    %v3496 = vunpack.c.l.b16 %v2654
    %v3497 = vunpack.c.h.b16 %v2654
    %v3498 = vunpack.c.l.b16 %v2655
    %v3499 = vunpack.c.h.b16 %v2655
    %v3500 = vunpack.c.l.b16 %v2656
    %v3501 = vunpack.c.h.b16 %v2656
    %v3502 = vunpack.c.l.b16 %v2657
    %v3503 = vunpack.c.h.b16 %v2657
    %v3504 = vunpack.c.l.b16 %v2658
    %v3505 = vunpack.c.h.b16 %v2658
    %v3506 = vunpack.c.l.b16 %v2659
    %v3507 = vunpack.c.h.b16 %v2659
    %v3508 = vunpack.c.l.b16 %v2660
    %v3509 = vunpack.c.h.b16 %v2660
    %v3510 = vunpack.c.l.b16 %v2661
    %v3511 = vunpack.c.h.b16 %v2661
    %v3512 = vunpack.c.l.b16 %v2662
    %v3513 = vunpack.c.h.b16 %v2662
    %v3514 = vunpack.c.l.b16 %v2663
    %v3515 = vunpack.c.h.b16 %v2663
    %v3516 = vunpack.c.l.b16 %v2664
    %v3517 = vunpack.c.h.b16 %v2664
    %v3518 = vunpack.c.l.b16 %v2665
    %v3519 = vunpack.c.h.b16 %v2665
    %v3520 = vunpack.c.l.b16 %v2666
    %v3521 = vunpack.c.h.b16 %v2666
    %v3522 = vunpack.c.l.b16 %v2667
    %v3523 = vunpack.c.h.b16 %v2667
    %v3524 = vunpack.c.l.b16 %v2668
    %v3525 = vunpack.c.h.b16 %v2668
    %v3526 = vunpack.c.l.b16 %v2669
    %v3527 = vunpack.c.h.b16 %v2669
    %v3528 = vunpack.c.l.b16 %v2670
    %v3529 = vunpack.c.h.b16 %v2670
    %v3530 = vunpack.c.l.b16 %v2671
    %v3531 = vunpack.c.h.b16 %v2671
    %v3532 = vunpack.c.l.b16 %v2672
    %v3533 = vunpack.c.h.b16 %v2672
    %v3534 = vunpack.c.l.b16 %v2673
    %v3535 = vunpack.c.h.b16 %v2673
    %v3536 = vunpack.c.l.b16 %v2674
    %v3537 = vunpack.c.h.b16 %v2674
    %v3538 = vunpack.c.l.b16 %v2675
    %v3539 = vunpack.c.h.b16 %v2675
    %v3540 = vunpack.c.l.b16 %v2676
    %v3541 = vunpack.c.h.b16 %v2676
    %v3542 = vunpack.c.l.b16 %v2677
    %v3543 = vunpack.c.h.b16 %v2677
    %v3544 = vunpack.c.l.b16 %v2678
    %v3545 = vunpack.c.h.b16 %v2678
    %v3546 = vunpack.c.l.b16 %v2679
    %v3547 = vunpack.c.h.b16 %v2679
    %v3548 = vunpack.c.l.b16 %v2680
    %v3549 = vunpack.c.h.b16 %v2680
    %v3550 = vunpack.c.l.b16 %v2681
    %v3551 = vunpack.c.h.b16 %v2681
    %v3552 = vunpack.c.l.b16 %v2682
    %v3553 = vunpack.c.h.b16 %v2682
    %v3554 = vunpack.c.l.b16 %v2683
    %v3555 = vunpack.c.h.b16 %v2683
    %v3556 = vunpack.c.l.b16 %v2684
    %v3557 = vunpack.c.h.b16 %v2684
    %v3558 = vunpack.c.l.b16 %v2685
    %v3559 = vunpack.c.h.b16 %v2685
    %v3560 = vunpack.c.l.b16 %v2686
    %v3561 = vunpack.c.h.b16 %v2686
    %v3562 = vunpack.c.l.b16 %v2687
    %v3563 = vunpack.c.h.b16 %v2687
    %v3564 = vunpack.c.l.b16 %v2688
    %v3565 = vunpack.c.h.b16 %v2688
    %v3566 = vunpack.c.l.b16 %v2689
    %v3567 = vunpack.c.h.b16 %v2689
    %v3568 = vunpack.c.l.b16 %v2690
    %v3569 = vunpack.c.h.b16 %v2690
    %v3570 = vunpack.c.l.b16 %v2691
    %v3571 = vunpack.c.h.b16 %v2691
    %v3572 = vunpack.c.l.b16 %v2692
    %v3573 = vunpack.c.h.b16 %v2692
    %v3574 = vunpack.c.l.b16 %v2693
    %v3575 = vunpack.c.h.b16 %v2693
    %v3576 = vunpack.c.l.b16 %v2694
    %v3577 = vunpack.c.h.b16 %v2694
    %v3578 = vunpack.c.l.b16 %v2695
    %v3579 = vunpack.c.h.b16 %v2695
    %v3580 = vunpack.c.l.b16 %v2696
    %v3581 = vunpack.c.h.b16 %v2696
    %v3582 = vunpack.c.l.b16 %v2697
    %v3583 = vunpack.c.h.b16 %v2697
    %v3584 = vunpack.c.l.b16 %v2698
    %v3585 = vunpack.c.h.b16 %v2698
    %v3586 = vunpack.c.l.b16 %v2699
    %v3587 = vunpack.c.h.b16 %v2699
    %v3588 = vunpack.c.l.b16 %v2700
    %v3589 = vunpack.c.h.b16 %v2700
    %v3590 = vunpack.c.l.b16 %v2701
    %v3591 = vunpack.c.h.b16 %v2701
    %v3592 = vunpack.c.l.b16 %v2702
    %v3593 = vunpack.c.h.b16 %v2702
    %v3594 = vunpack.c.l.b16 %v2703
    %v3595 = vunpack.c.h.b16 %v2703
    %v3596 = vunpack.c.l.b16 %v2704
    %v3597 = vunpack.c.h.b16 %v2704
    %v3598 = vunpack.c.l.b16 %v2705
    %v3599 = vunpack.c.h.b16 %v2705
    %v3600 = vunpack.c.l.b16 %v2706
    %v3601 = vunpack.c.h.b16 %v2706
    %v3602 = vpack.c.b16 %v3478, %v3474
    %v3603 = vpack.c.b16 %v3479, %v3475
    %v3604 = vpack.c.b16 %v3480, %v3476
    %v3605 = vpack.c.b16 %v3481, %v3477
    %v3606 = vpack.c.b16 %v3486, %v3482
    %v3607 = vpack.c.b16 %v3487, %v3483
    %v3608 = vpack.c.b16 %v3488, %v3484
    %v3609 = vpack.c.b16 %v3489, %v3485
    %v3610 = vpack.c.b16 %v3494, %v3490
    %v3611 = vpack.c.b16 %v3495, %v3491
    %v3612 = vpack.c.b16 %v3496, %v3492
    %v3613 = vpack.c.b16 %v3497, %v3493
    %v3614 = vpack.c.b16 %v3502, %v3498
    %v3615 = vpack.c.b16 %v3503, %v3499
    %v3616 = vpack.c.b16 %v3504, %v3500
    %v3617 = vpack.c.b16 %v3505, %v3501
    %v3618 = vpack.c.b16 %v3510, %v3506
    %v3619 = vpack.c.b16 %v3511, %v3507
    %v3620 = vpack.c.b16 %v3512, %v3508
    %v3621 = vpack.c.b16 %v3513, %v3509
    %v3622 = vpack.c.b16 %v3518, %v3514
    %v3623 = vpack.c.b16 %v3519, %v3515
    %v3624 = vpack.c.b16 %v3520, %v3516
    %v3625 = vpack.c.b16 %v3521, %v3517
    %v3626 = vpack.c.b16 %v3526, %v3522
    %v3627 = vpack.c.b16 %v3527, %v3523
    %v3628 = vpack.c.b16 %v3528, %v3524
    %v3629 = vpack.c.b16 %v3529, %v3525
    %v3630 = vpack.c.b16 %v3534, %v3530
    %v3631 = vpack.c.b16 %v3535, %v3531
    %v3632 = vpack.c.b16 %v3536, %v3532
    %v3633 = vpack.c.b16 %v3537, %v3533
    %v3634 = vpack.c.b16 %v3542, %v3538
    %v3635 = vpack.c.b16 %v3543, %v3539
    %v3636 = vpack.c.b16 %v3544, %v3540
    %v3637 = vpack.c.b16 %v3545, %v3541
    %v3638 = vpack.c.b16 %v3550, %v3546
    %v3639 = vpack.c.b16 %v3551, %v3547
    %v3640 = vpack.c.b16 %v3552, %v3548
    %v3641 = vpack.c.b16 %v3553, %v3549
    %v3642 = vpack.c.b16 %v3558, %v3554
    %v3643 = vpack.c.b16 %v3559, %v3555
    %v3644 = vpack.c.b16 %v3560, %v3556
    %v3645 = vpack.c.b16 %v3561, %v3557
    %v3646 = vpack.c.b16 %v3566, %v3562
    %v3647 = vpack.c.b16 %v3567, %v3563
    %v3648 = vpack.c.b16 %v3568, %v3564
    %v3649 = vpack.c.b16 %v3569, %v3565
    %v3650 = vpack.c.b16 %v3574, %v3570
    %v3651 = vpack.c.b16 %v3575, %v3571
    %v3652 = vpack.c.b16 %v3576, %v3572
    %v3653 = vpack.c.b16 %v3577, %v3573
    %v3654 = vpack.c.b16 %v3582, %v3578
    %v3655 = vpack.c.b16 %v3583, %v3579
    %v3656 = vpack.c.b16 %v3584, %v3580
    %v3657 = vpack.c.b16 %v3585, %v3581
    %v3658 = vpack.c.b16 %v3590, %v3586
    %v3659 = vpack.c.b16 %v3591, %v3587
    %v3660 = vpack.c.b16 %v3592, %v3588
    %v3661 = vpack.c.b16 %v3593, %v3589
    %v3662 = vpack.c.b16 %v3598, %v3594
    %v3663 = vpack.c.b16 %v3599, %v3595
    %v3664 = vpack.c.b16 %v3600, %v3596
    %v3665 = vpack.c.b16 %v3601, %v3597
    %3730 = vmatprep.subr.bf16.mxu0 %v3631
    %3731 = vmatpush1.bf16.msra.mxu0 %v3630
    %3732 = vmatprep.subr.bf16.mxu0 %v3627
    %3733 = vmatpush1.bf16.msra.mxu0 %v3626
    %3734 = vmatprep.subr.bf16.mxu0 %v3623
    %3735 = vmatpush1.bf16.msra.mxu0 %v3622
    %3736 = vmatprep.subr.bf16.mxu0 %v3619
    %3737 = vmatpush1.bf16.msra.mxu0 %v3618
    %3738 = vmatprep.subr.bf16.mxu0 %v3615
    %3739 = vmatpush1.bf16.msra.mxu0 %v3614
    %3740 = vmatprep.subr.bf16.mxu0 %v3611
    %3741 = vmatpush1.bf16.msra.mxu0 %v3610
    %3742 = vmatprep.subr.bf16.mxu0 %v3607
    %3743 = vmatpush1.bf16.msra.mxu0 %v3606
    %3744 = vmatprep.subr.bf16.mxu0 %v3603
    %3745 = vmatpush1.bf16.msra.mxu0 %v3602
    %3746 = vmatprep.subr.bf16.mxu0 %v3663
    %3747 = vmatpush2.bf16.msra.mxu0 %v3662
    %3748 = vmatprep.subr.bf16.mxu0 %v3659
    %3749 = vmatpush2.bf16.msra.mxu0 %v3658
    %3750 = vmatprep.subr.bf16.mxu0 %v3655
    %3751 = vmatpush2.bf16.msra.mxu0 %v3654
    %3752 = vmatprep.subr.bf16.mxu0 %v3651
    %3753 = vmatpush2.bf16.msra.mxu0 %v3650
    %3754 = vmatprep.subr.bf16.mxu0 %v3647
    %3755 = vmatpush2.bf16.msra.mxu0 %v3646
    %3756 = vmatprep.subr.bf16.mxu0 %v3643
    %3757 = vmatpush2.bf16.msra.mxu0 %v3642
    %3758 = vmatprep.subr.bf16.mxu0 %v3639
    %3759 = vmatpush2.bf16.msra.mxu0 %v3638
    %3760 = vmatprep.subr.bf16.mxu0 %v3635
    %3761 = vmatpush2.bf16.msra.mxu0 %v3634
    %3762 = vmatprep.mubr.bf16.mxu0 %v2825
    %3763 = vmatmul.mubr.bf16.gmra.mxu0 %v2824
    %v3764 = vpop.f32.mrf.mxu0
    %v3765 = vadd.f32 %v3209, %v3764
    %v3766 = vpop.f32.mrf.mxu0
    %v3767 = vadd.f32 %v3211, %v3766
    %v3768 = vpop.f32.mrf.mxu0
    %v3769 = vadd.f32 %v3213, %v3768
    %v3770 = vpop.f32.mrf.mxu0
    %v3771 = vadd.f32 %v3215, %v3770
    %3772 = vmatprep.mubr.bf16.mxu0 %v2827
    %3773 = vmatmul.mubr.bf16.gmra.mxu0 %v2826
    %v3774 = vpop.f32.mrf.mxu0
    %v3775 = vadd.f32 %v3219, %v3774
    %v3776 = vpop.f32.mrf.mxu0
    %v3777 = vadd.f32 %v3221, %v3776
    %v3778 = vpop.f32.mrf.mxu0
    %v3779 = vadd.f32 %v3223, %v3778
    %v3780 = vpop.f32.mrf.mxu0
    %v3781 = vadd.f32 %v3225, %v3780
    %3782 = vmatprep.mubr.bf16.mxu0 %v2829
    %3783 = vmatmul.mubr.bf16.gmra.mxu0 %v2828
    %v3784 = vpop.f32.mrf.mxu0
    %v3785 = vadd.f32 %v3229, %v3784
    %v3786 = vpop.f32.mrf.mxu0
    %v3787 = vadd.f32 %v3231, %v3786
    %v3788 = vpop.f32.mrf.mxu0
    %v3789 = vadd.f32 %v3233, %v3788
    %v3790 = vpop.f32.mrf.mxu0
    %v3791 = vadd.f32 %v3235, %v3790
    %3792 = vmatprep.mubr.bf16.mxu0 %v2831
    %3793 = vmatmul.mubr.bf16.gmra.mxu0 %v2830
    %v3794 = vpop.f32.mrf.mxu0
    %v3795 = vadd.f32 %v3239, %v3794
    %v3796 = vpop.f32.mrf.mxu0
    %v3797 = vadd.f32 %v3241, %v3796
    %v3798 = vpop.f32.mrf.mxu0
    %v3799 = vadd.f32 %v3243, %v3798
    %v3800 = vpop.f32.mrf.mxu0
    %v3801 = vadd.f32 %v3245, %v3800
    %3802 = vmatprep.mubr.bf16.mxu0 %v2833
    %3803 = vmatmul.mubr.bf16.gmra.mxu0 %v2832
    %v3804 = vpop.f32.mrf.mxu0
    %v3805 = vadd.f32 %v3249, %v3804
    %v3806 = vpop.f32.mrf.mxu0
    %v3807 = vadd.f32 %v3251, %v3806
    %v3808 = vpop.f32.mrf.mxu0
    %v3809 = vadd.f32 %v3253, %v3808
    %v3810 = vpop.f32.mrf.mxu0
    %v3811 = vadd.f32 %v3255, %v3810
    %3812 = vmatprep.mubr.bf16.mxu0 %v2835
    %3813 = vmatmul.mubr.bf16.gmra.mxu0 %v2834
    %v3814 = vpop.f32.mrf.mxu0
    %v3815 = vadd.f32 %v3259, %v3814
    %v3816 = vpop.f32.mrf.mxu0
    %v3817 = vadd.f32 %v3261, %v3816
    %v3818 = vpop.f32.mrf.mxu0
    %v3819 = vadd.f32 %v3263, %v3818
    %v3820 = vpop.f32.mrf.mxu0
    %v3821 = vadd.f32 %v3265, %v3820
    %3822 = vmatprep.mubr.bf16.mxu0 %v2837
    %3823 = vmatmul.mubr.bf16.gmra.mxu0 %v2836
    %v3824 = vpop.f32.mrf.mxu0
    %v3825 = vadd.f32 %v3269, %v3824
    %v3826 = vpop.f32.mrf.mxu0
    %v3827 = vadd.f32 %v3271, %v3826
    %v3828 = vpop.f32.mrf.mxu0
    %v3829 = vadd.f32 %v3273, %v3828
    %v3830 = vpop.f32.mrf.mxu0
    %v3831 = vadd.f32 %v3275, %v3830
    %3832 = vmatprep.mubr.bf16.mxu0 %v3407
    %3833 = vmatmul.mubr.bf16.gmra.mxu0 %v3406
    %v3834 = vpop.f32.mrf.mxu0
    %v3835 = vadd.f32 %v3279, %v3834
    %v3836 = vpop.f32.mrf.mxu0
    %v3837 = vadd.f32 %v3281, %v3836
    %v3838 = vpop.f32.mrf.mxu0
    %v3839 = vadd.f32 %v3283, %v3838
    %v3840 = vpop.f32.mrf.mxu0
    %v3841 = vadd.f32 %v3285, %v3840
    %3842 = vdwg.mxu0
    %3843 = vmatprep.subr.bf16.mxu0 %v3633
    %3844 = vmatpush1.bf16.msra.mxu0 %v3632
    %3845 = vmatprep.subr.bf16.mxu0 %v3629
    %3846 = vmatpush1.bf16.msra.mxu0 %v3628
    %3847 = vmatprep.subr.bf16.mxu0 %v3625
    %3848 = vmatpush1.bf16.msra.mxu0 %v3624
    %3849 = vmatprep.subr.bf16.mxu0 %v3621
    %3850 = vmatpush1.bf16.msra.mxu0 %v3620
    %3851 = vmatprep.subr.bf16.mxu0 %v3617
    %3852 = vmatpush1.bf16.msra.mxu0 %v3616
    %3853 = vmatprep.subr.bf16.mxu0 %v3613
    %3854 = vmatpush1.bf16.msra.mxu0 %v3612
    %3855 = vmatprep.subr.bf16.mxu0 %v3609
    %3856 = vmatpush1.bf16.msra.mxu0 %v3608
    %3857 = vmatprep.subr.bf16.mxu0 %v3605
    %3858 = vmatpush1.bf16.msra.mxu0 %v3604
    %3859 = vmatprep.subr.bf16.mxu0 %v3665
    %3860 = vmatpush2.bf16.msra.mxu0 %v3664
    %3861 = vmatprep.subr.bf16.mxu0 %v3661
    %3862 = vmatpush2.bf16.msra.mxu0 %v3660
    %3863 = vmatprep.subr.bf16.mxu0 %v3657
    %3864 = vmatpush2.bf16.msra.mxu0 %v3656
    %3865 = vmatprep.subr.bf16.mxu0 %v3653
    %3866 = vmatpush2.bf16.msra.mxu0 %v3652
    %3867 = vmatprep.subr.bf16.mxu0 %v3649
    %3868 = vmatpush2.bf16.msra.mxu0 %v3648
    %3869 = vmatprep.subr.bf16.mxu0 %v3645
    %3870 = vmatpush2.bf16.msra.mxu0 %v3644
    %3871 = vmatprep.subr.bf16.mxu0 %v3641
    %3872 = vmatpush2.bf16.msra.mxu0 %v3640
    %3873 = vmatprep.subr.bf16.mxu0 %v3637
    %3874 = vmatpush2.bf16.msra.mxu0 %v3636
    %3875 = vmatprep.mubr.bf16.mxu0 %v2825
    %3876 = vmatmul.mubr.bf16.gmra.mxu0 %v2824
    %v3877 = vpop.f32.mrf.mxu0
    %v3878 = vadd.f32 %v3322, %v3877
    %v3879 = vpop.f32.mrf.mxu0
    %v3880 = vadd.f32 %v3324, %v3879
    %v3881 = vpop.f32.mrf.mxu0
    %v3882 = vadd.f32 %v3326, %v3881
    %v3883 = vpop.f32.mrf.mxu0
    %v3884 = vadd.f32 %v3328, %v3883
    %3885 = vmatprep.mubr.bf16.mxu0 %v2827
    %3886 = vmatmul.mubr.bf16.gmra.mxu0 %v2826
    %v3887 = vpop.f32.mrf.mxu0
    %v3888 = vadd.f32 %v3332, %v3887
    %v3889 = vpop.f32.mrf.mxu0
    %v3890 = vadd.f32 %v3334, %v3889
    %v3891 = vpop.f32.mrf.mxu0
    %v3892 = vadd.f32 %v3336, %v3891
    %v3893 = vpop.f32.mrf.mxu0
    %v3894 = vadd.f32 %v3338, %v3893
    %3895 = vmatprep.mubr.bf16.mxu0 %v2829
    %3896 = vmatmul.mubr.bf16.gmra.mxu0 %v2828
    %v3897 = vpop.f32.mrf.mxu0
    %v3898 = vadd.f32 %v3342, %v3897
    %v3899 = vpop.f32.mrf.mxu0
    %v3900 = vadd.f32 %v3344, %v3899
    %v3901 = vpop.f32.mrf.mxu0
    %v3902 = vadd.f32 %v3346, %v3901
    %v3903 = vpop.f32.mrf.mxu0
    %v3904 = vadd.f32 %v3348, %v3903
    %3905 = vmatprep.mubr.bf16.mxu0 %v2831
    %3906 = vmatmul.mubr.bf16.gmra.mxu0 %v2830
    %v3907 = vpop.f32.mrf.mxu0
    %v3908 = vadd.f32 %v3352, %v3907
    %v3909 = vpop.f32.mrf.mxu0
    %v3910 = vadd.f32 %v3354, %v3909
    %v3911 = vpop.f32.mrf.mxu0
    %v3912 = vadd.f32 %v3356, %v3911
    %v3913 = vpop.f32.mrf.mxu0
    %v3914 = vadd.f32 %v3358, %v3913
    %3915 = vmatprep.mubr.bf16.mxu0 %v2833
    %3916 = vmatmul.mubr.bf16.gmra.mxu0 %v2832
    %v3917 = vpop.f32.mrf.mxu0
    %v3918 = vadd.f32 %v3362, %v3917
    %v3919 = vpop.f32.mrf.mxu0
    %v3920 = vadd.f32 %v3364, %v3919
    %v3921 = vpop.f32.mrf.mxu0
    %v3922 = vadd.f32 %v3366, %v3921
    %v3923 = vpop.f32.mrf.mxu0
    %v3924 = vadd.f32 %v3368, %v3923
    %3925 = vmatprep.mubr.bf16.mxu0 %v2835
    %3926 = vmatmul.mubr.bf16.gmra.mxu0 %v2834
    %v3927 = vpop.f32.mrf.mxu0
    %v3928 = vadd.f32 %v3372, %v3927
    %v3929 = vpop.f32.mrf.mxu0
    %v3930 = vadd.f32 %v3374, %v3929
    %v3931 = vpop.f32.mrf.mxu0
    %v3932 = vadd.f32 %v3376, %v3931
    %v3933 = vpop.f32.mrf.mxu0
    %v3934 = vadd.f32 %v3378, %v3933
    %3935 = vmatprep.mubr.bf16.mxu0 %v2837
    %3936 = vmatmul.mubr.bf16.gmra.mxu0 %v2836
    %v3937 = vpop.f32.mrf.mxu0
    %v3938 = vadd.f32 %v3382, %v3937
    %v3939 = vpop.f32.mrf.mxu0
    %v3940 = vadd.f32 %v3384, %v3939
    %v3941 = vpop.f32.mrf.mxu0
    %v3942 = vadd.f32 %v3386, %v3941
    %v3943 = vpop.f32.mrf.mxu0
    %v3944 = vadd.f32 %v3388, %v3943
    %3945 = vmatprep.mubr.bf16.mxu0 %v3407
    %3946 = vmatmul.mubr.bf16.gmra.mxu0 %v3406
    %v3947 = vpop.f32.mrf.mxu0
    %v3948 = vadd.f32 %v3392, %v3947
    %v3949 = vpop.f32.mrf.mxu0
    %v3950 = vadd.f32 %v3394, %v3949
    %v3951 = vpop.f32.mrf.mxu0
    %v3952 = vadd.f32 %v3396, %v3951
    %v3953 = vpop.f32.mrf.mxu0
    %v3954 = vadd.f32 %v3398, %v3953
    %3955 = vdwg.mxu0
    %v3957 = vlaneseq
    %v3958 = vshrl.u32 %v3957, 7
    %v3959 = vsub.s32 0, %v3958
    %v3960 = vrot.slane %v2625, %v3959
    %v3961 = vlaneseq
    %v3962 = vshrl.u32 %v3961, 7
    %v3963 = vsub.s32 1, %v3962
    %v3964 = vrot.slane %v2625, %v3963
    %v3965 = vlaneseq
    %v3966 = vshrl.u32 %v3965, 7
    %v3967 = vsub.s32 2, %v3966
    %v3968 = vrot.slane %v2625, %v3967
    %v3969 = vlaneseq
    %v3970 = vshrl.u32 %v3969, 7
    %v3971 = vsub.s32 3, %v3970
    %v3972 = vrot.slane %v2625, %v3971
    %v3977 = vadd.f32 %v3765, %v3960
    %v3978 = vadd.f32 %v3767, %v3964
    %v3979 = vadd.f32 %v3878, %v3968
    %v3980 = vadd.f32 %v3880, %v3972
    %v3981 = vadd.f32 %v3769, %v3960
    %v3982 = vadd.f32 %v3771, %v3964
    %v3983 = vadd.f32 %v3882, %v3968
    %v3984 = vadd.f32 %v3884, %v3972
    %v3985 = vadd.f32 %v3775, %v3960
    %v3986 = vadd.f32 %v3777, %v3964
    %v3987 = vadd.f32 %v3888, %v3968
    %v3988 = vadd.f32 %v3890, %v3972
    %v3989 = vadd.f32 %v3779, %v3960
    %v3990 = vadd.f32 %v3781, %v3964
    %v3991 = vadd.f32 %v3892, %v3968
    %v3992 = vadd.f32 %v3894, %v3972
    %v3993 = vadd.f32 %v3785, %v3960
    %v3994 = vadd.f32 %v3787, %v3964
    %v3995 = vadd.f32 %v3898, %v3968
    %v3996 = vadd.f32 %v3900, %v3972
    %v3997 = vadd.f32 %v3789, %v3960
    %v3998 = vadd.f32 %v3791, %v3964
    %v3999 = vadd.f32 %v3902, %v3968
    %v4000 = vadd.f32 %v3904, %v3972
    %v4001 = vadd.f32 %v3795, %v3960
    %v4002 = vadd.f32 %v3797, %v3964
    %v4003 = vadd.f32 %v3908, %v3968
    %v4004 = vadd.f32 %v3910, %v3972
    %v4005 = vadd.f32 %v3799, %v3960
    %v4006 = vadd.f32 %v3801, %v3964
    %v4007 = vadd.f32 %v3912, %v3968
    %v4008 = vadd.f32 %v3914, %v3972
    %v4009 = vadd.f32 %v3805, %v3960
    %v4010 = vadd.f32 %v3807, %v3964
    %v4011 = vadd.f32 %v3918, %v3968
    %v4012 = vadd.f32 %v3920, %v3972
    %v4013 = vadd.f32 %v3809, %v3960
    %v4014 = vadd.f32 %v3811, %v3964
    %v4015 = vadd.f32 %v3922, %v3968
    %v4016 = vadd.f32 %v3924, %v3972
    %v4017 = vadd.f32 %v3815, %v3960
    %v4018 = vadd.f32 %v3817, %v3964
    %v4019 = vadd.f32 %v3928, %v3968
    %v4020 = vadd.f32 %v3930, %v3972
    %v4021 = vadd.f32 %v3819, %v3960
    %v4022 = vadd.f32 %v3821, %v3964
    %v4023 = vadd.f32 %v3932, %v3968
    %v4024 = vadd.f32 %v3934, %v3972
    %v4025 = vadd.f32 %v3825, %v3960
    %v4026 = vadd.f32 %v3827, %v3964
    %v4027 = vadd.f32 %v3938, %v3968
    %v4028 = vadd.f32 %v3940, %v3972
    %v4029 = vadd.f32 %v3829, %v3960
    %v4030 = vadd.f32 %v3831, %v3964
    %v4031 = vadd.f32 %v3942, %v3968
    %v4032 = vadd.f32 %v3944, %v3972
    %v4033 = vadd.f32 %v3835, %v3960
    %v4034 = vadd.f32 %v3837, %v3964
    %v4035 = vadd.f32 %v3948, %v3968
    %v4036 = vadd.f32 %v3950, %v3972
    %v4037 = vadd.f32 %v3839, %v3960
    %v4038 = vadd.f32 %v3841, %v3964
    %v4039 = vadd.f32 %v3952, %v3968
    %v4040 = vadd.f32 %v3954, %v3972
    %v4041 = vmax.f32 %v3977, 0.0
    %v4042 = vmax.f32 %v3978, 0.0
    %v4043 = vmax.f32 %v3979, 0.0
    %v4044 = vmax.f32 %v3980, 0.0
    %v4045 = vmax.f32 %v3981, 0.0
    %v4046 = vmax.f32 %v3982, 0.0
    %v4047 = vmax.f32 %v3983, 0.0
    %v4048 = vmax.f32 %v3984, 0.0
    %v4049 = vmax.f32 %v3985, 0.0
    %v4050 = vmax.f32 %v3986, 0.0
    %v4051 = vmax.f32 %v3987, 0.0
    %v4052 = vmax.f32 %v3988, 0.0
    %v4053 = vmax.f32 %v3989, 0.0
    %v4054 = vmax.f32 %v3990, 0.0
    %v4055 = vmax.f32 %v3991, 0.0
    %v4056 = vmax.f32 %v3992, 0.0
    %v4057 = vmax.f32 %v3993, 0.0
    %v4058 = vmax.f32 %v3994, 0.0
    %v4059 = vmax.f32 %v3995, 0.0
    %v4060 = vmax.f32 %v3996, 0.0
    %v4061 = vmax.f32 %v3997, 0.0
    %v4062 = vmax.f32 %v3998, 0.0
    %v4063 = vmax.f32 %v3999, 0.0
    %v4064 = vmax.f32 %v4000, 0.0
    %v4065 = vmax.f32 %v4001, 0.0
    %v4066 = vmax.f32 %v4002, 0.0
    %v4067 = vmax.f32 %v4003, 0.0
    %v4068 = vmax.f32 %v4004, 0.0
    %v4069 = vmax.f32 %v4005, 0.0
    %v4070 = vmax.f32 %v4006, 0.0
    %v4071 = vmax.f32 %v4007, 0.0
    %v4072 = vmax.f32 %v4008, 0.0
    %v4073 = vmax.f32 %v4009, 0.0
    %v4074 = vmax.f32 %v4010, 0.0
    %v4075 = vmax.f32 %v4011, 0.0
    %v4076 = vmax.f32 %v4012, 0.0
    %v4077 = vmax.f32 %v4013, 0.0
    %v4078 = vmax.f32 %v4014, 0.0
    %v4079 = vmax.f32 %v4015, 0.0
    %v4080 = vmax.f32 %v4016, 0.0
    %v4081 = vmax.f32 %v4017, 0.0
    %v4082 = vmax.f32 %v4018, 0.0
    %v4083 = vmax.f32 %v4019, 0.0
    %v4084 = vmax.f32 %v4020, 0.0
    %v4085 = vmax.f32 %v4021, 0.0
    %v4086 = vmax.f32 %v4022, 0.0
    %v4087 = vmax.f32 %v4023, 0.0
    %v4088 = vmax.f32 %v4024, 0.0
    %v4089 = vmax.f32 %v4025, 0.0
    %v4090 = vmax.f32 %v4026, 0.0
    %v4091 = vmax.f32 %v4027, 0.0
    %v4092 = vmax.f32 %v4028, 0.0
    %v4093 = vmax.f32 %v4029, 0.0
    %v4094 = vmax.f32 %v4030, 0.0
    %v4095 = vmax.f32 %v4031, 0.0
    %v4096 = vmax.f32 %v4032, 0.0
    %v4097 = vmax.f32 %v4033, 0.0
    %v4098 = vmax.f32 %v4034, 0.0
    %v4099 = vmax.f32 %v4035, 0.0
    %v4100 = vmax.f32 %v4036, 0.0
    %v4101 = vmax.f32 %v4037, 0.0
    %v4102 = vmax.f32 %v4038, 0.0
    %v4103 = vmax.f32 %v4039, 0.0
    %v4104 = vmax.f32 %v4040, 0.0
    %v4105 = vpack.c.bf16 %v4045, %v4041
    %v4106 = vpack.c.bf16 %v4046, %v4042
    %v4107 = vpack.c.bf16 %v4047, %v4043
    %v4108 = vpack.c.bf16 %v4048, %v4044
    %v4109 = vpack.c.bf16 %v4053, %v4049
    %v4110 = vpack.c.bf16 %v4054, %v4050
    %v4111 = vpack.c.bf16 %v4055, %v4051
    %v4112 = vpack.c.bf16 %v4056, %v4052
    %v4113 = vpack.c.bf16 %v4061, %v4057
    %v4114 = vpack.c.bf16 %v4062, %v4058
    %v4115 = vpack.c.bf16 %v4063, %v4059
    %v4116 = vpack.c.bf16 %v4064, %v4060
    %v4117 = vpack.c.bf16 %v4069, %v4065
    %v4118 = vpack.c.bf16 %v4070, %v4066
    %v4119 = vpack.c.bf16 %v4071, %v4067
    %v4120 = vpack.c.bf16 %v4072, %v4068
    %v4121 = vpack.c.bf16 %v4077, %v4073
    %v4122 = vpack.c.bf16 %v4078, %v4074
    %v4123 = vpack.c.bf16 %v4079, %v4075
    %v4124 = vpack.c.bf16 %v4080, %v4076
    %v4125 = vpack.c.bf16 %v4085, %v4081
    %v4126 = vpack.c.bf16 %v4086, %v4082
    %v4127 = vpack.c.bf16 %v4087, %v4083
    %v4128 = vpack.c.bf16 %v4088, %v4084
    %v4129 = vpack.c.bf16 %v4093, %v4089
    %v4130 = vpack.c.bf16 %v4094, %v4090
    %v4131 = vpack.c.bf16 %v4095, %v4091
    %v4132 = vpack.c.bf16 %v4096, %v4092
    %v4133 = vpack.c.bf16 %v4101, %v4097
    %v4134 = vpack.c.bf16 %v4102, %v4098
    %v4135 = vpack.c.bf16 %v4103, %v4099
    %v4136 = vpack.c.bf16 %v4104, %v4100
    %v4141 = vunpack.c.l.b16 %v4105
    %v4142 = vunpack.c.l.b16 %v4106
    %v4143 = vunpack.c.l.b16 %v4107
    %v4144 = vunpack.c.l.b16 %v4108
    %v4145 = vunpack.c.h.b16 %v4105
    %v4146 = vunpack.c.h.b16 %v4106
    %v4147 = vunpack.c.h.b16 %v4107
    %v4148 = vunpack.c.h.b16 %v4108
    %v4149 = vpack.c.b16 %v4142, %v4141
    %v4150 = vpack.c.b16 %v4144, %v4143
    %v4151 = vpack.c.b16 %v4146, %v4145
    %v4152 = vpack.c.b16 %v4148, %v4147
    %4157 = vst [vmem:[#allocation4 + $0x20] sm:$0xff] %v4149
    %4158 = vst [vmem:[#allocation4 + $0x28] sm:$0xff] %v4150
    %4159 = vst [vmem:[#allocation4 + $0x30] sm:$0xff] %v4151
    %4160 = vst [vmem:[#allocation4 + $0x38] sm:$0xff] %v4152
    %v4165 = vunpack.c.l.b16 %v4109
    %v4166 = vunpack.c.l.b16 %v4110
    %v4167 = vunpack.c.l.b16 %v4111
    %v4168 = vunpack.c.l.b16 %v4112
    %v4169 = vunpack.c.h.b16 %v4109
    %v4170 = vunpack.c.h.b16 %v4110
    %v4171 = vunpack.c.h.b16 %v4111
    %v4172 = vunpack.c.h.b16 %v4112
    %v4173 = vpack.c.b16 %v4166, %v4165
    %v4174 = vpack.c.b16 %v4168, %v4167
    %v4175 = vpack.c.b16 %v4170, %v4169
    %v4176 = vpack.c.b16 %v4172, %v4171
    %4181 = vst [vmem:[#allocation4 + $0x60] sm:$0xff] %v4173
    %4182 = vst [vmem:[#allocation4 + $0x68] sm:$0xff] %v4174
    %4183 = vst [vmem:[#allocation4 + $0x70] sm:$0xff] %v4175
    %4184 = vst [vmem:[#allocation4 + $0x78] sm:$0xff] %v4176
    %v4189 = vunpack.c.l.b16 %v4113
    %v4190 = vunpack.c.l.b16 %v4114
    %v4191 = vunpack.c.l.b16 %v4115
    %v4192 = vunpack.c.l.b16 %v4116
    %v4193 = vunpack.c.h.b16 %v4113
    %v4194 = vunpack.c.h.b16 %v4114
    %v4195 = vunpack.c.h.b16 %v4115
    %v4196 = vunpack.c.h.b16 %v4116
    %v4197 = vpack.c.b16 %v4190, %v4189
    %v4198 = vpack.c.b16 %v4192, %v4191
    %v4199 = vpack.c.b16 %v4194, %v4193
    %v4200 = vpack.c.b16 %v4196, %v4195
    %4205 = vst [vmem:[#allocation4 + $0xa0] sm:$0xff] %v4197
    %4206 = vst [vmem:[#allocation4 + $0xa8] sm:$0xff] %v4198
    %4207 = vst [vmem:[#allocation4 + $0xb0] sm:$0xff] %v4199
    %4208 = vst [vmem:[#allocation4 + $0xb8] sm:$0xff] %v4200
    %v4213 = vunpack.c.l.b16 %v4117
    %v4214 = vunpack.c.l.b16 %v4118
    %v4215 = vunpack.c.l.b16 %v4119
    %v4216 = vunpack.c.l.b16 %v4120
    %v4217 = vunpack.c.h.b16 %v4117
    %v4218 = vunpack.c.h.b16 %v4118
    %v4219 = vunpack.c.h.b16 %v4119
    %v4220 = vunpack.c.h.b16 %v4120
    %v4221 = vpack.c.b16 %v4214, %v4213
    %v4222 = vpack.c.b16 %v4216, %v4215
    %v4223 = vpack.c.b16 %v4218, %v4217
    %v4224 = vpack.c.b16 %v4220, %v4219
    %4229 = vst [vmem:[#allocation4 + $0xe0] sm:$0xff] %v4221
    %4230 = vst [vmem:[#allocation4 + $0xe8] sm:$0xff] %v4222
    %4231 = vst [vmem:[#allocation4 + $0xf0] sm:$0xff] %v4223
    %4232 = vst [vmem:[#allocation4 + $0xf8] sm:$0xff] %v4224
    %v4237 = vunpack.c.l.b16 %v4121
    %v4238 = vunpack.c.l.b16 %v4122
    %v4239 = vunpack.c.l.b16 %v4123
    %v4240 = vunpack.c.l.b16 %v4124
    %v4241 = vunpack.c.h.b16 %v4121
    %v4242 = vunpack.c.h.b16 %v4122
    %v4243 = vunpack.c.h.b16 %v4123
    %v4244 = vunpack.c.h.b16 %v4124
    %v4245 = vpack.c.b16 %v4238, %v4237
    %v4246 = vpack.c.b16 %v4240, %v4239
    %v4247 = vpack.c.b16 %v4242, %v4241
    %v4248 = vpack.c.b16 %v4244, %v4243
    %4253 = vst [vmem:[#allocation4 + $0x120] sm:$0xff] %v4245
    %4254 = vst [vmem:[#allocation4 + $0x128] sm:$0xff] %v4246
    %4255 = vst [vmem:[#allocation4 + $0x130] sm:$0xff] %v4247
    %4256 = vst [vmem:[#allocation4 + $0x138] sm:$0xff] %v4248
    %v4261 = vunpack.c.l.b16 %v4125
    %v4262 = vunpack.c.l.b16 %v4126
    %v4263 = vunpack.c.l.b16 %v4127
    %v4264 = vunpack.c.l.b16 %v4128
    %v4265 = vunpack.c.h.b16 %v4125
    %v4266 = vunpack.c.h.b16 %v4126
    %v4267 = vunpack.c.h.b16 %v4127
    %v4268 = vunpack.c.h.b16 %v4128
    %v4269 = vpack.c.b16 %v4262, %v4261
    %v4270 = vpack.c.b16 %v4264, %v4263
    %v4271 = vpack.c.b16 %v4266, %v4265
    %v4272 = vpack.c.b16 %v4268, %v4267
    %4277 = vst [vmem:[#allocation4 + $0x160] sm:$0xff] %v4269
    %4278 = vst [vmem:[#allocation4 + $0x168] sm:$0xff] %v4270
    %4279 = vst [vmem:[#allocation4 + $0x170] sm:$0xff] %v4271
    %4280 = vst [vmem:[#allocation4 + $0x178] sm:$0xff] %v4272
    %v4285 = vunpack.c.l.b16 %v4129
    %v4286 = vunpack.c.l.b16 %v4130
    %v4287 = vunpack.c.l.b16 %v4131
    %v4288 = vunpack.c.l.b16 %v4132
    %v4289 = vunpack.c.h.b16 %v4129
    %v4290 = vunpack.c.h.b16 %v4130
    %v4291 = vunpack.c.h.b16 %v4131
    %v4292 = vunpack.c.h.b16 %v4132
    %v4293 = vpack.c.b16 %v4286, %v4285
    %v4294 = vpack.c.b16 %v4288, %v4287
    %v4295 = vpack.c.b16 %v4290, %v4289
    %v4296 = vpack.c.b16 %v4292, %v4291
    %4301 = vst [vmem:[#allocation4 + $0x1a0] sm:$0xff] %v4293
    %4302 = vst [vmem:[#allocation4 + $0x1a8] sm:$0xff] %v4294
    %4303 = vst [vmem:[#allocation4 + $0x1b0] sm:$0xff] %v4295
    %4304 = vst [vmem:[#allocation4 + $0x1b8] sm:$0xff] %v4296
    %v4309 = vunpack.c.l.b16 %v4133
    %v4310 = vunpack.c.l.b16 %v4134
    %v4311 = vunpack.c.l.b16 %v4135
    %v4312 = vunpack.c.l.b16 %v4136
    %v4313 = vunpack.c.h.b16 %v4133
    %v4314 = vunpack.c.h.b16 %v4134
    %v4315 = vunpack.c.h.b16 %v4135
    %v4316 = vunpack.c.h.b16 %v4136
    %v4317 = vpack.c.b16 %v4310, %v4309
    %v4318 = vpack.c.b16 %v4312, %v4311
    %v4319 = vpack.c.b16 %v4314, %v4313
    %v4320 = vpack.c.b16 %v4316, %v4315
    %4325 = vst [vmem:[#allocation4 + $0x1e0] sm:$0xff] %v4317
    %4326 = vst [vmem:[#allocation4 + $0x1e8] sm:$0xff] %v4318
    %4327 = vst [vmem:[#allocation4 + $0x1f0] sm:$0xff] %v4319
    %4328 = vst [vmem:[#allocation4 + $0x1f8] sm:$0xff] %v4320
    %v4329 = vld [vmem:[#allocation3 + $0x20] sm:$0xff]
    %v4330 = vld [vmem:[#allocation3 + $0x28] sm:$0xff]
    %v4331 = vld [vmem:[#allocation3 + $0x30] sm:$0xff]
    %v4332 = vld [vmem:[#allocation3 + $0x38] sm:$0xff]
    %v4333 = vld [vmem:[#allocation3 + $0x40] sm:$0xff]
    %v4334 = vld [vmem:[#allocation3 + $0x48] sm:$0xff]
    %v4335 = vld [vmem:[#allocation3 + $0x50] sm:$0xff]
    %v4336 = vld [vmem:[#allocation3 + $0x58] sm:$0xff]
    %v4337 = vld [vmem:[#allocation3 + $0x60] sm:$0xff]
    %v4338 = vld [vmem:[#allocation3 + $0x68] sm:$0xff]
    %v4339 = vld [vmem:[#allocation3 + $0x70] sm:$0xff]
    %v4340 = vld [vmem:[#allocation3 + $0x78] sm:$0xff]
    %v4341 = vld [vmem:[#allocation3 + $0x80] sm:$0xff]
    %v4342 = vld [vmem:[#allocation3 + $0x88] sm:$0xff]
    %v4343 = vld [vmem:[#allocation3 + $0x90] sm:$0xff]
    %v4344 = vld [vmem:[#allocation3 + $0x98] sm:$0xff]
    %v4345 = vld [vmem:[#allocation7] sm:$0xff]
    %v4346 = vld [vmem:[#allocation7 + $0x8] sm:$0xff]
    %v4347 = vld [vmem:[#allocation7 + $0x10] sm:$0xff]
    %v4348 = vld [vmem:[#allocation7 + $0x18] sm:$0xff]
    %v4349 = vld [vmem:[#allocation7 + $0x20] sm:$0xff]
    %v4350 = vld [vmem:[#allocation7 + $0x28] sm:$0xff]
    %v4351 = vld [vmem:[#allocation7 + $0x30] sm:$0xff]
    %v4352 = vld [vmem:[#allocation7 + $0x38] sm:$0xff]
    %v4353 = vld [vmem:[#allocation7 + $0x40] sm:$0xff]
    %v4354 = vld [vmem:[#allocation7 + $0x48] sm:$0xff]
    %v4355 = vld [vmem:[#allocation7 + $0x50] sm:$0xff]
    %v4356 = vld [vmem:[#allocation7 + $0x58] sm:$0xff]
    %v4357 = vld [vmem:[#allocation7 + $0x60] sm:$0xff]
    %v4358 = vld [vmem:[#allocation7 + $0x68] sm:$0xff]
    %v4359 = vld [vmem:[#allocation7 + $0x70] sm:$0xff]
    %v4360 = vld [vmem:[#allocation7 + $0x78] sm:$0xff]
    %v4361 = vld [vmem:[#allocation7 + $0x80] sm:$0xff]
    %v4362 = vld [vmem:[#allocation7 + $0x88] sm:$0xff]
    %v4363 = vld [vmem:[#allocation7 + $0x90] sm:$0xff]
    %v4364 = vld [vmem:[#allocation7 + $0x98] sm:$0xff]
    %v4365 = vld [vmem:[#allocation7 + $0xa0] sm:$0xff]
    %v4366 = vld [vmem:[#allocation7 + $0xa8] sm:$0xff]
    %v4367 = vld [vmem:[#allocation7 + $0xb0] sm:$0xff]
    %v4368 = vld [vmem:[#allocation7 + $0xb8] sm:$0xff]
    %v4369 = vld [vmem:[#allocation7 + $0xc0] sm:$0xff]
    %v4370 = vld [vmem:[#allocation7 + $0xc8] sm:$0xff]
    %v4371 = vld [vmem:[#allocation7 + $0xd0] sm:$0xff]
    %v4372 = vld [vmem:[#allocation7 + $0xd8] sm:$0xff]
    %v4373 = vld [vmem:[#allocation7 + $0xe0] sm:$0xff]
    %v4374 = vld [vmem:[#allocation7 + $0xe8] sm:$0xff]
    %v4375 = vld [vmem:[#allocation7 + $0xf0] sm:$0xff]
    %v4376 = vld [vmem:[#allocation7 + $0xf8] sm:$0xff]
    %v4377 = vld [vmem:[#allocation7 + $0x100] sm:$0xff]
    %v4378 = vld [vmem:[#allocation7 + $0x108] sm:$0xff]
    %v4379 = vld [vmem:[#allocation7 + $0x110] sm:$0xff]
    %v4380 = vld [vmem:[#allocation7 + $0x118] sm:$0xff]
    %v4381 = vld [vmem:[#allocation7 + $0x120] sm:$0xff]
    %v4382 = vld [vmem:[#allocation7 + $0x128] sm:$0xff]
    %v4383 = vld [vmem:[#allocation7 + $0x130] sm:$0xff]
    %v4384 = vld [vmem:[#allocation7 + $0x138] sm:$0xff]
    %v4385 = vld [vmem:[#allocation7 + $0x140] sm:$0xff]
    %v4386 = vld [vmem:[#allocation7 + $0x148] sm:$0xff]
    %v4387 = vld [vmem:[#allocation7 + $0x150] sm:$0xff]
    %v4388 = vld [vmem:[#allocation7 + $0x158] sm:$0xff]
    %v4389 = vld [vmem:[#allocation7 + $0x160] sm:$0xff]
    %v4390 = vld [vmem:[#allocation7 + $0x168] sm:$0xff]
    %v4391 = vld [vmem:[#allocation7 + $0x170] sm:$0xff]
    %v4392 = vld [vmem:[#allocation7 + $0x178] sm:$0xff]
    %v4393 = vld [vmem:[#allocation7 + $0x180] sm:$0xff]
    %v4394 = vld [vmem:[#allocation7 + $0x188] sm:$0xff]
    %v4395 = vld [vmem:[#allocation7 + $0x190] sm:$0xff]
    %v4396 = vld [vmem:[#allocation7 + $0x198] sm:$0xff]
    %v4397 = vld [vmem:[#allocation7 + $0x1a0] sm:$0xff]
    %v4398 = vld [vmem:[#allocation7 + $0x1a8] sm:$0xff]
    %v4399 = vld [vmem:[#allocation7 + $0x1b0] sm:$0xff]
    %v4400 = vld [vmem:[#allocation7 + $0x1b8] sm:$0xff]
    %v4401 = vld [vmem:[#allocation7 + $0x1c0] sm:$0xff]
    %v4402 = vld [vmem:[#allocation7 + $0x1c8] sm:$0xff]
    %v4403 = vld [vmem:[#allocation7 + $0x1d0] sm:$0xff]
    %v4404 = vld [vmem:[#allocation7 + $0x1d8] sm:$0xff]
    %v4405 = vld [vmem:[#allocation7 + $0x1e0] sm:$0xff]
    %v4406 = vld [vmem:[#allocation7 + $0x1e8] sm:$0xff]
    %v4407 = vld [vmem:[#allocation7 + $0x1f0] sm:$0xff]
    %v4408 = vld [vmem:[#allocation7 + $0x1f8] sm:$0xff]
    %v4409 = vld [vmem:[#allocation3 + $0x10] sm:$0xff]
    %v4410 = vld [vmem:[#allocation3 + $0x18] sm:$0xff]
    %v4411 = vld [vmem:[#allocation3 + $0x20] sm:$0xff]
    %v4412 = vld [vmem:[#allocation3 + $0x28] sm:$0xff]
    %v4413 = vld [vmem:[#allocation3 + $0x30] sm:$0xff]
    %v4414 = vld [vmem:[#allocation3 + $0x38] sm:$0xff]
    %v4415 = vld [vmem:[#allocation3 + $0x40] sm:$0xff]
    %v4416 = vld [vmem:[#allocation3 + $0x48] sm:$0xff]
    %v4417 = vld [vmem:[#allocation3 + $0x50] sm:$0xff]
    %v4418 = vld [vmem:[#allocation3 + $0x58] sm:$0xff]
    %v4419 = vld [vmem:[#allocation3 + $0x60] sm:$0xff]
    %v4420 = vld [vmem:[#allocation3 + $0x68] sm:$0xff]
    %v4421 = vld [vmem:[#allocation3 + $0x70] sm:$0xff]
    %v4422 = vld [vmem:[#allocation3 + $0x78] sm:$0xff]
    %v4423 = vld [vmem:[#allocation3 + $0x80] sm:$0xff]
    %v4424 = vld [vmem:[#allocation3 + $0x88] sm:$0xff]
    %s4425 = scalar_lea.vmem [#allocation7], 1024
    %v4426 = vld [vmem:[%s4425] sm:$0xff]
    %v4427 = vld [vmem:[%s4425 + $0x8] sm:$0xff]
    %v4428 = vld [vmem:[%s4425 + $0x10] sm:$0xff]
    %v4429 = vld [vmem:[%s4425 + $0x18] sm:$0xff]
    %v4430 = vld [vmem:[%s4425 + $0x20] sm:$0xff]
    %v4431 = vld [vmem:[%s4425 + $0x28] sm:$0xff]
    %v4432 = vld [vmem:[%s4425 + $0x30] sm:$0xff]
    %v4433 = vld [vmem:[%s4425 + $0x38] sm:$0xff]
    %v4434 = vld [vmem:[%s4425 + $0x40] sm:$0xff]
    %v4435 = vld [vmem:[%s4425 + $0x48] sm:$0xff]
    %v4436 = vld [vmem:[%s4425 + $0x50] sm:$0xff]
    %v4437 = vld [vmem:[%s4425 + $0x58] sm:$0xff]
    %v4438 = vld [vmem:[%s4425 + $0x60] sm:$0xff]
    %v4439 = vld [vmem:[%s4425 + $0x68] sm:$0xff]
    %v4440 = vld [vmem:[%s4425 + $0x70] sm:$0xff]
    %v4441 = vld [vmem:[%s4425 + $0x78] sm:$0xff]
    %v4442 = vld [vmem:[%s4425 + $0x80] sm:$0xff]
    %v4443 = vld [vmem:[%s4425 + $0x88] sm:$0xff]
    %v4444 = vld [vmem:[%s4425 + $0x90] sm:$0xff]
    %v4445 = vld [vmem:[%s4425 + $0x98] sm:$0xff]
    %v4446 = vld [vmem:[%s4425 + $0xa0] sm:$0xff]
    %v4447 = vld [vmem:[%s4425 + $0xa8] sm:$0xff]
    %v4448 = vld [vmem:[%s4425 + $0xb0] sm:$0xff]
    %v4449 = vld [vmem:[%s4425 + $0xb8] sm:$0xff]
    %v4450 = vld [vmem:[%s4425 + $0xc0] sm:$0xff]
    %v4451 = vld [vmem:[%s4425 + $0xc8] sm:$0xff]
    %v4452 = vld [vmem:[%s4425 + $0xd0] sm:$0xff]
    %v4453 = vld [vmem:[%s4425 + $0xd8] sm:$0xff]
    %v4454 = vld [vmem:[%s4425 + $0xe0] sm:$0xff]
    %v4455 = vld [vmem:[%s4425 + $0xe8] sm:$0xff]
    %v4456 = vld [vmem:[%s4425 + $0xf0] sm:$0xff]
    %v4457 = vld [vmem:[%s4425 + $0xf8] sm:$0xff]
    %v4458 = vld [vmem:[%s4425 + $0x100] sm:$0xff]
    %v4459 = vld [vmem:[%s4425 + $0x108] sm:$0xff]
    %v4460 = vld [vmem:[%s4425 + $0x110] sm:$0xff]
    %v4461 = vld [vmem:[%s4425 + $0x118] sm:$0xff]
    %v4462 = vld [vmem:[%s4425 + $0x120] sm:$0xff]
    %v4463 = vld [vmem:[%s4425 + $0x128] sm:$0xff]
    %v4464 = vld [vmem:[%s4425 + $0x130] sm:$0xff]
    %v4465 = vld [vmem:[%s4425 + $0x138] sm:$0xff]
    %v4466 = vld [vmem:[%s4425 + $0x140] sm:$0xff]
    %v4467 = vld [vmem:[%s4425 + $0x148] sm:$0xff]
    %v4468 = vld [vmem:[%s4425 + $0x150] sm:$0xff]
    %v4469 = vld [vmem:[%s4425 + $0x158] sm:$0xff]
    %v4470 = vld [vmem:[%s4425 + $0x160] sm:$0xff]
    %v4471 = vld [vmem:[%s4425 + $0x168] sm:$0xff]
    %v4472 = vld [vmem:[%s4425 + $0x170] sm:$0xff]
    %v4473 = vld [vmem:[%s4425 + $0x178] sm:$0xff]
    %v4474 = vld [vmem:[%s4425 + $0x180] sm:$0xff]
    %v4475 = vld [vmem:[%s4425 + $0x188] sm:$0xff]
    %v4476 = vld [vmem:[%s4425 + $0x190] sm:$0xff]
    %v4477 = vld [vmem:[%s4425 + $0x198] sm:$0xff]
    %v4478 = vld [vmem:[%s4425 + $0x1a0] sm:$0xff]
    %v4479 = vld [vmem:[%s4425 + $0x1a8] sm:$0xff]
    %v4480 = vld [vmem:[%s4425 + $0x1b0] sm:$0xff]
    %v4481 = vld [vmem:[%s4425 + $0x1b8] sm:$0xff]
    %v4482 = vld [vmem:[%s4425 + $0x1c0] sm:$0xff]
    %v4483 = vld [vmem:[%s4425 + $0x1c8] sm:$0xff]
    %v4484 = vld [vmem:[%s4425 + $0x1d0] sm:$0xff]
    %v4485 = vld [vmem:[%s4425 + $0x1d8] sm:$0xff]
    %v4486 = vld [vmem:[%s4425 + $0x1e0] sm:$0xff]
    %v4487 = vld [vmem:[%s4425 + $0x1e8] sm:$0xff]
    %v4488 = vld [vmem:[%s4425 + $0x1f0] sm:$0xff]
    %v4489 = vld [vmem:[%s4425 + $0x1f8] sm:$0xff]
    %v4506 = vunpack.c.l.b16 %v4409
    %v4507 = vunpack.c.h.b16 %v4409
    %v4508 = vunpack.c.l.b16 %v4410
    %v4509 = vunpack.c.h.b16 %v4410
    %v4510 = vunpack.c.l.b16 %v4411
    %v4511 = vunpack.c.h.b16 %v4411
    %v4512 = vunpack.c.l.b16 %v4412
    %v4513 = vunpack.c.h.b16 %v4412
    %v4514 = vunpack.c.l.b16 %v4413
    %v4515 = vunpack.c.h.b16 %v4413
    %v4516 = vunpack.c.l.b16 %v4414
    %v4517 = vunpack.c.h.b16 %v4414
    %v4518 = vunpack.c.l.b16 %v4415
    %v4519 = vunpack.c.h.b16 %v4415
    %v4520 = vunpack.c.l.b16 %v4416
    %v4521 = vunpack.c.h.b16 %v4416
    %v4522 = vunpack.c.l.b16 %v4417
    %v4523 = vunpack.c.h.b16 %v4417
    %v4524 = vunpack.c.l.b16 %v4418
    %v4525 = vunpack.c.h.b16 %v4418
    %v4526 = vunpack.c.l.b16 %v4419
    %v4527 = vunpack.c.h.b16 %v4419
    %v4528 = vunpack.c.l.b16 %v4420
    %v4529 = vunpack.c.h.b16 %v4420
    %v4530 = vunpack.c.l.b16 %v4421
    %v4531 = vunpack.c.h.b16 %v4421
    %v4532 = vunpack.c.l.b16 %v4422
    %v4533 = vunpack.c.h.b16 %v4422
    %v4534 = vunpack.c.l.b16 %v4423
    %v4535 = vunpack.c.h.b16 %v4423
    %v4536 = vunpack.c.l.b16 %v4424
    %v4537 = vunpack.c.h.b16 %v4424
    %v4538 = vpack.c.b16 %v4508, %v4506
    %v4539 = vpack.c.b16 %v4509, %v4507
    %v4540 = vpack.c.b16 %v4512, %v4510
    %v4541 = vpack.c.b16 %v4513, %v4511
    %v4542 = vpack.c.b16 %v4516, %v4514
    %v4543 = vpack.c.b16 %v4517, %v4515
    %v4544 = vpack.c.b16 %v4520, %v4518
    %v4545 = vpack.c.b16 %v4521, %v4519
    %v4546 = vpack.c.b16 %v4524, %v4522
    %v4547 = vpack.c.b16 %v4525, %v4523
    %v4548 = vpack.c.b16 %v4528, %v4526
    %v4549 = vpack.c.b16 %v4529, %v4527
    %v4550 = vpack.c.b16 %v4532, %v4530
    %v4551 = vpack.c.b16 %v4533, %v4531
    %v4552 = vpack.c.b16 %v4536, %v4534
    %v4553 = vpack.c.b16 %v4537, %v4535
    %v4634 = vunpack.c.l.b16 %v4426
    %v4635 = vunpack.c.h.b16 %v4426
    %v4636 = vunpack.c.l.b16 %v4427
    %v4637 = vunpack.c.h.b16 %v4427
    %v4638 = vunpack.c.l.b16 %v4428
    %v4639 = vunpack.c.h.b16 %v4428
    %v4640 = vunpack.c.l.b16 %v4429
    %v4641 = vunpack.c.h.b16 %v4429
    %v4642 = vunpack.c.l.b16 %v4430
    %v4643 = vunpack.c.h.b16 %v4430
    %v4644 = vunpack.c.l.b16 %v4431
    %v4645 = vunpack.c.h.b16 %v4431
    %v4646 = vunpack.c.l.b16 %v4432
    %v4647 = vunpack.c.h.b16 %v4432
    %v4648 = vunpack.c.l.b16 %v4433
    %v4649 = vunpack.c.h.b16 %v4433
    %v4650 = vunpack.c.l.b16 %v4434
    %v4651 = vunpack.c.h.b16 %v4434
    %v4652 = vunpack.c.l.b16 %v4435
    %v4653 = vunpack.c.h.b16 %v4435
    %v4654 = vunpack.c.l.b16 %v4436
    %v4655 = vunpack.c.h.b16 %v4436
    %v4656 = vunpack.c.l.b16 %v4437
    %v4657 = vunpack.c.h.b16 %v4437
    %v4658 = vunpack.c.l.b16 %v4438
    %v4659 = vunpack.c.h.b16 %v4438
    %v4660 = vunpack.c.l.b16 %v4439
    %v4661 = vunpack.c.h.b16 %v4439
    %v4662 = vunpack.c.l.b16 %v4440
    %v4663 = vunpack.c.h.b16 %v4440
    %v4664 = vunpack.c.l.b16 %v4441
    %v4665 = vunpack.c.h.b16 %v4441
    %v4666 = vunpack.c.l.b16 %v4442
    %v4667 = vunpack.c.h.b16 %v4442
    %v4668 = vunpack.c.l.b16 %v4443
    %v4669 = vunpack.c.h.b16 %v4443
    %v4670 = vunpack.c.l.b16 %v4444
    %v4671 = vunpack.c.h.b16 %v4444
    %v4672 = vunpack.c.l.b16 %v4445
    %v4673 = vunpack.c.h.b16 %v4445
    %v4674 = vunpack.c.l.b16 %v4446
    %v4675 = vunpack.c.h.b16 %v4446
    %v4676 = vunpack.c.l.b16 %v4447
    %v4677 = vunpack.c.h.b16 %v4447
    %v4678 = vunpack.c.l.b16 %v4448
    %v4679 = vunpack.c.h.b16 %v4448
    %v4680 = vunpack.c.l.b16 %v4449
    %v4681 = vunpack.c.h.b16 %v4449
    %v4682 = vunpack.c.l.b16 %v4450
    %v4683 = vunpack.c.h.b16 %v4450
    %v4684 = vunpack.c.l.b16 %v4451
    %v4685 = vunpack.c.h.b16 %v4451
    %v4686 = vunpack.c.l.b16 %v4452
    %v4687 = vunpack.c.h.b16 %v4452
    %v4688 = vunpack.c.l.b16 %v4453
    %v4689 = vunpack.c.h.b16 %v4453
    %v4690 = vunpack.c.l.b16 %v4454
    %v4691 = vunpack.c.h.b16 %v4454
    %v4692 = vunpack.c.l.b16 %v4455
    %v4693 = vunpack.c.h.b16 %v4455
    %v4694 = vunpack.c.l.b16 %v4456
    %v4695 = vunpack.c.h.b16 %v4456
    %v4696 = vunpack.c.l.b16 %v4457
    %v4697 = vunpack.c.h.b16 %v4457
    %v4698 = vunpack.c.l.b16 %v4458
    %v4699 = vunpack.c.h.b16 %v4458
    %v4700 = vunpack.c.l.b16 %v4459
    %v4701 = vunpack.c.h.b16 %v4459
    %v4702 = vunpack.c.l.b16 %v4460
    %v4703 = vunpack.c.h.b16 %v4460
    %v4704 = vunpack.c.l.b16 %v4461
    %v4705 = vunpack.c.h.b16 %v4461
    %v4706 = vunpack.c.l.b16 %v4462
    %v4707 = vunpack.c.h.b16 %v4462
    %v4708 = vunpack.c.l.b16 %v4463
    %v4709 = vunpack.c.h.b16 %v4463
    %v4710 = vunpack.c.l.b16 %v4464
    %v4711 = vunpack.c.h.b16 %v4464
    %v4712 = vunpack.c.l.b16 %v4465
    %v4713 = vunpack.c.h.b16 %v4465
    %v4714 = vunpack.c.l.b16 %v4466
    %v4715 = vunpack.c.h.b16 %v4466
    %v4716 = vunpack.c.l.b16 %v4467
    %v4717 = vunpack.c.h.b16 %v4467
    %v4718 = vunpack.c.l.b16 %v4468
    %v4719 = vunpack.c.h.b16 %v4468
    %v4720 = vunpack.c.l.b16 %v4469
    %v4721 = vunpack.c.h.b16 %v4469
    %v4722 = vunpack.c.l.b16 %v4470
    %v4723 = vunpack.c.h.b16 %v4470
    %v4724 = vunpack.c.l.b16 %v4471
    %v4725 = vunpack.c.h.b16 %v4471
    %v4726 = vunpack.c.l.b16 %v4472
    %v4727 = vunpack.c.h.b16 %v4472
    %v4728 = vunpack.c.l.b16 %v4473
    %v4729 = vunpack.c.h.b16 %v4473
    %v4730 = vunpack.c.l.b16 %v4474
    %v4731 = vunpack.c.h.b16 %v4474
    %v4732 = vunpack.c.l.b16 %v4475
    %v4733 = vunpack.c.h.b16 %v4475
    %v4734 = vunpack.c.l.b16 %v4476
    %v4735 = vunpack.c.h.b16 %v4476
    %v4736 = vunpack.c.l.b16 %v4477
    %v4737 = vunpack.c.h.b16 %v4477
    %v4738 = vunpack.c.l.b16 %v4478
    %v4739 = vunpack.c.h.b16 %v4478
    %v4740 = vunpack.c.l.b16 %v4479
    %v4741 = vunpack.c.h.b16 %v4479
    %v4742 = vunpack.c.l.b16 %v4480
    %v4743 = vunpack.c.h.b16 %v4480
    %v4744 = vunpack.c.l.b16 %v4481
    %v4745 = vunpack.c.h.b16 %v4481
    %v4746 = vunpack.c.l.b16 %v4482
    %v4747 = vunpack.c.h.b16 %v4482
    %v4748 = vunpack.c.l.b16 %v4483
    %v4749 = vunpack.c.h.b16 %v4483
    %v4750 = vunpack.c.l.b16 %v4484
    %v4751 = vunpack.c.h.b16 %v4484
    %v4752 = vunpack.c.l.b16 %v4485
    %v4753 = vunpack.c.h.b16 %v4485
    %v4754 = vunpack.c.l.b16 %v4486
    %v4755 = vunpack.c.h.b16 %v4486
    %v4756 = vunpack.c.l.b16 %v4487
    %v4757 = vunpack.c.h.b16 %v4487
    %v4758 = vunpack.c.l.b16 %v4488
    %v4759 = vunpack.c.h.b16 %v4488
    %v4760 = vunpack.c.l.b16 %v4489
    %v4761 = vunpack.c.h.b16 %v4489
    %v4762 = vpack.c.b16 %v4638, %v4634
    %v4763 = vpack.c.b16 %v4639, %v4635
    %v4764 = vpack.c.b16 %v4640, %v4636
    %v4765 = vpack.c.b16 %v4641, %v4637
    %v4766 = vpack.c.b16 %v4646, %v4642
    %v4767 = vpack.c.b16 %v4647, %v4643
    %v4768 = vpack.c.b16 %v4648, %v4644
    %v4769 = vpack.c.b16 %v4649, %v4645
    %v4770 = vpack.c.b16 %v4654, %v4650
    %v4771 = vpack.c.b16 %v4655, %v4651
    %v4772 = vpack.c.b16 %v4656, %v4652
    %v4773 = vpack.c.b16 %v4657, %v4653
    %v4774 = vpack.c.b16 %v4662, %v4658
    %v4775 = vpack.c.b16 %v4663, %v4659
    %v4776 = vpack.c.b16 %v4664, %v4660
    %v4777 = vpack.c.b16 %v4665, %v4661
    %v4778 = vpack.c.b16 %v4670, %v4666
    %v4779 = vpack.c.b16 %v4671, %v4667
    %v4780 = vpack.c.b16 %v4672, %v4668
    %v4781 = vpack.c.b16 %v4673, %v4669
    %v4782 = vpack.c.b16 %v4678, %v4674
    %v4783 = vpack.c.b16 %v4679, %v4675
    %v4784 = vpack.c.b16 %v4680, %v4676
    %v4785 = vpack.c.b16 %v4681, %v4677
    %v4786 = vpack.c.b16 %v4686, %v4682
    %v4787 = vpack.c.b16 %v4687, %v4683
    %v4788 = vpack.c.b16 %v4688, %v4684
    %v4789 = vpack.c.b16 %v4689, %v4685
    %v4790 = vpack.c.b16 %v4694, %v4690
    %v4791 = vpack.c.b16 %v4695, %v4691
    %v4792 = vpack.c.b16 %v4696, %v4692
    %v4793 = vpack.c.b16 %v4697, %v4693
    %v4794 = vpack.c.b16 %v4702, %v4698
    %v4795 = vpack.c.b16 %v4703, %v4699
    %v4796 = vpack.c.b16 %v4704, %v4700
    %v4797 = vpack.c.b16 %v4705, %v4701
    %v4798 = vpack.c.b16 %v4710, %v4706
    %v4799 = vpack.c.b16 %v4711, %v4707
    %v4800 = vpack.c.b16 %v4712, %v4708
    %v4801 = vpack.c.b16 %v4713, %v4709
    %v4802 = vpack.c.b16 %v4718, %v4714
    %v4803 = vpack.c.b16 %v4719, %v4715
    %v4804 = vpack.c.b16 %v4720, %v4716
    %v4805 = vpack.c.b16 %v4721, %v4717
    %v4806 = vpack.c.b16 %v4726, %v4722
    %v4807 = vpack.c.b16 %v4727, %v4723
    %v4808 = vpack.c.b16 %v4728, %v4724
    %v4809 = vpack.c.b16 %v4729, %v4725
    %v4810 = vpack.c.b16 %v4734, %v4730
    %v4811 = vpack.c.b16 %v4735, %v4731
    %v4812 = vpack.c.b16 %v4736, %v4732
    %v4813 = vpack.c.b16 %v4737, %v4733
    %v4814 = vpack.c.b16 %v4742, %v4738
    %v4815 = vpack.c.b16 %v4743, %v4739
    %v4816 = vpack.c.b16 %v4744, %v4740
    %v4817 = vpack.c.b16 %v4745, %v4741
    %v4818 = vpack.c.b16 %v4750, %v4746
    %v4819 = vpack.c.b16 %v4751, %v4747
    %v4820 = vpack.c.b16 %v4752, %v4748
    %v4821 = vpack.c.b16 %v4753, %v4749
    %v4822 = vpack.c.b16 %v4758, %v4754
    %v4823 = vpack.c.b16 %v4759, %v4755
    %v4824 = vpack.c.b16 %v4760, %v4756
    %v4825 = vpack.c.b16 %v4761, %v4757
    %4890 = vmatprep.subr.bf16.mxu0 %v4791
    %4891 = vmatpush1.bf16.msra.mxu0 %v4790
    %4892 = vmatprep.subr.bf16.mxu0 %v4787
    %4893 = vmatpush1.bf16.msra.mxu0 %v4786
    %4894 = vmatprep.subr.bf16.mxu0 %v4783
    %4895 = vmatpush1.bf16.msra.mxu0 %v4782
    %4896 = vmatprep.subr.bf16.mxu0 %v4779
    %4897 = vmatpush1.bf16.msra.mxu0 %v4778
    %4898 = vmatprep.subr.bf16.mxu0 %v4775
    %4899 = vmatpush1.bf16.msra.mxu0 %v4774
    %4900 = vmatprep.subr.bf16.mxu0 %v4771
    %4901 = vmatpush1.bf16.msra.mxu0 %v4770
    %4902 = vmatprep.subr.bf16.mxu0 %v4767
    %4903 = vmatpush1.bf16.msra.mxu0 %v4766
    %4904 = vmatprep.subr.bf16.mxu0 %v4763
    %4905 = vmatpush1.bf16.msra.mxu0 %v4762
    %4906 = vmatprep.subr.bf16.mxu0 %v4823
    %4907 = vmatpush2.bf16.msra.mxu0 %v4822
    %4908 = vmatprep.subr.bf16.mxu0 %v4819
    %4909 = vmatpush2.bf16.msra.mxu0 %v4818
    %4910 = vmatprep.subr.bf16.mxu0 %v4815
    %4911 = vmatpush2.bf16.msra.mxu0 %v4814
    %4912 = vmatprep.subr.bf16.mxu0 %v4811
    %4913 = vmatpush2.bf16.msra.mxu0 %v4810
    %4914 = vmatprep.subr.bf16.mxu0 %v4807
    %4915 = vmatpush2.bf16.msra.mxu0 %v4806
    %4916 = vmatprep.subr.bf16.mxu0 %v4803
    %4917 = vmatpush2.bf16.msra.mxu0 %v4802
    %4918 = vmatprep.subr.bf16.mxu0 %v4799
    %4919 = vmatpush2.bf16.msra.mxu0 %v4798
    %4920 = vmatprep.subr.bf16.mxu0 %v4795
    %4921 = vmatpush2.bf16.msra.mxu0 %v4794
    %4922 = vmatprep.mubr.bf16.mxu0 %v4539
    %4923 = vmatmul.mubr.bf16.gmra.mxu0 %v4538
    %v4924 = vpop.f32.mrf.mxu0
    %v4925 = vadd.f32 0.0, %v4924
    %v4926 = vpop.f32.mrf.mxu0
    %v4927 = vadd.f32 0.0, %v4926
    %v4928 = vpop.f32.mrf.mxu0
    %v4929 = vadd.f32 0.0, %v4928
    %v4930 = vpop.f32.mrf.mxu0
    %v4931 = vadd.f32 0.0, %v4930
    %4932 = vmatprep.mubr.bf16.mxu0 %v4541
    %4933 = vmatmul.mubr.bf16.gmra.mxu0 %v4540
    %v4934 = vpop.f32.mrf.mxu0
    %v4935 = vadd.f32 0.0, %v4934
    %v4936 = vpop.f32.mrf.mxu0
    %v4937 = vadd.f32 0.0, %v4936
    %v4938 = vpop.f32.mrf.mxu0
    %v4939 = vadd.f32 0.0, %v4938
    %v4940 = vpop.f32.mrf.mxu0
    %v4941 = vadd.f32 0.0, %v4940
    %4942 = vmatprep.mubr.bf16.mxu0 %v4543
    %4943 = vmatmul.mubr.bf16.gmra.mxu0 %v4542
    %v4944 = vpop.f32.mrf.mxu0
    %v4945 = vadd.f32 0.0, %v4944
    %v4946 = vpop.f32.mrf.mxu0
    %v4947 = vadd.f32 0.0, %v4946
    %v4948 = vpop.f32.mrf.mxu0
    %v4949 = vadd.f32 0.0, %v4948
    %v4950 = vpop.f32.mrf.mxu0
    %v4951 = vadd.f32 0.0, %v4950
    %4952 = vmatprep.mubr.bf16.mxu0 %v4545
    %4953 = vmatmul.mubr.bf16.gmra.mxu0 %v4544
    %v4954 = vpop.f32.mrf.mxu0
    %v4955 = vadd.f32 0.0, %v4954
    %v4956 = vpop.f32.mrf.mxu0
    %v4957 = vadd.f32 0.0, %v4956
    %v4958 = vpop.f32.mrf.mxu0
    %v4959 = vadd.f32 0.0, %v4958
    %v4960 = vpop.f32.mrf.mxu0
    %v4961 = vadd.f32 0.0, %v4960
    %4962 = vmatprep.mubr.bf16.mxu0 %v4547
    %4963 = vmatmul.mubr.bf16.gmra.mxu0 %v4546
    %v4964 = vpop.f32.mrf.mxu0
    %v4965 = vadd.f32 0.0, %v4964
    %v4966 = vpop.f32.mrf.mxu0
    %v4967 = vadd.f32 0.0, %v4966
    %v4968 = vpop.f32.mrf.mxu0
    %v4969 = vadd.f32 0.0, %v4968
    %v4970 = vpop.f32.mrf.mxu0
    %v4971 = vadd.f32 0.0, %v4970
    %4972 = vmatprep.mubr.bf16.mxu0 %v4549
    %4973 = vmatmul.mubr.bf16.gmra.mxu0 %v4548
    %v4974 = vpop.f32.mrf.mxu0
    %v4975 = vadd.f32 0.0, %v4974
    %v4976 = vpop.f32.mrf.mxu0
    %v4977 = vadd.f32 0.0, %v4976
    %v4978 = vpop.f32.mrf.mxu0
    %v4979 = vadd.f32 0.0, %v4978
    %v4980 = vpop.f32.mrf.mxu0
    %v4981 = vadd.f32 0.0, %v4980
    %4982 = vmatprep.mubr.bf16.mxu0 %v4551
    %4983 = vmatmul.mubr.bf16.gmra.mxu0 %v4550
    %v4984 = vpop.f32.mrf.mxu0
    %v4985 = vadd.f32 0.0, %v4984
    %v4986 = vpop.f32.mrf.mxu0
    %v4987 = vadd.f32 0.0, %v4986
    %v4988 = vpop.f32.mrf.mxu0
    %v4989 = vadd.f32 0.0, %v4988
    %v4990 = vpop.f32.mrf.mxu0
    %v4991 = vadd.f32 0.0, %v4990
    %4992 = vmatprep.mubr.bf16.mxu0 %v4553
    %4993 = vmatmul.mubr.bf16.gmra.mxu0 %v4552
    %v4994 = vpop.f32.mrf.mxu0
    %v4995 = vadd.f32 0.0, %v4994
    %v4996 = vpop.f32.mrf.mxu0
    %v4997 = vadd.f32 0.0, %v4996
    %v4998 = vpop.f32.mrf.mxu0
    %v4999 = vadd.f32 0.0, %v4998
    %v5000 = vpop.f32.mrf.mxu0
    %v5001 = vadd.f32 0.0, %v5000
    %5002 = vdwg.mxu0
    %5003 = vmatprep.subr.bf16.mxu0 %v4793
    %5004 = vmatpush1.bf16.msra.mxu0 %v4792
    %5005 = vmatprep.subr.bf16.mxu0 %v4789
    %5006 = vmatpush1.bf16.msra.mxu0 %v4788
    %5007 = vmatprep.subr.bf16.mxu0 %v4785
    %5008 = vmatpush1.bf16.msra.mxu0 %v4784
    %5009 = vmatprep.subr.bf16.mxu0 %v4781
    %5010 = vmatpush1.bf16.msra.mxu0 %v4780
    %5011 = vmatprep.subr.bf16.mxu0 %v4777
    %5012 = vmatpush1.bf16.msra.mxu0 %v4776
    %5013 = vmatprep.subr.bf16.mxu0 %v4773
    %5014 = vmatpush1.bf16.msra.mxu0 %v4772
    %5015 = vmatprep.subr.bf16.mxu0 %v4769
    %5016 = vmatpush1.bf16.msra.mxu0 %v4768
    %5017 = vmatprep.subr.bf16.mxu0 %v4765
    %5018 = vmatpush1.bf16.msra.mxu0 %v4764
    %5019 = vmatprep.subr.bf16.mxu0 %v4825
    %5020 = vmatpush2.bf16.msra.mxu0 %v4824
    %5021 = vmatprep.subr.bf16.mxu0 %v4821
    %5022 = vmatpush2.bf16.msra.mxu0 %v4820
    %5023 = vmatprep.subr.bf16.mxu0 %v4817
    %5024 = vmatpush2.bf16.msra.mxu0 %v4816
    %5025 = vmatprep.subr.bf16.mxu0 %v4813
    %5026 = vmatpush2.bf16.msra.mxu0 %v4812
    %5027 = vmatprep.subr.bf16.mxu0 %v4809
    %5028 = vmatpush2.bf16.msra.mxu0 %v4808
    %5029 = vmatprep.subr.bf16.mxu0 %v4805
    %5030 = vmatpush2.bf16.msra.mxu0 %v4804
    %5031 = vmatprep.subr.bf16.mxu0 %v4801
    %5032 = vmatpush2.bf16.msra.mxu0 %v4800
    %5033 = vmatprep.subr.bf16.mxu0 %v4797
    %5034 = vmatpush2.bf16.msra.mxu0 %v4796
    %5035 = vmatprep.mubr.bf16.mxu0 %v4539
    %5036 = vmatmul.mubr.bf16.gmra.mxu0 %v4538
    %v5037 = vpop.f32.mrf.mxu0
    %v5038 = vadd.f32 0.0, %v5037
    %v5039 = vpop.f32.mrf.mxu0
    %v5040 = vadd.f32 0.0, %v5039
    %v5041 = vpop.f32.mrf.mxu0
    %v5042 = vadd.f32 0.0, %v5041
    %v5043 = vpop.f32.mrf.mxu0
    %v5044 = vadd.f32 0.0, %v5043
    %5045 = vmatprep.mubr.bf16.mxu0 %v4541
    %5046 = vmatmul.mubr.bf16.gmra.mxu0 %v4540
    %v5047 = vpop.f32.mrf.mxu0
    %v5048 = vadd.f32 0.0, %v5047
    %v5049 = vpop.f32.mrf.mxu0
    %v5050 = vadd.f32 0.0, %v5049
    %v5051 = vpop.f32.mrf.mxu0
    %v5052 = vadd.f32 0.0, %v5051
    %v5053 = vpop.f32.mrf.mxu0
    %v5054 = vadd.f32 0.0, %v5053
    %5055 = vmatprep.mubr.bf16.mxu0 %v4543
    %5056 = vmatmul.mubr.bf16.gmra.mxu0 %v4542
    %v5057 = vpop.f32.mrf.mxu0
    %v5058 = vadd.f32 0.0, %v5057
    %v5059 = vpop.f32.mrf.mxu0
    %v5060 = vadd.f32 0.0, %v5059
    %v5061 = vpop.f32.mrf.mxu0
    %v5062 = vadd.f32 0.0, %v5061
    %v5063 = vpop.f32.mrf.mxu0
    %v5064 = vadd.f32 0.0, %v5063
    %5065 = vmatprep.mubr.bf16.mxu0 %v4545
    %5066 = vmatmul.mubr.bf16.gmra.mxu0 %v4544
    %v5067 = vpop.f32.mrf.mxu0
    %v5068 = vadd.f32 0.0, %v5067
    %v5069 = vpop.f32.mrf.mxu0
    %v5070 = vadd.f32 0.0, %v5069
    %v5071 = vpop.f32.mrf.mxu0
    %v5072 = vadd.f32 0.0, %v5071
    %v5073 = vpop.f32.mrf.mxu0
    %v5074 = vadd.f32 0.0, %v5073
    %5075 = vmatprep.mubr.bf16.mxu0 %v4547
    %5076 = vmatmul.mubr.bf16.gmra.mxu0 %v4546
    %v5077 = vpop.f32.mrf.mxu0
    %v5078 = vadd.f32 0.0, %v5077
    %v5079 = vpop.f32.mrf.mxu0
    %v5080 = vadd.f32 0.0, %v5079
    %v5081 = vpop.f32.mrf.mxu0
    %v5082 = vadd.f32 0.0, %v5081
    %v5083 = vpop.f32.mrf.mxu0
    %v5084 = vadd.f32 0.0, %v5083
    %5085 = vmatprep.mubr.bf16.mxu0 %v4549
    %5086 = vmatmul.mubr.bf16.gmra.mxu0 %v4548
    %v5087 = vpop.f32.mrf.mxu0
    %v5088 = vadd.f32 0.0, %v5087
    %v5089 = vpop.f32.mrf.mxu0
    %v5090 = vadd.f32 0.0, %v5089
    %v5091 = vpop.f32.mrf.mxu0
    %v5092 = vadd.f32 0.0, %v5091
    %v5093 = vpop.f32.mrf.mxu0
    %v5094 = vadd.f32 0.0, %v5093
    %5095 = vmatprep.mubr.bf16.mxu0 %v4551
    %5096 = vmatmul.mubr.bf16.gmra.mxu0 %v4550
    %v5097 = vpop.f32.mrf.mxu0
    %v5098 = vadd.f32 0.0, %v5097
    %v5099 = vpop.f32.mrf.mxu0
    %v5100 = vadd.f32 0.0, %v5099
    %v5101 = vpop.f32.mrf.mxu0
    %v5102 = vadd.f32 0.0, %v5101
    %v5103 = vpop.f32.mrf.mxu0
    %v5104 = vadd.f32 0.0, %v5103
    %5105 = vmatprep.mubr.bf16.mxu0 %v4553
    %5106 = vmatmul.mubr.bf16.gmra.mxu0 %v4552
    %v5107 = vpop.f32.mrf.mxu0
    %v5108 = vadd.f32 0.0, %v5107
    %v5109 = vpop.f32.mrf.mxu0
    %v5110 = vadd.f32 0.0, %v5109
    %v5111 = vpop.f32.mrf.mxu0
    %v5112 = vadd.f32 0.0, %v5111
    %v5113 = vpop.f32.mrf.mxu0
    %v5114 = vadd.f32 0.0, %v5113
    %5115 = vdwg.mxu0
    %v5132 = vunpack.c.l.b16 %v4329
    %v5133 = vunpack.c.h.b16 %v4329
    %v5134 = vunpack.c.l.b16 %v4330
    %v5135 = vunpack.c.h.b16 %v4330
    %v5136 = vunpack.c.l.b16 %v4331
    %v5137 = vunpack.c.h.b16 %v4331
    %v5138 = vunpack.c.l.b16 %v4332
    %v5139 = vunpack.c.h.b16 %v4332
    %v5140 = vunpack.c.l.b16 %v4333
    %v5141 = vunpack.c.h.b16 %v4333
    %v5142 = vunpack.c.l.b16 %v4334
    %v5143 = vunpack.c.h.b16 %v4334
    %v5144 = vunpack.c.l.b16 %v4335
    %v5145 = vunpack.c.h.b16 %v4335
    %v5146 = vunpack.c.l.b16 %v4336
    %v5147 = vunpack.c.h.b16 %v4336
    %v5148 = vunpack.c.l.b16 %v4337
    %v5149 = vunpack.c.h.b16 %v4337
    %v5150 = vunpack.c.l.b16 %v4338
    %v5151 = vunpack.c.h.b16 %v4338
    %v5152 = vunpack.c.l.b16 %v4339
    %v5153 = vunpack.c.h.b16 %v4339
    %v5154 = vunpack.c.l.b16 %v4340
    %v5155 = vunpack.c.h.b16 %v4340
    %v5156 = vunpack.c.l.b16 %v4341
    %v5157 = vunpack.c.h.b16 %v4341
    %v5158 = vunpack.c.l.b16 %v4342
    %v5159 = vunpack.c.h.b16 %v4342
    %v5160 = vunpack.c.l.b16 %v4343
    %v5161 = vunpack.c.h.b16 %v4343
    %v5162 = vunpack.c.l.b16 %v4344
    %v5163 = vunpack.c.h.b16 %v4344
    %v5164 = vpack.c.b16 %v5134, %v5132
    %v5165 = vpack.c.b16 %v5135, %v5133
    %v5166 = vpack.c.b16 %v5138, %v5136
    %v5167 = vpack.c.b16 %v5139, %v5137
    %v5168 = vpack.c.b16 %v5142, %v5140
    %v5169 = vpack.c.b16 %v5143, %v5141
    %v5170 = vpack.c.b16 %v5146, %v5144
    %v5171 = vpack.c.b16 %v5147, %v5145
    %v5172 = vpack.c.b16 %v5150, %v5148
    %v5173 = vpack.c.b16 %v5151, %v5149
    %v5174 = vpack.c.b16 %v5154, %v5152
    %v5175 = vpack.c.b16 %v5155, %v5153
    %v5176 = vpack.c.b16 %v5158, %v5156
    %v5177 = vpack.c.b16 %v5159, %v5157
    %v5178 = vpack.c.b16 %v5162, %v5160
    %v5179 = vpack.c.b16 %v5163, %v5161
    %v5260 = vunpack.c.l.b16 %v4345
    %v5261 = vunpack.c.h.b16 %v4345
    %v5262 = vunpack.c.l.b16 %v4346
    %v5263 = vunpack.c.h.b16 %v4346
    %v5264 = vunpack.c.l.b16 %v4347
    %v5265 = vunpack.c.h.b16 %v4347
    %v5266 = vunpack.c.l.b16 %v4348
    %v5267 = vunpack.c.h.b16 %v4348
    %v5268 = vunpack.c.l.b16 %v4349
    %v5269 = vunpack.c.h.b16 %v4349
    %v5270 = vunpack.c.l.b16 %v4350
    %v5271 = vunpack.c.h.b16 %v4350
    %v5272 = vunpack.c.l.b16 %v4351
    %v5273 = vunpack.c.h.b16 %v4351
    %v5274 = vunpack.c.l.b16 %v4352
    %v5275 = vunpack.c.h.b16 %v4352
    %v5276 = vunpack.c.l.b16 %v4353
    %v5277 = vunpack.c.h.b16 %v4353
    %v5278 = vunpack.c.l.b16 %v4354
    %v5279 = vunpack.c.h.b16 %v4354
    %v5280 = vunpack.c.l.b16 %v4355
    %v5281 = vunpack.c.h.b16 %v4355
    %v5282 = vunpack.c.l.b16 %v4356
    %v5283 = vunpack.c.h.b16 %v4356
    %v5284 = vunpack.c.l.b16 %v4357
    %v5285 = vunpack.c.h.b16 %v4357
    %v5286 = vunpack.c.l.b16 %v4358
    %v5287 = vunpack.c.h.b16 %v4358
    %v5288 = vunpack.c.l.b16 %v4359
    %v5289 = vunpack.c.h.b16 %v4359
    %v5290 = vunpack.c.l.b16 %v4360
    %v5291 = vunpack.c.h.b16 %v4360
    %v5292 = vunpack.c.l.b16 %v4361
    %v5293 = vunpack.c.h.b16 %v4361
    %v5294 = vunpack.c.l.b16 %v4362
    %v5295 = vunpack.c.h.b16 %v4362
    %v5296 = vunpack.c.l.b16 %v4363
    %v5297 = vunpack.c.h.b16 %v4363
    %v5298 = vunpack.c.l.b16 %v4364
    %v5299 = vunpack.c.h.b16 %v4364
    %v5300 = vunpack.c.l.b16 %v4365
    %v5301 = vunpack.c.h.b16 %v4365
    %v5302 = vunpack.c.l.b16 %v4366
    %v5303 = vunpack.c.h.b16 %v4366
    %v5304 = vunpack.c.l.b16 %v4367
    %v5305 = vunpack.c.h.b16 %v4367
    %v5306 = vunpack.c.l.b16 %v4368
    %v5307 = vunpack.c.h.b16 %v4368
    %v5308 = vunpack.c.l.b16 %v4369
    %v5309 = vunpack.c.h.b16 %v4369
    %v5310 = vunpack.c.l.b16 %v4370
    %v5311 = vunpack.c.h.b16 %v4370
    %v5312 = vunpack.c.l.b16 %v4371
    %v5313 = vunpack.c.h.b16 %v4371
    %v5314 = vunpack.c.l.b16 %v4372
    %v5315 = vunpack.c.h.b16 %v4372
    %v5316 = vunpack.c.l.b16 %v4373
    %v5317 = vunpack.c.h.b16 %v4373
    %v5318 = vunpack.c.l.b16 %v4374
    %v5319 = vunpack.c.h.b16 %v4374
    %v5320 = vunpack.c.l.b16 %v4375
    %v5321 = vunpack.c.h.b16 %v4375
    %v5322 = vunpack.c.l.b16 %v4376
    %v5323 = vunpack.c.h.b16 %v4376
    %v5324 = vunpack.c.l.b16 %v4377
    %v5325 = vunpack.c.h.b16 %v4377
    %v5326 = vunpack.c.l.b16 %v4378
    %v5327 = vunpack.c.h.b16 %v4378
    %v5328 = vunpack.c.l.b16 %v4379
    %v5329 = vunpack.c.h.b16 %v4379
    %v5330 = vunpack.c.l.b16 %v4380
    %v5331 = vunpack.c.h.b16 %v4380
    %v5332 = vunpack.c.l.b16 %v4381
    %v5333 = vunpack.c.h.b16 %v4381
    %v5334 = vunpack.c.l.b16 %v4382
    %v5335 = vunpack.c.h.b16 %v4382
    %v5336 = vunpack.c.l.b16 %v4383
    %v5337 = vunpack.c.h.b16 %v4383
    %v5338 = vunpack.c.l.b16 %v4384
    %v5339 = vunpack.c.h.b16 %v4384
    %v5340 = vunpack.c.l.b16 %v4385
    %v5341 = vunpack.c.h.b16 %v4385
    %v5342 = vunpack.c.l.b16 %v4386
    %v5343 = vunpack.c.h.b16 %v4386
    %v5344 = vunpack.c.l.b16 %v4387
    %v5345 = vunpack.c.h.b16 %v4387
    %v5346 = vunpack.c.l.b16 %v4388
    %v5347 = vunpack.c.h.b16 %v4388
    %v5348 = vunpack.c.l.b16 %v4389
    %v5349 = vunpack.c.h.b16 %v4389
    %v5350 = vunpack.c.l.b16 %v4390
    %v5351 = vunpack.c.h.b16 %v4390
    %v5352 = vunpack.c.l.b16 %v4391
    %v5353 = vunpack.c.h.b16 %v4391
    %v5354 = vunpack.c.l.b16 %v4392
    %v5355 = vunpack.c.h.b16 %v4392
    %v5356 = vunpack.c.l.b16 %v4393
    %v5357 = vunpack.c.h.b16 %v4393
    %v5358 = vunpack.c.l.b16 %v4394
    %v5359 = vunpack.c.h.b16 %v4394
    %v5360 = vunpack.c.l.b16 %v4395
    %v5361 = vunpack.c.h.b16 %v4395
    %v5362 = vunpack.c.l.b16 %v4396
    %v5363 = vunpack.c.h.b16 %v4396
    %v5364 = vunpack.c.l.b16 %v4397
    %v5365 = vunpack.c.h.b16 %v4397
    %v5366 = vunpack.c.l.b16 %v4398
    %v5367 = vunpack.c.h.b16 %v4398
    %v5368 = vunpack.c.l.b16 %v4399
    %v5369 = vunpack.c.h.b16 %v4399
    %v5370 = vunpack.c.l.b16 %v4400
    %v5371 = vunpack.c.h.b16 %v4400
    %v5372 = vunpack.c.l.b16 %v4401
    %v5373 = vunpack.c.h.b16 %v4401
    %v5374 = vunpack.c.l.b16 %v4402
    %v5375 = vunpack.c.h.b16 %v4402
    %v5376 = vunpack.c.l.b16 %v4403
    %v5377 = vunpack.c.h.b16 %v4403
    %v5378 = vunpack.c.l.b16 %v4404
    %v5379 = vunpack.c.h.b16 %v4404
    %v5380 = vunpack.c.l.b16 %v4405
    %v5381 = vunpack.c.h.b16 %v4405
    %v5382 = vunpack.c.l.b16 %v4406
    %v5383 = vunpack.c.h.b16 %v4406
    %v5384 = vunpack.c.l.b16 %v4407
    %v5385 = vunpack.c.h.b16 %v4407
    %v5386 = vunpack.c.l.b16 %v4408
    %v5387 = vunpack.c.h.b16 %v4408
    %v5388 = vpack.c.b16 %v5264, %v5260
    %v5389 = vpack.c.b16 %v5265, %v5261
    %v5390 = vpack.c.b16 %v5266, %v5262
    %v5391 = vpack.c.b16 %v5267, %v5263
    %v5392 = vpack.c.b16 %v5272, %v5268
    %v5393 = vpack.c.b16 %v5273, %v5269
    %v5394 = vpack.c.b16 %v5274, %v5270
    %v5395 = vpack.c.b16 %v5275, %v5271
    %v5396 = vpack.c.b16 %v5280, %v5276
    %v5397 = vpack.c.b16 %v5281, %v5277
    %v5398 = vpack.c.b16 %v5282, %v5278
    %v5399 = vpack.c.b16 %v5283, %v5279
    %v5400 = vpack.c.b16 %v5288, %v5284
    %v5401 = vpack.c.b16 %v5289, %v5285
    %v5402 = vpack.c.b16 %v5290, %v5286
    %v5403 = vpack.c.b16 %v5291, %v5287
    %v5404 = vpack.c.b16 %v5296, %v5292
    %v5405 = vpack.c.b16 %v5297, %v5293
    %v5406 = vpack.c.b16 %v5298, %v5294
    %v5407 = vpack.c.b16 %v5299, %v5295
    %v5408 = vpack.c.b16 %v5304, %v5300
    %v5409 = vpack.c.b16 %v5305, %v5301
    %v5410 = vpack.c.b16 %v5306, %v5302
    %v5411 = vpack.c.b16 %v5307, %v5303
    %v5412 = vpack.c.b16 %v5312, %v5308
    %v5413 = vpack.c.b16 %v5313, %v5309
    %v5414 = vpack.c.b16 %v5314, %v5310
    %v5415 = vpack.c.b16 %v5315, %v5311
    %v5416 = vpack.c.b16 %v5320, %v5316
    %v5417 = vpack.c.b16 %v5321, %v5317
    %v5418 = vpack.c.b16 %v5322, %v5318
    %v5419 = vpack.c.b16 %v5323, %v5319
    %v5420 = vpack.c.b16 %v5328, %v5324
    %v5421 = vpack.c.b16 %v5329, %v5325
    %v5422 = vpack.c.b16 %v5330, %v5326
    %v5423 = vpack.c.b16 %v5331, %v5327
    %v5424 = vpack.c.b16 %v5336, %v5332
    %v5425 = vpack.c.b16 %v5337, %v5333
    %v5426 = vpack.c.b16 %v5338, %v5334
    %v5427 = vpack.c.b16 %v5339, %v5335
    %v5428 = vpack.c.b16 %v5344, %v5340
    %v5429 = vpack.c.b16 %v5345, %v5341
    %v5430 = vpack.c.b16 %v5346, %v5342
    %v5431 = vpack.c.b16 %v5347, %v5343
    %v5432 = vpack.c.b16 %v5352, %v5348
    %v5433 = vpack.c.b16 %v5353, %v5349
    %v5434 = vpack.c.b16 %v5354, %v5350
    %v5435 = vpack.c.b16 %v5355, %v5351
    %v5436 = vpack.c.b16 %v5360, %v5356
    %v5437 = vpack.c.b16 %v5361, %v5357
    %v5438 = vpack.c.b16 %v5362, %v5358
    %v5439 = vpack.c.b16 %v5363, %v5359
    %v5440 = vpack.c.b16 %v5368, %v5364
    %v5441 = vpack.c.b16 %v5369, %v5365
    %v5442 = vpack.c.b16 %v5370, %v5366
    %v5443 = vpack.c.b16 %v5371, %v5367
    %v5444 = vpack.c.b16 %v5376, %v5372
    %v5445 = vpack.c.b16 %v5377, %v5373
    %v5446 = vpack.c.b16 %v5378, %v5374
    %v5447 = vpack.c.b16 %v5379, %v5375
    %v5448 = vpack.c.b16 %v5384, %v5380
    %v5449 = vpack.c.b16 %v5385, %v5381
    %v5450 = vpack.c.b16 %v5386, %v5382
    %v5451 = vpack.c.b16 %v5387, %v5383
    %5516 = vmatprep.subr.bf16.mxu0 %v5417
    %5517 = vmatpush1.bf16.msra.mxu0 %v5416
    %5518 = vmatprep.subr.bf16.mxu0 %v5413
    %5519 = vmatpush1.bf16.msra.mxu0 %v5412
    %5520 = vmatprep.subr.bf16.mxu0 %v5409
    %5521 = vmatpush1.bf16.msra.mxu0 %v5408
    %5522 = vmatprep.subr.bf16.mxu0 %v5405
    %5523 = vmatpush1.bf16.msra.mxu0 %v5404
    %5524 = vmatprep.subr.bf16.mxu0 %v5401
    %5525 = vmatpush1.bf16.msra.mxu0 %v5400
    %5526 = vmatprep.subr.bf16.mxu0 %v5397
    %5527 = vmatpush1.bf16.msra.mxu0 %v5396
    %5528 = vmatprep.subr.bf16.mxu0 %v5393
    %5529 = vmatpush1.bf16.msra.mxu0 %v5392
    %5530 = vmatprep.subr.bf16.mxu0 %v5389
    %5531 = vmatpush1.bf16.msra.mxu0 %v5388
    %5532 = vmatprep.subr.bf16.mxu0 %v5449
    %5533 = vmatpush2.bf16.msra.mxu0 %v5448
    %5534 = vmatprep.subr.bf16.mxu0 %v5445
    %5535 = vmatpush2.bf16.msra.mxu0 %v5444
    %5536 = vmatprep.subr.bf16.mxu0 %v5441
    %5537 = vmatpush2.bf16.msra.mxu0 %v5440
    %5538 = vmatprep.subr.bf16.mxu0 %v5437
    %5539 = vmatpush2.bf16.msra.mxu0 %v5436
    %5540 = vmatprep.subr.bf16.mxu0 %v5433
    %5541 = vmatpush2.bf16.msra.mxu0 %v5432
    %5542 = vmatprep.subr.bf16.mxu0 %v5429
    %5543 = vmatpush2.bf16.msra.mxu0 %v5428
    %5544 = vmatprep.subr.bf16.mxu0 %v5425
    %5545 = vmatpush2.bf16.msra.mxu0 %v5424
    %5546 = vmatprep.subr.bf16.mxu0 %v5421
    %5547 = vmatpush2.bf16.msra.mxu0 %v5420
    %5548 = vmatprep.mubr.bf16.mxu0 %v5165
    %5549 = vmatmul.mubr.bf16.gmra.mxu0 %v5164
    %v5550 = vpop.f32.mrf.mxu0
    %v5551 = vadd.f32 %v4925, %v5550
    %v5552 = vpop.f32.mrf.mxu0
    %v5553 = vadd.f32 %v4927, %v5552
    %v5554 = vpop.f32.mrf.mxu0
    %v5555 = vadd.f32 %v4929, %v5554
    %v5556 = vpop.f32.mrf.mxu0
    %v5557 = vadd.f32 %v4931, %v5556
    %5558 = vmatprep.mubr.bf16.mxu0 %v5167
    %5559 = vmatmul.mubr.bf16.gmra.mxu0 %v5166
    %v5560 = vpop.f32.mrf.mxu0
    %v5561 = vadd.f32 %v4935, %v5560
    %v5562 = vpop.f32.mrf.mxu0
    %v5563 = vadd.f32 %v4937, %v5562
    %v5564 = vpop.f32.mrf.mxu0
    %v5565 = vadd.f32 %v4939, %v5564
    %v5566 = vpop.f32.mrf.mxu0
    %v5567 = vadd.f32 %v4941, %v5566
    %5568 = vmatprep.mubr.bf16.mxu0 %v5169
    %5569 = vmatmul.mubr.bf16.gmra.mxu0 %v5168
    %v5570 = vpop.f32.mrf.mxu0
    %v5571 = vadd.f32 %v4945, %v5570
    %v5572 = vpop.f32.mrf.mxu0
    %v5573 = vadd.f32 %v4947, %v5572
    %v5574 = vpop.f32.mrf.mxu0
    %v5575 = vadd.f32 %v4949, %v5574
    %v5576 = vpop.f32.mrf.mxu0
    %v5577 = vadd.f32 %v4951, %v5576
    %5578 = vmatprep.mubr.bf16.mxu0 %v5171
    %5579 = vmatmul.mubr.bf16.gmra.mxu0 %v5170
    %v5580 = vpop.f32.mrf.mxu0
    %v5581 = vadd.f32 %v4955, %v5580
    %v5582 = vpop.f32.mrf.mxu0
    %v5583 = vadd.f32 %v4957, %v5582
    %v5584 = vpop.f32.mrf.mxu0
    %v5585 = vadd.f32 %v4959, %v5584
    %v5586 = vpop.f32.mrf.mxu0
    %v5587 = vadd.f32 %v4961, %v5586
    %5588 = vmatprep.mubr.bf16.mxu0 %v5173
    %5589 = vmatmul.mubr.bf16.gmra.mxu0 %v5172
    %v5590 = vpop.f32.mrf.mxu0
    %v5591 = vadd.f32 %v4965, %v5590
    %v5592 = vpop.f32.mrf.mxu0
    %v5593 = vadd.f32 %v4967, %v5592
    %v5594 = vpop.f32.mrf.mxu0
    %v5595 = vadd.f32 %v4969, %v5594
    %v5596 = vpop.f32.mrf.mxu0
    %v5597 = vadd.f32 %v4971, %v5596
    %5598 = vmatprep.mubr.bf16.mxu0 %v5175
    %5599 = vmatmul.mubr.bf16.gmra.mxu0 %v5174
    %v5600 = vpop.f32.mrf.mxu0
    %v5601 = vadd.f32 %v4975, %v5600
    %v5602 = vpop.f32.mrf.mxu0
    %v5603 = vadd.f32 %v4977, %v5602
    %v5604 = vpop.f32.mrf.mxu0
    %v5605 = vadd.f32 %v4979, %v5604
    %v5606 = vpop.f32.mrf.mxu0
    %v5607 = vadd.f32 %v4981, %v5606
    %5608 = vmatprep.mubr.bf16.mxu0 %v5177
    %5609 = vmatmul.mubr.bf16.gmra.mxu0 %v5176
    %v5610 = vpop.f32.mrf.mxu0
    %v5611 = vadd.f32 %v4985, %v5610
    %v5612 = vpop.f32.mrf.mxu0
    %v5613 = vadd.f32 %v4987, %v5612
    %v5614 = vpop.f32.mrf.mxu0
    %v5615 = vadd.f32 %v4989, %v5614
    %v5616 = vpop.f32.mrf.mxu0
    %v5617 = vadd.f32 %v4991, %v5616
    %5618 = vmatprep.mubr.bf16.mxu0 %v5179
    %5619 = vmatmul.mubr.bf16.gmra.mxu0 %v5178
    %v5620 = vpop.f32.mrf.mxu0
    %v5621 = vadd.f32 %v4995, %v5620
    %v5622 = vpop.f32.mrf.mxu0
    %v5623 = vadd.f32 %v4997, %v5622
    %v5624 = vpop.f32.mrf.mxu0
    %v5625 = vadd.f32 %v4999, %v5624
    %v5626 = vpop.f32.mrf.mxu0
    %v5627 = vadd.f32 %v5001, %v5626
    %5628 = vdwg.mxu0
    %5629 = vmatprep.subr.bf16.mxu0 %v5419
    %5630 = vmatpush1.bf16.msra.mxu0 %v5418
    %5631 = vmatprep.subr.bf16.mxu0 %v5415
    %5632 = vmatpush1.bf16.msra.mxu0 %v5414
    %5633 = vmatprep.subr.bf16.mxu0 %v5411
    %5634 = vmatpush1.bf16.msra.mxu0 %v5410
    %5635 = vmatprep.subr.bf16.mxu0 %v5407
    %5636 = vmatpush1.bf16.msra.mxu0 %v5406
    %5637 = vmatprep.subr.bf16.mxu0 %v5403
    %5638 = vmatpush1.bf16.msra.mxu0 %v5402
    %5639 = vmatprep.subr.bf16.mxu0 %v5399
    %5640 = vmatpush1.bf16.msra.mxu0 %v5398
    %5641 = vmatprep.subr.bf16.mxu0 %v5395
    %5642 = vmatpush1.bf16.msra.mxu0 %v5394
    %5643 = vmatprep.subr.bf16.mxu0 %v5391
    %5644 = vmatpush1.bf16.msra.mxu0 %v5390
    %5645 = vmatprep.subr.bf16.mxu0 %v5451
    %5646 = vmatpush2.bf16.msra.mxu0 %v5450
    %5647 = vmatprep.subr.bf16.mxu0 %v5447
    %5648 = vmatpush2.bf16.msra.mxu0 %v5446
    %5649 = vmatprep.subr.bf16.mxu0 %v5443
    %5650 = vmatpush2.bf16.msra.mxu0 %v5442
    %5651 = vmatprep.subr.bf16.mxu0 %v5439
    %5652 = vmatpush2.bf16.msra.mxu0 %v5438
    %5653 = vmatprep.subr.bf16.mxu0 %v5435
    %5654 = vmatpush2.bf16.msra.mxu0 %v5434
    %5655 = vmatprep.subr.bf16.mxu0 %v5431
    %5656 = vmatpush2.bf16.msra.mxu0 %v5430
    %5657 = vmatprep.subr.bf16.mxu0 %v5427
    %5658 = vmatpush2.bf16.msra.mxu0 %v5426
    %5659 = vmatprep.subr.bf16.mxu0 %v5423
    %5660 = vmatpush2.bf16.msra.mxu0 %v5422
    %5661 = vmatprep.mubr.bf16.mxu0 %v5165
    %5662 = vmatmul.mubr.bf16.gmra.mxu0 %v5164
    %v5663 = vpop.f32.mrf.mxu0
    %v5664 = vadd.f32 %v5038, %v5663
    %v5665 = vpop.f32.mrf.mxu0
    %v5666 = vadd.f32 %v5040, %v5665
    %v5667 = vpop.f32.mrf.mxu0
    %v5668 = vadd.f32 %v5042, %v5667
    %v5669 = vpop.f32.mrf.mxu0
    %v5670 = vadd.f32 %v5044, %v5669
    %5671 = vmatprep.mubr.bf16.mxu0 %v5167
    %5672 = vmatmul.mubr.bf16.gmra.mxu0 %v5166
    %v5673 = vpop.f32.mrf.mxu0
    %v5674 = vadd.f32 %v5048, %v5673
    %v5675 = vpop.f32.mrf.mxu0
    %v5676 = vadd.f32 %v5050, %v5675
    %v5677 = vpop.f32.mrf.mxu0
    %v5678 = vadd.f32 %v5052, %v5677
    %v5679 = vpop.f32.mrf.mxu0
    %v5680 = vadd.f32 %v5054, %v5679
    %5681 = vmatprep.mubr.bf16.mxu0 %v5169
    %5682 = vmatmul.mubr.bf16.gmra.mxu0 %v5168
    %v5683 = vpop.f32.mrf.mxu0
    %v5684 = vadd.f32 %v5058, %v5683
    %v5685 = vpop.f32.mrf.mxu0
    %v5686 = vadd.f32 %v5060, %v5685
    %v5687 = vpop.f32.mrf.mxu0
    %v5688 = vadd.f32 %v5062, %v5687
    %v5689 = vpop.f32.mrf.mxu0
    %v5690 = vadd.f32 %v5064, %v5689
    %5691 = vmatprep.mubr.bf16.mxu0 %v5171
    %5692 = vmatmul.mubr.bf16.gmra.mxu0 %v5170
    %v5693 = vpop.f32.mrf.mxu0
    %v5694 = vadd.f32 %v5068, %v5693
    %v5695 = vpop.f32.mrf.mxu0
    %v5696 = vadd.f32 %v5070, %v5695
    %v5697 = vpop.f32.mrf.mxu0
    %v5698 = vadd.f32 %v5072, %v5697
    %v5699 = vpop.f32.mrf.mxu0
    %v5700 = vadd.f32 %v5074, %v5699
    %5701 = vmatprep.mubr.bf16.mxu0 %v5173
    %5702 = vmatmul.mubr.bf16.gmra.mxu0 %v5172
    %v5703 = vpop.f32.mrf.mxu0
    %v5704 = vadd.f32 %v5078, %v5703
    %v5705 = vpop.f32.mrf.mxu0
    %v5706 = vadd.f32 %v5080, %v5705
    %v5707 = vpop.f32.mrf.mxu0
    %v5708 = vadd.f32 %v5082, %v5707
    %v5709 = vpop.f32.mrf.mxu0
    %v5710 = vadd.f32 %v5084, %v5709
    %5711 = vmatprep.mubr.bf16.mxu0 %v5175
    %5712 = vmatmul.mubr.bf16.gmra.mxu0 %v5174
    %v5713 = vpop.f32.mrf.mxu0
    %v5714 = vadd.f32 %v5088, %v5713
    %v5715 = vpop.f32.mrf.mxu0
    %v5716 = vadd.f32 %v5090, %v5715
    %v5717 = vpop.f32.mrf.mxu0
    %v5718 = vadd.f32 %v5092, %v5717
    %v5719 = vpop.f32.mrf.mxu0
    %v5720 = vadd.f32 %v5094, %v5719
    %5721 = vmatprep.mubr.bf16.mxu0 %v5177
    %5722 = vmatmul.mubr.bf16.gmra.mxu0 %v5176
    %v5723 = vpop.f32.mrf.mxu0
    %v5724 = vadd.f32 %v5098, %v5723
    %v5725 = vpop.f32.mrf.mxu0
    %v5726 = vadd.f32 %v5100, %v5725
    %v5727 = vpop.f32.mrf.mxu0
    %v5728 = vadd.f32 %v5102, %v5727
    %v5729 = vpop.f32.mrf.mxu0
    %v5730 = vadd.f32 %v5104, %v5729
    %5731 = vmatprep.mubr.bf16.mxu0 %v5179
    %5732 = vmatmul.mubr.bf16.gmra.mxu0 %v5178
    %v5733 = vpop.f32.mrf.mxu0
    %v5734 = vadd.f32 %v5108, %v5733
    %v5735 = vpop.f32.mrf.mxu0
    %v5736 = vadd.f32 %v5110, %v5735
    %v5737 = vpop.f32.mrf.mxu0
    %v5738 = vadd.f32 %v5112, %v5737
    %v5739 = vpop.f32.mrf.mxu0
    %v5740 = vadd.f32 %v5114, %v5739
    %5741 = vdwg.mxu0
    %v5742 = vadd.f32 %v5551, %v3960
    %v5743 = vadd.f32 %v5553, %v3964
    %v5744 = vadd.f32 %v5664, %v3968
    %v5745 = vadd.f32 %v5666, %v3972
    %v5746 = vadd.f32 %v5555, %v3960
    %v5747 = vadd.f32 %v5557, %v3964
    %v5748 = vadd.f32 %v5668, %v3968
    %v5749 = vadd.f32 %v5670, %v3972
    %v5750 = vadd.f32 %v5561, %v3960
    %v5751 = vadd.f32 %v5563, %v3964
    %v5752 = vadd.f32 %v5674, %v3968
    %v5753 = vadd.f32 %v5676, %v3972
    %v5754 = vadd.f32 %v5565, %v3960
    %v5755 = vadd.f32 %v5567, %v3964
    %v5756 = vadd.f32 %v5678, %v3968
    %v5757 = vadd.f32 %v5680, %v3972
    %v5758 = vadd.f32 %v5571, %v3960
    %v5759 = vadd.f32 %v5573, %v3964
    %v5760 = vadd.f32 %v5684, %v3968
    %v5761 = vadd.f32 %v5686, %v3972
    %v5762 = vadd.f32 %v5575, %v3960
    %v5763 = vadd.f32 %v5577, %v3964
    %v5764 = vadd.f32 %v5688, %v3968
    %v5765 = vadd.f32 %v5690, %v3972
    %v5766 = vadd.f32 %v5581, %v3960
    %v5767 = vadd.f32 %v5583, %v3964
    %v5768 = vadd.f32 %v5694, %v3968
    %v5769 = vadd.f32 %v5696, %v3972
    %v5770 = vadd.f32 %v5585, %v3960
    %v5771 = vadd.f32 %v5587, %v3964
    %v5772 = vadd.f32 %v5698, %v3968
    %v5773 = vadd.f32 %v5700, %v3972
    %v5774 = vadd.f32 %v5591, %v3960
    %v5775 = vadd.f32 %v5593, %v3964
    %v5776 = vadd.f32 %v5704, %v3968
    %v5777 = vadd.f32 %v5706, %v3972
    %v5778 = vadd.f32 %v5595, %v3960
    %v5779 = vadd.f32 %v5597, %v3964
    %v5780 = vadd.f32 %v5708, %v3968
    %v5781 = vadd.f32 %v5710, %v3972
    %v5782 = vadd.f32 %v5601, %v3960
    %v5783 = vadd.f32 %v5603, %v3964
    %v5784 = vadd.f32 %v5714, %v3968
    %v5785 = vadd.f32 %v5716, %v3972
    %v5786 = vadd.f32 %v5605, %v3960
    %v5787 = vadd.f32 %v5607, %v3964
    %v5788 = vadd.f32 %v5718, %v3968
    %v5789 = vadd.f32 %v5720, %v3972
    %v5790 = vadd.f32 %v5611, %v3960
    %v5791 = vadd.f32 %v5613, %v3964
    %v5792 = vadd.f32 %v5724, %v3968
    %v5793 = vadd.f32 %v5726, %v3972
    %v5794 = vadd.f32 %v5615, %v3960
    %v5795 = vadd.f32 %v5617, %v3964
    %v5796 = vadd.f32 %v5728, %v3968
    %v5797 = vadd.f32 %v5730, %v3972
    %v5798 = vadd.f32 %v5621, %v3960
    %v5799 = vadd.f32 %v5623, %v3964
    %v5800 = vadd.f32 %v5734, %v3968
    %v5801 = vadd.f32 %v5736, %v3972
    %v5802 = vadd.f32 %v5625, %v3960
    %v5803 = vadd.f32 %v5627, %v3964
    %v5804 = vadd.f32 %v5738, %v3968
    %v5805 = vadd.f32 %v5740, %v3972
    %v5806 = vmax.f32 %v5742, 0.0
    %v5807 = vmax.f32 %v5743, 0.0
    %v5808 = vmax.f32 %v5744, 0.0
    %v5809 = vmax.f32 %v5745, 0.0
    %v5810 = vmax.f32 %v5746, 0.0
    %v5811 = vmax.f32 %v5747, 0.0
    %v5812 = vmax.f32 %v5748, 0.0
    %v5813 = vmax.f32 %v5749, 0.0
    %v5814 = vmax.f32 %v5750, 0.0
    %v5815 = vmax.f32 %v5751, 0.0
    %v5816 = vmax.f32 %v5752, 0.0
    %v5817 = vmax.f32 %v5753, 0.0
    %v5818 = vmax.f32 %v5754, 0.0
    %v5819 = vmax.f32 %v5755, 0.0
    %v5820 = vmax.f32 %v5756, 0.0
    %v5821 = vmax.f32 %v5757, 0.0
    %v5822 = vmax.f32 %v5758, 0.0
    %v5823 = vmax.f32 %v5759, 0.0
    %v5824 = vmax.f32 %v5760, 0.0
    %v5825 = vmax.f32 %v5761, 0.0
    %v5826 = vmax.f32 %v5762, 0.0
    %v5827 = vmax.f32 %v5763, 0.0
    %v5828 = vmax.f32 %v5764, 0.0
    %v5829 = vmax.f32 %v5765, 0.0
    %v5830 = vmax.f32 %v5766, 0.0
    %v5831 = vmax.f32 %v5767, 0.0
    %v5832 = vmax.f32 %v5768, 0.0
    %v5833 = vmax.f32 %v5769, 0.0
    %v5834 = vmax.f32 %v5770, 0.0
    %v5835 = vmax.f32 %v5771, 0.0
    %v5836 = vmax.f32 %v5772, 0.0
    %v5837 = vmax.f32 %v5773, 0.0
    %v5838 = vmax.f32 %v5774, 0.0
    %v5839 = vmax.f32 %v5775, 0.0
    %v5840 = vmax.f32 %v5776, 0.0
    %v5841 = vmax.f32 %v5777, 0.0
    %v5842 = vmax.f32 %v5778, 0.0
    %v5843 = vmax.f32 %v5779, 0.0
    %v5844 = vmax.f32 %v5780, 0.0
    %v5845 = vmax.f32 %v5781, 0.0
    %v5846 = vmax.f32 %v5782, 0.0
    %v5847 = vmax.f32 %v5783, 0.0
    %v5848 = vmax.f32 %v5784, 0.0
    %v5849 = vmax.f32 %v5785, 0.0
    %v5850 = vmax.f32 %v5786, 0.0
    %v5851 = vmax.f32 %v5787, 0.0
    %v5852 = vmax.f32 %v5788, 0.0
    %v5853 = vmax.f32 %v5789, 0.0
    %v5854 = vmax.f32 %v5790, 0.0
    %v5855 = vmax.f32 %v5791, 0.0
    %v5856 = vmax.f32 %v5792, 0.0
    %v5857 = vmax.f32 %v5793, 0.0
    %v5858 = vmax.f32 %v5794, 0.0
    %v5859 = vmax.f32 %v5795, 0.0
    %v5860 = vmax.f32 %v5796, 0.0
    %v5861 = vmax.f32 %v5797, 0.0
    %v5862 = vmax.f32 %v5798, 0.0
    %v5863 = vmax.f32 %v5799, 0.0
    %v5864 = vmax.f32 %v5800, 0.0
    %v5865 = vmax.f32 %v5801, 0.0
    %v5866 = vmax.f32 %v5802, 0.0
    %v5867 = vmax.f32 %v5803, 0.0
    %v5868 = vmax.f32 %v5804, 0.0
    %v5869 = vmax.f32 %v5805, 0.0
    %v5870 = vpack.c.bf16 %v5810, %v5806
    %v5871 = vpack.c.bf16 %v5811, %v5807
    %v5872 = vpack.c.bf16 %v5812, %v5808
    %v5873 = vpack.c.bf16 %v5813, %v5809
    %v5874 = vpack.c.bf16 %v5818, %v5814
    %v5875 = vpack.c.bf16 %v5819, %v5815
    %v5876 = vpack.c.bf16 %v5820, %v5816
    %v5877 = vpack.c.bf16 %v5821, %v5817
    %v5878 = vpack.c.bf16 %v5826, %v5822
    %v5879 = vpack.c.bf16 %v5827, %v5823
    %v5880 = vpack.c.bf16 %v5828, %v5824
    %v5881 = vpack.c.bf16 %v5829, %v5825
    %v5882 = vpack.c.bf16 %v5834, %v5830
    %v5883 = vpack.c.bf16 %v5835, %v5831
    %v5884 = vpack.c.bf16 %v5836, %v5832
    %v5885 = vpack.c.bf16 %v5837, %v5833
    %v5886 = vpack.c.bf16 %v5842, %v5838
    %v5887 = vpack.c.bf16 %v5843, %v5839
    %v5888 = vpack.c.bf16 %v5844, %v5840
    %v5889 = vpack.c.bf16 %v5845, %v5841
    %v5890 = vpack.c.bf16 %v5850, %v5846
    %v5891 = vpack.c.bf16 %v5851, %v5847
    %v5892 = vpack.c.bf16 %v5852, %v5848
    %v5893 = vpack.c.bf16 %v5853, %v5849
    %v5894 = vpack.c.bf16 %v5858, %v5854
    %v5895 = vpack.c.bf16 %v5859, %v5855
    %v5896 = vpack.c.bf16 %v5860, %v5856
    %v5897 = vpack.c.bf16 %v5861, %v5857
    %v5898 = vpack.c.bf16 %v5866, %v5862
    %v5899 = vpack.c.bf16 %v5867, %v5863
    %v5900 = vpack.c.bf16 %v5868, %v5864
    %v5901 = vpack.c.bf16 %v5869, %v5865
    %v5906 = vunpack.c.l.b16 %v5870
    %v5907 = vunpack.c.l.b16 %v5871
    %v5908 = vunpack.c.l.b16 %v5872
    %v5909 = vunpack.c.l.b16 %v5873
    %v5910 = vunpack.c.h.b16 %v5870
    %v5911 = vunpack.c.h.b16 %v5871
    %v5912 = vunpack.c.h.b16 %v5872
    %v5913 = vunpack.c.h.b16 %v5873
    %v5914 = vpack.c.b16 %v5907, %v5906
    %v5915 = vpack.c.b16 %v5909, %v5908
    %v5916 = vpack.c.b16 %v5911, %v5910
    %v5917 = vpack.c.b16 %v5913, %v5912
    %5922 = vst [vmem:[#allocation4 + $0x40] sm:$0xff] %v5914
    %5923 = vst [vmem:[#allocation4 + $0x48] sm:$0xff] %v5915
    %5924 = vst [vmem:[#allocation4 + $0x50] sm:$0xff] %v5916
    %5925 = vst [vmem:[#allocation4 + $0x58] sm:$0xff] %v5917
    %v5930 = vunpack.c.l.b16 %v5874
    %v5931 = vunpack.c.l.b16 %v5875
    %v5932 = vunpack.c.l.b16 %v5876
    %v5933 = vunpack.c.l.b16 %v5877
    %v5934 = vunpack.c.h.b16 %v5874
    %v5935 = vunpack.c.h.b16 %v5875
    %v5936 = vunpack.c.h.b16 %v5876
    %v5937 = vunpack.c.h.b16 %v5877
    %v5938 = vpack.c.b16 %v5931, %v5930
    %v5939 = vpack.c.b16 %v5933, %v5932
    %v5940 = vpack.c.b16 %v5935, %v5934
    %v5941 = vpack.c.b16 %v5937, %v5936
    %5946 = vst [vmem:[#allocation4 + $0x80] sm:$0xff] %v5938
    %5947 = vst [vmem:[#allocation4 + $0x88] sm:$0xff] %v5939
    %5948 = vst [vmem:[#allocation4 + $0x90] sm:$0xff] %v5940
    %5949 = vst [vmem:[#allocation4 + $0x98] sm:$0xff] %v5941
    %v5954 = vunpack.c.l.b16 %v5878
    %v5955 = vunpack.c.l.b16 %v5879
    %v5956 = vunpack.c.l.b16 %v5880
    %v5957 = vunpack.c.l.b16 %v5881
    %v5958 = vunpack.c.h.b16 %v5878
    %v5959 = vunpack.c.h.b16 %v5879
    %v5960 = vunpack.c.h.b16 %v5880
    %v5961 = vunpack.c.h.b16 %v5881
    %v5962 = vpack.c.b16 %v5955, %v5954
    %v5963 = vpack.c.b16 %v5957, %v5956
    %v5964 = vpack.c.b16 %v5959, %v5958
    %v5965 = vpack.c.b16 %v5961, %v5960
    %5970 = vst [vmem:[#allocation4 + $0xc0] sm:$0xff] %v5962
    %5971 = vst [vmem:[#allocation4 + $0xc8] sm:$0xff] %v5963
    %5972 = vst [vmem:[#allocation4 + $0xd0] sm:$0xff] %v5964
    %5973 = vst [vmem:[#allocation4 + $0xd8] sm:$0xff] %v5965
    %v5978 = vunpack.c.l.b16 %v5882
    %v5979 = vunpack.c.l.b16 %v5883
    %v5980 = vunpack.c.l.b16 %v5884
    %v5981 = vunpack.c.l.b16 %v5885
    %v5982 = vunpack.c.h.b16 %v5882
    %v5983 = vunpack.c.h.b16 %v5883
    %v5984 = vunpack.c.h.b16 %v5884
    %v5985 = vunpack.c.h.b16 %v5885
    %v5986 = vpack.c.b16 %v5979, %v5978
    %v5987 = vpack.c.b16 %v5981, %v5980
    %v5988 = vpack.c.b16 %v5983, %v5982
    %v5989 = vpack.c.b16 %v5985, %v5984
    %5994 = vst [vmem:[#allocation4 + $0x100] sm:$0xff] %v5986
    %5995 = vst [vmem:[#allocation4 + $0x108] sm:$0xff] %v5987
    %5996 = vst [vmem:[#allocation4 + $0x110] sm:$0xff] %v5988
    %5997 = vst [vmem:[#allocation4 + $0x118] sm:$0xff] %v5989
    %v6002 = vunpack.c.l.b16 %v5886
    %v6003 = vunpack.c.l.b16 %v5887
    %v6004 = vunpack.c.l.b16 %v5888
    %v6005 = vunpack.c.l.b16 %v5889
    %v6006 = vunpack.c.h.b16 %v5886
    %v6007 = vunpack.c.h.b16 %v5887
    %v6008 = vunpack.c.h.b16 %v5888
    %v6009 = vunpack.c.h.b16 %v5889
    %v6010 = vpack.c.b16 %v6003, %v6002
    %v6011 = vpack.c.b16 %v6005, %v6004
    %v6012 = vpack.c.b16 %v6007, %v6006
    %v6013 = vpack.c.b16 %v6009, %v6008
    %6018 = vst [vmem:[#allocation4 + $0x140] sm:$0xff] %v6010
    %6019 = vst [vmem:[#allocation4 + $0x148] sm:$0xff] %v6011
    %6020 = vst [vmem:[#allocation4 + $0x150] sm:$0xff] %v6012
    %6021 = vst [vmem:[#allocation4 + $0x158] sm:$0xff] %v6013
    %v6026 = vunpack.c.l.b16 %v5890
    %v6027 = vunpack.c.l.b16 %v5891
    %v6028 = vunpack.c.l.b16 %v5892
    %v6029 = vunpack.c.l.b16 %v5893
    %v6030 = vunpack.c.h.b16 %v5890
    %v6031 = vunpack.c.h.b16 %v5891
    %v6032 = vunpack.c.h.b16 %v5892
    %v6033 = vunpack.c.h.b16 %v5893
    %v6034 = vpack.c.b16 %v6027, %v6026
    %v6035 = vpack.c.b16 %v6029, %v6028
    %v6036 = vpack.c.b16 %v6031, %v6030
    %v6037 = vpack.c.b16 %v6033, %v6032
    %6042 = vst [vmem:[#allocation4 + $0x180] sm:$0xff] %v6034
    %6043 = vst [vmem:[#allocation4 + $0x188] sm:$0xff] %v6035
    %6044 = vst [vmem:[#allocation4 + $0x190] sm:$0xff] %v6036
    %6045 = vst [vmem:[#allocation4 + $0x198] sm:$0xff] %v6037
    %v6050 = vunpack.c.l.b16 %v5894
    %v6051 = vunpack.c.l.b16 %v5895
    %v6052 = vunpack.c.l.b16 %v5896
    %v6053 = vunpack.c.l.b16 %v5897
    %v6054 = vunpack.c.h.b16 %v5894
    %v6055 = vunpack.c.h.b16 %v5895
    %v6056 = vunpack.c.h.b16 %v5896
    %v6057 = vunpack.c.h.b16 %v5897
    %v6058 = vpack.c.b16 %v6051, %v6050
    %v6059 = vpack.c.b16 %v6053, %v6052
    %v6060 = vpack.c.b16 %v6055, %v6054
    %v6061 = vpack.c.b16 %v6057, %v6056
    %6066 = vst [vmem:[#allocation4 + $0x1c0] sm:$0xff] %v6058
    %6067 = vst [vmem:[#allocation4 + $0x1c8] sm:$0xff] %v6059
    %6068 = vst [vmem:[#allocation4 + $0x1d0] sm:$0xff] %v6060
    %6069 = vst [vmem:[#allocation4 + $0x1d8] sm:$0xff] %v6061
    %v6074 = vunpack.c.l.b16 %v5898
    %v6075 = vunpack.c.l.b16 %v5899
    %v6076 = vunpack.c.l.b16 %v5900
    %v6077 = vunpack.c.l.b16 %v5901
    %v6078 = vunpack.c.h.b16 %v5898
    %v6079 = vunpack.c.h.b16 %v5899
    %v6080 = vunpack.c.h.b16 %v5900
    %v6081 = vunpack.c.h.b16 %v5901
    %v6082 = vpack.c.b16 %v6075, %v6074
    %v6083 = vpack.c.b16 %v6077, %v6076
    %v6084 = vpack.c.b16 %v6079, %v6078
    %v6085 = vpack.c.b16 %v6081, %v6080
    %6090 = vst [vmem:[#allocation4 + $0x200] sm:$0xff] %v6082
    %6091 = vst [vmem:[#allocation4 + $0x208] sm:$0xff] %v6083
    %6092 = vst [vmem:[#allocation4 + $0x210] sm:$0xff] %v6084
    %6093 = vst [vmem:[#allocation4 + $0x218] sm:$0xff] %v6085
    %v6094 = vld [vmem:[%s10] sm:$0x1]
    %v6095 = vld [vmem:[#allocation4 + $0x20] sm:$0xff]
    %v6096 = vld [vmem:[#allocation4 + $0x28] sm:$0xff]
    %v6097 = vld [vmem:[#allocation4 + $0x30] sm:$0xff]
    %v6098 = vld [vmem:[#allocation4 + $0x38] sm:$0xff]
    %v6099 = vld [vmem:[#allocation4 + $0x40] sm:$0xff]
    %v6100 = vld [vmem:[#allocation4 + $0x48] sm:$0xff]
    %v6101 = vld [vmem:[#allocation4 + $0x50] sm:$0xff]
    %v6102 = vld [vmem:[#allocation4 + $0x58] sm:$0xff]
    %v6103 = vld [vmem:[#allocation4 + $0x60] sm:$0xff]
    %v6104 = vld [vmem:[#allocation4 + $0x68] sm:$0xff]
    %v6105 = vld [vmem:[#allocation4 + $0x70] sm:$0xff]
    %v6106 = vld [vmem:[#allocation4 + $0x78] sm:$0xff]
    %v6107 = vld [vmem:[#allocation4 + $0x80] sm:$0xff]
    %v6108 = vld [vmem:[#allocation4 + $0x88] sm:$0xff]
    %v6109 = vld [vmem:[#allocation4 + $0x90] sm:$0xff]
    %v6110 = vld [vmem:[#allocation4 + $0x98] sm:$0xff]
    %v6111 = vld [vmem:[#allocation4 + $0xa0] sm:$0xff]
    %v6112 = vld [vmem:[#allocation4 + $0xa8] sm:$0xff]
    %v6113 = vld [vmem:[#allocation4 + $0xb0] sm:$0xff]
    %v6114 = vld [vmem:[#allocation4 + $0xb8] sm:$0xff]
    %v6115 = vld [vmem:[#allocation4 + $0xc0] sm:$0xff]
    %v6116 = vld [vmem:[#allocation4 + $0xc8] sm:$0xff]
    %v6117 = vld [vmem:[#allocation4 + $0xd0] sm:$0xff]
    %v6118 = vld [vmem:[#allocation4 + $0xd8] sm:$0xff]
    %v6119 = vld [vmem:[#allocation4 + $0xe0] sm:$0xff]
    %v6120 = vld [vmem:[#allocation4 + $0xe8] sm:$0xff]
    %v6121 = vld [vmem:[#allocation4 + $0xf0] sm:$0xff]
    %v6122 = vld [vmem:[#allocation4 + $0xf8] sm:$0xff]
    %v6123 = vld [vmem:[#allocation4 + $0x100] sm:$0xff]
    %v6124 = vld [vmem:[#allocation4 + $0x108] sm:$0xff]
    %v6125 = vld [vmem:[#allocation4 + $0x110] sm:$0xff]
    %v6126 = vld [vmem:[#allocation4 + $0x118] sm:$0xff]
    %v6127 = vld [vmem:[#allocation4 + $0x120] sm:$0xff]
    %v6128 = vld [vmem:[#allocation4 + $0x128] sm:$0xff]
    %v6129 = vld [vmem:[#allocation4 + $0x130] sm:$0xff]
    %v6130 = vld [vmem:[#allocation4 + $0x138] sm:$0xff]
    %v6131 = vld [vmem:[#allocation4 + $0x140] sm:$0xff]
    %v6132 = vld [vmem:[#allocation4 + $0x148] sm:$0xff]
    %v6133 = vld [vmem:[#allocation4 + $0x150] sm:$0xff]
    %v6134 = vld [vmem:[#allocation4 + $0x158] sm:$0xff]
    %v6135 = vld [vmem:[#allocation4 + $0x160] sm:$0xff]
    %v6136 = vld [vmem:[#allocation4 + $0x168] sm:$0xff]
    %v6137 = vld [vmem:[#allocation4 + $0x170] sm:$0xff]
    %v6138 = vld [vmem:[#allocation4 + $0x178] sm:$0xff]
    %v6139 = vld [vmem:[#allocation4 + $0x180] sm:$0xff]
    %v6140 = vld [vmem:[#allocation4 + $0x188] sm:$0xff]
    %v6141 = vld [vmem:[#allocation4 + $0x190] sm:$0xff]
    %v6142 = vld [vmem:[#allocation4 + $0x198] sm:$0xff]
    %v6143 = vld [vmem:[#allocation4 + $0x1a0] sm:$0xff]
    %v6144 = vld [vmem:[#allocation4 + $0x1a8] sm:$0xff]
    %v6145 = vld [vmem:[#allocation4 + $0x1b0] sm:$0xff]
    %v6146 = vld [vmem:[#allocation4 + $0x1b8] sm:$0xff]
    %v6147 = vld [vmem:[#allocation4 + $0x1c0] sm:$0xff]
    %v6148 = vld [vmem:[#allocation4 + $0x1c8] sm:$0xff]
    %v6149 = vld [vmem:[#allocation4 + $0x1d0] sm:$0xff]
    %v6150 = vld [vmem:[#allocation4 + $0x1d8] sm:$0xff]
    %v6151 = vld [vmem:[#allocation4 + $0x1e0] sm:$0xff]
    %v6152 = vld [vmem:[#allocation4 + $0x1e8] sm:$0xff]
    %v6153 = vld [vmem:[#allocation4 + $0x1f0] sm:$0xff]
    %v6154 = vld [vmem:[#allocation4 + $0x1f8] sm:$0xff]
    %v6155 = vld [vmem:[#allocation4 + $0x200] sm:$0xff]
    %v6156 = vld [vmem:[#allocation4 + $0x208] sm:$0xff]
    %v6157 = vld [vmem:[#allocation4 + $0x210] sm:$0xff]
    %v6158 = vld [vmem:[#allocation4 + $0x218] sm:$0xff]
    %s6159 = scalar_lea.vmem %s9, 256
    %v6160 = vld [vmem:[%s6159] sm:$0xf]
    %v6161 = vld [vmem:[%s6159 + $0x4] sm:$0xf]
    %v6162 = vld [vmem:[%s6159 + $0x8] sm:$0xf]
    %v6163 = vld [vmem:[%s6159 + $0xc] sm:$0xf]
    %v6164 = vld [vmem:[%s6159 + $0x10] sm:$0xf]
    %v6165 = vld [vmem:[%s6159 + $0x14] sm:$0xf]
    %v6166 = vld [vmem:[%s6159 + $0x18] sm:$0xf]
    %v6167 = vld [vmem:[%s6159 + $0x1c] sm:$0xf]
    %v6168 = vld [vmem:[%s6159 + $0x20] sm:$0xf]
    %v6169 = vld [vmem:[%s6159 + $0x24] sm:$0xf]
    %v6170 = vld [vmem:[%s6159 + $0x28] sm:$0xf]
    %v6171 = vld [vmem:[%s6159 + $0x2c] sm:$0xf]
    %v6172 = vld [vmem:[%s6159 + $0x30] sm:$0xf]
    %v6173 = vld [vmem:[%s6159 + $0x34] sm:$0xf]
    %v6174 = vld [vmem:[%s6159 + $0x38] sm:$0xf]
    %v6175 = vld [vmem:[%s6159 + $0x3c] sm:$0xf]
    %v6176 = vld [vmem:[%s6159 + $0x40] sm:$0xf]
    %v6177 = vld [vmem:[%s6159 + $0x44] sm:$0xf]
    %v6178 = vld [vmem:[%s6159 + $0x48] sm:$0xf]
    %v6179 = vld [vmem:[%s6159 + $0x4c] sm:$0xf]
    %v6180 = vld [vmem:[%s6159 + $0x50] sm:$0xf]
    %v6181 = vld [vmem:[%s6159 + $0x54] sm:$0xf]
    %v6182 = vld [vmem:[%s6159 + $0x58] sm:$0xf]
    %v6183 = vld [vmem:[%s6159 + $0x5c] sm:$0xf]
    %v6184 = vld [vmem:[%s6159 + $0x60] sm:$0xf]
    %v6185 = vld [vmem:[%s6159 + $0x64] sm:$0xf]
    %v6186 = vld [vmem:[%s6159 + $0x68] sm:$0xf]
    %v6187 = vld [vmem:[%s6159 + $0x6c] sm:$0xf]
    %v6188 = vld [vmem:[%s6159 + $0x70] sm:$0xf]
    %v6189 = vld [vmem:[%s6159 + $0x74] sm:$0xf]
    %v6190 = vld [vmem:[%s6159 + $0x78] sm:$0xf]
    %v6191 = vld [vmem:[%s6159 + $0x7c] sm:$0xf]
    %v6192 = vld [vmem:[%s6159 + $0x80] sm:$0xf]
    %v6193 = vld [vmem:[%s6159 + $0x84] sm:$0xf]
    %v6194 = vld [vmem:[%s6159 + $0x88] sm:$0xf]
    %v6195 = vld [vmem:[%s6159 + $0x8c] sm:$0xf]
    %v6196 = vld [vmem:[%s6159 + $0x90] sm:$0xf]
    %v6197 = vld [vmem:[%s6159 + $0x94] sm:$0xf]
    %v6198 = vld [vmem:[%s6159 + $0x98] sm:$0xf]
    %v6199 = vld [vmem:[%s6159 + $0x9c] sm:$0xf]
    %v6200 = vld [vmem:[%s6159 + $0xa0] sm:$0xf]
    %v6201 = vld [vmem:[%s6159 + $0xa4] sm:$0xf]
    %v6202 = vld [vmem:[%s6159 + $0xa8] sm:$0xf]
    %v6203 = vld [vmem:[%s6159 + $0xac] sm:$0xf]
    %v6204 = vld [vmem:[%s6159 + $0xb0] sm:$0xf]
    %v6205 = vld [vmem:[%s6159 + $0xb4] sm:$0xf]
    %v6206 = vld [vmem:[%s6159 + $0xb8] sm:$0xf]
    %v6207 = vld [vmem:[%s6159 + $0xbc] sm:$0xf]
    %v6208 = vld [vmem:[%s6159 + $0xc0] sm:$0xf]
    %v6209 = vld [vmem:[%s6159 + $0xc4] sm:$0xf]
    %v6210 = vld [vmem:[%s6159 + $0xc8] sm:$0xf]
    %v6211 = vld [vmem:[%s6159 + $0xcc] sm:$0xf]
    %v6212 = vld [vmem:[%s6159 + $0xd0] sm:$0xf]
    %v6213 = vld [vmem:[%s6159 + $0xd4] sm:$0xf]
    %v6214 = vld [vmem:[%s6159 + $0xd8] sm:$0xf]
    %v6215 = vld [vmem:[%s6159 + $0xdc] sm:$0xf]
    %v6216 = vld [vmem:[%s6159 + $0xe0] sm:$0xf]
    %v6217 = vld [vmem:[%s6159 + $0xe4] sm:$0xf]
    %v6218 = vld [vmem:[%s6159 + $0xe8] sm:$0xf]
    %v6219 = vld [vmem:[%s6159 + $0xec] sm:$0xf]
    %v6220 = vld [vmem:[%s6159 + $0xf0] sm:$0xf]
    %v6221 = vld [vmem:[%s6159 + $0xf4] sm:$0xf]
    %v6222 = vld [vmem:[%s6159 + $0xf8] sm:$0xf]
    %v6223 = vld [vmem:[%s6159 + $0xfc] sm:$0xf]
    %v6224 = vld [vmem:[#allocation4] sm:$0xff]
    %v6225 = vld [vmem:[#allocation4 + $0x8] sm:$0xff]
    %v6226 = vld [vmem:[#allocation4 + $0x10] sm:$0xff]
    %v6227 = vld [vmem:[#allocation4 + $0x18] sm:$0xff]
    %s6228 = scalar_lea.vmem %s9, 768
    %v6229 = vld [vmem:[%s6228] sm:$0xf]
    %v6230 = vld [vmem:[%s6228 + $0x4] sm:$0xf]
    %v6231 = vld [vmem:[%s6228 + $0x8] sm:$0xf]
    %v6232 = vld [vmem:[%s6228 + $0xc] sm:$0xf]
    %v6233 = vld [vmem:[%s6228 + $0x10] sm:$0xf]
    %v6234 = vld [vmem:[%s6228 + $0x14] sm:$0xf]
    %v6235 = vld [vmem:[%s6228 + $0x18] sm:$0xf]
    %v6236 = vld [vmem:[%s6228 + $0x1c] sm:$0xf]
    %v6237 = vld [vmem:[%s6228 + $0x20] sm:$0xf]
    %v6238 = vld [vmem:[%s6228 + $0x24] sm:$0xf]
    %v6239 = vld [vmem:[%s6228 + $0x28] sm:$0xf]
    %v6240 = vld [vmem:[%s6228 + $0x2c] sm:$0xf]
    %v6241 = vld [vmem:[%s6228 + $0x30] sm:$0xf]
    %v6242 = vld [vmem:[%s6228 + $0x34] sm:$0xf]
    %v6243 = vld [vmem:[%s6228 + $0x38] sm:$0xf]
    %v6244 = vld [vmem:[%s6228 + $0x3c] sm:$0xf]
    %v6245 = vld [vmem:[%s6228 + $0x40] sm:$0xf]
    %v6246 = vld [vmem:[%s6228 + $0x44] sm:$0xf]
    %v6247 = vld [vmem:[%s6228 + $0x48] sm:$0xf]
    %v6248 = vld [vmem:[%s6228 + $0x4c] sm:$0xf]
    %v6249 = vld [vmem:[%s6228 + $0x50] sm:$0xf]
    %v6250 = vld [vmem:[%s6228 + $0x54] sm:$0xf]
    %v6251 = vld [vmem:[%s6228 + $0x58] sm:$0xf]
    %v6252 = vld [vmem:[%s6228 + $0x5c] sm:$0xf]
    %v6253 = vld [vmem:[%s6228 + $0x60] sm:$0xf]
    %v6254 = vld [vmem:[%s6228 + $0x64] sm:$0xf]
    %v6255 = vld [vmem:[%s6228 + $0x68] sm:$0xf]
    %v6256 = vld [vmem:[%s6228 + $0x6c] sm:$0xf]
    %v6257 = vld [vmem:[%s6228 + $0x70] sm:$0xf]
    %v6258 = vld [vmem:[%s6228 + $0x74] sm:$0xf]
    %v6259 = vld [vmem:[%s6228 + $0x78] sm:$0xf]
    %v6260 = vld [vmem:[%s6228 + $0x7c] sm:$0xf]
    %v6261 = vld [vmem:[%s6228 + $0x80] sm:$0xf]
    %v6262 = vld [vmem:[%s6228 + $0x84] sm:$0xf]
    %v6263 = vld [vmem:[%s6228 + $0x88] sm:$0xf]
    %v6264 = vld [vmem:[%s6228 + $0x8c] sm:$0xf]
    %v6265 = vld [vmem:[%s6228 + $0x90] sm:$0xf]
    %v6266 = vld [vmem:[%s6228 + $0x94] sm:$0xf]
    %v6267 = vld [vmem:[%s6228 + $0x98] sm:$0xf]
    %v6268 = vld [vmem:[%s6228 + $0x9c] sm:$0xf]
    %v6269 = vld [vmem:[%s6228 + $0xa0] sm:$0xf]
    %v6270 = vld [vmem:[%s6228 + $0xa4] sm:$0xf]
    %v6271 = vld [vmem:[%s6228 + $0xa8] sm:$0xf]
    %v6272 = vld [vmem:[%s6228 + $0xac] sm:$0xf]
    %v6273 = vld [vmem:[%s6228 + $0xb0] sm:$0xf]
    %v6274 = vld [vmem:[%s6228 + $0xb4] sm:$0xf]
    %v6275 = vld [vmem:[%s6228 + $0xb8] sm:$0xf]
    %v6276 = vld [vmem:[%s6228 + $0xbc] sm:$0xf]
    %v6277 = vld [vmem:[%s6228 + $0xc0] sm:$0xf]
    %v6278 = vld [vmem:[%s6228 + $0xc4] sm:$0xf]
    %v6279 = vld [vmem:[%s6228 + $0xc8] sm:$0xf]
    %v6280 = vld [vmem:[%s6228 + $0xcc] sm:$0xf]
    %v6281 = vld [vmem:[%s6228 + $0xd0] sm:$0xf]
    %v6282 = vld [vmem:[%s6228 + $0xd4] sm:$0xf]
    %v6283 = vld [vmem:[%s6228 + $0xd8] sm:$0xf]
    %v6284 = vld [vmem:[%s6228 + $0xdc] sm:$0xf]
    %v6285 = vld [vmem:[%s6228 + $0xe0] sm:$0xf]
    %v6286 = vld [vmem:[%s6228 + $0xe4] sm:$0xf]
    %v6287 = vld [vmem:[%s6228 + $0xe8] sm:$0xf]
    %v6288 = vld [vmem:[%s6228 + $0xec] sm:$0xf]
    %v6289 = vld [vmem:[%s6228 + $0xf0] sm:$0xf]
    %v6290 = vld [vmem:[%s6228 + $0xf4] sm:$0xf]
    %v6291 = vld [vmem:[%s6228 + $0xf8] sm:$0xf]
    %v6292 = vld [vmem:[%s6228 + $0xfc] sm:$0xf]
    %v6357 = vunpack.c.l.b16 %v6224
    %v6358 = vunpack.c.h.b16 %v6224
    %v6359 = vunpack.c.l.b16 %v6225
    %v6360 = vunpack.c.h.b16 %v6225
    %v6361 = vunpack.c.l.b16 %v6226
    %v6362 = vunpack.c.h.b16 %v6226
    %v6363 = vunpack.c.l.b16 %v6227
    %v6364 = vunpack.c.h.b16 %v6227
    %v6365 = vunpack.c.l.b16 %v6095
    %v6366 = vunpack.c.h.b16 %v6095
    %v6367 = vunpack.c.l.b16 %v6096
    %v6368 = vunpack.c.h.b16 %v6096
    %v6369 = vunpack.c.l.b16 %v6097
    %v6370 = vunpack.c.h.b16 %v6097
    %v6371 = vunpack.c.l.b16 %v6098
    %v6372 = vunpack.c.h.b16 %v6098
    %v6373 = vunpack.c.l.b16 %v6099
    %v6374 = vunpack.c.h.b16 %v6099
    %v6375 = vunpack.c.l.b16 %v6100
    %v6376 = vunpack.c.h.b16 %v6100
    %v6377 = vunpack.c.l.b16 %v6101
    %v6378 = vunpack.c.h.b16 %v6101
    %v6379 = vunpack.c.l.b16 %v6102
    %v6380 = vunpack.c.h.b16 %v6102
    %v6381 = vunpack.c.l.b16 %v6103
    %v6382 = vunpack.c.h.b16 %v6103
    %v6383 = vunpack.c.l.b16 %v6104
    %v6384 = vunpack.c.h.b16 %v6104
    %v6385 = vunpack.c.l.b16 %v6105
    %v6386 = vunpack.c.h.b16 %v6105
    %v6387 = vunpack.c.l.b16 %v6106
    %v6388 = vunpack.c.h.b16 %v6106
    %v6389 = vunpack.c.l.b16 %v6107
    %v6390 = vunpack.c.h.b16 %v6107
    %v6391 = vunpack.c.l.b16 %v6108
    %v6392 = vunpack.c.h.b16 %v6108
    %v6393 = vunpack.c.l.b16 %v6109
    %v6394 = vunpack.c.h.b16 %v6109
    %v6395 = vunpack.c.l.b16 %v6110
    %v6396 = vunpack.c.h.b16 %v6110
    %v6397 = vunpack.c.l.b16 %v6111
    %v6398 = vunpack.c.h.b16 %v6111
    %v6399 = vunpack.c.l.b16 %v6112
    %v6400 = vunpack.c.h.b16 %v6112
    %v6401 = vunpack.c.l.b16 %v6113
    %v6402 = vunpack.c.h.b16 %v6113
    %v6403 = vunpack.c.l.b16 %v6114
    %v6404 = vunpack.c.h.b16 %v6114
    %v6405 = vunpack.c.l.b16 %v6115
    %v6406 = vunpack.c.h.b16 %v6115
    %v6407 = vunpack.c.l.b16 %v6116
    %v6408 = vunpack.c.h.b16 %v6116
    %v6409 = vunpack.c.l.b16 %v6117
    %v6410 = vunpack.c.h.b16 %v6117
    %v6411 = vunpack.c.l.b16 %v6118
    %v6412 = vunpack.c.h.b16 %v6118
    %v6413 = vunpack.c.l.b16 %v6119
    %v6414 = vunpack.c.h.b16 %v6119
    %v6415 = vunpack.c.l.b16 %v6120
    %v6416 = vunpack.c.h.b16 %v6120
    %v6417 = vunpack.c.l.b16 %v6121
    %v6418 = vunpack.c.h.b16 %v6121
    %v6419 = vunpack.c.l.b16 %v6122
    %v6420 = vunpack.c.h.b16 %v6122
    %v6421 = vunpack.c.l.b16 %v6123
    %v6422 = vunpack.c.h.b16 %v6123
    %v6423 = vunpack.c.l.b16 %v6124
    %v6424 = vunpack.c.h.b16 %v6124
    %v6425 = vunpack.c.l.b16 %v6125
    %v6426 = vunpack.c.h.b16 %v6125
    %v6427 = vunpack.c.l.b16 %v6126
    %v6428 = vunpack.c.h.b16 %v6126
    %v6429 = vunpack.c.l.b16 %v6127
    %v6430 = vunpack.c.h.b16 %v6127
    %v6431 = vunpack.c.l.b16 %v6128
    %v6432 = vunpack.c.h.b16 %v6128
    %v6433 = vunpack.c.l.b16 %v6129
    %v6434 = vunpack.c.h.b16 %v6129
    %v6435 = vunpack.c.l.b16 %v6130
    %v6436 = vunpack.c.h.b16 %v6130
    %v6437 = vunpack.c.l.b16 %v6131
    %v6438 = vunpack.c.h.b16 %v6131
    %v6439 = vunpack.c.l.b16 %v6132
    %v6440 = vunpack.c.h.b16 %v6132
    %v6441 = vunpack.c.l.b16 %v6133
    %v6442 = vunpack.c.h.b16 %v6133
    %v6443 = vunpack.c.l.b16 %v6134
    %v6444 = vunpack.c.h.b16 %v6134
    %v6445 = vunpack.c.l.b16 %v6135
    %v6446 = vunpack.c.h.b16 %v6135
    %v6447 = vunpack.c.l.b16 %v6136
    %v6448 = vunpack.c.h.b16 %v6136
    %v6449 = vunpack.c.l.b16 %v6137
    %v6450 = vunpack.c.h.b16 %v6137
    %v6451 = vunpack.c.l.b16 %v6138
    %v6452 = vunpack.c.h.b16 %v6138
    %v6453 = vunpack.c.l.b16 %v6139
    %v6454 = vunpack.c.h.b16 %v6139
    %v6455 = vunpack.c.l.b16 %v6140
    %v6456 = vunpack.c.h.b16 %v6140
    %v6457 = vunpack.c.l.b16 %v6141
    %v6458 = vunpack.c.h.b16 %v6141
    %v6459 = vunpack.c.l.b16 %v6142
    %v6460 = vunpack.c.h.b16 %v6142
    %v6461 = vunpack.c.l.b16 %v6143
    %v6462 = vunpack.c.h.b16 %v6143
    %v6463 = vunpack.c.l.b16 %v6144
    %v6464 = vunpack.c.h.b16 %v6144
    %v6465 = vunpack.c.l.b16 %v6145
    %v6466 = vunpack.c.h.b16 %v6145
    %v6467 = vunpack.c.l.b16 %v6146
    %v6468 = vunpack.c.h.b16 %v6146
    %v6469 = vunpack.c.l.b16 %v6147
    %v6470 = vunpack.c.h.b16 %v6147
    %v6471 = vunpack.c.l.b16 %v6148
    %v6472 = vunpack.c.h.b16 %v6148
    %v6473 = vunpack.c.l.b16 %v6149
    %v6474 = vunpack.c.h.b16 %v6149
    %v6475 = vunpack.c.l.b16 %v6150
    %v6476 = vunpack.c.h.b16 %v6150
    %v6477 = vunpack.c.l.b16 %v6151
    %v6478 = vunpack.c.h.b16 %v6151
    %v6479 = vunpack.c.l.b16 %v6152
    %v6480 = vunpack.c.h.b16 %v6152
    %v6481 = vunpack.c.l.b16 %v6153
    %v6482 = vunpack.c.h.b16 %v6153
    %v6483 = vunpack.c.l.b16 %v6154
    %v6484 = vunpack.c.h.b16 %v6154
    %v6485 = vpack.c.b16 %v6361, %v6357
    %v6486 = vpack.c.b16 %v6362, %v6358
    %v6487 = vpack.c.b16 %v6363, %v6359
    %v6488 = vpack.c.b16 %v6364, %v6360
    %v6489 = vpack.c.b16 %v6369, %v6365
    %v6490 = vpack.c.b16 %v6370, %v6366
    %v6491 = vpack.c.b16 %v6371, %v6367
    %v6492 = vpack.c.b16 %v6372, %v6368
    %v6493 = vpack.c.b16 %v6377, %v6373
    %v6494 = vpack.c.b16 %v6378, %v6374
    %v6495 = vpack.c.b16 %v6379, %v6375
    %v6496 = vpack.c.b16 %v6380, %v6376
    %v6497 = vpack.c.b16 %v6385, %v6381
    %v6498 = vpack.c.b16 %v6386, %v6382
    %v6499 = vpack.c.b16 %v6387, %v6383
    %v6500 = vpack.c.b16 %v6388, %v6384
    %v6501 = vpack.c.b16 %v6393, %v6389
    %v6502 = vpack.c.b16 %v6394, %v6390
    %v6503 = vpack.c.b16 %v6395, %v6391
    %v6504 = vpack.c.b16 %v6396, %v6392
    %v6505 = vpack.c.b16 %v6401, %v6397
    %v6506 = vpack.c.b16 %v6402, %v6398
    %v6507 = vpack.c.b16 %v6403, %v6399
    %v6508 = vpack.c.b16 %v6404, %v6400
    %v6509 = vpack.c.b16 %v6409, %v6405
    %v6510 = vpack.c.b16 %v6410, %v6406
    %v6511 = vpack.c.b16 %v6411, %v6407
    %v6512 = vpack.c.b16 %v6412, %v6408
    %v6513 = vpack.c.b16 %v6417, %v6413
    %v6514 = vpack.c.b16 %v6418, %v6414
    %v6515 = vpack.c.b16 %v6419, %v6415
    %v6516 = vpack.c.b16 %v6420, %v6416
    %v6517 = vpack.c.b16 %v6425, %v6421
    %v6518 = vpack.c.b16 %v6426, %v6422
    %v6519 = vpack.c.b16 %v6427, %v6423
    %v6520 = vpack.c.b16 %v6428, %v6424
    %v6521 = vpack.c.b16 %v6433, %v6429
    %v6522 = vpack.c.b16 %v6434, %v6430
    %v6523 = vpack.c.b16 %v6435, %v6431
    %v6524 = vpack.c.b16 %v6436, %v6432
    %v6525 = vpack.c.b16 %v6441, %v6437
    %v6526 = vpack.c.b16 %v6442, %v6438
    %v6527 = vpack.c.b16 %v6443, %v6439
    %v6528 = vpack.c.b16 %v6444, %v6440
    %v6529 = vpack.c.b16 %v6449, %v6445
    %v6530 = vpack.c.b16 %v6450, %v6446
    %v6531 = vpack.c.b16 %v6451, %v6447
    %v6532 = vpack.c.b16 %v6452, %v6448
    %v6533 = vpack.c.b16 %v6457, %v6453
    %v6534 = vpack.c.b16 %v6458, %v6454
    %v6535 = vpack.c.b16 %v6459, %v6455
    %v6536 = vpack.c.b16 %v6460, %v6456
    %v6537 = vpack.c.b16 %v6465, %v6461
    %v6538 = vpack.c.b16 %v6466, %v6462
    %v6539 = vpack.c.b16 %v6467, %v6463
    %v6540 = vpack.c.b16 %v6468, %v6464
    %v6541 = vpack.c.b16 %v6473, %v6469
    %v6542 = vpack.c.b16 %v6474, %v6470
    %v6543 = vpack.c.b16 %v6475, %v6471
    %v6544 = vpack.c.b16 %v6476, %v6472
    %v6545 = vpack.c.b16 %v6481, %v6477
    %v6546 = vpack.c.b16 %v6482, %v6478
    %v6547 = vpack.c.b16 %v6483, %v6479
    %v6548 = vpack.c.b16 %v6484, %v6480
    %v6677 = vunpack.c.l.b16 %v6229
    %v6678 = vunpack.c.l.b16 %v6230
    %v6679 = vunpack.c.l.b16 %v6231
    %v6680 = vunpack.c.l.b16 %v6232
    %v6681 = vunpack.c.l.b16 %v6233
    %v6682 = vunpack.c.l.b16 %v6234
    %v6683 = vunpack.c.l.b16 %v6235
    %v6684 = vunpack.c.l.b16 %v6236
    %v6685 = vunpack.c.l.b16 %v6237
    %v6686 = vunpack.c.l.b16 %v6238
    %v6687 = vunpack.c.l.b16 %v6239
    %v6688 = vunpack.c.l.b16 %v6240
    %v6689 = vunpack.c.l.b16 %v6241
    %v6690 = vunpack.c.l.b16 %v6242
    %v6691 = vunpack.c.l.b16 %v6243
    %v6692 = vunpack.c.l.b16 %v6244
    %v6693 = vunpack.c.l.b16 %v6245
    %v6694 = vunpack.c.l.b16 %v6246
    %v6695 = vunpack.c.l.b16 %v6247
    %v6696 = vunpack.c.l.b16 %v6248
    %v6697 = vunpack.c.l.b16 %v6249
    %v6698 = vunpack.c.l.b16 %v6250
    %v6699 = vunpack.c.l.b16 %v6251
    %v6700 = vunpack.c.l.b16 %v6252
    %v6701 = vunpack.c.l.b16 %v6253
    %v6702 = vunpack.c.l.b16 %v6254
    %v6703 = vunpack.c.l.b16 %v6255
    %v6704 = vunpack.c.l.b16 %v6256
    %v6705 = vunpack.c.l.b16 %v6257
    %v6706 = vunpack.c.l.b16 %v6258
    %v6707 = vunpack.c.l.b16 %v6259
    %v6708 = vunpack.c.l.b16 %v6260
    %v6709 = vunpack.c.l.b16 %v6261
    %v6710 = vunpack.c.l.b16 %v6262
    %v6711 = vunpack.c.l.b16 %v6263
    %v6712 = vunpack.c.l.b16 %v6264
    %v6713 = vunpack.c.l.b16 %v6265
    %v6714 = vunpack.c.l.b16 %v6266
    %v6715 = vunpack.c.l.b16 %v6267
    %v6716 = vunpack.c.l.b16 %v6268
    %v6717 = vunpack.c.l.b16 %v6269
    %v6718 = vunpack.c.l.b16 %v6270
    %v6719 = vunpack.c.l.b16 %v6271
    %v6720 = vunpack.c.l.b16 %v6272
    %v6721 = vunpack.c.l.b16 %v6273
    %v6722 = vunpack.c.l.b16 %v6274
    %v6723 = vunpack.c.l.b16 %v6275
    %v6724 = vunpack.c.l.b16 %v6276
    %v6725 = vunpack.c.l.b16 %v6277
    %v6726 = vunpack.c.l.b16 %v6278
    %v6727 = vunpack.c.l.b16 %v6279
    %v6728 = vunpack.c.l.b16 %v6280
    %v6729 = vunpack.c.l.b16 %v6281
    %v6730 = vunpack.c.l.b16 %v6282
    %v6731 = vunpack.c.l.b16 %v6283
    %v6732 = vunpack.c.l.b16 %v6284
    %v6733 = vunpack.c.l.b16 %v6285
    %v6734 = vunpack.c.l.b16 %v6286
    %v6735 = vunpack.c.l.b16 %v6287
    %v6736 = vunpack.c.l.b16 %v6288
    %v6737 = vunpack.c.l.b16 %v6289
    %v6738 = vunpack.c.l.b16 %v6290
    %v6739 = vunpack.c.l.b16 %v6291
    %v6740 = vunpack.c.l.b16 %v6292
    %v6741 = vpack.c.b16 %v6678, %v6677
    %v6742 = vpack.c.b16 %v6680, %v6679
    %v6743 = vpack.c.b16 %v6682, %v6681
    %v6744 = vpack.c.b16 %v6684, %v6683
    %v6745 = vpack.c.b16 %v6686, %v6685
    %v6746 = vpack.c.b16 %v6688, %v6687
    %v6747 = vpack.c.b16 %v6690, %v6689
    %v6748 = vpack.c.b16 %v6692, %v6691
    %v6749 = vpack.c.b16 %v6694, %v6693
    %v6750 = vpack.c.b16 %v6696, %v6695
    %v6751 = vpack.c.b16 %v6698, %v6697
    %v6752 = vpack.c.b16 %v6700, %v6699
    %v6753 = vpack.c.b16 %v6702, %v6701
    %v6754 = vpack.c.b16 %v6704, %v6703
    %v6755 = vpack.c.b16 %v6706, %v6705
    %v6756 = vpack.c.b16 %v6708, %v6707
    %v6757 = vpack.c.b16 %v6710, %v6709
    %v6758 = vpack.c.b16 %v6712, %v6711
    %v6759 = vpack.c.b16 %v6714, %v6713
    %v6760 = vpack.c.b16 %v6716, %v6715
    %v6761 = vpack.c.b16 %v6718, %v6717
    %v6762 = vpack.c.b16 %v6720, %v6719
    %v6763 = vpack.c.b16 %v6722, %v6721
    %v6764 = vpack.c.b16 %v6724, %v6723
    %v6765 = vpack.c.b16 %v6726, %v6725
    %v6766 = vpack.c.b16 %v6728, %v6727
    %v6767 = vpack.c.b16 %v6730, %v6729
    %v6768 = vpack.c.b16 %v6732, %v6731
    %v6769 = vpack.c.b16 %v6734, %v6733
    %v6770 = vpack.c.b16 %v6736, %v6735
    %v6771 = vpack.c.b16 %v6738, %v6737
    %v6772 = vpack.c.b16 %v6740, %v6739
    %6805 = vmatprep.subr.bf16.mxu0 0
    %6806 = vmatpush1.bf16.msra.mxu0 %v6748
    %6807 = vmatprep.subr.bf16.mxu0 0
    %6808 = vmatpush1.bf16.msra.mxu0 %v6747
    %6809 = vmatprep.subr.bf16.mxu0 0
    %6810 = vmatpush1.bf16.msra.mxu0 %v6746
    %6811 = vmatprep.subr.bf16.mxu0 0
    %6812 = vmatpush1.bf16.msra.mxu0 %v6745
    %6813 = vmatprep.subr.bf16.mxu0 0
    %6814 = vmatpush1.bf16.msra.mxu0 %v6744
    %6815 = vmatprep.subr.bf16.mxu0 0
    %6816 = vmatpush1.bf16.msra.mxu0 %v6743
    %6817 = vmatprep.subr.bf16.mxu0 0
    %6818 = vmatpush1.bf16.msra.mxu0 %v6742
    %6819 = vmatprep.subr.bf16.mxu0 0
    %6820 = vmatpush1.bf16.msra.mxu0 %v6741
    %6821 = vmatprep.subr.bf16.mxu0 0
    %6822 = vmatpush2.bf16.msra.mxu0 %v6756
    %6823 = vmatprep.subr.bf16.mxu0 0
    %6824 = vmatpush2.bf16.msra.mxu0 %v6755
    %6825 = vmatprep.subr.bf16.mxu0 0
    %6826 = vmatpush2.bf16.msra.mxu0 %v6754
    %6827 = vmatprep.subr.bf16.mxu0 0
    %6828 = vmatpush2.bf16.msra.mxu0 %v6753
    %6829 = vmatprep.subr.bf16.mxu0 0
    %6830 = vmatpush2.bf16.msra.mxu0 %v6752
    %6831 = vmatprep.subr.bf16.mxu0 0
    %6832 = vmatpush2.bf16.msra.mxu0 %v6751
    %6833 = vmatprep.subr.bf16.mxu0 0
    %6834 = vmatpush2.bf16.msra.mxu0 %v6750
    %6835 = vmatprep.subr.bf16.mxu0 0
    %6836 = vmatpush2.bf16.msra.mxu0 %v6749
    %6837 = vmatprep.mubr.bf16.mxu0 %v6486
    %6838 = vmatmul.mubr.bf16.gmra.mxu0 %v6485
    %v6839 = vpop.f32.mrf.mxu0
    %v6840 = vadd.f32 0.0, %v6839
    %v6841 = vpop.f32.mrf.mxu0
    %v6842 = vpop.f32.mrf.mxu0
    %v6843 = vadd.f32 0.0, %v6842
    %v6844 = vpop.f32.mrf.mxu0
    %6845 = vmatprep.mubr.bf16.mxu0 %v6490
    %6846 = vmatmul.mubr.bf16.gmra.mxu0 %v6489
    %v6847 = vpop.f32.mrf.mxu0
    %v6848 = vadd.f32 0.0, %v6847
    %v6849 = vpop.f32.mrf.mxu0
    %v6850 = vpop.f32.mrf.mxu0
    %v6851 = vadd.f32 0.0, %v6850
    %v6852 = vpop.f32.mrf.mxu0
    %6853 = vmatprep.mubr.bf16.mxu0 %v6494
    %6854 = vmatmul.mubr.bf16.gmra.mxu0 %v6493
    %v6855 = vpop.f32.mrf.mxu0
    %v6856 = vadd.f32 0.0, %v6855
    %v6857 = vpop.f32.mrf.mxu0
    %v6858 = vpop.f32.mrf.mxu0
    %v6859 = vadd.f32 0.0, %v6858
    %v6860 = vpop.f32.mrf.mxu0
    %6861 = vmatprep.mubr.bf16.mxu0 %v6498
    %6862 = vmatmul.mubr.bf16.gmra.mxu0 %v6497
    %v6863 = vpop.f32.mrf.mxu0
    %v6864 = vadd.f32 0.0, %v6863
    %v6865 = vpop.f32.mrf.mxu0
    %v6866 = vpop.f32.mrf.mxu0
    %v6867 = vadd.f32 0.0, %v6866
    %v6868 = vpop.f32.mrf.mxu0
    %6869 = vmatprep.mubr.bf16.mxu0 %v6502
    %6870 = vmatmul.mubr.bf16.gmra.mxu0 %v6501
    %v6871 = vpop.f32.mrf.mxu0
    %v6872 = vadd.f32 0.0, %v6871
    %v6873 = vpop.f32.mrf.mxu0
    %v6874 = vpop.f32.mrf.mxu0
    %v6875 = vadd.f32 0.0, %v6874
    %v6876 = vpop.f32.mrf.mxu0
    %6877 = vmatprep.mubr.bf16.mxu0 %v6506
    %6878 = vmatmul.mubr.bf16.gmra.mxu0 %v6505
    %v6879 = vpop.f32.mrf.mxu0
    %v6880 = vadd.f32 0.0, %v6879
    %v6881 = vpop.f32.mrf.mxu0
    %v6882 = vpop.f32.mrf.mxu0
    %v6883 = vadd.f32 0.0, %v6882
    %v6884 = vpop.f32.mrf.mxu0
    %6885 = vmatprep.mubr.bf16.mxu0 %v6510
    %6886 = vmatmul.mubr.bf16.gmra.mxu0 %v6509
    %v6887 = vpop.f32.mrf.mxu0
    %v6888 = vadd.f32 0.0, %v6887
    %v6889 = vpop.f32.mrf.mxu0
    %v6890 = vpop.f32.mrf.mxu0
    %v6891 = vadd.f32 0.0, %v6890
    %v6892 = vpop.f32.mrf.mxu0
    %6893 = vmatprep.mubr.bf16.mxu0 %v6514
    %6894 = vmatmul.mubr.bf16.gmra.mxu0 %v6513
    %v6895 = vpop.f32.mrf.mxu0
    %v6896 = vadd.f32 0.0, %v6895
    %v6897 = vpop.f32.mrf.mxu0
    %v6898 = vpop.f32.mrf.mxu0
    %v6899 = vadd.f32 0.0, %v6898
    %v6900 = vpop.f32.mrf.mxu0
    %6901 = vmatprep.mubr.bf16.mxu0 %v6518
    %6902 = vmatmul.mubr.bf16.gmra.mxu0 %v6517
    %v6903 = vpop.f32.mrf.mxu0
    %v6904 = vadd.f32 0.0, %v6903
    %v6905 = vpop.f32.mrf.mxu0
    %v6906 = vpop.f32.mrf.mxu0
    %v6907 = vadd.f32 0.0, %v6906
    %v6908 = vpop.f32.mrf.mxu0
    %6909 = vmatprep.mubr.bf16.mxu0 %v6522
    %6910 = vmatmul.mubr.bf16.gmra.mxu0 %v6521
    %v6911 = vpop.f32.mrf.mxu0
    %v6912 = vadd.f32 0.0, %v6911
    %v6913 = vpop.f32.mrf.mxu0
    %v6914 = vpop.f32.mrf.mxu0
    %v6915 = vadd.f32 0.0, %v6914
    %v6916 = vpop.f32.mrf.mxu0
    %6917 = vmatprep.mubr.bf16.mxu0 %v6526
    %6918 = vmatmul.mubr.bf16.gmra.mxu0 %v6525
    %v6919 = vpop.f32.mrf.mxu0
    %v6920 = vadd.f32 0.0, %v6919
    %v6921 = vpop.f32.mrf.mxu0
    %v6922 = vpop.f32.mrf.mxu0
    %v6923 = vadd.f32 0.0, %v6922
    %v6924 = vpop.f32.mrf.mxu0
    %6925 = vmatprep.mubr.bf16.mxu0 %v6530
    %6926 = vmatmul.mubr.bf16.gmra.mxu0 %v6529
    %v6927 = vpop.f32.mrf.mxu0
    %v6928 = vadd.f32 0.0, %v6927
    %v6929 = vpop.f32.mrf.mxu0
    %v6930 = vpop.f32.mrf.mxu0
    %v6931 = vadd.f32 0.0, %v6930
    %v6932 = vpop.f32.mrf.mxu0
    %6933 = vmatprep.mubr.bf16.mxu0 %v6534
    %6934 = vmatmul.mubr.bf16.gmra.mxu0 %v6533
    %v6935 = vpop.f32.mrf.mxu0
    %v6936 = vadd.f32 0.0, %v6935
    %v6937 = vpop.f32.mrf.mxu0
    %v6938 = vpop.f32.mrf.mxu0
    %v6939 = vadd.f32 0.0, %v6938
    %v6940 = vpop.f32.mrf.mxu0
    %6941 = vmatprep.mubr.bf16.mxu0 %v6538
    %6942 = vmatmul.mubr.bf16.gmra.mxu0 %v6537
    %v6943 = vpop.f32.mrf.mxu0
    %v6944 = vadd.f32 0.0, %v6943
    %v6945 = vpop.f32.mrf.mxu0
    %v6946 = vpop.f32.mrf.mxu0
    %v6947 = vadd.f32 0.0, %v6946
    %v6948 = vpop.f32.mrf.mxu0
    %6949 = vmatprep.mubr.bf16.mxu0 %v6542
    %6950 = vmatmul.mubr.bf16.gmra.mxu0 %v6541
    %v6951 = vpop.f32.mrf.mxu0
    %v6952 = vadd.f32 0.0, %v6951
    %v6953 = vpop.f32.mrf.mxu0
    %v6954 = vpop.f32.mrf.mxu0
    %v6955 = vadd.f32 0.0, %v6954
    %v6956 = vpop.f32.mrf.mxu0
    %6957 = vmatprep.mubr.bf16.mxu0 %v6546
    %6958 = vmatmul.mubr.bf16.gmra.mxu0 %v6545
    %v6959 = vpop.f32.mrf.mxu0
    %v6960 = vadd.f32 0.0, %v6959
    %v6961 = vpop.f32.mrf.mxu0
    %v6962 = vpop.f32.mrf.mxu0
    %v6963 = vadd.f32 0.0, %v6962
    %v6964 = vpop.f32.mrf.mxu0
    %6965 = vdwg.mxu0
    %6966 = vmatprep.subr.bf16.mxu0 0
    %6967 = vmatpush1.bf16.msra.mxu0 %v6764
    %6968 = vmatprep.subr.bf16.mxu0 0
    %6969 = vmatpush1.bf16.msra.mxu0 %v6763
    %6970 = vmatprep.subr.bf16.mxu0 0
    %6971 = vmatpush1.bf16.msra.mxu0 %v6762
    %6972 = vmatprep.subr.bf16.mxu0 0
    %6973 = vmatpush1.bf16.msra.mxu0 %v6761
    %6974 = vmatprep.subr.bf16.mxu0 0
    %6975 = vmatpush1.bf16.msra.mxu0 %v6760
    %6976 = vmatprep.subr.bf16.mxu0 0
    %6977 = vmatpush1.bf16.msra.mxu0 %v6759
    %6978 = vmatprep.subr.bf16.mxu0 0
    %6979 = vmatpush1.bf16.msra.mxu0 %v6758
    %6980 = vmatprep.subr.bf16.mxu0 0
    %6981 = vmatpush1.bf16.msra.mxu0 %v6757
    %6982 = vmatprep.subr.bf16.mxu0 0
    %6983 = vmatpush2.bf16.msra.mxu0 %v6772
    %6984 = vmatprep.subr.bf16.mxu0 0
    %6985 = vmatpush2.bf16.msra.mxu0 %v6771
    %6986 = vmatprep.subr.bf16.mxu0 0
    %6987 = vmatpush2.bf16.msra.mxu0 %v6770
    %6988 = vmatprep.subr.bf16.mxu0 0
    %6989 = vmatpush2.bf16.msra.mxu0 %v6769
    %6990 = vmatprep.subr.bf16.mxu0 0
    %6991 = vmatpush2.bf16.msra.mxu0 %v6768
    %6992 = vmatprep.subr.bf16.mxu0 0
    %6993 = vmatpush2.bf16.msra.mxu0 %v6767
    %6994 = vmatprep.subr.bf16.mxu0 0
    %6995 = vmatpush2.bf16.msra.mxu0 %v6766
    %6996 = vmatprep.subr.bf16.mxu0 0
    %6997 = vmatpush2.bf16.msra.mxu0 %v6765
    %6998 = vmatprep.mubr.bf16.mxu0 %v6488
    %6999 = vmatmul.mubr.bf16.gmra.mxu0 %v6487
    %v7000 = vpop.f32.mrf.mxu0
    %v7001 = vadd.f32 %v6840, %v7000
    %v7002 = vpop.f32.mrf.mxu0
    %v7003 = vpop.f32.mrf.mxu0
    %v7004 = vadd.f32 %v6843, %v7003
    %v7005 = vpop.f32.mrf.mxu0
    %7006 = vmatprep.mubr.bf16.mxu0 %v6492
    %7007 = vmatmul.mubr.bf16.gmra.mxu0 %v6491
    %v7008 = vpop.f32.mrf.mxu0
    %v7009 = vadd.f32 %v6848, %v7008
    %v7010 = vpop.f32.mrf.mxu0
    %v7011 = vpop.f32.mrf.mxu0
    %v7012 = vadd.f32 %v6851, %v7011
    %v7013 = vpop.f32.mrf.mxu0
    %7014 = vmatprep.mubr.bf16.mxu0 %v6496
    %7015 = vmatmul.mubr.bf16.gmra.mxu0 %v6495
    %v7016 = vpop.f32.mrf.mxu0
    %v7017 = vadd.f32 %v6856, %v7016
    %v7018 = vpop.f32.mrf.mxu0
    %v7019 = vpop.f32.mrf.mxu0
    %v7020 = vadd.f32 %v6859, %v7019
    %v7021 = vpop.f32.mrf.mxu0
    %7022 = vmatprep.mubr.bf16.mxu0 %v6500
    %7023 = vmatmul.mubr.bf16.gmra.mxu0 %v6499
    %v7024 = vpop.f32.mrf.mxu0
    %v7025 = vadd.f32 %v6864, %v7024
    %v7026 = vpop.f32.mrf.mxu0
    %v7027 = vpop.f32.mrf.mxu0
    %v7028 = vadd.f32 %v6867, %v7027
    %v7029 = vpop.f32.mrf.mxu0
    %7030 = vmatprep.mubr.bf16.mxu0 %v6504
    %7031 = vmatmul.mubr.bf16.gmra.mxu0 %v6503
    %v7032 = vpop.f32.mrf.mxu0
    %v7033 = vadd.f32 %v6872, %v7032
    %v7034 = vpop.f32.mrf.mxu0
    %v7035 = vpop.f32.mrf.mxu0
    %v7036 = vadd.f32 %v6875, %v7035
    %v7037 = vpop.f32.mrf.mxu0
    %7038 = vmatprep.mubr.bf16.mxu0 %v6508
    %7039 = vmatmul.mubr.bf16.gmra.mxu0 %v6507
    %v7040 = vpop.f32.mrf.mxu0
    %v7041 = vadd.f32 %v6880, %v7040
    %v7042 = vpop.f32.mrf.mxu0
    %v7043 = vpop.f32.mrf.mxu0
    %v7044 = vadd.f32 %v6883, %v7043
    %v7045 = vpop.f32.mrf.mxu0
    %7046 = vmatprep.mubr.bf16.mxu0 %v6512
    %7047 = vmatmul.mubr.bf16.gmra.mxu0 %v6511
    %v7048 = vpop.f32.mrf.mxu0
    %v7049 = vadd.f32 %v6888, %v7048
    %v7050 = vpop.f32.mrf.mxu0
    %v7051 = vpop.f32.mrf.mxu0
    %v7052 = vadd.f32 %v6891, %v7051
    %v7053 = vpop.f32.mrf.mxu0
    %7054 = vmatprep.mubr.bf16.mxu0 %v6516
    %7055 = vmatmul.mubr.bf16.gmra.mxu0 %v6515
    %v7056 = vpop.f32.mrf.mxu0
    %v7057 = vadd.f32 %v6896, %v7056
    %v7058 = vpop.f32.mrf.mxu0
    %v7059 = vpop.f32.mrf.mxu0
    %v7060 = vadd.f32 %v6899, %v7059
    %v7061 = vpop.f32.mrf.mxu0
    %7062 = vmatprep.mubr.bf16.mxu0 %v6520
    %7063 = vmatmul.mubr.bf16.gmra.mxu0 %v6519
    %v7064 = vpop.f32.mrf.mxu0
    %v7065 = vadd.f32 %v6904, %v7064
    %v7066 = vpop.f32.mrf.mxu0
    %v7067 = vpop.f32.mrf.mxu0
    %v7068 = vadd.f32 %v6907, %v7067
    %v7069 = vpop.f32.mrf.mxu0
    %7070 = vmatprep.mubr.bf16.mxu0 %v6524
    %7071 = vmatmul.mubr.bf16.gmra.mxu0 %v6523
    %v7072 = vpop.f32.mrf.mxu0
    %v7073 = vadd.f32 %v6912, %v7072
    %v7074 = vpop.f32.mrf.mxu0
    %v7075 = vpop.f32.mrf.mxu0
    %v7076 = vadd.f32 %v6915, %v7075
    %v7077 = vpop.f32.mrf.mxu0
    %7078 = vmatprep.mubr.bf16.mxu0 %v6528
    %7079 = vmatmul.mubr.bf16.gmra.mxu0 %v6527
    %v7080 = vpop.f32.mrf.mxu0
    %v7081 = vadd.f32 %v6920, %v7080
    %v7082 = vpop.f32.mrf.mxu0
    %v7083 = vpop.f32.mrf.mxu0
    %v7084 = vadd.f32 %v6923, %v7083
    %v7085 = vpop.f32.mrf.mxu0
    %7086 = vmatprep.mubr.bf16.mxu0 %v6532
    %7087 = vmatmul.mubr.bf16.gmra.mxu0 %v6531
    %v7088 = vpop.f32.mrf.mxu0
    %v7089 = vadd.f32 %v6928, %v7088
    %v7090 = vpop.f32.mrf.mxu0
    %v7091 = vpop.f32.mrf.mxu0
    %v7092 = vadd.f32 %v6931, %v7091
    %v7093 = vpop.f32.mrf.mxu0
    %7094 = vmatprep.mubr.bf16.mxu0 %v6536
    %7095 = vmatmul.mubr.bf16.gmra.mxu0 %v6535
    %v7096 = vpop.f32.mrf.mxu0
    %v7097 = vadd.f32 %v6936, %v7096
    %v7098 = vpop.f32.mrf.mxu0
    %v7099 = vpop.f32.mrf.mxu0
    %v7100 = vadd.f32 %v6939, %v7099
    %v7101 = vpop.f32.mrf.mxu0
    %7102 = vmatprep.mubr.bf16.mxu0 %v6540
    %7103 = vmatmul.mubr.bf16.gmra.mxu0 %v6539
    %v7104 = vpop.f32.mrf.mxu0
    %v7105 = vadd.f32 %v6944, %v7104
    %v7106 = vpop.f32.mrf.mxu0
    %v7107 = vpop.f32.mrf.mxu0
    %v7108 = vadd.f32 %v6947, %v7107
    %v7109 = vpop.f32.mrf.mxu0
    %7110 = vmatprep.mubr.bf16.mxu0 %v6544
    %7111 = vmatmul.mubr.bf16.gmra.mxu0 %v6543
    %v7112 = vpop.f32.mrf.mxu0
    %v7113 = vadd.f32 %v6952, %v7112
    %v7114 = vpop.f32.mrf.mxu0
    %v7115 = vpop.f32.mrf.mxu0
    %v7116 = vadd.f32 %v6955, %v7115
    %v7117 = vpop.f32.mrf.mxu0
    %7118 = vmatprep.mubr.bf16.mxu0 %v6548
    %7119 = vmatmul.mubr.bf16.gmra.mxu0 %v6547
    %v7120 = vpop.f32.mrf.mxu0
    %v7121 = vadd.f32 %v6960, %v7120
    %v7122 = vpop.f32.mrf.mxu0
    %v7123 = vpop.f32.mrf.mxu0
    %v7124 = vadd.f32 %v6963, %v7123
    %v7125 = vpop.f32.mrf.mxu0
    %7126 = vdwg.mxu0
    %v7131 = vunpack.c.l.b16 %v6155
    %v7132 = vunpack.c.h.b16 %v6155
    %v7133 = vunpack.c.l.b16 %v6156
    %v7134 = vunpack.c.h.b16 %v6156
    %v7135 = vunpack.c.l.b16 %v6157
    %v7136 = vunpack.c.h.b16 %v6157
    %v7137 = vunpack.c.l.b16 %v6158
    %v7138 = vunpack.c.h.b16 %v6158
    %v7139 = vpack.c.b16 %v7135, %v7131
    %v7140 = vpack.c.b16 %v7136, %v7132
    %v7141 = vpack.c.b16 %v7137, %v7133
    %v7142 = vpack.c.b16 %v7138, %v7134
    %v7211 = vunpack.c.l.b16 %v6160
    %v7212 = vunpack.c.l.b16 %v6161
    %v7213 = vunpack.c.l.b16 %v6162
    %v7214 = vunpack.c.l.b16 %v6163
    %v7215 = vunpack.c.l.b16 %v6164
    %v7216 = vunpack.c.l.b16 %v6165
    %v7217 = vunpack.c.l.b16 %v6166
    %v7218 = vunpack.c.l.b16 %v6167
    %v7219 = vunpack.c.l.b16 %v6168
    %v7220 = vunpack.c.l.b16 %v6169
    %v7221 = vunpack.c.l.b16 %v6170
    %v7222 = vunpack.c.l.b16 %v6171
    %v7223 = vunpack.c.l.b16 %v6172
    %v7224 = vunpack.c.l.b16 %v6173
    %v7225 = vunpack.c.l.b16 %v6174
    %v7226 = vunpack.c.l.b16 %v6175
    %v7227 = vunpack.c.l.b16 %v6176
    %v7228 = vunpack.c.l.b16 %v6177
    %v7229 = vunpack.c.l.b16 %v6178
    %v7230 = vunpack.c.l.b16 %v6179
    %v7231 = vunpack.c.l.b16 %v6180
    %v7232 = vunpack.c.l.b16 %v6181
    %v7233 = vunpack.c.l.b16 %v6182
    %v7234 = vunpack.c.l.b16 %v6183
    %v7235 = vunpack.c.l.b16 %v6184
    %v7236 = vunpack.c.l.b16 %v6185
    %v7237 = vunpack.c.l.b16 %v6186
    %v7238 = vunpack.c.l.b16 %v6187
    %v7239 = vunpack.c.l.b16 %v6188
    %v7240 = vunpack.c.l.b16 %v6189
    %v7241 = vunpack.c.l.b16 %v6190
    %v7242 = vunpack.c.l.b16 %v6191
    %v7243 = vunpack.c.l.b16 %v6192
    %v7244 = vunpack.c.l.b16 %v6193
    %v7245 = vunpack.c.l.b16 %v6194
    %v7246 = vunpack.c.l.b16 %v6195
    %v7247 = vunpack.c.l.b16 %v6196
    %v7248 = vunpack.c.l.b16 %v6197
    %v7249 = vunpack.c.l.b16 %v6198
    %v7250 = vunpack.c.l.b16 %v6199
    %v7251 = vunpack.c.l.b16 %v6200
    %v7252 = vunpack.c.l.b16 %v6201
    %v7253 = vunpack.c.l.b16 %v6202
    %v7254 = vunpack.c.l.b16 %v6203
    %v7255 = vunpack.c.l.b16 %v6204
    %v7256 = vunpack.c.l.b16 %v6205
    %v7257 = vunpack.c.l.b16 %v6206
    %v7258 = vunpack.c.l.b16 %v6207
    %v7259 = vunpack.c.l.b16 %v6208
    %v7260 = vunpack.c.l.b16 %v6209
    %v7261 = vunpack.c.l.b16 %v6210
    %v7262 = vunpack.c.l.b16 %v6211
    %v7263 = vunpack.c.l.b16 %v6212
    %v7264 = vunpack.c.l.b16 %v6213
    %v7265 = vunpack.c.l.b16 %v6214
    %v7266 = vunpack.c.l.b16 %v6215
    %v7267 = vunpack.c.l.b16 %v6216
    %v7268 = vunpack.c.l.b16 %v6217
    %v7269 = vunpack.c.l.b16 %v6218
    %v7270 = vunpack.c.l.b16 %v6219
    %v7271 = vunpack.c.l.b16 %v6220
    %v7272 = vunpack.c.l.b16 %v6221
    %v7273 = vunpack.c.l.b16 %v6222
    %v7274 = vunpack.c.l.b16 %v6223
    %v7275 = vpack.c.b16 %v7212, %v7211
    %v7276 = vpack.c.b16 %v7214, %v7213
    %v7277 = vpack.c.b16 %v7216, %v7215
    %v7278 = vpack.c.b16 %v7218, %v7217
    %v7279 = vpack.c.b16 %v7220, %v7219
    %v7280 = vpack.c.b16 %v7222, %v7221
    %v7281 = vpack.c.b16 %v7224, %v7223
    %v7282 = vpack.c.b16 %v7226, %v7225
    %v7283 = vpack.c.b16 %v7228, %v7227
    %v7284 = vpack.c.b16 %v7230, %v7229
    %v7285 = vpack.c.b16 %v7232, %v7231
    %v7286 = vpack.c.b16 %v7234, %v7233
    %v7287 = vpack.c.b16 %v7236, %v7235
    %v7288 = vpack.c.b16 %v7238, %v7237
    %v7289 = vpack.c.b16 %v7240, %v7239
    %v7290 = vpack.c.b16 %v7242, %v7241
    %v7291 = vpack.c.b16 %v7244, %v7243
    %v7292 = vpack.c.b16 %v7246, %v7245
    %v7293 = vpack.c.b16 %v7248, %v7247
    %v7294 = vpack.c.b16 %v7250, %v7249
    %v7295 = vpack.c.b16 %v7252, %v7251
    %v7296 = vpack.c.b16 %v7254, %v7253
    %v7297 = vpack.c.b16 %v7256, %v7255
    %v7298 = vpack.c.b16 %v7258, %v7257
    %v7299 = vpack.c.b16 %v7260, %v7259
    %v7300 = vpack.c.b16 %v7262, %v7261
    %v7301 = vpack.c.b16 %v7264, %v7263
    %v7302 = vpack.c.b16 %v7266, %v7265
    %v7303 = vpack.c.b16 %v7268, %v7267
    %v7304 = vpack.c.b16 %v7270, %v7269
    %v7305 = vpack.c.b16 %v7272, %v7271
    %v7306 = vpack.c.b16 %v7274, %v7273
    %7339 = vmatprep.subr.bf16.mxu0 0
    %7340 = vmatpush1.bf16.msra.mxu0 %v7282
    %7341 = vmatprep.subr.bf16.mxu0 0
    %7342 = vmatpush1.bf16.msra.mxu0 %v7281
    %7343 = vmatprep.subr.bf16.mxu0 0
    %7344 = vmatpush1.bf16.msra.mxu0 %v7280
    %7345 = vmatprep.subr.bf16.mxu0 0
    %7346 = vmatpush1.bf16.msra.mxu0 %v7279
    %7347 = vmatprep.subr.bf16.mxu0 0
    %7348 = vmatpush1.bf16.msra.mxu0 %v7278
    %7349 = vmatprep.subr.bf16.mxu0 0
    %7350 = vmatpush1.bf16.msra.mxu0 %v7277
    %7351 = vmatprep.subr.bf16.mxu0 0
    %7352 = vmatpush1.bf16.msra.mxu0 %v7276
    %7353 = vmatprep.subr.bf16.mxu0 0
    %7354 = vmatpush1.bf16.msra.mxu0 %v7275
    %7355 = vmatprep.subr.bf16.mxu0 0
    %7356 = vmatpush2.bf16.msra.mxu0 %v7290
    %7357 = vmatprep.subr.bf16.mxu0 0
    %7358 = vmatpush2.bf16.msra.mxu0 %v7289
    %7359 = vmatprep.subr.bf16.mxu0 0
    %7360 = vmatpush2.bf16.msra.mxu0 %v7288
    %7361 = vmatprep.subr.bf16.mxu0 0
    %7362 = vmatpush2.bf16.msra.mxu0 %v7287
    %7363 = vmatprep.subr.bf16.mxu0 0
    %7364 = vmatpush2.bf16.msra.mxu0 %v7286
    %7365 = vmatprep.subr.bf16.mxu0 0
    %7366 = vmatpush2.bf16.msra.mxu0 %v7285
    %7367 = vmatprep.subr.bf16.mxu0 0
    %7368 = vmatpush2.bf16.msra.mxu0 %v7284
    %7369 = vmatprep.subr.bf16.mxu0 0
    %7370 = vmatpush2.bf16.msra.mxu0 %v7283
    %7371 = vmatprep.mubr.bf16.mxu0 %v6490
    %7372 = vmatmul.mubr.bf16.gmra.mxu0 %v6489
    %v7373 = vpop.f32.mrf.mxu0
    %v7374 = vadd.f32 %v7001, %v7373
    %v7375 = vpop.f32.mrf.mxu0
    %v7376 = vpop.f32.mrf.mxu0
    %v7377 = vadd.f32 %v7004, %v7376
    %v7378 = vpop.f32.mrf.mxu0
    %7379 = vmatprep.mubr.bf16.mxu0 %v6494
    %7380 = vmatmul.mubr.bf16.gmra.mxu0 %v6493
    %v7381 = vpop.f32.mrf.mxu0
    %v7382 = vadd.f32 %v7009, %v7381
    %v7383 = vpop.f32.mrf.mxu0
    %v7384 = vpop.f32.mrf.mxu0
    %v7385 = vadd.f32 %v7012, %v7384
    %v7386 = vpop.f32.mrf.mxu0
    %7387 = vmatprep.mubr.bf16.mxu0 %v6498
    %7388 = vmatmul.mubr.bf16.gmra.mxu0 %v6497
    %v7389 = vpop.f32.mrf.mxu0
    %v7390 = vadd.f32 %v7017, %v7389
    %v7391 = vpop.f32.mrf.mxu0
    %v7392 = vpop.f32.mrf.mxu0
    %v7393 = vadd.f32 %v7020, %v7392
    %v7394 = vpop.f32.mrf.mxu0
    %7395 = vmatprep.mubr.bf16.mxu0 %v6502
    %7396 = vmatmul.mubr.bf16.gmra.mxu0 %v6501
    %v7397 = vpop.f32.mrf.mxu0
    %v7398 = vadd.f32 %v7025, %v7397
    %v7399 = vpop.f32.mrf.mxu0
    %v7400 = vpop.f32.mrf.mxu0
    %v7401 = vadd.f32 %v7028, %v7400
    %v7402 = vpop.f32.mrf.mxu0
    %7403 = vmatprep.mubr.bf16.mxu0 %v6506
    %7404 = vmatmul.mubr.bf16.gmra.mxu0 %v6505
    %v7405 = vpop.f32.mrf.mxu0
    %v7406 = vadd.f32 %v7033, %v7405
    %v7407 = vpop.f32.mrf.mxu0
    %v7408 = vpop.f32.mrf.mxu0
    %v7409 = vadd.f32 %v7036, %v7408
    %v7410 = vpop.f32.mrf.mxu0
    %7411 = vmatprep.mubr.bf16.mxu0 %v6510
    %7412 = vmatmul.mubr.bf16.gmra.mxu0 %v6509
    %v7413 = vpop.f32.mrf.mxu0
    %v7414 = vadd.f32 %v7041, %v7413
    %v7415 = vpop.f32.mrf.mxu0
    %v7416 = vpop.f32.mrf.mxu0
    %v7417 = vadd.f32 %v7044, %v7416
    %v7418 = vpop.f32.mrf.mxu0
    %7419 = vmatprep.mubr.bf16.mxu0 %v6514
    %7420 = vmatmul.mubr.bf16.gmra.mxu0 %v6513
    %v7421 = vpop.f32.mrf.mxu0
    %v7422 = vadd.f32 %v7049, %v7421
    %v7423 = vpop.f32.mrf.mxu0
    %v7424 = vpop.f32.mrf.mxu0
    %v7425 = vadd.f32 %v7052, %v7424
    %v7426 = vpop.f32.mrf.mxu0
    %7427 = vmatprep.mubr.bf16.mxu0 %v6518
    %7428 = vmatmul.mubr.bf16.gmra.mxu0 %v6517
    %v7429 = vpop.f32.mrf.mxu0
    %v7430 = vadd.f32 %v7057, %v7429
    %v7431 = vpop.f32.mrf.mxu0
    %v7432 = vpop.f32.mrf.mxu0
    %v7433 = vadd.f32 %v7060, %v7432
    %v7434 = vpop.f32.mrf.mxu0
    %7435 = vmatprep.mubr.bf16.mxu0 %v6522
    %7436 = vmatmul.mubr.bf16.gmra.mxu0 %v6521
    %v7437 = vpop.f32.mrf.mxu0
    %v7438 = vadd.f32 %v7065, %v7437
    %v7439 = vpop.f32.mrf.mxu0
    %v7440 = vpop.f32.mrf.mxu0
    %v7441 = vadd.f32 %v7068, %v7440
    %v7442 = vpop.f32.mrf.mxu0
    %7443 = vmatprep.mubr.bf16.mxu0 %v6526
    %7444 = vmatmul.mubr.bf16.gmra.mxu0 %v6525
    %v7445 = vpop.f32.mrf.mxu0
    %v7446 = vadd.f32 %v7073, %v7445
    %v7447 = vpop.f32.mrf.mxu0
    %v7448 = vpop.f32.mrf.mxu0
    %v7449 = vadd.f32 %v7076, %v7448
    %v7450 = vpop.f32.mrf.mxu0
    %7451 = vmatprep.mubr.bf16.mxu0 %v6530
    %7452 = vmatmul.mubr.bf16.gmra.mxu0 %v6529
    %v7453 = vpop.f32.mrf.mxu0
    %v7454 = vadd.f32 %v7081, %v7453
    %v7455 = vpop.f32.mrf.mxu0
    %v7456 = vpop.f32.mrf.mxu0
    %v7457 = vadd.f32 %v7084, %v7456
    %v7458 = vpop.f32.mrf.mxu0
    %7459 = vmatprep.mubr.bf16.mxu0 %v6534
    %7460 = vmatmul.mubr.bf16.gmra.mxu0 %v6533
    %v7461 = vpop.f32.mrf.mxu0
    %v7462 = vadd.f32 %v7089, %v7461
    %v7463 = vpop.f32.mrf.mxu0
    %v7464 = vpop.f32.mrf.mxu0
    %v7465 = vadd.f32 %v7092, %v7464
    %v7466 = vpop.f32.mrf.mxu0
    %7467 = vmatprep.mubr.bf16.mxu0 %v6538
    %7468 = vmatmul.mubr.bf16.gmra.mxu0 %v6537
    %v7469 = vpop.f32.mrf.mxu0
    %v7470 = vadd.f32 %v7097, %v7469
    %v7471 = vpop.f32.mrf.mxu0
    %v7472 = vpop.f32.mrf.mxu0
    %v7473 = vadd.f32 %v7100, %v7472
    %v7474 = vpop.f32.mrf.mxu0
    %7475 = vmatprep.mubr.bf16.mxu0 %v6542
    %7476 = vmatmul.mubr.bf16.gmra.mxu0 %v6541
    %v7477 = vpop.f32.mrf.mxu0
    %v7478 = vadd.f32 %v7105, %v7477
    %v7479 = vpop.f32.mrf.mxu0
    %v7480 = vpop.f32.mrf.mxu0
    %v7481 = vadd.f32 %v7108, %v7480
    %v7482 = vpop.f32.mrf.mxu0
    %7483 = vmatprep.mubr.bf16.mxu0 %v6546
    %7484 = vmatmul.mubr.bf16.gmra.mxu0 %v6545
    %v7485 = vpop.f32.mrf.mxu0
    %v7486 = vadd.f32 %v7113, %v7485
    %v7487 = vpop.f32.mrf.mxu0
    %v7488 = vpop.f32.mrf.mxu0
    %v7489 = vadd.f32 %v7116, %v7488
    %v7490 = vpop.f32.mrf.mxu0
    %7491 = vmatprep.mubr.bf16.mxu0 %v7140
    %7492 = vmatmul.mubr.bf16.gmra.mxu0 %v7139
    %v7493 = vpop.f32.mrf.mxu0
    %v7494 = vadd.f32 %v7121, %v7493
    %v7495 = vpop.f32.mrf.mxu0
    %v7496 = vpop.f32.mrf.mxu0
    %v7497 = vadd.f32 %v7124, %v7496
    %v7498 = vpop.f32.mrf.mxu0
    %7499 = vdwg.mxu0
    %7500 = vmatprep.subr.bf16.mxu0 0
    %7501 = vmatpush1.bf16.msra.mxu0 %v7298
    %7502 = vmatprep.subr.bf16.mxu0 0
    %7503 = vmatpush1.bf16.msra.mxu0 %v7297
    %7504 = vmatprep.subr.bf16.mxu0 0
    %7505 = vmatpush1.bf16.msra.mxu0 %v7296
    %7506 = vmatprep.subr.bf16.mxu0 0
    %7507 = vmatpush1.bf16.msra.mxu0 %v7295
    %7508 = vmatprep.subr.bf16.mxu0 0
    %7509 = vmatpush1.bf16.msra.mxu0 %v7294
    %7510 = vmatprep.subr.bf16.mxu0 0
    %7511 = vmatpush1.bf16.msra.mxu0 %v7293
    %7512 = vmatprep.subr.bf16.mxu0 0
    %7513 = vmatpush1.bf16.msra.mxu0 %v7292
    %7514 = vmatprep.subr.bf16.mxu0 0
    %7515 = vmatpush1.bf16.msra.mxu0 %v7291
    %7516 = vmatprep.subr.bf16.mxu0 0
    %7517 = vmatpush2.bf16.msra.mxu0 %v7306
    %7518 = vmatprep.subr.bf16.mxu0 0
    %7519 = vmatpush2.bf16.msra.mxu0 %v7305
    %7520 = vmatprep.subr.bf16.mxu0 0
    %7521 = vmatpush2.bf16.msra.mxu0 %v7304
    %7522 = vmatprep.subr.bf16.mxu0 0
    %7523 = vmatpush2.bf16.msra.mxu0 %v7303
    %7524 = vmatprep.subr.bf16.mxu0 0
    %7525 = vmatpush2.bf16.msra.mxu0 %v7302
    %7526 = vmatprep.subr.bf16.mxu0 0
    %7527 = vmatpush2.bf16.msra.mxu0 %v7301
    %7528 = vmatprep.subr.bf16.mxu0 0
    %7529 = vmatpush2.bf16.msra.mxu0 %v7300
    %7530 = vmatprep.subr.bf16.mxu0 0
    %7531 = vmatpush2.bf16.msra.mxu0 %v7299
    %7532 = vmatprep.mubr.bf16.mxu0 %v6492
    %7533 = vmatmul.mubr.bf16.gmra.mxu0 %v6491
    %v7534 = vpop.f32.mrf.mxu0
    %v7535 = vadd.f32 %v7374, %v7534
    %v7536 = vpop.f32.mrf.mxu0
    %v7537 = vpop.f32.mrf.mxu0
    %v7538 = vadd.f32 %v7377, %v7537
    %v7539 = vpop.f32.mrf.mxu0
    %7540 = vmatprep.mubr.bf16.mxu0 %v6496
    %7541 = vmatmul.mubr.bf16.gmra.mxu0 %v6495
    %v7542 = vpop.f32.mrf.mxu0
    %v7543 = vadd.f32 %v7382, %v7542
    %v7544 = vpop.f32.mrf.mxu0
    %v7545 = vpop.f32.mrf.mxu0
    %v7546 = vadd.f32 %v7385, %v7545
    %v7547 = vpop.f32.mrf.mxu0
    %7548 = vmatprep.mubr.bf16.mxu0 %v6500
    %7549 = vmatmul.mubr.bf16.gmra.mxu0 %v6499
    %v7550 = vpop.f32.mrf.mxu0
    %v7551 = vadd.f32 %v7390, %v7550
    %v7552 = vpop.f32.mrf.mxu0
    %v7553 = vpop.f32.mrf.mxu0
    %v7554 = vadd.f32 %v7393, %v7553
    %v7555 = vpop.f32.mrf.mxu0
    %7556 = vmatprep.mubr.bf16.mxu0 %v6504
    %7557 = vmatmul.mubr.bf16.gmra.mxu0 %v6503
    %v7558 = vpop.f32.mrf.mxu0
    %v7559 = vadd.f32 %v7398, %v7558
    %v7560 = vpop.f32.mrf.mxu0
    %v7561 = vpop.f32.mrf.mxu0
    %v7562 = vadd.f32 %v7401, %v7561
    %v7563 = vpop.f32.mrf.mxu0
    %7564 = vmatprep.mubr.bf16.mxu0 %v6508
    %7565 = vmatmul.mubr.bf16.gmra.mxu0 %v6507
    %v7566 = vpop.f32.mrf.mxu0
    %v7567 = vadd.f32 %v7406, %v7566
    %v7568 = vpop.f32.mrf.mxu0
    %v7569 = vpop.f32.mrf.mxu0
    %v7570 = vadd.f32 %v7409, %v7569
    %v7571 = vpop.f32.mrf.mxu0
    %7572 = vmatprep.mubr.bf16.mxu0 %v6512
    %7573 = vmatmul.mubr.bf16.gmra.mxu0 %v6511
    %v7574 = vpop.f32.mrf.mxu0
    %v7575 = vadd.f32 %v7414, %v7574
    %v7576 = vpop.f32.mrf.mxu0
    %v7577 = vpop.f32.mrf.mxu0
    %v7578 = vadd.f32 %v7417, %v7577
    %v7579 = vpop.f32.mrf.mxu0
    %7580 = vmatprep.mubr.bf16.mxu0 %v6516
    %7581 = vmatmul.mubr.bf16.gmra.mxu0 %v6515
    %v7582 = vpop.f32.mrf.mxu0
    %v7583 = vadd.f32 %v7422, %v7582
    %v7584 = vpop.f32.mrf.mxu0
    %v7585 = vpop.f32.mrf.mxu0
    %v7586 = vadd.f32 %v7425, %v7585
    %v7587 = vpop.f32.mrf.mxu0
    %7588 = vmatprep.mubr.bf16.mxu0 %v6520
    %7589 = vmatmul.mubr.bf16.gmra.mxu0 %v6519
    %v7590 = vpop.f32.mrf.mxu0
    %v7591 = vadd.f32 %v7430, %v7590
    %v7592 = vpop.f32.mrf.mxu0
    %v7593 = vpop.f32.mrf.mxu0
    %v7594 = vadd.f32 %v7433, %v7593
    %v7595 = vpop.f32.mrf.mxu0
    %7596 = vmatprep.mubr.bf16.mxu0 %v6524
    %7597 = vmatmul.mubr.bf16.gmra.mxu0 %v6523
    %v7598 = vpop.f32.mrf.mxu0
    %v7599 = vadd.f32 %v7438, %v7598
    %v7600 = vpop.f32.mrf.mxu0
    %v7601 = vpop.f32.mrf.mxu0
    %v7602 = vadd.f32 %v7441, %v7601
    %v7603 = vpop.f32.mrf.mxu0
    %7604 = vmatprep.mubr.bf16.mxu0 %v6528
    %7605 = vmatmul.mubr.bf16.gmra.mxu0 %v6527
    %v7606 = vpop.f32.mrf.mxu0
    %v7607 = vadd.f32 %v7446, %v7606
    %v7608 = vpop.f32.mrf.mxu0
    %v7609 = vpop.f32.mrf.mxu0
    %v7610 = vadd.f32 %v7449, %v7609
    %v7611 = vpop.f32.mrf.mxu0
    %7612 = vmatprep.mubr.bf16.mxu0 %v6532
    %7613 = vmatmul.mubr.bf16.gmra.mxu0 %v6531
    %v7614 = vpop.f32.mrf.mxu0
    %v7615 = vadd.f32 %v7454, %v7614
    %v7616 = vpop.f32.mrf.mxu0
    %v7617 = vpop.f32.mrf.mxu0
    %v7618 = vadd.f32 %v7457, %v7617
    %v7619 = vpop.f32.mrf.mxu0
    %7620 = vmatprep.mubr.bf16.mxu0 %v6536
    %7621 = vmatmul.mubr.bf16.gmra.mxu0 %v6535
    %v7622 = vpop.f32.mrf.mxu0
    %v7623 = vadd.f32 %v7462, %v7622
    %v7624 = vpop.f32.mrf.mxu0
    %v7625 = vpop.f32.mrf.mxu0
    %v7626 = vadd.f32 %v7465, %v7625
    %v7627 = vpop.f32.mrf.mxu0
    %7628 = vmatprep.mubr.bf16.mxu0 %v6540
    %7629 = vmatmul.mubr.bf16.gmra.mxu0 %v6539
    %v7630 = vpop.f32.mrf.mxu0
    %v7631 = vadd.f32 %v7470, %v7630
    %v7632 = vpop.f32.mrf.mxu0
    %v7633 = vpop.f32.mrf.mxu0
    %v7634 = vadd.f32 %v7473, %v7633
    %v7635 = vpop.f32.mrf.mxu0
    %7636 = vmatprep.mubr.bf16.mxu0 %v6544
    %7637 = vmatmul.mubr.bf16.gmra.mxu0 %v6543
    %v7638 = vpop.f32.mrf.mxu0
    %v7639 = vadd.f32 %v7478, %v7638
    %v7640 = vpop.f32.mrf.mxu0
    %v7641 = vpop.f32.mrf.mxu0
    %v7642 = vadd.f32 %v7481, %v7641
    %v7643 = vpop.f32.mrf.mxu0
    %7644 = vmatprep.mubr.bf16.mxu0 %v6548
    %7645 = vmatmul.mubr.bf16.gmra.mxu0 %v6547
    %v7646 = vpop.f32.mrf.mxu0
    %v7647 = vadd.f32 %v7486, %v7646
    %v7648 = vpop.f32.mrf.mxu0
    %v7649 = vpop.f32.mrf.mxu0
    %v7650 = vadd.f32 %v7489, %v7649
    %v7651 = vpop.f32.mrf.mxu0
    %7652 = vmatprep.mubr.bf16.mxu0 %v7142
    %7653 = vmatmul.mubr.bf16.gmra.mxu0 %v7141
    %v7654 = vpop.f32.mrf.mxu0
    %v7655 = vadd.f32 %v7494, %v7654
    %v7656 = vpop.f32.mrf.mxu0
    %v7657 = vpop.f32.mrf.mxu0
    %v7658 = vadd.f32 %v7497, %v7657
    %v7659 = vpop.f32.mrf.mxu0
    %7660 = vdwg.mxu0
    %v7662 = vlaneseq
    %v7663 = vshrl.u32 %v7662, 7
    %v7664 = vsub.s32 0, %v7663
    %v7665 = vrot.slane %v6094, %v7664
    %v7667 = vadd.f32 %v7535, %v7665
    %v7668 = vadd.f32 %v7538, %v7665
    %v7669 = vadd.f32 %v7543, %v7665
    %v7670 = vadd.f32 %v7546, %v7665
    %v7671 = vadd.f32 %v7551, %v7665
    %v7672 = vadd.f32 %v7554, %v7665
    %v7673 = vadd.f32 %v7559, %v7665
    %v7674 = vadd.f32 %v7562, %v7665
    %v7675 = vadd.f32 %v7567, %v7665
    %v7676 = vadd.f32 %v7570, %v7665
    %v7677 = vadd.f32 %v7575, %v7665
    %v7678 = vadd.f32 %v7578, %v7665
    %v7679 = vadd.f32 %v7583, %v7665
    %v7680 = vadd.f32 %v7586, %v7665
    %v7681 = vadd.f32 %v7591, %v7665
    %v7682 = vadd.f32 %v7594, %v7665
    %v7683 = vadd.f32 %v7599, %v7665
    %v7684 = vadd.f32 %v7602, %v7665
    %v7685 = vadd.f32 %v7607, %v7665
    %v7686 = vadd.f32 %v7610, %v7665
    %v7687 = vadd.f32 %v7615, %v7665
    %v7688 = vadd.f32 %v7618, %v7665
    %v7689 = vadd.f32 %v7623, %v7665
    %v7690 = vadd.f32 %v7626, %v7665
    %v7691 = vadd.f32 %v7631, %v7665
    %v7692 = vadd.f32 %v7634, %v7665
    %v7693 = vadd.f32 %v7639, %v7665
    %v7694 = vadd.f32 %v7642, %v7665
    %v7695 = vadd.f32 %v7647, %v7665
    %v7696 = vadd.f32 %v7650, %v7665
    %v7697 = vadd.f32 %v7655, %v7665
    %v7698 = vadd.f32 %v7658, %v7665
    %vm7699 = vcmask 261120
    %7700 = vst.msk [vmem:[%s11] sm:$0xff] %vm7699, %v7667
    %7701 = vst.msk [vmem:[%s11 + $0x8] sm:$0xff] %vm7699, %v7668
    %7702 = vst.msk [vmem:[%s11 + $0x10] sm:$0xff] %vm7699, %v7669
    %7703 = vst.msk [vmem:[%s11 + $0x18] sm:$0xff] %vm7699, %v7670
    %7704 = vst.msk [vmem:[%s11 + $0x20] sm:$0xff] %vm7699, %v7671
    %7705 = vst.msk [vmem:[%s11 + $0x28] sm:$0xff] %vm7699, %v7672
    %7706 = vst.msk [vmem:[%s11 + $0x30] sm:$0xff] %vm7699, %v7673
    %7707 = vst.msk [vmem:[%s11 + $0x38] sm:$0xff] %vm7699, %v7674
    %7708 = vst.msk [vmem:[%s11 + $0x40] sm:$0xff] %vm7699, %v7675
    %7709 = vst.msk [vmem:[%s11 + $0x48] sm:$0xff] %vm7699, %v7676
    %7710 = vst.msk [vmem:[%s11 + $0x50] sm:$0xff] %vm7699, %v7677
    %7711 = vst.msk [vmem:[%s11 + $0x58] sm:$0xff] %vm7699, %v7678
    %7712 = vst.msk [vmem:[%s11 + $0x60] sm:$0xff] %vm7699, %v7679
    %7713 = vst.msk [vmem:[%s11 + $0x68] sm:$0xff] %vm7699, %v7680
    %7714 = vst.msk [vmem:[%s11 + $0x70] sm:$0xff] %vm7699, %v7681
    %7715 = vst.msk [vmem:[%s11 + $0x78] sm:$0xff] %vm7699, %v7682
    %7716 = vst.msk [vmem:[%s11 + $0x80] sm:$0xff] %vm7699, %v7683
    %7717 = vst.msk [vmem:[%s11 + $0x88] sm:$0xff] %vm7699, %v7684
    %7718 = vst.msk [vmem:[%s11 + $0x90] sm:$0xff] %vm7699, %v7685
    %7719 = vst.msk [vmem:[%s11 + $0x98] sm:$0xff] %vm7699, %v7686
    %7720 = vst.msk [vmem:[%s11 + $0xa0] sm:$0xff] %vm7699, %v7687
    %7721 = vst.msk [vmem:[%s11 + $0xa8] sm:$0xff] %vm7699, %v7688
    %7722 = vst.msk [vmem:[%s11 + $0xb0] sm:$0xff] %vm7699, %v7689
    %7723 = vst.msk [vmem:[%s11 + $0xb8] sm:$0xff] %vm7699, %v7690
    %7724 = vst.msk [vmem:[%s11 + $0xc0] sm:$0xff] %vm7699, %v7691
    %7725 = vst.msk [vmem:[%s11 + $0xc8] sm:$0xff] %vm7699, %v7692
    %7726 = vst.msk [vmem:[%s11 + $0xd0] sm:$0xff] %vm7699, %v7693
    %7727 = vst.msk [vmem:[%s11 + $0xd8] sm:$0xff] %vm7699, %v7694
    %7728 = vst.msk [vmem:[%s11 + $0xe0] sm:$0xff] %vm7699, %v7695
    %7729 = vst.msk [vmem:[%s11 + $0xe8] sm:$0xff] %vm7699, %v7696
    %7730 = vst.msk [vmem:[%s11 + $0xf0] sm:$0xff] %vm7699, %v7697
    %7731 = vst.msk [vmem:[%s11 + $0xf8] sm:$0xff] %vm7699, %v7698
    %v7732 = vld [vmem:[#allocation4 + $0x40] sm:$0xff]
    %v7733 = vld [vmem:[#allocation4 + $0x48] sm:$0xff]
    %v7734 = vld [vmem:[#allocation4 + $0x50] sm:$0xff]
    %v7735 = vld [vmem:[#allocation4 + $0x58] sm:$0xff]
    %v7736 = vld [vmem:[#allocation4 + $0x60] sm:$0xff]
    %v7737 = vld [vmem:[#allocation4 + $0x68] sm:$0xff]
    %v7738 = vld [vmem:[#allocation4 + $0x70] sm:$0xff]
    %v7739 = vld [vmem:[#allocation4 + $0x78] sm:$0xff]
    %v7740 = vld [vmem:[#allocation4 + $0x80] sm:$0xff]
    %v7741 = vld [vmem:[#allocation4 + $0x88] sm:$0xff]
    %v7742 = vld [vmem:[#allocation4 + $0x90] sm:$0xff]
    %v7743 = vld [vmem:[#allocation4 + $0x98] sm:$0xff]
    %v7744 = vld [vmem:[#allocation4 + $0xa0] sm:$0xff]
    %v7745 = vld [vmem:[#allocation4 + $0xa8] sm:$0xff]
    %v7746 = vld [vmem:[#allocation4 + $0xb0] sm:$0xff]
    %v7747 = vld [vmem:[#allocation4 + $0xb8] sm:$0xff]
    %v7748 = vld [vmem:[#allocation4 + $0xc0] sm:$0xff]
    %v7749 = vld [vmem:[#allocation4 + $0xc8] sm:$0xff]
    %v7750 = vld [vmem:[#allocation4 + $0xd0] sm:$0xff]
    %v7751 = vld [vmem:[#allocation4 + $0xd8] sm:$0xff]
    %v7752 = vld [vmem:[#allocation4 + $0xe0] sm:$0xff]
    %v7753 = vld [vmem:[#allocation4 + $0xe8] sm:$0xff]
    %v7754 = vld [vmem:[#allocation4 + $0xf0] sm:$0xff]
    %v7755 = vld [vmem:[#allocation4 + $0xf8] sm:$0xff]
    %v7756 = vld [vmem:[#allocation4 + $0x100] sm:$0xff]
    %v7757 = vld [vmem:[#allocation4 + $0x108] sm:$0xff]
    %v7758 = vld [vmem:[#allocation4 + $0x110] sm:$0xff]
    %v7759 = vld [vmem:[#allocation4 + $0x118] sm:$0xff]
    %v7760 = vld [vmem:[#allocation4 + $0x120] sm:$0xff]
    %v7761 = vld [vmem:[#allocation4 + $0x128] sm:$0xff]
    %v7762 = vld [vmem:[#allocation4 + $0x130] sm:$0xff]
    %v7763 = vld [vmem:[#allocation4 + $0x138] sm:$0xff]
    %v7764 = vld [vmem:[#allocation4 + $0x140] sm:$0xff]
    %v7765 = vld [vmem:[#allocation4 + $0x148] sm:$0xff]
    %v7766 = vld [vmem:[#allocation4 + $0x150] sm:$0xff]
    %v7767 = vld [vmem:[#allocation4 + $0x158] sm:$0xff]
    %v7768 = vld [vmem:[#allocation4 + $0x160] sm:$0xff]
    %v7769 = vld [vmem:[#allocation4 + $0x168] sm:$0xff]
    %v7770 = vld [vmem:[#allocation4 + $0x170] sm:$0xff]
    %v7771 = vld [vmem:[#allocation4 + $0x178] sm:$0xff]
    %v7772 = vld [vmem:[#allocation4 + $0x180] sm:$0xff]
    %v7773 = vld [vmem:[#allocation4 + $0x188] sm:$0xff]
    %v7774 = vld [vmem:[#allocation4 + $0x190] sm:$0xff]
    %v7775 = vld [vmem:[#allocation4 + $0x198] sm:$0xff]
    %v7776 = vld [vmem:[#allocation4 + $0x1a0] sm:$0xff]
    %v7777 = vld [vmem:[#allocation4 + $0x1a8] sm:$0xff]
    %v7778 = vld [vmem:[#allocation4 + $0x1b0] sm:$0xff]
    %v7779 = vld [vmem:[#allocation4 + $0x1b8] sm:$0xff]
    %v7780 = vld [vmem:[#allocation4 + $0x1c0] sm:$0xff]
    %v7781 = vld [vmem:[#allocation4 + $0x1c8] sm:$0xff]
    %v7782 = vld [vmem:[#allocation4 + $0x1d0] sm:$0xff]
    %v7783 = vld [vmem:[#allocation4 + $0x1d8] sm:$0xff]
    %v7784 = vld [vmem:[#allocation4 + $0x1e0] sm:$0xff]
    %v7785 = vld [vmem:[#allocation4 + $0x1e8] sm:$0xff]
    %v7786 = vld [vmem:[#allocation4 + $0x1f0] sm:$0xff]
    %v7787 = vld [vmem:[#allocation4 + $0x1f8] sm:$0xff]
    %v7788 = vld [vmem:[#allocation4 + $0x200] sm:$0xff]
    %v7789 = vld [vmem:[#allocation4 + $0x208] sm:$0xff]
    %v7790 = vld [vmem:[#allocation4 + $0x210] sm:$0xff]
    %v7791 = vld [vmem:[#allocation4 + $0x218] sm:$0xff]
    %v7792 = vld [vmem:[#allocation4 + $0x220] sm:$0xff]
    %v7793 = vld [vmem:[#allocation4 + $0x228] sm:$0xff]
    %v7794 = vld [vmem:[#allocation4 + $0x230] sm:$0xff]
    %v7795 = vld [vmem:[#allocation4 + $0x238] sm:$0xff]
    %v7796 = vld [vmem:[%s9] sm:$0xf]
    %v7797 = vld [vmem:[%s9 + $0x4] sm:$0xf]
    %v7798 = vld [vmem:[%s9 + $0x8] sm:$0xf]
    %v7799 = vld [vmem:[%s9 + $0xc] sm:$0xf]
    %v7800 = vld [vmem:[%s9 + $0x10] sm:$0xf]
    %v7801 = vld [vmem:[%s9 + $0x14] sm:$0xf]
    %v7802 = vld [vmem:[%s9 + $0x18] sm:$0xf]
    %v7803 = vld [vmem:[%s9 + $0x1c] sm:$0xf]
    %v7804 = vld [vmem:[%s9 + $0x20] sm:$0xf]
    %v7805 = vld [vmem:[%s9 + $0x24] sm:$0xf]
    %v7806 = vld [vmem:[%s9 + $0x28] sm:$0xf]
    %v7807 = vld [vmem:[%s9 + $0x2c] sm:$0xf]
    %v7808 = vld [vmem:[%s9 + $0x30] sm:$0xf]
    %v7809 = vld [vmem:[%s9 + $0x34] sm:$0xf]
    %v7810 = vld [vmem:[%s9 + $0x38] sm:$0xf]
    %v7811 = vld [vmem:[%s9 + $0x3c] sm:$0xf]
    %v7812 = vld [vmem:[%s9 + $0x40] sm:$0xf]
    %v7813 = vld [vmem:[%s9 + $0x44] sm:$0xf]
    %v7814 = vld [vmem:[%s9 + $0x48] sm:$0xf]
    %v7815 = vld [vmem:[%s9 + $0x4c] sm:$0xf]
    %v7816 = vld [vmem:[%s9 + $0x50] sm:$0xf]
    %v7817 = vld [vmem:[%s9 + $0x54] sm:$0xf]
    %v7818 = vld [vmem:[%s9 + $0x58] sm:$0xf]
    %v7819 = vld [vmem:[%s9 + $0x5c] sm:$0xf]
    %v7820 = vld [vmem:[%s9 + $0x60] sm:$0xf]
    %v7821 = vld [vmem:[%s9 + $0x64] sm:$0xf]
    %v7822 = vld [vmem:[%s9 + $0x68] sm:$0xf]
    %v7823 = vld [vmem:[%s9 + $0x6c] sm:$0xf]
    %v7824 = vld [vmem:[%s9 + $0x70] sm:$0xf]
    %v7825 = vld [vmem:[%s9 + $0x74] sm:$0xf]
    %v7826 = vld [vmem:[%s9 + $0x78] sm:$0xf]
    %v7827 = vld [vmem:[%s9 + $0x7c] sm:$0xf]
    %v7828 = vld [vmem:[%s9 + $0x80] sm:$0xf]
    %v7829 = vld [vmem:[%s9 + $0x84] sm:$0xf]
    %v7830 = vld [vmem:[%s9 + $0x88] sm:$0xf]
    %v7831 = vld [vmem:[%s9 + $0x8c] sm:$0xf]
    %v7832 = vld [vmem:[%s9 + $0x90] sm:$0xf]
    %v7833 = vld [vmem:[%s9 + $0x94] sm:$0xf]
    %v7834 = vld [vmem:[%s9 + $0x98] sm:$0xf]
    %v7835 = vld [vmem:[%s9 + $0x9c] sm:$0xf]
    %v7836 = vld [vmem:[%s9 + $0xa0] sm:$0xf]
    %v7837 = vld [vmem:[%s9 + $0xa4] sm:$0xf]
    %v7838 = vld [vmem:[%s9 + $0xa8] sm:$0xf]
    %v7839 = vld [vmem:[%s9 + $0xac] sm:$0xf]
    %v7840 = vld [vmem:[%s9 + $0xb0] sm:$0xf]
    %v7841 = vld [vmem:[%s9 + $0xb4] sm:$0xf]
    %v7842 = vld [vmem:[%s9 + $0xb8] sm:$0xf]
    %v7843 = vld [vmem:[%s9 + $0xbc] sm:$0xf]
    %v7844 = vld [vmem:[%s9 + $0xc0] sm:$0xf]
    %v7845 = vld [vmem:[%s9 + $0xc4] sm:$0xf]
    %v7846 = vld [vmem:[%s9 + $0xc8] sm:$0xf]
    %v7847 = vld [vmem:[%s9 + $0xcc] sm:$0xf]
    %v7848 = vld [vmem:[%s9 + $0xd0] sm:$0xf]
    %v7849 = vld [vmem:[%s9 + $0xd4] sm:$0xf]
    %v7850 = vld [vmem:[%s9 + $0xd8] sm:$0xf]
    %v7851 = vld [vmem:[%s9 + $0xdc] sm:$0xf]
    %v7852 = vld [vmem:[%s9 + $0xe0] sm:$0xf]
    %v7853 = vld [vmem:[%s9 + $0xe4] sm:$0xf]
    %v7854 = vld [vmem:[%s9 + $0xe8] sm:$0xf]
    %v7855 = vld [vmem:[%s9 + $0xec] sm:$0xf]
    %v7856 = vld [vmem:[%s9 + $0xf0] sm:$0xf]
    %v7857 = vld [vmem:[%s9 + $0xf4] sm:$0xf]
    %v7858 = vld [vmem:[%s9 + $0xf8] sm:$0xf]
    %v7859 = vld [vmem:[%s9 + $0xfc] sm:$0xf]
    %v7860 = vld [vmem:[#allocation4 + $0x20] sm:$0xff]
    %v7861 = vld [vmem:[#allocation4 + $0x28] sm:$0xff]
    %v7862 = vld [vmem:[#allocation4 + $0x30] sm:$0xff]
    %v7863 = vld [vmem:[#allocation4 + $0x38] sm:$0xff]
    %v7864 = vld [vmem:[#allocation4 + $0x40] sm:$0xff]
    %v7865 = vld [vmem:[#allocation4 + $0x48] sm:$0xff]
    %v7866 = vld [vmem:[#allocation4 + $0x50] sm:$0xff]
    %v7867 = vld [vmem:[#allocation4 + $0x58] sm:$0xff]
    %v7868 = vld [vmem:[#allocation4 + $0x60] sm:$0xff]
    %v7869 = vld [vmem:[#allocation4 + $0x68] sm:$0xff]
    %v7870 = vld [vmem:[#allocation4 + $0x70] sm:$0xff]
    %v7871 = vld [vmem:[#allocation4 + $0x78] sm:$0xff]
    %v7872 = vld [vmem:[#allocation4 + $0x80] sm:$0xff]
    %v7873 = vld [vmem:[#allocation4 + $0x88] sm:$0xff]
    %v7874 = vld [vmem:[#allocation4 + $0x90] sm:$0xff]
    %v7875 = vld [vmem:[#allocation4 + $0x98] sm:$0xff]
    %v7876 = vld [vmem:[#allocation4 + $0xa0] sm:$0xff]
    %v7877 = vld [vmem:[#allocation4 + $0xa8] sm:$0xff]
    %v7878 = vld [vmem:[#allocation4 + $0xb0] sm:$0xff]
    %v7879 = vld [vmem:[#allocation4 + $0xb8] sm:$0xff]
    %v7880 = vld [vmem:[#allocation4 + $0xc0] sm:$0xff]
    %v7881 = vld [vmem:[#allocation4 + $0xc8] sm:$0xff]
    %v7882 = vld [vmem:[#allocation4 + $0xd0] sm:$0xff]
    %v7883 = vld [vmem:[#allocation4 + $0xd8] sm:$0xff]
    %v7884 = vld [vmem:[#allocation4 + $0xe0] sm:$0xff]
    %v7885 = vld [vmem:[#allocation4 + $0xe8] sm:$0xff]
    %v7886 = vld [vmem:[#allocation4 + $0xf0] sm:$0xff]
    %v7887 = vld [vmem:[#allocation4 + $0xf8] sm:$0xff]
    %v7888 = vld [vmem:[#allocation4 + $0x100] sm:$0xff]
    %v7889 = vld [vmem:[#allocation4 + $0x108] sm:$0xff]
    %v7890 = vld [vmem:[#allocation4 + $0x110] sm:$0xff]
    %v7891 = vld [vmem:[#allocation4 + $0x118] sm:$0xff]
    %v7892 = vld [vmem:[#allocation4 + $0x120] sm:$0xff]
    %v7893 = vld [vmem:[#allocation4 + $0x128] sm:$0xff]
    %v7894 = vld [vmem:[#allocation4 + $0x130] sm:$0xff]
    %v7895 = vld [vmem:[#allocation4 + $0x138] sm:$0xff]
    %v7896 = vld [vmem:[#allocation4 + $0x140] sm:$0xff]
    %v7897 = vld [vmem:[#allocation4 + $0x148] sm:$0xff]
    %v7898 = vld [vmem:[#allocation4 + $0x150] sm:$0xff]
    %v7899 = vld [vmem:[#allocation4 + $0x158] sm:$0xff]
    %v7900 = vld [vmem:[#allocation4 + $0x160] sm:$0xff]
    %v7901 = vld [vmem:[#allocation4 + $0x168] sm:$0xff]
    %v7902 = vld [vmem:[#allocation4 + $0x170] sm:$0xff]
    %v7903 = vld [vmem:[#allocation4 + $0x178] sm:$0xff]
    %v7904 = vld [vmem:[#allocation4 + $0x180] sm:$0xff]
    %v7905 = vld [vmem:[#allocation4 + $0x188] sm:$0xff]
    %v7906 = vld [vmem:[#allocation4 + $0x190] sm:$0xff]
    %v7907 = vld [vmem:[#allocation4 + $0x198] sm:$0xff]
    %v7908 = vld [vmem:[#allocation4 + $0x1a0] sm:$0xff]
    %v7909 = vld [vmem:[#allocation4 + $0x1a8] sm:$0xff]
    %v7910 = vld [vmem:[#allocation4 + $0x1b0] sm:$0xff]
    %v7911 = vld [vmem:[#allocation4 + $0x1b8] sm:$0xff]
    %v7912 = vld [vmem:[#allocation4 + $0x1c0] sm:$0xff]
    %v7913 = vld [vmem:[#allocation4 + $0x1c8] sm:$0xff]
    %v7914 = vld [vmem:[#allocation4 + $0x1d0] sm:$0xff]
    %v7915 = vld [vmem:[#allocation4 + $0x1d8] sm:$0xff]
    %v7916 = vld [vmem:[#allocation4 + $0x1e0] sm:$0xff]
    %v7917 = vld [vmem:[#allocation4 + $0x1e8] sm:$0xff]
    %v7918 = vld [vmem:[#allocation4 + $0x1f0] sm:$0xff]
    %v7919 = vld [vmem:[#allocation4 + $0x1f8] sm:$0xff]
    %v7920 = vld [vmem:[#allocation4 + $0x200] sm:$0xff]
    %v7921 = vld [vmem:[#allocation4 + $0x208] sm:$0xff]
    %v7922 = vld [vmem:[#allocation4 + $0x210] sm:$0xff]
    %v7923 = vld [vmem:[#allocation4 + $0x218] sm:$0xff]
    %s7924 = scalar_lea.vmem %s9, 512
    %v7925 = vld [vmem:[%s7924] sm:$0xf]
    %v7926 = vld [vmem:[%s7924 + $0x4] sm:$0xf]
    %v7927 = vld [vmem:[%s7924 + $0x8] sm:$0xf]
    %v7928 = vld [vmem:[%s7924 + $0xc] sm:$0xf]
    %v7929 = vld [vmem:[%s7924 + $0x10] sm:$0xf]
    %v7930 = vld [vmem:[%s7924 + $0x14] sm:$0xf]
    %v7931 = vld [vmem:[%s7924 + $0x18] sm:$0xf]
    %v7932 = vld [vmem:[%s7924 + $0x1c] sm:$0xf]
    %v7933 = vld [vmem:[%s7924 + $0x20] sm:$0xf]
    %v7934 = vld [vmem:[%s7924 + $0x24] sm:$0xf]
    %v7935 = vld [vmem:[%s7924 + $0x28] sm:$0xf]
    %v7936 = vld [vmem:[%s7924 + $0x2c] sm:$0xf]
    %v7937 = vld [vmem:[%s7924 + $0x30] sm:$0xf]
    %v7938 = vld [vmem:[%s7924 + $0x34] sm:$0xf]
    %v7939 = vld [vmem:[%s7924 + $0x38] sm:$0xf]
    %v7940 = vld [vmem:[%s7924 + $0x3c] sm:$0xf]
    %v7941 = vld [vmem:[%s7924 + $0x40] sm:$0xf]
    %v7942 = vld [vmem:[%s7924 + $0x44] sm:$0xf]
    %v7943 = vld [vmem:[%s7924 + $0x48] sm:$0xf]
    %v7944 = vld [vmem:[%s7924 + $0x4c] sm:$0xf]
    %v7945 = vld [vmem:[%s7924 + $0x50] sm:$0xf]
    %v7946 = vld [vmem:[%s7924 + $0x54] sm:$0xf]
    %v7947 = vld [vmem:[%s7924 + $0x58] sm:$0xf]
    %v7948 = vld [vmem:[%s7924 + $0x5c] sm:$0xf]
    %v7949 = vld [vmem:[%s7924 + $0x60] sm:$0xf]
    %v7950 = vld [vmem:[%s7924 + $0x64] sm:$0xf]
    %v7951 = vld [vmem:[%s7924 + $0x68] sm:$0xf]
    %v7952 = vld [vmem:[%s7924 + $0x6c] sm:$0xf]
    %v7953 = vld [vmem:[%s7924 + $0x70] sm:$0xf]
    %v7954 = vld [vmem:[%s7924 + $0x74] sm:$0xf]
    %v7955 = vld [vmem:[%s7924 + $0x78] sm:$0xf]
    %v7956 = vld [vmem:[%s7924 + $0x7c] sm:$0xf]
    %v7957 = vld [vmem:[%s7924 + $0x80] sm:$0xf]
    %v7958 = vld [vmem:[%s7924 + $0x84] sm:$0xf]
    %v7959 = vld [vmem:[%s7924 + $0x88] sm:$0xf]
    %v7960 = vld [vmem:[%s7924 + $0x8c] sm:$0xf]
    %v7961 = vld [vmem:[%s7924 + $0x90] sm:$0xf]
    %v7962 = vld [vmem:[%s7924 + $0x94] sm:$0xf]
    %v7963 = vld [vmem:[%s7924 + $0x98] sm:$0xf]
    %v7964 = vld [vmem:[%s7924 + $0x9c] sm:$0xf]
    %v7965 = vld [vmem:[%s7924 + $0xa0] sm:$0xf]
    %v7966 = vld [vmem:[%s7924 + $0xa4] sm:$0xf]
    %v7967 = vld [vmem:[%s7924 + $0xa8] sm:$0xf]
    %v7968 = vld [vmem:[%s7924 + $0xac] sm:$0xf]
    %v7969 = vld [vmem:[%s7924 + $0xb0] sm:$0xf]
    %v7970 = vld [vmem:[%s7924 + $0xb4] sm:$0xf]
    %v7971 = vld [vmem:[%s7924 + $0xb8] sm:$0xf]
    %v7972 = vld [vmem:[%s7924 + $0xbc] sm:$0xf]
    %v7973 = vld [vmem:[%s7924 + $0xc0] sm:$0xf]
    %v7974 = vld [vmem:[%s7924 + $0xc4] sm:$0xf]
    %v7975 = vld [vmem:[%s7924 + $0xc8] sm:$0xf]
    %v7976 = vld [vmem:[%s7924 + $0xcc] sm:$0xf]
    %v7977 = vld [vmem:[%s7924 + $0xd0] sm:$0xf]
    %v7978 = vld [vmem:[%s7924 + $0xd4] sm:$0xf]
    %v7979 = vld [vmem:[%s7924 + $0xd8] sm:$0xf]
    %v7980 = vld [vmem:[%s7924 + $0xdc] sm:$0xf]
    %v7981 = vld [vmem:[%s7924 + $0xe0] sm:$0xf]
    %v7982 = vld [vmem:[%s7924 + $0xe4] sm:$0xf]
    %v7983 = vld [vmem:[%s7924 + $0xe8] sm:$0xf]
    %v7984 = vld [vmem:[%s7924 + $0xec] sm:$0xf]
    %v7985 = vld [vmem:[%s7924 + $0xf0] sm:$0xf]
    %v7986 = vld [vmem:[%s7924 + $0xf4] sm:$0xf]
    %v7987 = vld [vmem:[%s7924 + $0xf8] sm:$0xf]
    %v7988 = vld [vmem:[%s7924 + $0xfc] sm:$0xf]
    %v8053 = vunpack.c.l.b16 %v7860
    %v8054 = vunpack.c.h.b16 %v7860
    %v8055 = vunpack.c.l.b16 %v7861
    %v8056 = vunpack.c.h.b16 %v7861
    %v8057 = vunpack.c.l.b16 %v7862
    %v8058 = vunpack.c.h.b16 %v7862
    %v8059 = vunpack.c.l.b16 %v7863
    %v8060 = vunpack.c.h.b16 %v7863
    %v8061 = vunpack.c.l.b16 %v7864
    %v8062 = vunpack.c.h.b16 %v7864
    %v8063 = vunpack.c.l.b16 %v7865
    %v8064 = vunpack.c.h.b16 %v7865
    %v8065 = vunpack.c.l.b16 %v7866
    %v8066 = vunpack.c.h.b16 %v7866
    %v8067 = vunpack.c.l.b16 %v7867
    %v8068 = vunpack.c.h.b16 %v7867
    %v8069 = vunpack.c.l.b16 %v7868
    %v8070 = vunpack.c.h.b16 %v7868
    %v8071 = vunpack.c.l.b16 %v7869
    %v8072 = vunpack.c.h.b16 %v7869
    %v8073 = vunpack.c.l.b16 %v7870
    %v8074 = vunpack.c.h.b16 %v7870
    %v8075 = vunpack.c.l.b16 %v7871
    %v8076 = vunpack.c.h.b16 %v7871
    %v8077 = vunpack.c.l.b16 %v7872
    %v8078 = vunpack.c.h.b16 %v7872
    %v8079 = vunpack.c.l.b16 %v7873
    %v8080 = vunpack.c.h.b16 %v7873
    %v8081 = vunpack.c.l.b16 %v7874
    %v8082 = vunpack.c.h.b16 %v7874
    %v8083 = vunpack.c.l.b16 %v7875
    %v8084 = vunpack.c.h.b16 %v7875
    %v8085 = vunpack.c.l.b16 %v7876
    %v8086 = vunpack.c.h.b16 %v7876
    %v8087 = vunpack.c.l.b16 %v7877
    %v8088 = vunpack.c.h.b16 %v7877
    %v8089 = vunpack.c.l.b16 %v7878
    %v8090 = vunpack.c.h.b16 %v7878
    %v8091 = vunpack.c.l.b16 %v7879
    %v8092 = vunpack.c.h.b16 %v7879
    %v8093 = vunpack.c.l.b16 %v7880
    %v8094 = vunpack.c.h.b16 %v7880
    %v8095 = vunpack.c.l.b16 %v7881
    %v8096 = vunpack.c.h.b16 %v7881
    %v8097 = vunpack.c.l.b16 %v7882
    %v8098 = vunpack.c.h.b16 %v7882
    %v8099 = vunpack.c.l.b16 %v7883
    %v8100 = vunpack.c.h.b16 %v7883
    %v8101 = vunpack.c.l.b16 %v7884
    %v8102 = vunpack.c.h.b16 %v7884
    %v8103 = vunpack.c.l.b16 %v7885
    %v8104 = vunpack.c.h.b16 %v7885
    %v8105 = vunpack.c.l.b16 %v7886
    %v8106 = vunpack.c.h.b16 %v7886
    %v8107 = vunpack.c.l.b16 %v7887
    %v8108 = vunpack.c.h.b16 %v7887
    %v8109 = vunpack.c.l.b16 %v7888
    %v8110 = vunpack.c.h.b16 %v7888
    %v8111 = vunpack.c.l.b16 %v7889
    %v8112 = vunpack.c.h.b16 %v7889
    %v8113 = vunpack.c.l.b16 %v7890
    %v8114 = vunpack.c.h.b16 %v7890
    %v8115 = vunpack.c.l.b16 %v7891
    %v8116 = vunpack.c.h.b16 %v7891
    %v8117 = vunpack.c.l.b16 %v7892
    %v8118 = vunpack.c.h.b16 %v7892
    %v8119 = vunpack.c.l.b16 %v7893
    %v8120 = vunpack.c.h.b16 %v7893
    %v8121 = vunpack.c.l.b16 %v7894
    %v8122 = vunpack.c.h.b16 %v7894
    %v8123 = vunpack.c.l.b16 %v7895
    %v8124 = vunpack.c.h.b16 %v7895
    %v8125 = vunpack.c.l.b16 %v7896
    %v8126 = vunpack.c.h.b16 %v7896
    %v8127 = vunpack.c.l.b16 %v7897
    %v8128 = vunpack.c.h.b16 %v7897
    %v8129 = vunpack.c.l.b16 %v7898
    %v8130 = vunpack.c.h.b16 %v7898
    %v8131 = vunpack.c.l.b16 %v7899
    %v8132 = vunpack.c.h.b16 %v7899
    %v8133 = vunpack.c.l.b16 %v7900
    %v8134 = vunpack.c.h.b16 %v7900
    %v8135 = vunpack.c.l.b16 %v7901
    %v8136 = vunpack.c.h.b16 %v7901
    %v8137 = vunpack.c.l.b16 %v7902
    %v8138 = vunpack.c.h.b16 %v7902
    %v8139 = vunpack.c.l.b16 %v7903
    %v8140 = vunpack.c.h.b16 %v7903
    %v8141 = vunpack.c.l.b16 %v7904
    %v8142 = vunpack.c.h.b16 %v7904
    %v8143 = vunpack.c.l.b16 %v7905
    %v8144 = vunpack.c.h.b16 %v7905
    %v8145 = vunpack.c.l.b16 %v7906
    %v8146 = vunpack.c.h.b16 %v7906
    %v8147 = vunpack.c.l.b16 %v7907
    %v8148 = vunpack.c.h.b16 %v7907
    %v8149 = vunpack.c.l.b16 %v7908
    %v8150 = vunpack.c.h.b16 %v7908
    %v8151 = vunpack.c.l.b16 %v7909
    %v8152 = vunpack.c.h.b16 %v7909
    %v8153 = vunpack.c.l.b16 %v7910
    %v8154 = vunpack.c.h.b16 %v7910
    %v8155 = vunpack.c.l.b16 %v7911
    %v8156 = vunpack.c.h.b16 %v7911
    %v8157 = vunpack.c.l.b16 %v7912
    %v8158 = vunpack.c.h.b16 %v7912
    %v8159 = vunpack.c.l.b16 %v7913
    %v8160 = vunpack.c.h.b16 %v7913
    %v8161 = vunpack.c.l.b16 %v7914
    %v8162 = vunpack.c.h.b16 %v7914
    %v8163 = vunpack.c.l.b16 %v7915
    %v8164 = vunpack.c.h.b16 %v7915
    %v8165 = vunpack.c.l.b16 %v7916
    %v8166 = vunpack.c.h.b16 %v7916
    %v8167 = vunpack.c.l.b16 %v7917
    %v8168 = vunpack.c.h.b16 %v7917
    %v8169 = vunpack.c.l.b16 %v7918
    %v8170 = vunpack.c.h.b16 %v7918
    %v8171 = vunpack.c.l.b16 %v7919
    %v8172 = vunpack.c.h.b16 %v7919
    %v8173 = vunpack.c.l.b16 %v7920
    %v8174 = vunpack.c.h.b16 %v7920
    %v8175 = vunpack.c.l.b16 %v7921
    %v8176 = vunpack.c.h.b16 %v7921
    %v8177 = vunpack.c.l.b16 %v7922
    %v8178 = vunpack.c.h.b16 %v7922
    %v8179 = vunpack.c.l.b16 %v7923
    %v8180 = vunpack.c.h.b16 %v7923
    %v8181 = vpack.c.b16 %v8057, %v8053
    %v8182 = vpack.c.b16 %v8058, %v8054
    %v8183 = vpack.c.b16 %v8059, %v8055
    %v8184 = vpack.c.b16 %v8060, %v8056
    %v8185 = vpack.c.b16 %v8065, %v8061
    %v8186 = vpack.c.b16 %v8066, %v8062
    %v8187 = vpack.c.b16 %v8067, %v8063
    %v8188 = vpack.c.b16 %v8068, %v8064
    %v8189 = vpack.c.b16 %v8073, %v8069
    %v8190 = vpack.c.b16 %v8074, %v8070
    %v8191 = vpack.c.b16 %v8075, %v8071
    %v8192 = vpack.c.b16 %v8076, %v8072
    %v8193 = vpack.c.b16 %v8081, %v8077
    %v8194 = vpack.c.b16 %v8082, %v8078
    %v8195 = vpack.c.b16 %v8083, %v8079
    %v8196 = vpack.c.b16 %v8084, %v8080
    %v8197 = vpack.c.b16 %v8089, %v8085
    %v8198 = vpack.c.b16 %v8090, %v8086
    %v8199 = vpack.c.b16 %v8091, %v8087
    %v8200 = vpack.c.b16 %v8092, %v8088
    %v8201 = vpack.c.b16 %v8097, %v8093
    %v8202 = vpack.c.b16 %v8098, %v8094
    %v8203 = vpack.c.b16 %v8099, %v8095
    %v8204 = vpack.c.b16 %v8100, %v8096
    %v8205 = vpack.c.b16 %v8105, %v8101
    %v8206 = vpack.c.b16 %v8106, %v8102
    %v8207 = vpack.c.b16 %v8107, %v8103
    %v8208 = vpack.c.b16 %v8108, %v8104
    %v8209 = vpack.c.b16 %v8113, %v8109
    %v8210 = vpack.c.b16 %v8114, %v8110
    %v8211 = vpack.c.b16 %v8115, %v8111
    %v8212 = vpack.c.b16 %v8116, %v8112
    %v8213 = vpack.c.b16 %v8121, %v8117
    %v8214 = vpack.c.b16 %v8122, %v8118
    %v8215 = vpack.c.b16 %v8123, %v8119
    %v8216 = vpack.c.b16 %v8124, %v8120
    %v8217 = vpack.c.b16 %v8129, %v8125
    %v8218 = vpack.c.b16 %v8130, %v8126
    %v8219 = vpack.c.b16 %v8131, %v8127
    %v8220 = vpack.c.b16 %v8132, %v8128
    %v8221 = vpack.c.b16 %v8137, %v8133
    %v8222 = vpack.c.b16 %v8138, %v8134
    %v8223 = vpack.c.b16 %v8139, %v8135
    %v8224 = vpack.c.b16 %v8140, %v8136
    %v8225 = vpack.c.b16 %v8145, %v8141
    %v8226 = vpack.c.b16 %v8146, %v8142
    %v8227 = vpack.c.b16 %v8147, %v8143
    %v8228 = vpack.c.b16 %v8148, %v8144
    %v8229 = vpack.c.b16 %v8153, %v8149
    %v8230 = vpack.c.b16 %v8154, %v8150
    %v8231 = vpack.c.b16 %v8155, %v8151
    %v8232 = vpack.c.b16 %v8156, %v8152
    %v8233 = vpack.c.b16 %v8161, %v8157
    %v8234 = vpack.c.b16 %v8162, %v8158
    %v8235 = vpack.c.b16 %v8163, %v8159
    %v8236 = vpack.c.b16 %v8164, %v8160
    %v8237 = vpack.c.b16 %v8169, %v8165
    %v8238 = vpack.c.b16 %v8170, %v8166
    %v8239 = vpack.c.b16 %v8171, %v8167
    %v8240 = vpack.c.b16 %v8172, %v8168
    %v8241 = vpack.c.b16 %v8177, %v8173
    %v8242 = vpack.c.b16 %v8178, %v8174
    %v8243 = vpack.c.b16 %v8179, %v8175
    %v8244 = vpack.c.b16 %v8180, %v8176
    %v8373 = vunpack.c.l.b16 %v7925
    %v8374 = vunpack.c.l.b16 %v7926
    %v8375 = vunpack.c.l.b16 %v7927
    %v8376 = vunpack.c.l.b16 %v7928
    %v8377 = vunpack.c.l.b16 %v7929
    %v8378 = vunpack.c.l.b16 %v7930
    %v8379 = vunpack.c.l.b16 %v7931
    %v8380 = vunpack.c.l.b16 %v7932
    %v8381 = vunpack.c.l.b16 %v7933
    %v8382 = vunpack.c.l.b16 %v7934
    %v8383 = vunpack.c.l.b16 %v7935
    %v8384 = vunpack.c.l.b16 %v7936
    %v8385 = vunpack.c.l.b16 %v7937
    %v8386 = vunpack.c.l.b16 %v7938
    %v8387 = vunpack.c.l.b16 %v7939
    %v8388 = vunpack.c.l.b16 %v7940
    %v8389 = vunpack.c.l.b16 %v7941
    %v8390 = vunpack.c.l.b16 %v7942
    %v8391 = vunpack.c.l.b16 %v7943
    %v8392 = vunpack.c.l.b16 %v7944
    %v8393 = vunpack.c.l.b16 %v7945
    %v8394 = vunpack.c.l.b16 %v7946
    %v8395 = vunpack.c.l.b16 %v7947
    %v8396 = vunpack.c.l.b16 %v7948
    %v8397 = vunpack.c.l.b16 %v7949
    %v8398 = vunpack.c.l.b16 %v7950
    %v8399 = vunpack.c.l.b16 %v7951
    %v8400 = vunpack.c.l.b16 %v7952
    %v8401 = vunpack.c.l.b16 %v7953
    %v8402 = vunpack.c.l.b16 %v7954
    %v8403 = vunpack.c.l.b16 %v7955
    %v8404 = vunpack.c.l.b16 %v7956
    %v8405 = vunpack.c.l.b16 %v7957
    %v8406 = vunpack.c.l.b16 %v7958
    %v8407 = vunpack.c.l.b16 %v7959
    %v8408 = vunpack.c.l.b16 %v7960
    %v8409 = vunpack.c.l.b16 %v7961
    %v8410 = vunpack.c.l.b16 %v7962
    %v8411 = vunpack.c.l.b16 %v7963
    %v8412 = vunpack.c.l.b16 %v7964
    %v8413 = vunpack.c.l.b16 %v7965
    %v8414 = vunpack.c.l.b16 %v7966
    %v8415 = vunpack.c.l.b16 %v7967
    %v8416 = vunpack.c.l.b16 %v7968
    %v8417 = vunpack.c.l.b16 %v7969
    %v8418 = vunpack.c.l.b16 %v7970
    %v8419 = vunpack.c.l.b16 %v7971
    %v8420 = vunpack.c.l.b16 %v7972
    %v8421 = vunpack.c.l.b16 %v7973
    %v8422 = vunpack.c.l.b16 %v7974
    %v8423 = vunpack.c.l.b16 %v7975
    %v8424 = vunpack.c.l.b16 %v7976
    %v8425 = vunpack.c.l.b16 %v7977
    %v8426 = vunpack.c.l.b16 %v7978
    %v8427 = vunpack.c.l.b16 %v7979
    %v8428 = vunpack.c.l.b16 %v7980
    %v8429 = vunpack.c.l.b16 %v7981
    %v8430 = vunpack.c.l.b16 %v7982
    %v8431 = vunpack.c.l.b16 %v7983
    %v8432 = vunpack.c.l.b16 %v7984
    %v8433 = vunpack.c.l.b16 %v7985
    %v8434 = vunpack.c.l.b16 %v7986
    %v8435 = vunpack.c.l.b16 %v7987
    %v8436 = vunpack.c.l.b16 %v7988
    %v8437 = vpack.c.b16 %v8374, %v8373
    %v8438 = vpack.c.b16 %v8376, %v8375
    %v8439 = vpack.c.b16 %v8378, %v8377
    %v8440 = vpack.c.b16 %v8380, %v8379
    %v8441 = vpack.c.b16 %v8382, %v8381
    %v8442 = vpack.c.b16 %v8384, %v8383
    %v8443 = vpack.c.b16 %v8386, %v8385
    %v8444 = vpack.c.b16 %v8388, %v8387
    %v8445 = vpack.c.b16 %v8390, %v8389
    %v8446 = vpack.c.b16 %v8392, %v8391
    %v8447 = vpack.c.b16 %v8394, %v8393
    %v8448 = vpack.c.b16 %v8396, %v8395
    %v8449 = vpack.c.b16 %v8398, %v8397
    %v8450 = vpack.c.b16 %v8400, %v8399
    %v8451 = vpack.c.b16 %v8402, %v8401
    %v8452 = vpack.c.b16 %v8404, %v8403
    %v8453 = vpack.c.b16 %v8406, %v8405
    %v8454 = vpack.c.b16 %v8408, %v8407
    %v8455 = vpack.c.b16 %v8410, %v8409
    %v8456 = vpack.c.b16 %v8412, %v8411
    %v8457 = vpack.c.b16 %v8414, %v8413
    %v8458 = vpack.c.b16 %v8416, %v8415
    %v8459 = vpack.c.b16 %v8418, %v8417
    %v8460 = vpack.c.b16 %v8420, %v8419
    %v8461 = vpack.c.b16 %v8422, %v8421
    %v8462 = vpack.c.b16 %v8424, %v8423
    %v8463 = vpack.c.b16 %v8426, %v8425
    %v8464 = vpack.c.b16 %v8428, %v8427
    %v8465 = vpack.c.b16 %v8430, %v8429
    %v8466 = vpack.c.b16 %v8432, %v8431
    %v8467 = vpack.c.b16 %v8434, %v8433
    %v8468 = vpack.c.b16 %v8436, %v8435
    %8501 = vmatprep.subr.bf16.mxu0 0
    %8502 = vmatpush1.bf16.msra.mxu0 %v8444
    %8503 = vmatprep.subr.bf16.mxu0 0
    %8504 = vmatpush1.bf16.msra.mxu0 %v8443
    %8505 = vmatprep.subr.bf16.mxu0 0
    %8506 = vmatpush1.bf16.msra.mxu0 %v8442
    %8507 = vmatprep.subr.bf16.mxu0 0
    %8508 = vmatpush1.bf16.msra.mxu0 %v8441
    %8509 = vmatprep.subr.bf16.mxu0 0
    %8510 = vmatpush1.bf16.msra.mxu0 %v8440
    %8511 = vmatprep.subr.bf16.mxu0 0
    %8512 = vmatpush1.bf16.msra.mxu0 %v8439
    %8513 = vmatprep.subr.bf16.mxu0 0
    %8514 = vmatpush1.bf16.msra.mxu0 %v8438
    %8515 = vmatprep.subr.bf16.mxu0 0
    %8516 = vmatpush1.bf16.msra.mxu0 %v8437
    %8517 = vmatprep.subr.bf16.mxu0 0
    %8518 = vmatpush2.bf16.msra.mxu0 %v8452
    %8519 = vmatprep.subr.bf16.mxu0 0
    %8520 = vmatpush2.bf16.msra.mxu0 %v8451
    %8521 = vmatprep.subr.bf16.mxu0 0
    %8522 = vmatpush2.bf16.msra.mxu0 %v8450
    %8523 = vmatprep.subr.bf16.mxu0 0
    %8524 = vmatpush2.bf16.msra.mxu0 %v8449
    %8525 = vmatprep.subr.bf16.mxu0 0
    %8526 = vmatpush2.bf16.msra.mxu0 %v8448
    %8527 = vmatprep.subr.bf16.mxu0 0
    %8528 = vmatpush2.bf16.msra.mxu0 %v8447
    %8529 = vmatprep.subr.bf16.mxu0 0
    %8530 = vmatpush2.bf16.msra.mxu0 %v8446
    %8531 = vmatprep.subr.bf16.mxu0 0
    %8532 = vmatpush2.bf16.msra.mxu0 %v8445
    %8533 = vmatprep.mubr.bf16.mxu0 %v8182
    %8534 = vmatmul.mubr.bf16.gmra.mxu0 %v8181
    %v8535 = vpop.f32.mrf.mxu0
    %v8536 = vadd.f32 0.0, %v8535
    %v8537 = vpop.f32.mrf.mxu0
    %v8538 = vpop.f32.mrf.mxu0
    %v8539 = vadd.f32 0.0, %v8538
    %v8540 = vpop.f32.mrf.mxu0
    %8541 = vmatprep.mubr.bf16.mxu0 %v8186
    %8542 = vmatmul.mubr.bf16.gmra.mxu0 %v8185
    %v8543 = vpop.f32.mrf.mxu0
    %v8544 = vadd.f32 0.0, %v8543
    %v8545 = vpop.f32.mrf.mxu0
    %v8546 = vpop.f32.mrf.mxu0
    %v8547 = vadd.f32 0.0, %v8546
    %v8548 = vpop.f32.mrf.mxu0
    %8549 = vmatprep.mubr.bf16.mxu0 %v8190
    %8550 = vmatmul.mubr.bf16.gmra.mxu0 %v8189
    %v8551 = vpop.f32.mrf.mxu0
    %v8552 = vadd.f32 0.0, %v8551
    %v8553 = vpop.f32.mrf.mxu0
    %v8554 = vpop.f32.mrf.mxu0
    %v8555 = vadd.f32 0.0, %v8554
    %v8556 = vpop.f32.mrf.mxu0
    %8557 = vmatprep.mubr.bf16.mxu0 %v8194
    %8558 = vmatmul.mubr.bf16.gmra.mxu0 %v8193
    %v8559 = vpop.f32.mrf.mxu0
    %v8560 = vadd.f32 0.0, %v8559
    %v8561 = vpop.f32.mrf.mxu0
    %v8562 = vpop.f32.mrf.mxu0
    %v8563 = vadd.f32 0.0, %v8562
    %v8564 = vpop.f32.mrf.mxu0
    %8565 = vmatprep.mubr.bf16.mxu0 %v8198
    %8566 = vmatmul.mubr.bf16.gmra.mxu0 %v8197
    %v8567 = vpop.f32.mrf.mxu0
    %v8568 = vadd.f32 0.0, %v8567
    %v8569 = vpop.f32.mrf.mxu0
    %v8570 = vpop.f32.mrf.mxu0
    %v8571 = vadd.f32 0.0, %v8570
    %v8572 = vpop.f32.mrf.mxu0
    %8573 = vmatprep.mubr.bf16.mxu0 %v8202
    %8574 = vmatmul.mubr.bf16.gmra.mxu0 %v8201
    %v8575 = vpop.f32.mrf.mxu0
    %v8576 = vadd.f32 0.0, %v8575
    %v8577 = vpop.f32.mrf.mxu0
    %v8578 = vpop.f32.mrf.mxu0
    %v8579 = vadd.f32 0.0, %v8578
    %v8580 = vpop.f32.mrf.mxu0
    %8581 = vmatprep.mubr.bf16.mxu0 %v8206
    %8582 = vmatmul.mubr.bf16.gmra.mxu0 %v8205
    %v8583 = vpop.f32.mrf.mxu0
    %v8584 = vadd.f32 0.0, %v8583
    %v8585 = vpop.f32.mrf.mxu0
    %v8586 = vpop.f32.mrf.mxu0
    %v8587 = vadd.f32 0.0, %v8586
    %v8588 = vpop.f32.mrf.mxu0
    %8589 = vmatprep.mubr.bf16.mxu0 %v8210
    %8590 = vmatmul.mubr.bf16.gmra.mxu0 %v8209
    %v8591 = vpop.f32.mrf.mxu0
    %v8592 = vadd.f32 0.0, %v8591
    %v8593 = vpop.f32.mrf.mxu0
    %v8594 = vpop.f32.mrf.mxu0
    %v8595 = vadd.f32 0.0, %v8594
    %v8596 = vpop.f32.mrf.mxu0
    %8597 = vmatprep.mubr.bf16.mxu0 %v8214
    %8598 = vmatmul.mubr.bf16.gmra.mxu0 %v8213
    %v8599 = vpop.f32.mrf.mxu0
    %v8600 = vadd.f32 0.0, %v8599
    %v8601 = vpop.f32.mrf.mxu0
    %v8602 = vpop.f32.mrf.mxu0
    %v8603 = vadd.f32 0.0, %v8602
    %v8604 = vpop.f32.mrf.mxu0
    %8605 = vmatprep.mubr.bf16.mxu0 %v8218
    %8606 = vmatmul.mubr.bf16.gmra.mxu0 %v8217
    %v8607 = vpop.f32.mrf.mxu0
    %v8608 = vadd.f32 0.0, %v8607
    %v8609 = vpop.f32.mrf.mxu0
    %v8610 = vpop.f32.mrf.mxu0
    %v8611 = vadd.f32 0.0, %v8610
    %v8612 = vpop.f32.mrf.mxu0
    %8613 = vmatprep.mubr.bf16.mxu0 %v8222
    %8614 = vmatmul.mubr.bf16.gmra.mxu0 %v8221
    %v8615 = vpop.f32.mrf.mxu0
    %v8616 = vadd.f32 0.0, %v8615
    %v8617 = vpop.f32.mrf.mxu0
    %v8618 = vpop.f32.mrf.mxu0
    %v8619 = vadd.f32 0.0, %v8618
    %v8620 = vpop.f32.mrf.mxu0
    %8621 = vmatprep.mubr.bf16.mxu0 %v8226
    %8622 = vmatmul.mubr.bf16.gmra.mxu0 %v8225
    %v8623 = vpop.f32.mrf.mxu0
    %v8624 = vadd.f32 0.0, %v8623
    %v8625 = vpop.f32.mrf.mxu0
    %v8626 = vpop.f32.mrf.mxu0
    %v8627 = vadd.f32 0.0, %v8626
    %v8628 = vpop.f32.mrf.mxu0
    %8629 = vmatprep.mubr.bf16.mxu0 %v8230
    %8630 = vmatmul.mubr.bf16.gmra.mxu0 %v8229
    %v8631 = vpop.f32.mrf.mxu0
    %v8632 = vadd.f32 0.0, %v8631
    %v8633 = vpop.f32.mrf.mxu0
    %v8634 = vpop.f32.mrf.mxu0
    %v8635 = vadd.f32 0.0, %v8634
    %v8636 = vpop.f32.mrf.mxu0
    %8637 = vmatprep.mubr.bf16.mxu0 %v8234
    %8638 = vmatmul.mubr.bf16.gmra.mxu0 %v8233
    %v8639 = vpop.f32.mrf.mxu0
    %v8640 = vadd.f32 0.0, %v8639
    %v8641 = vpop.f32.mrf.mxu0
    %v8642 = vpop.f32.mrf.mxu0
    %v8643 = vadd.f32 0.0, %v8642
    %v8644 = vpop.f32.mrf.mxu0
    %8645 = vmatprep.mubr.bf16.mxu0 %v8238
    %8646 = vmatmul.mubr.bf16.gmra.mxu0 %v8237
    %v8647 = vpop.f32.mrf.mxu0
    %v8648 = vadd.f32 0.0, %v8647
    %v8649 = vpop.f32.mrf.mxu0
    %v8650 = vpop.f32.mrf.mxu0
    %v8651 = vadd.f32 0.0, %v8650
    %v8652 = vpop.f32.mrf.mxu0
    %8653 = vmatprep.mubr.bf16.mxu0 %v8242
    %8654 = vmatmul.mubr.bf16.gmra.mxu0 %v8241
    %v8655 = vpop.f32.mrf.mxu0
    %v8656 = vadd.f32 0.0, %v8655
    %v8657 = vpop.f32.mrf.mxu0
    %v8658 = vpop.f32.mrf.mxu0
    %v8659 = vadd.f32 0.0, %v8658
    %v8660 = vpop.f32.mrf.mxu0
    %8661 = vdwg.mxu0
    %8662 = vmatprep.subr.bf16.mxu0 0
    %8663 = vmatpush1.bf16.msra.mxu0 %v8460
    %8664 = vmatprep.subr.bf16.mxu0 0
    %8665 = vmatpush1.bf16.msra.mxu0 %v8459
    %8666 = vmatprep.subr.bf16.mxu0 0
    %8667 = vmatpush1.bf16.msra.mxu0 %v8458
    %8668 = vmatprep.subr.bf16.mxu0 0
    %8669 = vmatpush1.bf16.msra.mxu0 %v8457
    %8670 = vmatprep.subr.bf16.mxu0 0
    %8671 = vmatpush1.bf16.msra.mxu0 %v8456
    %8672 = vmatprep.subr.bf16.mxu0 0
    %8673 = vmatpush1.bf16.msra.mxu0 %v8455
    %8674 = vmatprep.subr.bf16.mxu0 0
    %8675 = vmatpush1.bf16.msra.mxu0 %v8454
    %8676 = vmatprep.subr.bf16.mxu0 0
    %8677 = vmatpush1.bf16.msra.mxu0 %v8453
    %8678 = vmatprep.subr.bf16.mxu0 0
    %8679 = vmatpush2.bf16.msra.mxu0 %v8468
    %8680 = vmatprep.subr.bf16.mxu0 0
    %8681 = vmatpush2.bf16.msra.mxu0 %v8467
    %8682 = vmatprep.subr.bf16.mxu0 0
    %8683 = vmatpush2.bf16.msra.mxu0 %v8466
    %8684 = vmatprep.subr.bf16.mxu0 0
    %8685 = vmatpush2.bf16.msra.mxu0 %v8465
    %8686 = vmatprep.subr.bf16.mxu0 0
    %8687 = vmatpush2.bf16.msra.mxu0 %v8464
    %8688 = vmatprep.subr.bf16.mxu0 0
    %8689 = vmatpush2.bf16.msra.mxu0 %v8463
    %8690 = vmatprep.subr.bf16.mxu0 0
    %8691 = vmatpush2.bf16.msra.mxu0 %v8462
    %8692 = vmatprep.subr.bf16.mxu0 0
    %8693 = vmatpush2.bf16.msra.mxu0 %v8461
    %8694 = vmatprep.mubr.bf16.mxu0 %v8184
    %8695 = vmatmul.mubr.bf16.gmra.mxu0 %v8183
    %v8696 = vpop.f32.mrf.mxu0
    %v8697 = vadd.f32 %v8536, %v8696
    %v8698 = vpop.f32.mrf.mxu0
    %v8699 = vpop.f32.mrf.mxu0
    %v8700 = vadd.f32 %v8539, %v8699
    %v8701 = vpop.f32.mrf.mxu0
    %8702 = vmatprep.mubr.bf16.mxu0 %v8188
    %8703 = vmatmul.mubr.bf16.gmra.mxu0 %v8187
    %v8704 = vpop.f32.mrf.mxu0
    %v8705 = vadd.f32 %v8544, %v8704
    %v8706 = vpop.f32.mrf.mxu0
    %v8707 = vpop.f32.mrf.mxu0
    %v8708 = vadd.f32 %v8547, %v8707
    %v8709 = vpop.f32.mrf.mxu0
    %8710 = vmatprep.mubr.bf16.mxu0 %v8192
    %8711 = vmatmul.mubr.bf16.gmra.mxu0 %v8191
    %v8712 = vpop.f32.mrf.mxu0
    %v8713 = vadd.f32 %v8552, %v8712
    %v8714 = vpop.f32.mrf.mxu0
    %v8715 = vpop.f32.mrf.mxu0
    %v8716 = vadd.f32 %v8555, %v8715
    %v8717 = vpop.f32.mrf.mxu0
    %8718 = vmatprep.mubr.bf16.mxu0 %v8196
    %8719 = vmatmul.mubr.bf16.gmra.mxu0 %v8195
    %v8720 = vpop.f32.mrf.mxu0
    %v8721 = vadd.f32 %v8560, %v8720
    %v8722 = vpop.f32.mrf.mxu0
    %v8723 = vpop.f32.mrf.mxu0
    %v8724 = vadd.f32 %v8563, %v8723
    %v8725 = vpop.f32.mrf.mxu0
    %8726 = vmatprep.mubr.bf16.mxu0 %v8200
    %8727 = vmatmul.mubr.bf16.gmra.mxu0 %v8199
    %v8728 = vpop.f32.mrf.mxu0
    %v8729 = vadd.f32 %v8568, %v8728
    %v8730 = vpop.f32.mrf.mxu0
    %v8731 = vpop.f32.mrf.mxu0
    %v8732 = vadd.f32 %v8571, %v8731
    %v8733 = vpop.f32.mrf.mxu0
    %8734 = vmatprep.mubr.bf16.mxu0 %v8204
    %8735 = vmatmul.mubr.bf16.gmra.mxu0 %v8203
    %v8736 = vpop.f32.mrf.mxu0
    %v8737 = vadd.f32 %v8576, %v8736
    %v8738 = vpop.f32.mrf.mxu0
    %v8739 = vpop.f32.mrf.mxu0
    %v8740 = vadd.f32 %v8579, %v8739
    %v8741 = vpop.f32.mrf.mxu0
    %8742 = vmatprep.mubr.bf16.mxu0 %v8208
    %8743 = vmatmul.mubr.bf16.gmra.mxu0 %v8207
    %v8744 = vpop.f32.mrf.mxu0
    %v8745 = vadd.f32 %v8584, %v8744
    %v8746 = vpop.f32.mrf.mxu0
    %v8747 = vpop.f32.mrf.mxu0
    %v8748 = vadd.f32 %v8587, %v8747
    %v8749 = vpop.f32.mrf.mxu0
    %8750 = vmatprep.mubr.bf16.mxu0 %v8212
    %8751 = vmatmul.mubr.bf16.gmra.mxu0 %v8211
    %v8752 = vpop.f32.mrf.mxu0
    %v8753 = vadd.f32 %v8592, %v8752
    %v8754 = vpop.f32.mrf.mxu0
    %v8755 = vpop.f32.mrf.mxu0
    %v8756 = vadd.f32 %v8595, %v8755
    %v8757 = vpop.f32.mrf.mxu0
    %8758 = vmatprep.mubr.bf16.mxu0 %v8216
    %8759 = vmatmul.mubr.bf16.gmra.mxu0 %v8215
    %v8760 = vpop.f32.mrf.mxu0
    %v8761 = vadd.f32 %v8600, %v8760
    %v8762 = vpop.f32.mrf.mxu0
    %v8763 = vpop.f32.mrf.mxu0
    %v8764 = vadd.f32 %v8603, %v8763
    %v8765 = vpop.f32.mrf.mxu0
    %8766 = vmatprep.mubr.bf16.mxu0 %v8220
    %8767 = vmatmul.mubr.bf16.gmra.mxu0 %v8219
    %v8768 = vpop.f32.mrf.mxu0
    %v8769 = vadd.f32 %v8608, %v8768
    %v8770 = vpop.f32.mrf.mxu0
    %v8771 = vpop.f32.mrf.mxu0
    %v8772 = vadd.f32 %v8611, %v8771
    %v8773 = vpop.f32.mrf.mxu0
    %8774 = vmatprep.mubr.bf16.mxu0 %v8224
    %8775 = vmatmul.mubr.bf16.gmra.mxu0 %v8223
    %v8776 = vpop.f32.mrf.mxu0
    %v8777 = vadd.f32 %v8616, %v8776
    %v8778 = vpop.f32.mrf.mxu0
    %v8779 = vpop.f32.mrf.mxu0
    %v8780 = vadd.f32 %v8619, %v8779
    %v8781 = vpop.f32.mrf.mxu0
    %8782 = vmatprep.mubr.bf16.mxu0 %v8228
    %8783 = vmatmul.mubr.bf16.gmra.mxu0 %v8227
    %v8784 = vpop.f32.mrf.mxu0
    %v8785 = vadd.f32 %v8624, %v8784
    %v8786 = vpop.f32.mrf.mxu0
    %v8787 = vpop.f32.mrf.mxu0
    %v8788 = vadd.f32 %v8627, %v8787
    %v8789 = vpop.f32.mrf.mxu0
    %8790 = vmatprep.mubr.bf16.mxu0 %v8232
    %8791 = vmatmul.mubr.bf16.gmra.mxu0 %v8231
    %v8792 = vpop.f32.mrf.mxu0
    %v8793 = vadd.f32 %v8632, %v8792
    %v8794 = vpop.f32.mrf.mxu0
    %v8795 = vpop.f32.mrf.mxu0
    %v8796 = vadd.f32 %v8635, %v8795
    %v8797 = vpop.f32.mrf.mxu0
    %8798 = vmatprep.mubr.bf16.mxu0 %v8236
    %8799 = vmatmul.mubr.bf16.gmra.mxu0 %v8235
    %v8800 = vpop.f32.mrf.mxu0
    %v8801 = vadd.f32 %v8640, %v8800
    %v8802 = vpop.f32.mrf.mxu0
    %v8803 = vpop.f32.mrf.mxu0
    %v8804 = vadd.f32 %v8643, %v8803
    %v8805 = vpop.f32.mrf.mxu0
    %8806 = vmatprep.mubr.bf16.mxu0 %v8240
    %8807 = vmatmul.mubr.bf16.gmra.mxu0 %v8239
    %v8808 = vpop.f32.mrf.mxu0
    %v8809 = vadd.f32 %v8648, %v8808
    %v8810 = vpop.f32.mrf.mxu0
    %v8811 = vpop.f32.mrf.mxu0
    %v8812 = vadd.f32 %v8651, %v8811
    %v8813 = vpop.f32.mrf.mxu0
    %8814 = vmatprep.mubr.bf16.mxu0 %v8244
    %8815 = vmatmul.mubr.bf16.gmra.mxu0 %v8243
    %v8816 = vpop.f32.mrf.mxu0
    %v8817 = vadd.f32 %v8656, %v8816
    %v8818 = vpop.f32.mrf.mxu0
    %v8819 = vpop.f32.mrf.mxu0
    %v8820 = vadd.f32 %v8659, %v8819
    %v8821 = vpop.f32.mrf.mxu0
    %8822 = vdwg.mxu0
    %v8887 = vunpack.c.l.b16 %v7732
    %v8888 = vunpack.c.h.b16 %v7732
    %v8889 = vunpack.c.l.b16 %v7733
    %v8890 = vunpack.c.h.b16 %v7733
    %v8891 = vunpack.c.l.b16 %v7734
    %v8892 = vunpack.c.h.b16 %v7734
    %v8893 = vunpack.c.l.b16 %v7735
    %v8894 = vunpack.c.h.b16 %v7735
    %v8895 = vunpack.c.l.b16 %v7736
    %v8896 = vunpack.c.h.b16 %v7736
    %v8897 = vunpack.c.l.b16 %v7737
    %v8898 = vunpack.c.h.b16 %v7737
    %v8899 = vunpack.c.l.b16 %v7738
    %v8900 = vunpack.c.h.b16 %v7738
    %v8901 = vunpack.c.l.b16 %v7739
    %v8902 = vunpack.c.h.b16 %v7739
    %v8903 = vunpack.c.l.b16 %v7740
    %v8904 = vunpack.c.h.b16 %v7740
    %v8905 = vunpack.c.l.b16 %v7741
    %v8906 = vunpack.c.h.b16 %v7741
    %v8907 = vunpack.c.l.b16 %v7742
    %v8908 = vunpack.c.h.b16 %v7742
    %v8909 = vunpack.c.l.b16 %v7743
    %v8910 = vunpack.c.h.b16 %v7743
    %v8911 = vunpack.c.l.b16 %v7744
    %v8912 = vunpack.c.h.b16 %v7744
    %v8913 = vunpack.c.l.b16 %v7745
    %v8914 = vunpack.c.h.b16 %v7745
    %v8915 = vunpack.c.l.b16 %v7746
    %v8916 = vunpack.c.h.b16 %v7746
    %v8917 = vunpack.c.l.b16 %v7747
    %v8918 = vunpack.c.h.b16 %v7747
    %v8919 = vunpack.c.l.b16 %v7748
    %v8920 = vunpack.c.h.b16 %v7748
    %v8921 = vunpack.c.l.b16 %v7749
    %v8922 = vunpack.c.h.b16 %v7749
    %v8923 = vunpack.c.l.b16 %v7750
    %v8924 = vunpack.c.h.b16 %v7750
    %v8925 = vunpack.c.l.b16 %v7751
    %v8926 = vunpack.c.h.b16 %v7751
    %v8927 = vunpack.c.l.b16 %v7752
    %v8928 = vunpack.c.h.b16 %v7752
    %v8929 = vunpack.c.l.b16 %v7753
    %v8930 = vunpack.c.h.b16 %v7753
    %v8931 = vunpack.c.l.b16 %v7754
    %v8932 = vunpack.c.h.b16 %v7754
    %v8933 = vunpack.c.l.b16 %v7755
    %v8934 = vunpack.c.h.b16 %v7755
    %v8935 = vunpack.c.l.b16 %v7756
    %v8936 = vunpack.c.h.b16 %v7756
    %v8937 = vunpack.c.l.b16 %v7757
    %v8938 = vunpack.c.h.b16 %v7757
    %v8939 = vunpack.c.l.b16 %v7758
    %v8940 = vunpack.c.h.b16 %v7758
    %v8941 = vunpack.c.l.b16 %v7759
    %v8942 = vunpack.c.h.b16 %v7759
    %v8943 = vunpack.c.l.b16 %v7760
    %v8944 = vunpack.c.h.b16 %v7760
    %v8945 = vunpack.c.l.b16 %v7761
    %v8946 = vunpack.c.h.b16 %v7761
    %v8947 = vunpack.c.l.b16 %v7762
    %v8948 = vunpack.c.h.b16 %v7762
    %v8949 = vunpack.c.l.b16 %v7763
    %v8950 = vunpack.c.h.b16 %v7763
    %v8951 = vunpack.c.l.b16 %v7764
    %v8952 = vunpack.c.h.b16 %v7764
    %v8953 = vunpack.c.l.b16 %v7765
    %v8954 = vunpack.c.h.b16 %v7765
    %v8955 = vunpack.c.l.b16 %v7766
    %v8956 = vunpack.c.h.b16 %v7766
    %v8957 = vunpack.c.l.b16 %v7767
    %v8958 = vunpack.c.h.b16 %v7767
    %v8959 = vunpack.c.l.b16 %v7768
    %v8960 = vunpack.c.h.b16 %v7768
    %v8961 = vunpack.c.l.b16 %v7769
    %v8962 = vunpack.c.h.b16 %v7769
    %v8963 = vunpack.c.l.b16 %v7770
    %v8964 = vunpack.c.h.b16 %v7770
    %v8965 = vunpack.c.l.b16 %v7771
    %v8966 = vunpack.c.h.b16 %v7771
    %v8967 = vunpack.c.l.b16 %v7772
    %v8968 = vunpack.c.h.b16 %v7772
    %v8969 = vunpack.c.l.b16 %v7773
    %v8970 = vunpack.c.h.b16 %v7773
    %v8971 = vunpack.c.l.b16 %v7774
    %v8972 = vunpack.c.h.b16 %v7774
    %v8973 = vunpack.c.l.b16 %v7775
    %v8974 = vunpack.c.h.b16 %v7775
    %v8975 = vunpack.c.l.b16 %v7776
    %v8976 = vunpack.c.h.b16 %v7776
    %v8977 = vunpack.c.l.b16 %v7777
    %v8978 = vunpack.c.h.b16 %v7777
    %v8979 = vunpack.c.l.b16 %v7778
    %v8980 = vunpack.c.h.b16 %v7778
    %v8981 = vunpack.c.l.b16 %v7779
    %v8982 = vunpack.c.h.b16 %v7779
    %v8983 = vunpack.c.l.b16 %v7780
    %v8984 = vunpack.c.h.b16 %v7780
    %v8985 = vunpack.c.l.b16 %v7781
    %v8986 = vunpack.c.h.b16 %v7781
    %v8987 = vunpack.c.l.b16 %v7782
    %v8988 = vunpack.c.h.b16 %v7782
    %v8989 = vunpack.c.l.b16 %v7783
    %v8990 = vunpack.c.h.b16 %v7783
    %v8991 = vunpack.c.l.b16 %v7784
    %v8992 = vunpack.c.h.b16 %v7784
    %v8993 = vunpack.c.l.b16 %v7785
    %v8994 = vunpack.c.h.b16 %v7785
    %v8995 = vunpack.c.l.b16 %v7786
    %v8996 = vunpack.c.h.b16 %v7786
    %v8997 = vunpack.c.l.b16 %v7787
    %v8998 = vunpack.c.h.b16 %v7787
    %v8999 = vunpack.c.l.b16 %v7788
    %v9000 = vunpack.c.h.b16 %v7788
    %v9001 = vunpack.c.l.b16 %v7789
    %v9002 = vunpack.c.h.b16 %v7789
    %v9003 = vunpack.c.l.b16 %v7790
    %v9004 = vunpack.c.h.b16 %v7790
    %v9005 = vunpack.c.l.b16 %v7791
    %v9006 = vunpack.c.h.b16 %v7791
    %v9007 = vunpack.c.l.b16 %v7792
    %v9008 = vunpack.c.h.b16 %v7792
    %v9009 = vunpack.c.l.b16 %v7793
    %v9010 = vunpack.c.h.b16 %v7793
    %v9011 = vunpack.c.l.b16 %v7794
    %v9012 = vunpack.c.h.b16 %v7794
    %v9013 = vunpack.c.l.b16 %v7795
    %v9014 = vunpack.c.h.b16 %v7795
    %v9015 = vpack.c.b16 %v8891, %v8887
    %v9016 = vpack.c.b16 %v8892, %v8888
    %v9017 = vpack.c.b16 %v8893, %v8889
    %v9018 = vpack.c.b16 %v8894, %v8890
    %v9019 = vpack.c.b16 %v8899, %v8895
    %v9020 = vpack.c.b16 %v8900, %v8896
    %v9021 = vpack.c.b16 %v8901, %v8897
    %v9022 = vpack.c.b16 %v8902, %v8898
    %v9023 = vpack.c.b16 %v8907, %v8903
    %v9024 = vpack.c.b16 %v8908, %v8904
    %v9025 = vpack.c.b16 %v8909, %v8905
    %v9026 = vpack.c.b16 %v8910, %v8906
    %v9027 = vpack.c.b16 %v8915, %v8911
    %v9028 = vpack.c.b16 %v8916, %v8912
    %v9029 = vpack.c.b16 %v8917, %v8913
    %v9030 = vpack.c.b16 %v8918, %v8914
    %v9031 = vpack.c.b16 %v8923, %v8919
    %v9032 = vpack.c.b16 %v8924, %v8920
    %v9033 = vpack.c.b16 %v8925, %v8921
    %v9034 = vpack.c.b16 %v8926, %v8922
    %v9035 = vpack.c.b16 %v8931, %v8927
    %v9036 = vpack.c.b16 %v8932, %v8928
    %v9037 = vpack.c.b16 %v8933, %v8929
    %v9038 = vpack.c.b16 %v8934, %v8930
    %v9039 = vpack.c.b16 %v8939, %v8935
    %v9040 = vpack.c.b16 %v8940, %v8936
    %v9041 = vpack.c.b16 %v8941, %v8937
    %v9042 = vpack.c.b16 %v8942, %v8938
    %v9043 = vpack.c.b16 %v8947, %v8943
    %v9044 = vpack.c.b16 %v8948, %v8944
    %v9045 = vpack.c.b16 %v8949, %v8945
    %v9046 = vpack.c.b16 %v8950, %v8946
    %v9047 = vpack.c.b16 %v8955, %v8951
    %v9048 = vpack.c.b16 %v8956, %v8952
    %v9049 = vpack.c.b16 %v8957, %v8953
    %v9050 = vpack.c.b16 %v8958, %v8954
    %v9051 = vpack.c.b16 %v8963, %v8959
    %v9052 = vpack.c.b16 %v8964, %v8960
    %v9053 = vpack.c.b16 %v8965, %v8961
    %v9054 = vpack.c.b16 %v8966, %v8962
    %v9055 = vpack.c.b16 %v8971, %v8967
    %v9056 = vpack.c.b16 %v8972, %v8968
    %v9057 = vpack.c.b16 %v8973, %v8969
    %v9058 = vpack.c.b16 %v8974, %v8970
    %v9059 = vpack.c.b16 %v8979, %v8975
    %v9060 = vpack.c.b16 %v8980, %v8976
    %v9061 = vpack.c.b16 %v8981, %v8977
    %v9062 = vpack.c.b16 %v8982, %v8978
    %v9063 = vpack.c.b16 %v8987, %v8983
    %v9064 = vpack.c.b16 %v8988, %v8984
    %v9065 = vpack.c.b16 %v8989, %v8985
    %v9066 = vpack.c.b16 %v8990, %v8986
    %v9067 = vpack.c.b16 %v8995, %v8991
    %v9068 = vpack.c.b16 %v8996, %v8992
    %v9069 = vpack.c.b16 %v8997, %v8993
    %v9070 = vpack.c.b16 %v8998, %v8994
    %v9071 = vpack.c.b16 %v9003, %v8999
    %v9072 = vpack.c.b16 %v9004, %v9000
    %v9073 = vpack.c.b16 %v9005, %v9001
    %v9074 = vpack.c.b16 %v9006, %v9002
    %v9075 = vpack.c.b16 %v9011, %v9007
    %v9076 = vpack.c.b16 %v9012, %v9008
    %v9077 = vpack.c.b16 %v9013, %v9009
    %v9078 = vpack.c.b16 %v9014, %v9010
    %v9207 = vunpack.c.l.b16 %v7796
    %v9208 = vunpack.c.l.b16 %v7797
    %v9209 = vunpack.c.l.b16 %v7798
    %v9210 = vunpack.c.l.b16 %v7799
    %v9211 = vunpack.c.l.b16 %v7800
    %v9212 = vunpack.c.l.b16 %v7801
    %v9213 = vunpack.c.l.b16 %v7802
    %v9214 = vunpack.c.l.b16 %v7803
    %v9215 = vunpack.c.l.b16 %v7804
    %v9216 = vunpack.c.l.b16 %v7805
    %v9217 = vunpack.c.l.b16 %v7806
    %v9218 = vunpack.c.l.b16 %v7807
    %v9219 = vunpack.c.l.b16 %v7808
    %v9220 = vunpack.c.l.b16 %v7809
    %v9221 = vunpack.c.l.b16 %v7810
    %v9222 = vunpack.c.l.b16 %v7811
    %v9223 = vunpack.c.l.b16 %v7812
    %v9224 = vunpack.c.l.b16 %v7813
    %v9225 = vunpack.c.l.b16 %v7814
    %v9226 = vunpack.c.l.b16 %v7815
    %v9227 = vunpack.c.l.b16 %v7816
    %v9228 = vunpack.c.l.b16 %v7817
    %v9229 = vunpack.c.l.b16 %v7818
    %v9230 = vunpack.c.l.b16 %v7819
    %v9231 = vunpack.c.l.b16 %v7820
    %v9232 = vunpack.c.l.b16 %v7821
    %v9233 = vunpack.c.l.b16 %v7822
    %v9234 = vunpack.c.l.b16 %v7823
    %v9235 = vunpack.c.l.b16 %v7824
    %v9236 = vunpack.c.l.b16 %v7825
    %v9237 = vunpack.c.l.b16 %v7826
    %v9238 = vunpack.c.l.b16 %v7827
    %v9239 = vunpack.c.l.b16 %v7828
    %v9240 = vunpack.c.l.b16 %v7829
    %v9241 = vunpack.c.l.b16 %v7830
    %v9242 = vunpack.c.l.b16 %v7831
    %v9243 = vunpack.c.l.b16 %v7832
    %v9244 = vunpack.c.l.b16 %v7833
    %v9245 = vunpack.c.l.b16 %v7834
    %v9246 = vunpack.c.l.b16 %v7835
    %v9247 = vunpack.c.l.b16 %v7836
    %v9248 = vunpack.c.l.b16 %v7837
    %v9249 = vunpack.c.l.b16 %v7838
    %v9250 = vunpack.c.l.b16 %v7839
    %v9251 = vunpack.c.l.b16 %v7840
    %v9252 = vunpack.c.l.b16 %v7841
    %v9253 = vunpack.c.l.b16 %v7842
    %v9254 = vunpack.c.l.b16 %v7843
    %v9255 = vunpack.c.l.b16 %v7844
    %v9256 = vunpack.c.l.b16 %v7845
    %v9257 = vunpack.c.l.b16 %v7846
    %v9258 = vunpack.c.l.b16 %v7847
    %v9259 = vunpack.c.l.b16 %v7848
    %v9260 = vunpack.c.l.b16 %v7849
    %v9261 = vunpack.c.l.b16 %v7850
    %v9262 = vunpack.c.l.b16 %v7851
    %v9263 = vunpack.c.l.b16 %v7852
    %v9264 = vunpack.c.l.b16 %v7853
    %v9265 = vunpack.c.l.b16 %v7854
    %v9266 = vunpack.c.l.b16 %v7855
    %v9267 = vunpack.c.l.b16 %v7856
    %v9268 = vunpack.c.l.b16 %v7857
    %v9269 = vunpack.c.l.b16 %v7858
    %v9270 = vunpack.c.l.b16 %v7859
    %v9271 = vpack.c.b16 %v9208, %v9207
    %v9272 = vpack.c.b16 %v9210, %v9209
    %v9273 = vpack.c.b16 %v9212, %v9211
    %v9274 = vpack.c.b16 %v9214, %v9213
    %v9275 = vpack.c.b16 %v9216, %v9215
    %v9276 = vpack.c.b16 %v9218, %v9217
    %v9277 = vpack.c.b16 %v9220, %v9219
    %v9278 = vpack.c.b16 %v9222, %v9221
    %v9279 = vpack.c.b16 %v9224, %v9223
    %v9280 = vpack.c.b16 %v9226, %v9225
    %v9281 = vpack.c.b16 %v9228, %v9227
    %v9282 = vpack.c.b16 %v9230, %v9229
    %v9283 = vpack.c.b16 %v9232, %v9231
    %v9284 = vpack.c.b16 %v9234, %v9233
    %v9285 = vpack.c.b16 %v9236, %v9235
    %v9286 = vpack.c.b16 %v9238, %v9237
    %v9287 = vpack.c.b16 %v9240, %v9239
    %v9288 = vpack.c.b16 %v9242, %v9241
    %v9289 = vpack.c.b16 %v9244, %v9243
    %v9290 = vpack.c.b16 %v9246, %v9245
    %v9291 = vpack.c.b16 %v9248, %v9247
    %v9292 = vpack.c.b16 %v9250, %v9249
    %v9293 = vpack.c.b16 %v9252, %v9251
    %v9294 = vpack.c.b16 %v9254, %v9253
    %v9295 = vpack.c.b16 %v9256, %v9255
    %v9296 = vpack.c.b16 %v9258, %v9257
    %v9297 = vpack.c.b16 %v9260, %v9259
    %v9298 = vpack.c.b16 %v9262, %v9261
    %v9299 = vpack.c.b16 %v9264, %v9263
    %v9300 = vpack.c.b16 %v9266, %v9265
    %v9301 = vpack.c.b16 %v9268, %v9267
    %v9302 = vpack.c.b16 %v9270, %v9269
    %9335 = vmatprep.subr.bf16.mxu0 0
    %9336 = vmatpush1.bf16.msra.mxu0 %v9278
    %9337 = vmatprep.subr.bf16.mxu0 0
    %9338 = vmatpush1.bf16.msra.mxu0 %v9277
    %9339 = vmatprep.subr.bf16.mxu0 0
    %9340 = vmatpush1.bf16.msra.mxu0 %v9276
    %9341 = vmatprep.subr.bf16.mxu0 0
    %9342 = vmatpush1.bf16.msra.mxu0 %v9275
    %9343 = vmatprep.subr.bf16.mxu0 0
    %9344 = vmatpush1.bf16.msra.mxu0 %v9274
    %9345 = vmatprep.subr.bf16.mxu0 0
    %9346 = vmatpush1.bf16.msra.mxu0 %v9273
    %9347 = vmatprep.subr.bf16.mxu0 0
    %9348 = vmatpush1.bf16.msra.mxu0 %v9272
    %9349 = vmatprep.subr.bf16.mxu0 0
    %9350 = vmatpush1.bf16.msra.mxu0 %v9271
    %9351 = vmatprep.subr.bf16.mxu0 0
    %9352 = vmatpush2.bf16.msra.mxu0 %v9286
    %9353 = vmatprep.subr.bf16.mxu0 0
    %9354 = vmatpush2.bf16.msra.mxu0 %v9285
    %9355 = vmatprep.subr.bf16.mxu0 0
    %9356 = vmatpush2.bf16.msra.mxu0 %v9284
    %9357 = vmatprep.subr.bf16.mxu0 0
    %9358 = vmatpush2.bf16.msra.mxu0 %v9283
    %9359 = vmatprep.subr.bf16.mxu0 0
    %9360 = vmatpush2.bf16.msra.mxu0 %v9282
    %9361 = vmatprep.subr.bf16.mxu0 0
    %9362 = vmatpush2.bf16.msra.mxu0 %v9281
    %9363 = vmatprep.subr.bf16.mxu0 0
    %9364 = vmatpush2.bf16.msra.mxu0 %v9280
    %9365 = vmatprep.subr.bf16.mxu0 0
    %9366 = vmatpush2.bf16.msra.mxu0 %v9279
    %9367 = vmatprep.mubr.bf16.mxu0 %v9016
    %9368 = vmatmul.mubr.bf16.gmra.mxu0 %v9015
    %v9369 = vpop.f32.mrf.mxu0
    %v9370 = vadd.f32 %v8697, %v9369
    %v9371 = vpop.f32.mrf.mxu0
    %v9372 = vpop.f32.mrf.mxu0
    %v9373 = vadd.f32 %v8700, %v9372
    %v9374 = vpop.f32.mrf.mxu0
    %9375 = vmatprep.mubr.bf16.mxu0 %v9020
    %9376 = vmatmul.mubr.bf16.gmra.mxu0 %v9019
    %v9377 = vpop.f32.mrf.mxu0
    %v9378 = vadd.f32 %v8705, %v9377
    %v9379 = vpop.f32.mrf.mxu0
    %v9380 = vpop.f32.mrf.mxu0
    %v9381 = vadd.f32 %v8708, %v9380
    %v9382 = vpop.f32.mrf.mxu0
    %9383 = vmatprep.mubr.bf16.mxu0 %v9024
    %9384 = vmatmul.mubr.bf16.gmra.mxu0 %v9023
    %v9385 = vpop.f32.mrf.mxu0
    %v9386 = vadd.f32 %v8713, %v9385
    %v9387 = vpop.f32.mrf.mxu0
    %v9388 = vpop.f32.mrf.mxu0
    %v9389 = vadd.f32 %v8716, %v9388
    %v9390 = vpop.f32.mrf.mxu0
    %9391 = vmatprep.mubr.bf16.mxu0 %v9028
    %9392 = vmatmul.mubr.bf16.gmra.mxu0 %v9027
    %v9393 = vpop.f32.mrf.mxu0
    %v9394 = vadd.f32 %v8721, %v9393
    %v9395 = vpop.f32.mrf.mxu0
    %v9396 = vpop.f32.mrf.mxu0
    %v9397 = vadd.f32 %v8724, %v9396
    %v9398 = vpop.f32.mrf.mxu0
    %9399 = vmatprep.mubr.bf16.mxu0 %v9032
    %9400 = vmatmul.mubr.bf16.gmra.mxu0 %v9031
    %v9401 = vpop.f32.mrf.mxu0
    %v9402 = vadd.f32 %v8729, %v9401
    %v9403 = vpop.f32.mrf.mxu0
    %v9404 = vpop.f32.mrf.mxu0
    %v9405 = vadd.f32 %v8732, %v9404
    %v9406 = vpop.f32.mrf.mxu0
    %9407 = vmatprep.mubr.bf16.mxu0 %v9036
    %9408 = vmatmul.mubr.bf16.gmra.mxu0 %v9035
    %v9409 = vpop.f32.mrf.mxu0
    %v9410 = vadd.f32 %v8737, %v9409
    %v9411 = vpop.f32.mrf.mxu0
    %v9412 = vpop.f32.mrf.mxu0
    %v9413 = vadd.f32 %v8740, %v9412
    %v9414 = vpop.f32.mrf.mxu0
    %9415 = vmatprep.mubr.bf16.mxu0 %v9040
    %9416 = vmatmul.mubr.bf16.gmra.mxu0 %v9039
    %v9417 = vpop.f32.mrf.mxu0
    %v9418 = vadd.f32 %v8745, %v9417
    %v9419 = vpop.f32.mrf.mxu0
    %v9420 = vpop.f32.mrf.mxu0
    %v9421 = vadd.f32 %v8748, %v9420
    %v9422 = vpop.f32.mrf.mxu0
    %9423 = vmatprep.mubr.bf16.mxu0 %v9044
    %9424 = vmatmul.mubr.bf16.gmra.mxu0 %v9043
    %v9425 = vpop.f32.mrf.mxu0
    %v9426 = vadd.f32 %v8753, %v9425
    %v9427 = vpop.f32.mrf.mxu0
    %v9428 = vpop.f32.mrf.mxu0
    %v9429 = vadd.f32 %v8756, %v9428
    %v9430 = vpop.f32.mrf.mxu0
    %9431 = vmatprep.mubr.bf16.mxu0 %v9048
    %9432 = vmatmul.mubr.bf16.gmra.mxu0 %v9047
    %v9433 = vpop.f32.mrf.mxu0
    %v9434 = vadd.f32 %v8761, %v9433
    %v9435 = vpop.f32.mrf.mxu0
    %v9436 = vpop.f32.mrf.mxu0
    %v9437 = vadd.f32 %v8764, %v9436
    %v9438 = vpop.f32.mrf.mxu0
    %9439 = vmatprep.mubr.bf16.mxu0 %v9052
    %9440 = vmatmul.mubr.bf16.gmra.mxu0 %v9051
    %v9441 = vpop.f32.mrf.mxu0
    %v9442 = vadd.f32 %v8769, %v9441
    %v9443 = vpop.f32.mrf.mxu0
    %v9444 = vpop.f32.mrf.mxu0
    %v9445 = vadd.f32 %v8772, %v9444
    %v9446 = vpop.f32.mrf.mxu0
    %9447 = vmatprep.mubr.bf16.mxu0 %v9056
    %9448 = vmatmul.mubr.bf16.gmra.mxu0 %v9055
    %v9449 = vpop.f32.mrf.mxu0
    %v9450 = vadd.f32 %v8777, %v9449
    %v9451 = vpop.f32.mrf.mxu0
    %v9452 = vpop.f32.mrf.mxu0
    %v9453 = vadd.f32 %v8780, %v9452
    %v9454 = vpop.f32.mrf.mxu0
    %9455 = vmatprep.mubr.bf16.mxu0 %v9060
    %9456 = vmatmul.mubr.bf16.gmra.mxu0 %v9059
    %v9457 = vpop.f32.mrf.mxu0
    %v9458 = vadd.f32 %v8785, %v9457
    %v9459 = vpop.f32.mrf.mxu0
    %v9460 = vpop.f32.mrf.mxu0
    %v9461 = vadd.f32 %v8788, %v9460
    %v9462 = vpop.f32.mrf.mxu0
    %9463 = vmatprep.mubr.bf16.mxu0 %v9064
    %9464 = vmatmul.mubr.bf16.gmra.mxu0 %v9063
    %v9465 = vpop.f32.mrf.mxu0
    %v9466 = vadd.f32 %v8793, %v9465
    %v9467 = vpop.f32.mrf.mxu0
    %v9468 = vpop.f32.mrf.mxu0
    %v9469 = vadd.f32 %v8796, %v9468
    %v9470 = vpop.f32.mrf.mxu0
    %9471 = vmatprep.mubr.bf16.mxu0 %v9068
    %9472 = vmatmul.mubr.bf16.gmra.mxu0 %v9067
    %v9473 = vpop.f32.mrf.mxu0
    %v9474 = vadd.f32 %v8801, %v9473
    %v9475 = vpop.f32.mrf.mxu0
    %v9476 = vpop.f32.mrf.mxu0
    %v9477 = vadd.f32 %v8804, %v9476
    %v9478 = vpop.f32.mrf.mxu0
    %9479 = vmatprep.mubr.bf16.mxu0 %v9072
    %9480 = vmatmul.mubr.bf16.gmra.mxu0 %v9071
    %v9481 = vpop.f32.mrf.mxu0
    %v9482 = vadd.f32 %v8809, %v9481
    %v9483 = vpop.f32.mrf.mxu0
    %v9484 = vpop.f32.mrf.mxu0
    %v9485 = vadd.f32 %v8812, %v9484
    %v9486 = vpop.f32.mrf.mxu0
    %9487 = vmatprep.mubr.bf16.mxu0 %v9076
    %9488 = vmatmul.mubr.bf16.gmra.mxu0 %v9075
    %v9489 = vpop.f32.mrf.mxu0
    %v9490 = vadd.f32 %v8817, %v9489
    %v9491 = vpop.f32.mrf.mxu0
    %v9492 = vpop.f32.mrf.mxu0
    %v9493 = vadd.f32 %v8820, %v9492
    %v9494 = vpop.f32.mrf.mxu0
    %9495 = vdwg.mxu0
    %9496 = vmatprep.subr.bf16.mxu0 0
    %9497 = vmatpush1.bf16.msra.mxu0 %v9294
    %9498 = vmatprep.subr.bf16.mxu0 0
    %9499 = vmatpush1.bf16.msra.mxu0 %v9293
    %9500 = vmatprep.subr.bf16.mxu0 0
    %9501 = vmatpush1.bf16.msra.mxu0 %v9292
    %9502 = vmatprep.subr.bf16.mxu0 0
    %9503 = vmatpush1.bf16.msra.mxu0 %v9291
    %9504 = vmatprep.subr.bf16.mxu0 0
    %9505 = vmatpush1.bf16.msra.mxu0 %v9290
    %9506 = vmatprep.subr.bf16.mxu0 0
    %9507 = vmatpush1.bf16.msra.mxu0 %v9289
    %9508 = vmatprep.subr.bf16.mxu0 0
    %9509 = vmatpush1.bf16.msra.mxu0 %v9288
    %9510 = vmatprep.subr.bf16.mxu0 0
    %9511 = vmatpush1.bf16.msra.mxu0 %v9287
    %9512 = vmatprep.subr.bf16.mxu0 0
    %9513 = vmatpush2.bf16.msra.mxu0 %v9302
    %9514 = vmatprep.subr.bf16.mxu0 0
    %9515 = vmatpush2.bf16.msra.mxu0 %v9301
    %9516 = vmatprep.subr.bf16.mxu0 0
    %9517 = vmatpush2.bf16.msra.mxu0 %v9300
    %9518 = vmatprep.subr.bf16.mxu0 0
    %9519 = vmatpush2.bf16.msra.mxu0 %v9299
    %9520 = vmatprep.subr.bf16.mxu0 0
    %9521 = vmatpush2.bf16.msra.mxu0 %v9298
    %9522 = vmatprep.subr.bf16.mxu0 0
    %9523 = vmatpush2.bf16.msra.mxu0 %v9297
    %9524 = vmatprep.subr.bf16.mxu0 0
    %9525 = vmatpush2.bf16.msra.mxu0 %v9296
    %9526 = vmatprep.subr.bf16.mxu0 0
    %9527 = vmatpush2.bf16.msra.mxu0 %v9295
    %9528 = vmatprep.mubr.bf16.mxu0 %v9018
    %9529 = vmatmul.mubr.bf16.gmra.mxu0 %v9017
    %v9530 = vpop.f32.mrf.mxu0
    %v9531 = vadd.f32 %v9370, %v9530
    %v9532 = vpop.f32.mrf.mxu0
    %v9533 = vpop.f32.mrf.mxu0
    %v9534 = vadd.f32 %v9373, %v9533
    %v9535 = vpop.f32.mrf.mxu0
    %9536 = vmatprep.mubr.bf16.mxu0 %v9022
    %9537 = vmatmul.mubr.bf16.gmra.mxu0 %v9021
    %v9538 = vpop.f32.mrf.mxu0
    %v9539 = vadd.f32 %v9378, %v9538
    %v9540 = vpop.f32.mrf.mxu0
    %v9541 = vpop.f32.mrf.mxu0
    %v9542 = vadd.f32 %v9381, %v9541
    %v9543 = vpop.f32.mrf.mxu0
    %9544 = vmatprep.mubr.bf16.mxu0 %v9026
    %9545 = vmatmul.mubr.bf16.gmra.mxu0 %v9025
    %v9546 = vpop.f32.mrf.mxu0
    %v9547 = vadd.f32 %v9386, %v9546
    %v9548 = vpop.f32.mrf.mxu0
    %v9549 = vpop.f32.mrf.mxu0
    %v9550 = vadd.f32 %v9389, %v9549
    %v9551 = vpop.f32.mrf.mxu0
    %9552 = vmatprep.mubr.bf16.mxu0 %v9030
    %9553 = vmatmul.mubr.bf16.gmra.mxu0 %v9029
    %v9554 = vpop.f32.mrf.mxu0
    %v9555 = vadd.f32 %v9394, %v9554
    %v9556 = vpop.f32.mrf.mxu0
    %v9557 = vpop.f32.mrf.mxu0
    %v9558 = vadd.f32 %v9397, %v9557
    %v9559 = vpop.f32.mrf.mxu0
    %9560 = vmatprep.mubr.bf16.mxu0 %v9034
    %9561 = vmatmul.mubr.bf16.gmra.mxu0 %v9033
    %v9562 = vpop.f32.mrf.mxu0
    %v9563 = vadd.f32 %v9402, %v9562
    %v9564 = vpop.f32.mrf.mxu0
    %v9565 = vpop.f32.mrf.mxu0
    %v9566 = vadd.f32 %v9405, %v9565
    %v9567 = vpop.f32.mrf.mxu0
    %9568 = vmatprep.mubr.bf16.mxu0 %v9038
    %9569 = vmatmul.mubr.bf16.gmra.mxu0 %v9037
    %v9570 = vpop.f32.mrf.mxu0
    %v9571 = vadd.f32 %v9410, %v9570
    %v9572 = vpop.f32.mrf.mxu0
    %v9573 = vpop.f32.mrf.mxu0
    %v9574 = vadd.f32 %v9413, %v9573
    %v9575 = vpop.f32.mrf.mxu0
    %9576 = vmatprep.mubr.bf16.mxu0 %v9042
    %9577 = vmatmul.mubr.bf16.gmra.mxu0 %v9041
    %v9578 = vpop.f32.mrf.mxu0
    %v9579 = vadd.f32 %v9418, %v9578
    %v9580 = vpop.f32.mrf.mxu0
    %v9581 = vpop.f32.mrf.mxu0
    %v9582 = vadd.f32 %v9421, %v9581
    %v9583 = vpop.f32.mrf.mxu0
    %9584 = vmatprep.mubr.bf16.mxu0 %v9046
    %9585 = vmatmul.mubr.bf16.gmra.mxu0 %v9045
    %v9586 = vpop.f32.mrf.mxu0
    %v9587 = vadd.f32 %v9426, %v9586
    %v9588 = vpop.f32.mrf.mxu0
    %v9589 = vpop.f32.mrf.mxu0
    %v9590 = vadd.f32 %v9429, %v9589
    %v9591 = vpop.f32.mrf.mxu0
    %9592 = vmatprep.mubr.bf16.mxu0 %v9050
    %9593 = vmatmul.mubr.bf16.gmra.mxu0 %v9049
    %v9594 = vpop.f32.mrf.mxu0
    %v9595 = vadd.f32 %v9434, %v9594
    %v9596 = vpop.f32.mrf.mxu0
    %v9597 = vpop.f32.mrf.mxu0
    %v9598 = vadd.f32 %v9437, %v9597
    %v9599 = vpop.f32.mrf.mxu0
    %9600 = vmatprep.mubr.bf16.mxu0 %v9054
    %9601 = vmatmul.mubr.bf16.gmra.mxu0 %v9053
    %v9602 = vpop.f32.mrf.mxu0
    %v9603 = vadd.f32 %v9442, %v9602
    %v9604 = vpop.f32.mrf.mxu0
    %v9605 = vpop.f32.mrf.mxu0
    %v9606 = vadd.f32 %v9445, %v9605
    %v9607 = vpop.f32.mrf.mxu0
    %9608 = vmatprep.mubr.bf16.mxu0 %v9058
    %9609 = vmatmul.mubr.bf16.gmra.mxu0 %v9057
    %v9610 = vpop.f32.mrf.mxu0
    %v9611 = vadd.f32 %v9450, %v9610
    %v9612 = vpop.f32.mrf.mxu0
    %v9613 = vpop.f32.mrf.mxu0
    %v9614 = vadd.f32 %v9453, %v9613
    %v9615 = vpop.f32.mrf.mxu0
    %9616 = vmatprep.mubr.bf16.mxu0 %v9062
    %9617 = vmatmul.mubr.bf16.gmra.mxu0 %v9061
    %v9618 = vpop.f32.mrf.mxu0
    %v9619 = vadd.f32 %v9458, %v9618
    %v9620 = vpop.f32.mrf.mxu0
    %v9621 = vpop.f32.mrf.mxu0
    %v9622 = vadd.f32 %v9461, %v9621
    %v9623 = vpop.f32.mrf.mxu0
    %9624 = vmatprep.mubr.bf16.mxu0 %v9066
    %9625 = vmatmul.mubr.bf16.gmra.mxu0 %v9065
    %v9626 = vpop.f32.mrf.mxu0
    %v9627 = vadd.f32 %v9466, %v9626
    %v9628 = vpop.f32.mrf.mxu0
    %v9629 = vpop.f32.mrf.mxu0
    %v9630 = vadd.f32 %v9469, %v9629
    %v9631 = vpop.f32.mrf.mxu0
    %9632 = vmatprep.mubr.bf16.mxu0 %v9070
    %9633 = vmatmul.mubr.bf16.gmra.mxu0 %v9069
    %v9634 = vpop.f32.mrf.mxu0
    %v9635 = vadd.f32 %v9474, %v9634
    %v9636 = vpop.f32.mrf.mxu0
    %v9637 = vpop.f32.mrf.mxu0
    %v9638 = vadd.f32 %v9477, %v9637
    %v9639 = vpop.f32.mrf.mxu0
    %9640 = vmatprep.mubr.bf16.mxu0 %v9074
    %9641 = vmatmul.mubr.bf16.gmra.mxu0 %v9073
    %v9642 = vpop.f32.mrf.mxu0
    %v9643 = vadd.f32 %v9482, %v9642
    %v9644 = vpop.f32.mrf.mxu0
    %v9645 = vpop.f32.mrf.mxu0
    %v9646 = vadd.f32 %v9485, %v9645
    %v9647 = vpop.f32.mrf.mxu0
    %9648 = vmatprep.mubr.bf16.mxu0 %v9078
    %9649 = vmatmul.mubr.bf16.gmra.mxu0 %v9077
    %v9650 = vpop.f32.mrf.mxu0
    %v9651 = vadd.f32 %v9490, %v9650
    %v9652 = vpop.f32.mrf.mxu0
    %v9653 = vpop.f32.mrf.mxu0
    %v9654 = vadd.f32 %v9493, %v9653
    %v9655 = vpop.f32.mrf.mxu0
    %9656 = vdwg.mxu0
    %v9657 = vadd.f32 %v9531, %v7665
    %v9658 = vadd.f32 %v9534, %v7665
    %v9659 = vadd.f32 %v9539, %v7665
    %v9660 = vadd.f32 %v9542, %v7665
    %v9661 = vadd.f32 %v9547, %v7665
    %v9662 = vadd.f32 %v9550, %v7665
    %v9663 = vadd.f32 %v9555, %v7665
    %v9664 = vadd.f32 %v9558, %v7665
    %v9665 = vadd.f32 %v9563, %v7665
    %v9666 = vadd.f32 %v9566, %v7665
    %v9667 = vadd.f32 %v9571, %v7665
    %v9668 = vadd.f32 %v9574, %v7665
    %v9669 = vadd.f32 %v9579, %v7665
    %v9670 = vadd.f32 %v9582, %v7665
    %v9671 = vadd.f32 %v9587, %v7665
    %v9672 = vadd.f32 %v9590, %v7665
    %v9673 = vadd.f32 %v9595, %v7665
    %v9674 = vadd.f32 %v9598, %v7665
    %v9675 = vadd.f32 %v9603, %v7665
    %v9676 = vadd.f32 %v9606, %v7665
    %v9677 = vadd.f32 %v9611, %v7665
    %v9678 = vadd.f32 %v9614, %v7665
    %v9679 = vadd.f32 %v9619, %v7665
    %v9680 = vadd.f32 %v9622, %v7665
    %v9681 = vadd.f32 %v9627, %v7665
    %v9682 = vadd.f32 %v9630, %v7665
    %v9683 = vadd.f32 %v9635, %v7665
    %v9684 = vadd.f32 %v9638, %v7665
    %v9685 = vadd.f32 %v9643, %v7665
    %v9686 = vadd.f32 %v9646, %v7665
    %v9687 = vadd.f32 %v9651, %v7665
    %v9688 = vadd.f32 %v9654, %v7665
    %s9689 = scalar_lea.vmem %s11, 256
    %9690 = vst.msk [vmem:[%s9689] sm:$0xff] %vm7699, %v9657
    %9691 = vst.msk [vmem:[%s9689 + $0x8] sm:$0xff] %vm7699, %v9658
    %9692 = vst.msk [vmem:[%s9689 + $0x10] sm:$0xff] %vm7699, %v9659
    %9693 = vst.msk [vmem:[%s9689 + $0x18] sm:$0xff] %vm7699, %v9660
    %9694 = vst.msk [vmem:[%s9689 + $0x20] sm:$0xff] %vm7699, %v9661
    %9695 = vst.msk [vmem:[%s9689 + $0x28] sm:$0xff] %vm7699, %v9662
    %9696 = vst.msk [vmem:[%s9689 + $0x30] sm:$0xff] %vm7699, %v9663
    %9697 = vst.msk [vmem:[%s9689 + $0x38] sm:$0xff] %vm7699, %v9664
    %9698 = vst.msk [vmem:[%s9689 + $0x40] sm:$0xff] %vm7699, %v9665
    %9699 = vst.msk [vmem:[%s9689 + $0x48] sm:$0xff] %vm7699, %v9666
    %9700 = vst.msk [vmem:[%s9689 + $0x50] sm:$0xff] %vm7699, %v9667
    %9701 = vst.msk [vmem:[%s9689 + $0x58] sm:$0xff] %vm7699, %v9668
    %9702 = vst.msk [vmem:[%s9689 + $0x60] sm:$0xff] %vm7699, %v9669
    %9703 = vst.msk [vmem:[%s9689 + $0x68] sm:$0xff] %vm7699, %v9670
    %9704 = vst.msk [vmem:[%s9689 + $0x70] sm:$0xff] %vm7699, %v9671
    %9705 = vst.msk [vmem:[%s9689 + $0x78] sm:$0xff] %vm7699, %v9672
    %9706 = vst.msk [vmem:[%s9689 + $0x80] sm:$0xff] %vm7699, %v9673
    %9707 = vst.msk [vmem:[%s9689 + $0x88] sm:$0xff] %vm7699, %v9674
    %9708 = vst.msk [vmem:[%s9689 + $0x90] sm:$0xff] %vm7699, %v9675
    %9709 = vst.msk [vmem:[%s9689 + $0x98] sm:$0xff] %vm7699, %v9676
    %9710 = vst.msk [vmem:[%s9689 + $0xa0] sm:$0xff] %vm7699, %v9677
    %9711 = vst.msk [vmem:[%s9689 + $0xa8] sm:$0xff] %vm7699, %v9678
    %9712 = vst.msk [vmem:[%s9689 + $0xb0] sm:$0xff] %vm7699, %v9679
    %9713 = vst.msk [vmem:[%s9689 + $0xb8] sm:$0xff] %vm7699, %v9680
    %9714 = vst.msk [vmem:[%s9689 + $0xc0] sm:$0xff] %vm7699, %v9681
    %9715 = vst.msk [vmem:[%s9689 + $0xc8] sm:$0xff] %vm7699, %v9682
    %9716 = vst.msk [vmem:[%s9689 + $0xd0] sm:$0xff] %vm7699, %v9683
    %9717 = vst.msk [vmem:[%s9689 + $0xd8] sm:$0xff] %vm7699, %v9684
    %9718 = vst.msk [vmem:[%s9689 + $0xe0] sm:$0xff] %vm7699, %v9685
    %9719 = vst.msk [vmem:[%s9689 + $0xe8] sm:$0xff] %vm7699, %v9686
    %9720 = vst.msk [vmem:[%s9689 + $0xf0] sm:$0xff] %vm7699, %v9687
    %9721 = vst.msk [vmem:[%s9689 + $0xf8] sm:$0xff] %vm7699, %v9688
    // Predicated region
    $region54: #{decoder_a_forward.1} parent=1 // pred_check
      _
    $region55: #{decoder_a_forward.1} parent=1 // pred_check_branch
      %9723 = sbr.rel (0) target = $region57
    $region56: #{decoder_a_forward.1} parent=1 // pred_region
      _
    $region57: #{decoder_a_forward.1} parent=1 // pred_fallthru
      _
    // Predicated region
    $region58: #{decoder_a_forward.1} parent=1 // pred_check
      _
    $region59: #{decoder_a_forward.1} parent=1 // pred_check_branch
      %9725 = sbr.rel (0) target = $region61
    $region60: #{decoder_a_forward.1} parent=1 // pred_region
      _
    $region61: #{decoder_a_forward.1} parent=1 // pred_fallthru
      _
    %9726 = vsyncpa [#allocation6], 1
    %9727 = vsyncpa [#allocation8], 1

</llo_original>
